<compile_context>
chip_gen: v7x
topology: tpu7x:2x2x1
jax: 0.10.0
libtpu: 0.0.40
codegen_flags: <defaults>
</compile_context>

<pallas_src>
import jax
import jax.numpy as jnp
from jax.experimental import pallas as pl
from jax.experimental.pallas import tpu as pltpu

EPS = 1e-3   # BatchNorm2d eps used by the module
LANE = 128   # TPU lane width


def _round_up(x, m):
    return (x + m - 1) // m * m


def _fold_bn_pad(w, gamma, beta, mean, var, cin_p, cout_p, dtype):
    """Fold inference BatchNorm into conv weights/bias, per-tap, lane-padded.

    w: (Cout, Cin, 3, 3) -> w_taps: (9, cin_p, cout_p) in `dtype`
                            bias:   (1, cout_p) f32
    Padding channels with zeros keeps the math identical (padded inputs
    contribute nothing, padded outputs are discarded by the wrapper).
    """
    cout, cin = w.shape[0], w.shape[1]
    scale = gamma / jnp.sqrt(var + EPS)                  # (Cout,)
    w_f = w * scale[:, None, None, None]                 # (Cout, Cin, 3, 3)
    b_f = beta - mean * scale                            # (Cout,)
    # (kh, kw, Cin, Cout): tap t = dy*3 + dx matches the kernel's tap loop.
    w_taps = jnp.transpose(w_f, (2, 3, 1, 0)).reshape(9, cin, cout)
    w_taps = jnp.pad(w_taps, ((0, 0), (0, cin_p - cin), (0, cout_p - cout)))
    b = jnp.pad(b_f, (0, cout_p - cout)).reshape(1, cout_p)
    return w_taps.astype(dtype), b.astype(jnp.float32)


def _make_kernel(H, W, TH, S, C1p, Cmp, C2p, add_residual, compute_dtype):
    """Fused cv1 -> cv2 (-> +x) kernel for one row strip of one image."""
    TH2 = TH + 2      # cv1 output rows per strip (1-row halo each side)
    TH4 = TH + 4      # padded input rows per strip (2-row halo each side)
    Wp = W + 2        # padded width

    def kernel(x_ref, w1_ref, b1_ref, w2_ref, b2_ref, o_ref,
               xpad_ref, y1pad_ref, acc1_ref, acc2_ref):
        s = pl.program_id(1)              # strip index within the image
        r0 = s * TH                       # first output row of this strip
        if TH % 8 == 0:
            r0 = pl.multiple_of(r0, 8)

        # ---------------- build zero-padded input strip in VMEM ----------------
        # (no host-side jnp.pad: interior copy + edge memsets on the scratch)
        xpad_ref[2:TH + 2, 1:W + 1, :] = x_ref[pl.ds(r0, TH), :, :]
        xpad_ref[:, 0:1, :] = jnp.zeros((TH4, 1, C1p), xpad_ref.dtype)
        xpad_ref[:, W + 1:W + 2, :] = jnp.zeros((TH4, 1, C1p), xpad_ref.dtype)

        @pl.when(s > 0)
        def _():  # top halo rows come from the previous strip's rows
            xpad_ref[0:2, 1:W + 1, :] = x_ref[pl.ds(r0 - 2, 2), :, :]

        @pl.when(s == 0)
        def _():  # image top edge -> zero padding rows
            xpad_ref[0:2, :, :] = jnp.zeros((2, Wp, C1p), xpad_ref.dtype)

        @pl.when(s < S - 1)
        def _():  # bottom halo rows come from the next strip's rows
            xpad_ref[TH + 2:TH + 4, 1:W + 1, :] = x_ref[pl.ds(r0 + TH, 2), :, :]

        @pl.when(s == S - 1)
        def _():  # image bottom edge -> zero padding rows
            xpad_ref[TH + 2:TH + 4, :, :] = jnp.zeros((2, Wp, C1p), xpad_ref.dtype)

        # ---------------- cv1: 3x3 conv as 9 tap matmuls (VMEM accumulator) ----
        for dy in range(3):
            for dx in range(3):
                t = dy * 3 + dx
                tap = xpad_ref[dy:dy + TH2, dx:dx + W, :]
                tap = tap.reshape(TH2 * W, C1p).astype(compute_dtype)
                contrib = jnp.dot(tap, w1_ref[t],
                                  preferred_element_type=jnp.float32)
                if t == 0:
                    acc1_ref[...] = contrib
                else:
                    acc1_ref[...] += contrib

        z1 = acc1_ref[...] + b1_ref[...]          # fused BN bias (f32)
        z1 = z1 * jax.nn.sigmoid(z1)              # SiLU, f32 (EUP)
        y1 = z1.astype(compute_dtype).reshape(TH2, W, Cmp)

        # cv1 result -> ring-zero-padded VMEM scratch == cv2's padded input.
        y1pad_ref[:, 1:W + 1, :] = y1
        y1pad_ref[:, 0:1, :] = jnp.zeros((TH2, 1, Cmp), y1pad_ref.dtype)
        y1pad_ref[:, W + 1:W + 2, :] = jnp.zeros((TH2, 1, Cmp), y1pad_ref.dtype)

        @pl.when(s == 0)
        def _():  # cv1 "row above the image" is zero padding for cv2
            y1pad_ref[0:1, :, :] = jnp.zeros((1, Wp, Cmp), y1pad_ref.dtype)

        @pl.when(s == S - 1)
        def _():  # cv1 "row below the image" is zero padding for cv2
            y1pad_ref[TH + 1:TH + 2, :, :] = jnp.zeros((1, Wp, Cmp), y1pad_ref.dtype)

        # ---------------- cv2: 3x3 conv over the strip's output rows -----------
        for dy in range(3):
            for dx in range(3):
                t = dy * 3 + dx
                tap = y1pad_ref[dy:dy + TH, dx:dx + W, :].reshape(TH * W, Cmp)
                contrib = jnp.dot(tap, w2_ref[t],
                                  preferred_element_type=jnp.float32)
                if t == 0:
                    acc2_ref[...] = contrib
                else:
                    acc2_ref[...] += contrib

        z2 = acc2_ref[...] + b2_ref[...]
        z2 = z2 * jax.nn.sigmoid(z2)

        if add_residual:
            # Residual from the x strip already resident in VMEM (f32 add).
            res = xpad_ref[2:TH + 2, 1:W + 1, :].reshape(TH * W, C1p)
            z2 = z2 + res.astype(jnp.float32)

        # Lane-dense store: last dim is C2p (multiple of 128).
        o_ref[...] = z2.reshape(TH, W, C2p).astype(o_ref.dtype)

    return kernel


def bottleneck_forward(x_nchw, params, shortcut=True, *,
                       io_dtype=jnp.bfloat16, compute_dtype=jnp.bfloat16,
                       strip_rows=None):
    """Pallas implementation of Bottleneck.forward. x_nchw: (N, C1, H, W)."""
    N, C1, H, W = x_nchw.shape
    Cm = params["w1"].shape[0]
    C2 = params["w2"].shape[0]
    add = bool(shortcut) and (C1 == C2)

    C1p = _round_up(C1, LANE)
    Cmp = _round_up(Cm, LANE)
    C2p = _round_up(C2, LANE)

    # Row-strip size: >1 grid step per image (pipelining depth, both v7x TCs)
    # with small per-strip scratch.
    if strip_rows is None:
        strip_rows = 8 if (H % 8 == 0 and H >= 16) else H
    TH = strip_rows
    assert H % TH == 0, "strip_rows must divide H"
    S = H // TH
    assert TH >= 2 or S == 1

    # NCHW -> NHWC (a real NHWC pipeline would skip this), bf16 I/O, channels
    # zero-padded to lane-dense multiples of 128 (no-op for real YOLO widths).
    # Spatial padding is done INSIDE the kernel, not on the host.
    x = jnp.transpose(x_nchw, (0, 2, 3, 1)).astype(io_dtype)
    if C1p != C1:
        x = jnp.pad(x, ((0, 0), (0, 0), (0, 0), (0, C1p - C1)))

    w1t, b1 = _fold_bn_pad(params["w1"], params["g1"], params["b1"],
                           params["m1"], params["v1"], C1p, Cmp, compute_dtype)
    w2t, b2 = _fold_bn_pad(params["w2"], params["g2"], params["b2"],
                           params["m2"], params["v2"], Cmp, C2p, compute_dtype)

    kernel = _make_kernel(H, W, TH, S, C1p, Cmp, C2p, add, compute_dtype)

    out = pl.pallas_call(
        kernel,
        out_shape=jax.ShapeDtypeStruct((N, H, W, C2p), io_dtype),
        grid_spec=pltpu.PrefetchScalarGridSpec(
            num_scalar_prefetch=0,
            grid=(N, S),
            in_specs=[
                # whole image stays resident while its strips are processed
                pl.BlockSpec((None, H, W, C1p), lambda n, s: (n, 0, 0, 0)),
                pl.BlockSpec((9, C1p, Cmp), lambda n, s: (0, 0, 0)),
                pl.BlockSpec((1, Cmp), lambda n, s: (0, 0)),
                pl.BlockSpec((9, Cmp, C2p), lambda n, s: (0, 0, 0)),
                pl.BlockSpec((1, C2p), lambda n, s: (0, 0)),
            ],
            out_specs=pl.BlockSpec((None, TH, W, C2p), lambda n, s: (n, s, 0, 0)),
            scratch_shapes=[
                pltpu.VMEM((TH + 4, W + 2, C1p), io_dtype),       # padded x strip
                pltpu.VMEM((TH + 2, W + 2, Cmp), compute_dtype),  # padded cv1 out
                pltpu.VMEM(((TH + 2) * W, Cmp), jnp.float32),     # cv1 accumulator
                pltpu.VMEM((TH * W, C2p), jnp.float32),           # cv2 accumulator
            ],
        ),
        compiler_params=pltpu.CompilerParams(
            dimension_semantics=("parallel", "parallel"),
            # Conservative for v7x's 64 MiB VMEM; raise toward 96 MiB on v6e.
            vmem_limit_bytes=48 * 1024 * 1024,
        ),
    )(x, w1t, b1, w2t, b2)

    out = out[..., :C2]                                   # drop lane padding
    return jnp.transpose(out, (0, 3, 1, 2)).astype(x_nchw.dtype)   # NHWC -> NCHW


# ------------------------- plain-JAX reference (for checking) -------------------------
def _ref_conv_bn_silu(x, w, gamma, beta, mean, var):
    y = jax.lax.conv_general_dilated(
        x, jnp.transpose(w, (2, 3, 1, 0)), window_strides=(1, 1), padding="SAME",
        dimension_numbers=("NHWC", "HWIO", "NHWC"))
    scale = gamma / jnp.sqrt(var + EPS)
    y = y * scale + (beta - mean * scale)
    return y * jax.nn.sigmoid(y)


def _ref_bottleneck(x_nchw, params, shortcut=True):
    c1 = x_nchw.shape[1]
    c2 = params["w2"].shape[0]
    x = jnp.transpose(x_nchw, (0, 2, 3, 1)).astype(jnp.float32)
    y = _ref_conv_bn_silu(x, params["w1"], params["g1"], params["b1"],
                          params["m1"], params["v1"])
    y = _ref_conv_bn_silu(y, params["w2"], params["g2"], params["b2"],
                          params["m2"], params["v2"])
    if shortcut and c1 == c2:
        y = y + x
    return jnp.transpose(y, (0, 3, 1, 2))


if __name__ == "__main__":
    # Small shapes consistent with the module: Bottleneck(c1=4, c2=4, e=0.5) -> c_ = 2
    N, C1, H, W = 2, 4, 16, 16
    C2 = 4
    C_ = int(C2 * 0.5)

    key = jax.random.PRNGKey(0)
    ks = jax.random.split(key, 11)

    params = {
        # cv1: Conv2d(C1 -> C_, k=3, no bias) + BN(C_)
        "w1": 0.2 * jax.random.normal(ks[0], (C_, C1, 3, 3), jnp.float32),
        "g1": jax.random.uniform(ks[1], (C_,), jnp.float32, 0.5, 1.5),
        "b1": 0.1 * jax.random.normal(ks[2], (C_,), jnp.float32),
        "m1": 0.1 * jax.random.normal(ks[3], (C_,), jnp.float32),
        "v1": jax.random.uniform(ks[4], (C_,), jnp.float32, 0.5, 1.5),
        # cv2: Conv2d(C_ -> C2, k=3, no bias) + BN(C2)
        "w2": 0.2 * jax.random.normal(ks[5], (C2, C_, 3, 3), jnp.float32),
        "g2": jax.random.uniform(ks[6], (C2,), jnp.float32, 0.5, 1.5),
        "b2": 0.1 * jax.random.normal(ks[7], (C2,), jnp.float32),
        "m2": 0.1 * jax.random.normal(ks[8], (C2,), jnp.float32),
        "v2": jax.random.uniform(ks[9], (C2,), jnp.float32, 0.5, 1.5),
    }

    x = jax.random.normal(ks[10], (N, C1, H, W), jnp.float32)

    ref = jax.block_until_ready(_ref_bottleneck(x, params, shortcut=True))

    # Exact-precision path (f32 I/O + f32 MXU operands), 2 row strips per image.
    out_f32 = jax.block_until_ready(
        bottleneck_forward(x, params, shortcut=True,
                           io_dtype=jnp.float32, compute_dtype=jnp.float32))
    assert out_f32.shape == (N, C2, H, W)
    assert jnp.allclose(out_f32, ref, atol=1e-4, rtol=1e-4), "f32 path mismatch"

    # Same f32 path, single whole-image strip (exercises the S == 1 edge path).
    out_f32_s1 = jax.block_until_ready(
        bottleneck_forward(x, params, shortcut=True, strip_rows=H,
                           io_dtype=jnp.float32, compute_dtype=jnp.float32))
    assert jnp.allclose(out_f32_s1, ref, atol=1e-4, rtol=1e-4), "single-strip mismatch"

    # Performance path (bf16 I/O, bf16 MXU operands, f32 accumulation).
    out_bf16 = jax.block_until_ready(
        bottleneck_forward(x, params, shortcut=True,
                           io_dtype=jnp.bfloat16, compute_dtype=jnp.bfloat16))
    assert out_bf16.shape == (N, C2, H, W)
    assert jnp.allclose(out_bf16, ref, atol=1e-1, rtol=5e-2), "bf16 path mismatch"

    # No-shortcut branch.
    ref_ns = jax.block_until_ready(_ref_bottleneck(x, params, shortcut=False))
    out_ns = jax.block_until_ready(
        bottleneck_forward(x, params, shortcut=False,
                           io_dtype=jnp.float32, compute_dtype=jnp.float32))
    assert jnp.allclose(out_ns, ref_ns, atol=1e-4, rtol=1e-4), "no-shortcut mismatch"

    print("KERNEL_OK")
</pallas_src>

<mosaic_0001>
module attributes {stable_mosaic.version = 11 : i64} {
  func.func @kernel(%arg0: i32, %arg1: i32, %arg2: memref<1x16x16x128xf32, #tpu.memory_space<vmem>>, %arg3: memref<9x128x128xf32, #tpu.memory_space<vmem>>, %arg4: memref<1x128xf32, #tpu.memory_space<vmem>>, %arg5: memref<9x128x128xf32, #tpu.memory_space<vmem>>, %arg6: memref<1x128xf32, #tpu.memory_space<vmem>>, %arg7: memref<1x8x16x128xf32, #tpu.memory_space<vmem>>, %arg8: memref<12x18x128xf32, #tpu.memory_space<vmem>>, %arg9: memref<10x18x128xf32, #tpu.memory_space<vmem>>, %arg10: memref<160x128xf32, #tpu.memory_space<vmem>>, %arg11: memref<128x128xf32, #tpu.memory_space<vmem>>) attributes {dimension_semantics = [#tpu.dimension_semantics<parallel>, #tpu.dimension_semantics<parallel>], iteration_bounds = array<i64: 2, 2>, scalar_prefetch = 0 : i64, scratch_operands = 4 : i64, tpu.core_type = #tpu.core_type<tc>, window_params = [{transform_indices = @transform_0, window_bounds = array<i64: 1, 16, 16, 128>}, {pipeline_mode = #tpu.pipeline_mode<synchronous>, transform_indices = @transform_1, window_bounds = array<i64: 9, 128, 128>}, {pipeline_mode = #tpu.pipeline_mode<synchronous>, transform_indices = @transform_2, window_bounds = array<i64: 1, 128>}, {pipeline_mode = #tpu.pipeline_mode<synchronous>, transform_indices = @transform_3, window_bounds = array<i64: 9, 128, 128>}, {pipeline_mode = #tpu.pipeline_mode<synchronous>, transform_indices = @transform_4, window_bounds = array<i64: 1, 128>}, {transform_indices = @transform_5, window_bounds = array<i64: 1, 8, 16, 128>}]} {
    %c8_i32 = arith.constant 8 : i32
    %0 = arith.muli %arg1, %c8_i32 : i32
    %1 = tpu.assume_multiple %0, 8 : i32
    %c0 = arith.constant 0 : index
    %2 = arith.index_cast %1 : i32 to index
    %c0_0 = arith.constant 0 : index
    %c0_1 = arith.constant 0 : index
    %3 = vector.load %arg2[%c0, %2, %c0_0, %c0_1] : memref<1x16x16x128xf32, #tpu.memory_space<vmem>>, vector<1x8x16x128xf32>
    %4 = vector.shape_cast %3 : vector<1x8x16x128xf32> to vector<8x16x128xf32>
    %c2 = arith.constant 2 : index
    %c1 = arith.constant 1 : index
    %c0_2 = arith.constant 0 : index
    %5 = vector.load %arg8[%c2, %c1, %c0_2] : memref<12x18x128xf32, #tpu.memory_space<vmem>>, vector<8x16x128xf32>
    tpu.vector_store %arg8[%c2, %c1, %c0_2], %4 {strides = array<i32>} : memref<12x18x128xf32, #tpu.memory_space<vmem>>, vector<8x16x128xf32>,
    %cst = arith.constant 0.000000e+00 : f32
    %6 = vector.broadcast %cst : f32 to vector<12x1x128xf32>
    %c0_3 = arith.constant 0 : index
    %c0_4 = arith.constant 0 : index
    %c0_5 = arith.constant 0 : index
    %7 = vector.load %arg8[%c0_3, %c0_4, %c0_5] : memref<12x18x128xf32, #tpu.memory_space<vmem>>, vector<12x1x128xf32>
    tpu.vector_store %arg8[%c0_3, %c0_4, %c0_5], %6 {strides = array<i32>} : memref<12x18x128xf32, #tpu.memory_space<vmem>>, vector<12x1x128xf32>,
    %cst_6 = arith.constant 0.000000e+00 : f32
    %8 = vector.broadcast %cst_6 : f32 to vector<12x1x128xf32>
    %c0_7 = arith.constant 0 : index
    %c17 = arith.constant 17 : index
    %c0_8 = arith.constant 0 : index
    %9 = vector.load %arg8[%c0_7, %c17, %c0_8] : memref<12x18x128xf32, #tpu.memory_space<vmem>>, vector<12x1x128xf32>
    tpu.vector_store %arg8[%c0_7, %c17, %c0_8], %8 {strides = array<i32>} : memref<12x18x128xf32, #tpu.memory_space<vmem>>, vector<12x1x128xf32>,
    %c0_i32 = arith.constant 0 : i32
    %10 = arith.cmpi sgt, %arg1, %c0_i32 : i32
    %11 = arith.extui %10 : i1 to i32
    %c0_i32_9 = arith.constant 0 : i32
    %12 = arith.cmpi ne, %11, %c0_i32_9 : i32
    scf.if %12 {
      %c2_i32 = arith.constant 2 : i32
      %201 = arith.subi %1, %c2_i32 : i32
      %c0_235 = arith.constant 0 : index
      %202 = arith.index_cast %201 : i32 to index
      %c0_236 = arith.constant 0 : index
      %c0_237 = arith.constant 0 : index
      %203 = vector.load %arg2[%c0_235, %202, %c0_236, %c0_237] : memref<1x16x16x128xf32, #tpu.memory_space<vmem>>, vector<1x2x16x128xf32>
      %204 = vector.shape_cast %203 : vector<1x2x16x128xf32> to vector<2x16x128xf32>
      %c0_238 = arith.constant 0 : index
      %c1_239 = arith.constant 1 : index
      %c0_240 = arith.constant 0 : index
      %205 = vector.load %arg8[%c0_238, %c1_239, %c0_240] : memref<12x18x128xf32, #tpu.memory_space<vmem>>, vector<2x16x128xf32>
      tpu.vector_store %arg8[%c0_238, %c1_239, %c0_240], %204 {strides = array<i32>} : memref<12x18x128xf32, #tpu.memory_space<vmem>>, vector<2x16x128xf32>,
    } else {
    }
    %c0_i32_10 = arith.constant 0 : i32
    %13 = arith.cmpi eq, %arg1, %c0_i32_10 : i32
    %14 = arith.extui %13 : i1 to i32
    %c0_i32_11 = arith.constant 0 : i32
    %15 = arith.cmpi ne, %14, %c0_i32_11 : i32
    scf.if %15 {
      %cst_235 = arith.constant 0.000000e+00 : f32
      %201 = vector.broadcast %cst_235 : f32 to vector<2x18x128xf32>
      %c0_236 = arith.constant 0 : index
      %c0_237 = arith.constant 0 : index
      %c0_238 = arith.constant 0 : index
      %202 = vector.load %arg8[%c0_236, %c0_237, %c0_238] : memref<12x18x128xf32, #tpu.memory_space<vmem>>, vector<2x18x128xf32>
      tpu.vector_store %arg8[%c0_236, %c0_237, %c0_238], %201 {strides = array<i32>} : memref<12x18x128xf32, #tpu.memory_space<vmem>>, vector<2x18x128xf32>,
    } else {
    }
    %c1_i32 = arith.constant 1 : i32
    %16 = arith.cmpi slt, %arg1, %c1_i32 : i32
    %17 = arith.extui %16 : i1 to i32
    %c0_i32_12 = arith.constant 0 : i32
    %18 = arith.cmpi ne, %17, %c0_i32_12 : i32
    scf.if %18 {
      %c8_i32_235 = arith.constant 8 : i32
      %201 = arith.addi %1, %c8_i32_235 : i32
      %c0_236 = arith.constant 0 : index
      %202 = arith.index_cast %201 : i32 to index
      %c0_237 = arith.constant 0 : index
      %c0_238 = arith.constant 0 : index
      %203 = vector.load %arg2[%c0_236, %202, %c0_237, %c0_238] : memref<1x16x16x128xf32, #tpu.memory_space<vmem>>, vector<1x2x16x128xf32>
      %204 = vector.shape_cast %203 : vector<1x2x16x128xf32> to vector<2x16x128xf32>
      %c10 = arith.constant 10 : index
      %c1_239 = arith.constant 1 : index
      %c0_240 = arith.constant 0 : index
      %205 = vector.load %arg8[%c10, %c1_239, %c0_240] : memref<12x18x128xf32, #tpu.memory_space<vmem>>, vector<2x16x128xf32>
      tpu.vector_store %arg8[%c10, %c1_239, %c0_240], %204 {strides = array<i32>} : memref<12x18x128xf32, #tpu.memory_space<vmem>>, vector<2x16x128xf32>,
    } else {
    }
    %c1_i32_13 = arith.constant 1 : i32
    %19 = arith.cmpi eq, %arg1, %c1_i32_13 : i32
    %20 = arith.extui %19 : i1 to i32
    %c0_i32_14 = arith.constant 0 : i32
    %21 = arith.cmpi ne, %20, %c0_i32_14 : i32
    scf.if %21 {
      %cst_235 = arith.constant 0.000000e+00 : f32
      %201 = vector.broadcast %cst_235 : f32 to vector<2x18x128xf32>
      %c10 = arith.constant 10 : index
      %c0_236 = arith.constant 0 : index
      %c0_237 = arith.constant 0 : index
      %202 = vector.load %arg8[%c10, %c0_236, %c0_237] : memref<12x18x128xf32, #tpu.memory_space<vmem>>, vector<2x18x128xf32>
      tpu.vector_store %arg8[%c10, %c0_236, %c0_237], %201 {strides = array<i32>} : memref<12x18x128xf32, #tpu.memory_space<vmem>>, vector<2x18x128xf32>,
    } else {
    }
    %c0_15 = arith.constant 0 : index
    %c0_16 = arith.constant 0 : index
    %c0_17 = arith.constant 0 : index
    %22 = vector.load %arg8[%c0_15, %c0_16, %c0_17] : memref<12x18x128xf32, #tpu.memory_space<vmem>>, vector<10x16x128xf32>
    %23 = vector.shape_cast %22 : vector<10x16x128xf32> to vector<160x128xf32>
    %c0_18 = arith.constant 0 : index
    %c0_19 = arith.constant 0 : index
    %c0_20 = arith.constant 0 : index
    %24 = vector.load %arg3[%c0_18, %c0_19, %c0_20] : memref<9x128x128xf32, #tpu.memory_space<vmem>>, vector<1x128x128xf32>
    %25 = vector.shape_cast %24 : vector<1x128x128xf32> to vector<128x128xf32>
    %cst_21 = arith.constant dense<0.000000e+00> : vector<160x128xf32>
    %26 = tpu.matmul %23, %25, %cst_21 {dimension_numbers = #tpu.dot_dimension_numbers<[1], [0], [0], [1], [0, 0, 1, 1], [], []>} : vector<160x128xf32>, vector<128x128xf32>, vector<160x128xf32> -> vector<160x128xf32>
    %c0_22 = arith.constant 0 : index
    %c0_23 = arith.constant 0 : index
    %27 = vector.load %arg10[%c0_22, %c0_23] : memref<160x128xf32, #tpu.memory_space<vmem>>, vector<160x128xf32>
    tpu.vector_store %arg10[%c0_22, %c0_23], %26 {strides = array<i32>} : memref<160x128xf32, #tpu.memory_space<vmem>>, vector<160x128xf32>,
    %c0_24 = arith.constant 0 : index
    %c1_25 = arith.constant 1 : index
    %c0_26 = arith.constant 0 : index
    %28 = vector.load %arg8[%c0_24, %c1_25, %c0_26] : memref<12x18x128xf32, #tpu.memory_space<vmem>>, vector<10x16x128xf32>
    %29 = vector.shape_cast %28 : vector<10x16x128xf32> to vector<160x128xf32>
    %c1_27 = arith.constant 1 : index
    %c0_28 = arith.constant 0 : index
    %c0_29 = arith.constant 0 : index
    %30 = vector.load %arg3[%c1_27, %c0_28, %c0_29] : memref<9x128x128xf32, #tpu.memory_space<vmem>>, vector<1x128x128xf32>
    %31 = vector.shape_cast %30 : vector<1x128x128xf32> to vector<128x128xf32>
    %cst_30 = arith.constant dense<0.000000e+00> : vector<160x128xf32>
    %32 = tpu.matmul %29, %31, %cst_30 {dimension_numbers = #tpu.dot_dimension_numbers<[1], [0], [0], [1], [0, 0, 1, 1], [], []>} : vector<160x128xf32>, vector<128x128xf32>, vector<160x128xf32> -> vector<160x128xf32>
    %c0_31 = arith.constant 0 : index
    %c0_32 = arith.constant 0 : index
    %33 = vector.load %arg10[%c0_31, %c0_32] : memref<160x128xf32, #tpu.memory_space<vmem>>, vector<160x128xf32>
    %34 = arith.addf %33, %32 : vector<160x128xf32>
    %c0_33 = arith.constant 0 : index
    %c0_34 = arith.constant 0 : index
    %35 = vector.load %arg10[%c0_33, %c0_34] : memref<160x128xf32, #tpu.memory_space<vmem>>, vector<160x128xf32>
    tpu.vector_store %arg10[%c0_33, %c0_34], %34 {strides = array<i32>} : memref<160x128xf32, #tpu.memory_space<vmem>>, vector<160x128xf32>,
    %c0_35 = arith.constant 0 : index
    %c2_36 = arith.constant 2 : index
    %c0_37 = arith.constant 0 : index
    %36 = vector.load %arg8[%c0_35, %c2_36, %c0_37] : memref<12x18x128xf32, #tpu.memory_space<vmem>>, vector<10x16x128xf32>
    %37 = vector.shape_cast %36 : vector<10x16x128xf32> to vector<160x128xf32>
    %c2_38 = arith.constant 2 : index
    %c0_39 = arith.constant 0 : index
    %c0_40 = arith.constant 0 : index
    %38 = vector.load %arg3[%c2_38, %c0_39, %c0_40] : memref<9x128x128xf32, #tpu.memory_space<vmem>>, vector<1x128x128xf32>
    %39 = vector.shape_cast %38 : vector<1x128x128xf32> to vector<128x128xf32>
    %cst_41 = arith.constant dense<0.000000e+00> : vector<160x128xf32>
    %40 = tpu.matmul %37, %39, %cst_41 {dimension_numbers = #tpu.dot_dimension_numbers<[1], [0], [0], [1], [0, 0, 1, 1], [], []>} : vector<160x128xf32>, vector<128x128xf32>, vector<160x128xf32> -> vector<160x128xf32>
    %c0_42 = arith.constant 0 : index
    %c0_43 = arith.constant 0 : index
    %41 = vector.load %arg10[%c0_42, %c0_43] : memref<160x128xf32, #tpu.memory_space<vmem>>, vector<160x128xf32>
    %42 = arith.addf %41, %40 : vector<160x128xf32>
    %c0_44 = arith.constant 0 : index
    %c0_45 = arith.constant 0 : index
    %43 = vector.load %arg10[%c0_44, %c0_45] : memref<160x128xf32, #tpu.memory_space<vmem>>, vector<160x128xf32>
    tpu.vector_store %arg10[%c0_44, %c0_45], %42 {strides = array<i32>} : memref<160x128xf32, #tpu.memory_space<vmem>>, vector<160x128xf32>,
    %c1_46 = arith.constant 1 : index
    %c0_47 = arith.constant 0 : index
    %c0_48 = arith.constant 0 : index
    %44 = vector.load %arg8[%c1_46, %c0_47, %c0_48] : memref<12x18x128xf32, #tpu.memory_space<vmem>>, vector<10x16x128xf32>
    %45 = vector.shape_cast %44 : vector<10x16x128xf32> to vector<160x128xf32>
    %c3 = arith.constant 3 : index
    %c0_49 = arith.constant 0 : index
    %c0_50 = arith.constant 0 : index
    %46 = vector.load %arg3[%c3, %c0_49, %c0_50] : memref<9x128x128xf32, #tpu.memory_space<vmem>>, vector<1x128x128xf32>
    %47 = vector.shape_cast %46 : vector<1x128x128xf32> to vector<128x128xf32>
    %cst_51 = arith.constant dense<0.000000e+00> : vector<160x128xf32>
    %48 = tpu.matmul %45, %47, %cst_51 {dimension_numbers = #tpu.dot_dimension_numbers<[1], [0], [0], [1], [0, 0, 1, 1], [], []>} : vector<160x128xf32>, vector<128x128xf32>, vector<160x128xf32> -> vector<160x128xf32>
    %c0_52 = arith.constant 0 : index
    %c0_53 = arith.constant 0 : index
    %49 = vector.load %arg10[%c0_52, %c0_53] : memref<160x128xf32, #tpu.memory_space<vmem>>, vector<160x128xf32>
    %50 = arith.addf %49, %48 : vector<160x128xf32>
    %c0_54 = arith.constant 0 : index
    %c0_55 = arith.constant 0 : index
    %51 = vector.load %arg10[%c0_54, %c0_55] : memref<160x128xf32, #tpu.memory_space<vmem>>, vector<160x128xf32>
    tpu.vector_store %arg10[%c0_54, %c0_55], %50 {strides = array<i32>} : memref<160x128xf32, #tpu.memory_space<vmem>>, vector<160x128xf32>,
    %c1_56 = arith.constant 1 : index
    %c1_57 = arith.constant 1 : index
    %c0_58 = arith.constant 0 : index
    %52 = vector.load %arg8[%c1_56, %c1_57, %c0_58] : memref<12x18x128xf32, #tpu.memory_space<vmem>>, vector<10x16x128xf32>
    %53 = vector.shape_cast %52 : vector<10x16x128xf32> to vector<160x128xf32>
    %c4 = arith.constant 4 : index
    %c0_59 = arith.constant 0 : index
    %c0_60 = arith.constant 0 : index
    %54 = vector.load %arg3[%c4, %c0_59, %c0_60] : memref<9x128x128xf32, #tpu.memory_space<vmem>>, vector<1x128x128xf32>
    %55 = vector.shape_cast %54 : vector<1x128x128xf32> to vector<128x128xf32>
    %cst_61 = arith.constant dense<0.000000e+00> : vector<160x128xf32>
    %56 = tpu.matmul %53, %55, %cst_61 {dimension_numbers = #tpu.dot_dimension_numbers<[1], [0], [0], [1], [0, 0, 1, 1], [], []>} : vector<160x128xf32>, vector<128x128xf32>, vector<160x128xf32> -> vector<160x128xf32>
    %c0_62 = arith.constant 0 : index
    %c0_63 = arith.constant 0 : index
    %57 = vector.load %arg10[%c0_62, %c0_63] : memref<160x128xf32, #tpu.memory_space<vmem>>, vector<160x128xf32>
    %58 = arith.addf %57, %56 : vector<160x128xf32>
    %c0_64 = arith.constant 0 : index
    %c0_65 = arith.constant 0 : index
    %59 = vector.load %arg10[%c0_64, %c0_65] : memref<160x128xf32, #tpu.memory_space<vmem>>, vector<160x128xf32>
    tpu.vector_store %arg10[%c0_64, %c0_65], %58 {strides = array<i32>} : memref<160x128xf32, #tpu.memory_space<vmem>>, vector<160x128xf32>,
    %c1_66 = arith.constant 1 : index
    %c2_67 = arith.constant 2 : index
    %c0_68 = arith.constant 0 : index
    %60 = vector.load %arg8[%c1_66, %c2_67, %c0_68] : memref<12x18x128xf32, #tpu.memory_space<vmem>>, vector<10x16x128xf32>
    %61 = vector.shape_cast %60 : vector<10x16x128xf32> to vector<160x128xf32>
    %c5 = arith.constant 5 : index
    %c0_69 = arith.constant 0 : index
    %c0_70 = arith.constant 0 : index
    %62 = vector.load %arg3[%c5, %c0_69, %c0_70] : memref<9x128x128xf32, #tpu.memory_space<vmem>>, vector<1x128x128xf32>
    %63 = vector.shape_cast %62 : vector<1x128x128xf32> to vector<128x128xf32>
    %cst_71 = arith.constant dense<0.000000e+00> : vector<160x128xf32>
    %64 = tpu.matmul %61, %63, %cst_71 {dimension_numbers = #tpu.dot_dimension_numbers<[1], [0], [0], [1], [0, 0, 1, 1], [], []>} : vector<160x128xf32>, vector<128x128xf32>, vector<160x128xf32> -> vector<160x128xf32>
    %c0_72 = arith.constant 0 : index
    %c0_73 = arith.constant 0 : index
    %65 = vector.load %arg10[%c0_72, %c0_73] : memref<160x128xf32, #tpu.memory_space<vmem>>, vector<160x128xf32>
    %66 = arith.addf %65, %64 : vector<160x128xf32>
    %c0_74 = arith.constant 0 : index
    %c0_75 = arith.constant 0 : index
    %67 = vector.load %arg10[%c0_74, %c0_75] : memref<160x128xf32, #tpu.memory_space<vmem>>, vector<160x128xf32>
    tpu.vector_store %arg10[%c0_74, %c0_75], %66 {strides = array<i32>} : memref<160x128xf32, #tpu.memory_space<vmem>>, vector<160x128xf32>,
    %c2_76 = arith.constant 2 : index
    %c0_77 = arith.constant 0 : index
    %c0_78 = arith.constant 0 : index
    %68 = vector.load %arg8[%c2_76, %c0_77, %c0_78] : memref<12x18x128xf32, #tpu.memory_space<vmem>>, vector<10x16x128xf32>
    %69 = vector.shape_cast %68 : vector<10x16x128xf32> to vector<160x128xf32>
    %c6 = arith.constant 6 : index
    %c0_79 = arith.constant 0 : index
    %c0_80 = arith.constant 0 : index
    %70 = vector.load %arg3[%c6, %c0_79, %c0_80] : memref<9x128x128xf32, #tpu.memory_space<vmem>>, vector<1x128x128xf32>
    %71 = vector.shape_cast %70 : vector<1x128x128xf32> to vector<128x128xf32>
    %cst_81 = arith.constant dense<0.000000e+00> : vector<160x128xf32>
    %72 = tpu.matmul %69, %71, %cst_81 {dimension_numbers = #tpu.dot_dimension_numbers<[1], [0], [0], [1], [0, 0, 1, 1], [], []>} : vector<160x128xf32>, vector<128x128xf32>, vector<160x128xf32> -> vector<160x128xf32>
    %c0_82 = arith.constant 0 : index
    %c0_83 = arith.constant 0 : index
    %73 = vector.load %arg10[%c0_82, %c0_83] : memref<160x128xf32, #tpu.memory_space<vmem>>, vector<160x128xf32>
    %74 = arith.addf %73, %72 : vector<160x128xf32>
    %c0_84 = arith.constant 0 : index
    %c0_85 = arith.constant 0 : index
    %75 = vector.load %arg10[%c0_84, %c0_85] : memref<160x128xf32, #tpu.memory_space<vmem>>, vector<160x128xf32>
    tpu.vector_store %arg10[%c0_84, %c0_85], %74 {strides = array<i32>} : memref<160x128xf32, #tpu.memory_space<vmem>>, vector<160x128xf32>,
    %c2_86 = arith.constant 2 : index
    %c1_87 = arith.constant 1 : index
    %c0_88 = arith.constant 0 : index
    %76 = vector.load %arg8[%c2_86, %c1_87, %c0_88] : memref<12x18x128xf32, #tpu.memory_space<vmem>>, vector<10x16x128xf32>
    %77 = vector.shape_cast %76 : vector<10x16x128xf32> to vector<160x128xf32>
    %c7 = arith.constant 7 : index
    %c0_89 = arith.constant 0 : index
    %c0_90 = arith.constant 0 : index
    %78 = vector.load %arg3[%c7, %c0_89, %c0_90] : memref<9x128x128xf32, #tpu.memory_space<vmem>>, vector<1x128x128xf32>
    %79 = vector.shape_cast %78 : vector<1x128x128xf32> to vector<128x128xf32>
    %cst_91 = arith.constant dense<0.000000e+00> : vector<160x128xf32>
    %80 = tpu.matmul %77, %79, %cst_91 {dimension_numbers = #tpu.dot_dimension_numbers<[1], [0], [0], [1], [0, 0, 1, 1], [], []>} : vector<160x128xf32>, vector<128x128xf32>, vector<160x128xf32> -> vector<160x128xf32>
    %c0_92 = arith.constant 0 : index
    %c0_93 = arith.constant 0 : index
    %81 = vector.load %arg10[%c0_92, %c0_93] : memref<160x128xf32, #tpu.memory_space<vmem>>, vector<160x128xf32>
    %82 = arith.addf %81, %80 : vector<160x128xf32>
    %c0_94 = arith.constant 0 : index
    %c0_95 = arith.constant 0 : index
    %83 = vector.load %arg10[%c0_94, %c0_95] : memref<160x128xf32, #tpu.memory_space<vmem>>, vector<160x128xf32>
    tpu.vector_store %arg10[%c0_94, %c0_95], %82 {strides = array<i32>} : memref<160x128xf32, #tpu.memory_space<vmem>>, vector<160x128xf32>,
    %c2_96 = arith.constant 2 : index
    %c2_97 = arith.constant 2 : index
    %c0_98 = arith.constant 0 : index
    %84 = vector.load %arg8[%c2_96, %c2_97, %c0_98] : memref<12x18x128xf32, #tpu.memory_space<vmem>>, vector<10x16x128xf32>
    %85 = vector.shape_cast %84 : vector<10x16x128xf32> to vector<160x128xf32>
    %c8 = arith.constant 8 : index
    %c0_99 = arith.constant 0 : index
    %c0_100 = arith.constant 0 : index
    %86 = vector.load %arg3[%c8, %c0_99, %c0_100] : memref<9x128x128xf32, #tpu.memory_space<vmem>>, vector<1x128x128xf32>
    %87 = vector.shape_cast %86 : vector<1x128x128xf32> to vector<128x128xf32>
    %cst_101 = arith.constant dense<0.000000e+00> : vector<160x128xf32>
    %88 = tpu.matmul %85, %87, %cst_101 {dimension_numbers = #tpu.dot_dimension_numbers<[1], [0], [0], [1], [0, 0, 1, 1], [], []>} : vector<160x128xf32>, vector<128x128xf32>, vector<160x128xf32> -> vector<160x128xf32>
    %c0_102 = arith.constant 0 : index
    %c0_103 = arith.constant 0 : index
    %89 = vector.load %arg10[%c0_102, %c0_103] : memref<160x128xf32, #tpu.memory_space<vmem>>, vector<160x128xf32>
    %90 = arith.addf %89, %88 : vector<160x128xf32>
    %c0_104 = arith.constant 0 : index
    %c0_105 = arith.constant 0 : index
    %91 = vector.load %arg10[%c0_104, %c0_105] : memref<160x128xf32, #tpu.memory_space<vmem>>, vector<160x128xf32>
    tpu.vector_store %arg10[%c0_104, %c0_105], %90 {strides = array<i32>} : memref<160x128xf32, #tpu.memory_space<vmem>>, vector<160x128xf32>,
    %c0_106 = arith.constant 0 : index
    %c0_107 = arith.constant 0 : index
    %92 = vector.load %arg10[%c0_106, %c0_107] : memref<160x128xf32, #tpu.memory_space<vmem>>, vector<160x128xf32>
    %c0_108 = arith.constant 0 : index
    %c0_109 = arith.constant 0 : index
    %93 = vector.load %arg4[%c0_108, %c0_109] : memref<1x128xf32, #tpu.memory_space<vmem>>, vector<1x128xf32>
    %94 = vector.broadcast %93 : vector<1x128xf32> to vector<160x128xf32>
    %95 = arith.addf %92, %94 : vector<160x128xf32>
    %96 = arith.negf %95 : vector<160x128xf32>
    %97 = math.exp %96 : vector<160x128xf32>
    %cst_110 = arith.constant 1.000000e+00 : f32
    %98 = vector.broadcast %cst_110 : f32 to vector<160x128xf32>
    %99 = arith.addf %98, %97 : vector<160x128xf32>
    %100 = arith.divf %98, %99 : vector<160x128xf32>
    %101 = arith.mulf %95, %100 : vector<160x128xf32>
    %102 = vector.shape_cast %101 : vector<160x128xf32> to vector<10x16x128xf32>
    %c0_111 = arith.constant 0 : index
    %c1_112 = arith.constant 1 : index
    %c0_113 = arith.constant 0 : index
    %103 = vector.load %arg9[%c0_111, %c1_112, %c0_113] : memref<10x18x128xf32, #tpu.memory_space<vmem>>, vector<10x16x128xf32>
    tpu.vector_store %arg9[%c0_111, %c1_112, %c0_113], %102 {strides = array<i32>} : memref<10x18x128xf32, #tpu.memory_space<vmem>>, vector<10x16x128xf32>,
    %cst_114 = arith.constant 0.000000e+00 : f32
    %104 = vector.broadcast %cst_114 : f32 to vector<10x1x128xf32>
    %c0_115 = arith.constant 0 : index
    %c0_116 = arith.constant 0 : index
    %c0_117 = arith.constant 0 : index
    %105 = vector.load %arg9[%c0_115, %c0_116, %c0_117] : memref<10x18x128xf32, #tpu.memory_space<vmem>>, vector<10x1x128xf32>
    tpu.vector_store %arg9[%c0_115, %c0_116, %c0_117], %104 {strides = array<i32>} : memref<10x18x128xf32, #tpu.memory_space<vmem>>, vector<10x1x128xf32>,
    %cst_118 = arith.constant 0.000000e+00 : f32
    %106 = vector.broadcast %cst_118 : f32 to vector<10x1x128xf32>
    %c0_119 = arith.constant 0 : index
    %c17_120 = arith.constant 17 : index
    %c0_121 = arith.constant 0 : index
    %107 = vector.load %arg9[%c0_119, %c17_120, %c0_121] : memref<10x18x128xf32, #tpu.memory_space<vmem>>, vector<10x1x128xf32>
    tpu.vector_store %arg9[%c0_119, %c17_120, %c0_121], %106 {strides = array<i32>} : memref<10x18x128xf32, #tpu.memory_space<vmem>>, vector<10x1x128xf32>,
    %c0_i32_122 = arith.constant 0 : i32
    %108 = arith.cmpi eq, %arg1, %c0_i32_122 : i32
    %109 = arith.extui %108 : i1 to i32
    %c0_i32_123 = arith.constant 0 : i32
    %110 = arith.cmpi ne, %109, %c0_i32_123 : i32
    scf.if %110 {
      %cst_235 = arith.constant 0.000000e+00 : f32
      %201 = vector.broadcast %cst_235 : f32 to vector<1x18x128xf32>
      %c0_236 = arith.constant 0 : index
      %c0_237 = arith.constant 0 : index
      %c0_238 = arith.constant 0 : index
      %202 = vector.load %arg9[%c0_236, %c0_237, %c0_238] : memref<10x18x128xf32, #tpu.memory_space<vmem>>, vector<1x18x128xf32>
      tpu.vector_store %arg9[%c0_236, %c0_237, %c0_238], %201 {strides = array<i32>} : memref<10x18x128xf32, #tpu.memory_space<vmem>>, vector<1x18x128xf32>,
    } else {
    }
    %c1_i32_124 = arith.constant 1 : i32
    %111 = arith.cmpi eq, %arg1, %c1_i32_124 : i32
    %112 = arith.extui %111 : i1 to i32
    %c0_i32_125 = arith.constant 0 : i32
    %113 = arith.cmpi ne, %112, %c0_i32_125 : i32
    scf.if %113 {
      %cst_235 = arith.constant 0.000000e+00 : f32
      %201 = vector.broadcast %cst_235 : f32 to vector<1x18x128xf32>
      %c9 = arith.constant 9 : index
      %c0_236 = arith.constant 0 : index
      %c0_237 = arith.constant 0 : index
      %202 = vector.load %arg9[%c9, %c0_236, %c0_237] : memref<10x18x128xf32, #tpu.memory_space<vmem>>, vector<1x18x128xf32>
      tpu.vector_store %arg9[%c9, %c0_236, %c0_237], %201 {strides = array<i32>} : memref<10x18x128xf32, #tpu.memory_space<vmem>>, vector<1x18x128xf32>,
    } else {
    }
    %c0_126 = arith.constant 0 : index
    %c0_127 = arith.constant 0 : index
    %c0_128 = arith.constant 0 : index
    %114 = vector.load %arg9[%c0_126, %c0_127, %c0_128] : memref<10x18x128xf32, #tpu.memory_space<vmem>>, vector<8x16x128xf32>
    %115 = vector.shape_cast %114 : vector<8x16x128xf32> to vector<128x128xf32>
    %c0_129 = arith.constant 0 : index
    %c0_130 = arith.constant 0 : index
    %c0_131 = arith.constant 0 : index
    %116 = vector.load %arg5[%c0_129, %c0_130, %c0_131] : memref<9x128x128xf32, #tpu.memory_space<vmem>>, vector<1x128x128xf32>
    %117 = vector.shape_cast %116 : vector<1x128x128xf32> to vector<128x128xf32>
    %cst_132 = arith.constant dense<0.000000e+00> : vector<128x128xf32>
    %118 = tpu.matmul %115, %117, %cst_132 {dimension_numbers = #tpu.dot_dimension_numbers<[1], [0], [0], [1], [0, 0, 1, 1], [], []>} : vector<128x128xf32>, vector<128x128xf32>, vector<128x128xf32> -> vector<128x128xf32>
    %c0_133 = arith.constant 0 : index
    %c0_134 = arith.constant 0 : index
    %119 = vector.load %arg11[%c0_133, %c0_134] : memref<128x128xf32, #tpu.memory_space<vmem>>, vector<128x128xf32>
    tpu.vector_store %arg11[%c0_133, %c0_134], %118 {strides = array<i32>} : memref<128x128xf32, #tpu.memory_space<vmem>>, vector<128x128xf32>,
    %c0_135 = arith.constant 0 : index
    %c1_136 = arith.constant 1 : index
    %c0_137 = arith.constant 0 : index
    %120 = vector.load %arg9[%c0_135, %c1_136, %c0_137] : memref<10x18x128xf32, #tpu.memory_space<vmem>>, vector<8x16x128xf32>
    %121 = vector.shape_cast %120 : vector<8x16x128xf32> to vector<128x128xf32>
    %c1_138 = arith.constant 1 : index
    %c0_139 = arith.constant 0 : index
    %c0_140 = arith.constant 0 : index
    %122 = vector.load %arg5[%c1_138, %c0_139, %c0_140] : memref<9x128x128xf32, #tpu.memory_space<vmem>>, vector<1x128x128xf32>
    %123 = vector.shape_cast %122 : vector<1x128x128xf32> to vector<128x128xf32>
    %cst_141 = arith.constant dense<0.000000e+00> : vector<128x128xf32>
    %124 = tpu.matmul %121, %123, %cst_141 {dimension_numbers = #tpu.dot_dimension_numbers<[1], [0], [0], [1], [0, 0, 1, 1], [], []>} : vector<128x128xf32>, vector<128x128xf32>, vector<128x128xf32> -> vector<128x128xf32>
    %c0_142 = arith.constant 0 : index
    %c0_143 = arith.constant 0 : index
    %125 = vector.load %arg11[%c0_142, %c0_143] : memref<128x128xf32, #tpu.memory_space<vmem>>, vector<128x128xf32>
    %126 = arith.addf %125, %124 : vector<128x128xf32>
    %c0_144 = arith.constant 0 : index
    %c0_145 = arith.constant 0 : index
    %127 = vector.load %arg11[%c0_144, %c0_145] : memref<128x128xf32, #tpu.memory_space<vmem>>, vector<128x128xf32>
    tpu.vector_store %arg11[%c0_144, %c0_145], %126 {strides = array<i32>} : memref<128x128xf32, #tpu.memory_space<vmem>>, vector<128x128xf32>,
    %c0_146 = arith.constant 0 : index
    %c2_147 = arith.constant 2 : index
    %c0_148 = arith.constant 0 : index
    %128 = vector.load %arg9[%c0_146, %c2_147, %c0_148] : memref<10x18x128xf32, #tpu.memory_space<vmem>>, vector<8x16x128xf32>
    %129 = vector.shape_cast %128 : vector<8x16x128xf32> to vector<128x128xf32>
    %c2_149 = arith.constant 2 : index
    %c0_150 = arith.constant 0 : index
    %c0_151 = arith.constant 0 : index
    %130 = vector.load %arg5[%c2_149, %c0_150, %c0_151] : memref<9x128x128xf32, #tpu.memory_space<vmem>>, vector<1x128x128xf32>
    %131 = vector.shape_cast %130 : vector<1x128x128xf32> to vector<128x128xf32>
    %cst_152 = arith.constant dense<0.000000e+00> : vector<128x128xf32>
    %132 = tpu.matmul %129, %131, %cst_152 {dimension_numbers = #tpu.dot_dimension_numbers<[1], [0], [0], [1], [0, 0, 1, 1], [], []>} : vector<128x128xf32>, vector<128x128xf32>, vector<128x128xf32> -> vector<128x128xf32>
    %c0_153 = arith.constant 0 : index
    %c0_154 = arith.constant 0 : index
    %133 = vector.load %arg11[%c0_153, %c0_154] : memref<128x128xf32, #tpu.memory_space<vmem>>, vector<128x128xf32>
    %134 = arith.addf %133, %132 : vector<128x128xf32>
    %c0_155 = arith.constant 0 : index
    %c0_156 = arith.constant 0 : index
    %135 = vector.load %arg11[%c0_155, %c0_156] : memref<128x128xf32, #tpu.memory_space<vmem>>, vector<128x128xf32>
    tpu.vector_store %arg11[%c0_155, %c0_156], %134 {strides = array<i32>} : memref<128x128xf32, #tpu.memory_space<vmem>>, vector<128x128xf32>,
    %c1_157 = arith.constant 1 : index
    %c0_158 = arith.constant 0 : index
    %c0_159 = arith.constant 0 : index
    %136 = vector.load %arg9[%c1_157, %c0_158, %c0_159] : memref<10x18x128xf32, #tpu.memory_space<vmem>>, vector<8x16x128xf32>
    %137 = vector.shape_cast %136 : vector<8x16x128xf32> to vector<128x128xf32>
    %c3_160 = arith.constant 3 : index
    %c0_161 = arith.constant 0 : index
    %c0_162 = arith.constant 0 : index
    %138 = vector.load %arg5[%c3_160, %c0_161, %c0_162] : memref<9x128x128xf32, #tpu.memory_space<vmem>>, vector<1x128x128xf32>
    %139 = vector.shape_cast %138 : vector<1x128x128xf32> to vector<128x128xf32>
    %cst_163 = arith.constant dense<0.000000e+00> : vector<128x128xf32>
    %140 = tpu.matmul %137, %139, %cst_163 {dimension_numbers = #tpu.dot_dimension_numbers<[1], [0], [0], [1], [0, 0, 1, 1], [], []>} : vector<128x128xf32>, vector<128x128xf32>, vector<128x128xf32> -> vector<128x128xf32>
    %c0_164 = arith.constant 0 : index
    %c0_165 = arith.constant 0 : index
    %141 = vector.load %arg11[%c0_164, %c0_165] : memref<128x128xf32, #tpu.memory_space<vmem>>, vector<128x128xf32>
    %142 = arith.addf %141, %140 : vector<128x128xf32>
    %c0_166 = arith.constant 0 : index
    %c0_167 = arith.constant 0 : index
    %143 = vector.load %arg11[%c0_166, %c0_167] : memref<128x128xf32, #tpu.memory_space<vmem>>, vector<128x128xf32>
    tpu.vector_store %arg11[%c0_166, %c0_167], %142 {strides = array<i32>} : memref<128x128xf32, #tpu.memory_space<vmem>>, vector<128x128xf32>,
    %c1_168 = arith.constant 1 : index
    %c1_169 = arith.constant 1 : index
    %c0_170 = arith.constant 0 : index
    %144 = vector.load %arg9[%c1_168, %c1_169, %c0_170] : memref<10x18x128xf32, #tpu.memory_space<vmem>>, vector<8x16x128xf32>
    %145 = vector.shape_cast %144 : vector<8x16x128xf32> to vector<128x128xf32>
    %c4_171 = arith.constant 4 : index
    %c0_172 = arith.constant 0 : index
    %c0_173 = arith.constant 0 : index
    %146 = vector.load %arg5[%c4_171, %c0_172, %c0_173] : memref<9x128x128xf32, #tpu.memory_space<vmem>>, vector<1x128x128xf32>
    %147 = vector.shape_cast %146 : vector<1x128x128xf32> to vector<128x128xf32>
    %cst_174 = arith.constant dense<0.000000e+00> : vector<128x128xf32>
    %148 = tpu.matmul %145, %147, %cst_174 {dimension_numbers = #tpu.dot_dimension_numbers<[1], [0], [0], [1], [0, 0, 1, 1], [], []>} : vector<128x128xf32>, vector<128x128xf32>, vector<128x128xf32> -> vector<128x128xf32>
    %c0_175 = arith.constant 0 : index
    %c0_176 = arith.constant 0 : index
    %149 = vector.load %arg11[%c0_175, %c0_176] : memref<128x128xf32, #tpu.memory_space<vmem>>, vector<128x128xf32>
    %150 = arith.addf %149, %148 : vector<128x128xf32>
    %c0_177 = arith.constant 0 : index
    %c0_178 = arith.constant 0 : index
    %151 = vector.load %arg11[%c0_177, %c0_178] : memref<128x128xf32, #tpu.memory_space<vmem>>, vector<128x128xf32>
    tpu.vector_store %arg11[%c0_177, %c0_178], %150 {strides = array<i32>} : memref<128x128xf32, #tpu.memory_space<vmem>>, vector<128x128xf32>,
    %c1_179 = arith.constant 1 : index
    %c2_180 = arith.constant 2 : index
    %c0_181 = arith.constant 0 : index
    %152 = vector.load %arg9[%c1_179, %c2_180, %c0_181] : memref<10x18x128xf32, #tpu.memory_space<vmem>>, vector<8x16x128xf32>
    %153 = vector.shape_cast %152 : vector<8x16x128xf32> to vector<128x128xf32>
    %c5_182 = arith.constant 5 : index
    %c0_183 = arith.constant 0 : index
    %c0_184 = arith.constant 0 : index
    %154 = vector.load %arg5[%c5_182, %c0_183, %c0_184] : memref<9x128x128xf32, #tpu.memory_space<vmem>>, vector<1x128x128xf32>
    %155 = vector.shape_cast %154 : vector<1x128x128xf32> to vector<128x128xf32>
    %cst_185 = arith.constant dense<0.000000e+00> : vector<128x128xf32>
    %156 = tpu.matmul %153, %155, %cst_185 {dimension_numbers = #tpu.dot_dimension_numbers<[1], [0], [0], [1], [0, 0, 1, 1], [], []>} : vector<128x128xf32>, vector<128x128xf32>, vector<128x128xf32> -> vector<128x128xf32>
    %c0_186 = arith.constant 0 : index
    %c0_187 = arith.constant 0 : index
    %157 = vector.load %arg11[%c0_186, %c0_187] : memref<128x128xf32, #tpu.memory_space<vmem>>, vector<128x128xf32>
    %158 = arith.addf %157, %156 : vector<128x128xf32>
    %c0_188 = arith.constant 0 : index
    %c0_189 = arith.constant 0 : index
    %159 = vector.load %arg11[%c0_188, %c0_189] : memref<128x128xf32, #tpu.memory_space<vmem>>, vector<128x128xf32>
    tpu.vector_store %arg11[%c0_188, %c0_189], %158 {strides = array<i32>} : memref<128x128xf32, #tpu.memory_space<vmem>>, vector<128x128xf32>,
    %c2_190 = arith.constant 2 : index
    %c0_191 = arith.constant 0 : index
    %c0_192 = arith.constant 0 : index
    %160 = vector.load %arg9[%c2_190, %c0_191, %c0_192] : memref<10x18x128xf32, #tpu.memory_space<vmem>>, vector<8x16x128xf32>
    %161 = vector.shape_cast %160 : vector<8x16x128xf32> to vector<128x128xf32>
    %c6_193 = arith.constant 6 : index
    %c0_194 = arith.constant 0 : index
    %c0_195 = arith.constant 0 : index
    %162 = vector.load %arg5[%c6_193, %c0_194, %c0_195] : memref<9x128x128xf32, #tpu.memory_space<vmem>>, vector<1x128x128xf32>
    %163 = vector.shape_cast %162 : vector<1x128x128xf32> to vector<128x128xf32>
    %cst_196 = arith.constant dense<0.000000e+00> : vector<128x128xf32>
    %164 = tpu.matmul %161, %163, %cst_196 {dimension_numbers = #tpu.dot_dimension_numbers<[1], [0], [0], [1], [0, 0, 1, 1], [], []>} : vector<128x128xf32>, vector<128x128xf32>, vector<128x128xf32> -> vector<128x128xf32>
    %c0_197 = arith.constant 0 : index
    %c0_198 = arith.constant 0 : index
    %165 = vector.load %arg11[%c0_197, %c0_198] : memref<128x128xf32, #tpu.memory_space<vmem>>, vector<128x128xf32>
    %166 = arith.addf %165, %164 : vector<128x128xf32>
    %c0_199 = arith.constant 0 : index
    %c0_200 = arith.constant 0 : index
    %167 = vector.load %arg11[%c0_199, %c0_200] : memref<128x128xf32, #tpu.memory_space<vmem>>, vector<128x128xf32>
    tpu.vector_store %arg11[%c0_199, %c0_200], %166 {strides = array<i32>} : memref<128x128xf32, #tpu.memory_space<vmem>>, vector<128x128xf32>,
    %c2_201 = arith.constant 2 : index
    %c1_202 = arith.constant 1 : index
    %c0_203 = arith.constant 0 : index
    %168 = vector.load %arg9[%c2_201, %c1_202, %c0_203] : memref<10x18x128xf32, #tpu.memory_space<vmem>>, vector<8x16x128xf32>
    %169 = vector.shape_cast %168 : vector<8x16x128xf32> to vector<128x128xf32>
    %c7_204 = arith.constant 7 : index
    %c0_205 = arith.constant 0 : index
    %c0_206 = arith.constant 0 : index
    %170 = vector.load %arg5[%c7_204, %c0_205, %c0_206] : memref<9x128x128xf32, #tpu.memory_space<vmem>>, vector<1x128x128xf32>
    %171 = vector.shape_cast %170 : vector<1x128x128xf32> to vector<128x128xf32>
    %cst_207 = arith.constant dense<0.000000e+00> : vector<128x128xf32>
    %172 = tpu.matmul %169, %171, %cst_207 {dimension_numbers = #tpu.dot_dimension_numbers<[1], [0], [0], [1], [0, 0, 1, 1], [], []>} : vector<128x128xf32>, vector<128x128xf32>, vector<128x128xf32> -> vector<128x128xf32>
    %c0_208 = arith.constant 0 : index
    %c0_209 = arith.constant 0 : index
    %173 = vector.load %arg11[%c0_208, %c0_209] : memref<128x128xf32, #tpu.memory_space<vmem>>, vector<128x128xf32>
    %174 = arith.addf %173, %172 : vector<128x128xf32>
    %c0_210 = arith.constant 0 : index
    %c0_211 = arith.constant 0 : index
    %175 = vector.load %arg11[%c0_210, %c0_211] : memref<128x128xf32, #tpu.memory_space<vmem>>, vector<128x128xf32>
    tpu.vector_store %arg11[%c0_210, %c0_211], %174 {strides = array<i32>} : memref<128x128xf32, #tpu.memory_space<vmem>>, vector<128x128xf32>,
    %c2_212 = arith.constant 2 : index
    %c2_213 = arith.constant 2 : index
    %c0_214 = arith.constant 0 : index
    %176 = vector.load %arg9[%c2_212, %c2_213, %c0_214] : memref<10x18x128xf32, #tpu.memory_space<vmem>>, vector<8x16x128xf32>
    %177 = vector.shape_cast %176 : vector<8x16x128xf32> to vector<128x128xf32>
    %c8_215 = arith.constant 8 : index
    %c0_216 = arith.constant 0 : index
    %c0_217 = arith.constant 0 : index
    %178 = vector.load %arg5[%c8_215, %c0_216, %c0_217] : memref<9x128x128xf32, #tpu.memory_space<vmem>>, vector<1x128x128xf32>
    %179 = vector.shape_cast %178 : vector<1x128x128xf32> to vector<128x128xf32>
    %cst_218 = arith.constant dense<0.000000e+00> : vector<128x128xf32>
    %180 = tpu.matmul %177, %179, %cst_218 {dimension_numbers = #tpu.dot_dimension_numbers<[1], [0], [0], [1], [0, 0, 1, 1], [], []>} : vector<128x128xf32>, vector<128x128xf32>, vector<128x128xf32> -> vector<128x128xf32>
    %c0_219 = arith.constant 0 : index
    %c0_220 = arith.constant 0 : index
    %181 = vector.load %arg11[%c0_219, %c0_220] : memref<128x128xf32, #tpu.memory_space<vmem>>, vector<128x128xf32>
    %182 = arith.addf %181, %180 : vector<128x128xf32>
    %c0_221 = arith.constant 0 : index
    %c0_222 = arith.constant 0 : index
    %183 = vector.load %arg11[%c0_221, %c0_222] : memref<128x128xf32, #tpu.memory_space<vmem>>, vector<128x128xf32>
    tpu.vector_store %arg11[%c0_221, %c0_222], %182 {strides = array<i32>} : memref<128x128xf32, #tpu.memory_space<vmem>>, vector<128x128xf32>,
    %c0_223 = arith.constant 0 : index
    %c0_224 = arith.constant 0 : index
    %184 = vector.load %arg11[%c0_223, %c0_224] : memref<128x128xf32, #tpu.memory_space<vmem>>, vector<128x128xf32>
    %c0_225 = arith.constant 0 : index
    %c0_226 = arith.constant 0 : index
    %185 = vector.load %arg6[%c0_225, %c0_226] : memref<1x128xf32, #tpu.memory_space<vmem>>, vector<1x128xf32>
    %186 = vector.broadcast %185 : vector<1x128xf32> to vector<128x128xf32>
    %187 = arith.addf %184, %186 : vector<128x128xf32>
    %188 = arith.negf %187 : vector<128x128xf32>
    %189 = math.exp %188 : vector<128x128xf32>
    %cst_227 = arith.constant 1.000000e+00 : f32
    %190 = vector.broadcast %cst_227 : f32 to vector<128x128xf32>
    %191 = arith.addf %190, %189 : vector<128x128xf32>
    %192 = arith.divf %190, %191 : vector<128x128xf32>
    %193 = arith.mulf %187, %192 : vector<128x128xf32>
    %c2_228 = arith.constant 2 : index
    %c1_229 = arith.constant 1 : index
    %c0_230 = arith.constant 0 : index
    %194 = vector.load %arg8[%c2_228, %c1_229, %c0_230] : memref<12x18x128xf32, #tpu.memory_space<vmem>>, vector<8x16x128xf32>
    %195 = vector.shape_cast %194 : vector<8x16x128xf32> to vector<128x128xf32>
    %196 = arith.addf %193, %195 : vector<128x128xf32>
    %197 = vector.shape_cast %196 : vector<128x128xf32> to vector<8x16x128xf32>
    %c0_231 = arith.constant 0 : index
    %c0_232 = arith.constant 0 : index
    %c0_233 = arith.constant 0 : index
    %c0_234 = arith.constant 0 : index
    %198 = vector.load %arg7[%c0_231, %c0_232, %c0_233, %c0_234] : memref<1x8x16x128xf32, #tpu.memory_space<vmem>>, vector<1x8x16x128xf32>
    %199 = vector.shape_cast %198 : vector<1x8x16x128xf32> to vector<8x16x128xf32>
    %200 = vector.shape_cast %197 : vector<8x16x128xf32> to vector<1x8x16x128xf32>
    tpu.vector_store %arg7[%c0_231, %c0_232, %c0_233, %c0_234], %200 {strides = array<i32>} : memref<1x8x16x128xf32, #tpu.memory_space<vmem>>, vector<1x8x16x128xf32>,
    return
  }
  func.func @transform_0(%arg0: i32, %arg1: i32) -> (i32, i32, i32, i32) {
    %c0_i32 = arith.constant 0 : i32
    %c0_i32_0 = arith.constant 0 : i32
    %c0_i32_1 = arith.constant 0 : i32
    %c0_i32_2 = arith.constant 0 : i32
    return %arg0, %c0_i32, %c0_i32_0, %c0_i32_1 : i32, i32, i32, i32
  }
  func.func @transform_1(%arg0: i32, %arg1: i32) -> (i32, i32, i32) {
    %c0_i32 = arith.constant 0 : i32
    %c0_i32_0 = arith.constant 0 : i32
    %c0_i32_1 = arith.constant 0 : i32
    %c0_i32_2 = arith.constant 0 : i32
    return %c0_i32, %c0_i32_0, %c0_i32_1 : i32, i32, i32
  }
  func.func @transform_2(%arg0: i32, %arg1: i32) -> (i32, i32) {
    %c0_i32 = arith.constant 0 : i32
    %c0_i32_0 = arith.constant 0 : i32
    %c0_i32_1 = arith.constant 0 : i32
    return %c0_i32, %c0_i32_0 : i32, i32
  }
  func.func @transform_3(%arg0: i32, %arg1: i32) -> (i32, i32, i32) {
    %c0_i32 = arith.constant 0 : i32
    %c0_i32_0 = arith.constant 0 : i32
    %c0_i32_1 = arith.constant 0 : i32
    %c0_i32_2 = arith.constant 0 : i32
    return %c0_i32, %c0_i32_0, %c0_i32_1 : i32, i32, i32
  }
  func.func @transform_4(%arg0: i32, %arg1: i32) -> (i32, i32) {
    %c0_i32 = arith.constant 0 : i32
    %c0_i32_0 = arith.constant 0 : i32
    %c0_i32_1 = arith.constant 0 : i32
    return %c0_i32, %c0_i32_0 : i32, i32
  }
  func.func @transform_5(%arg0: i32, %arg1: i32) -> (i32, i32, i32, i32) {
    %c0_i32 = arith.constant 0 : i32
    %c0_i32_0 = arith.constant 0 : i32
    %c0_i32_1 = arith.constant 0 : i32
    return %arg0, %arg1, %c0_i32, %c0_i32_0 : i32, i32, i32, i32
  }
}

</mosaic_0001>

<llo_original>
// kernel: tpu_custom_call.1
$region0: #{tpu_custom_call.1}
  #allocation0 [shape = 'u32[]', space=smem, size = 0x4, offset = 0x4, fixed_abs, tag = 'smem constant byte address 0x4 - core index']
  #allocation1 [shape = 'u32[144,128]{1,0:T(1,128)}', space=vmem, size = 0x12000, scoped, tag = 'internal scratch']
  #allocation2 [shape = 'f32[12,18,128]{2,1,0:T(8,128)}', space=vmem, size = 0x24000, scoped, tag = 'scratch operand']
  #allocation3 [shape = 'f32[10,18,128]{2,1,0:T(8,128)}', space=vmem, size = 0x1e000, scoped, tag = 'scratch operand']
  #allocation4 [shape = 'f32[160,128]{1,0:T(8,128)}', space=vmem, size = 0x14000, scoped, tag = 'scratch operand']
  #allocation5 [shape = 'f32[128,128]{1,0:T(8,128)}', space=vmem, size = 0x10000, scoped, tag = 'scratch operand']
  %s0 = inlined_call_operand.hbm [shape: f32[2,16,16,128], index: 0, kind: input, shape index: {}]
  %s1 = inlined_call_operand.hbm [shape: f32[9,128,128], index: 1, kind: input, shape index: {}]
  %s2 = inlined_call_operand.vmem [shape: f32[1,128], index: 2, kind: input, shape index: {}]
  %s3 = inlined_call_operand.hbm [shape: f32[9,128,128], index: 3, kind: input, shape index: {}]
  %s4 = inlined_call_operand.vmem [shape: f32[1,128], index: 4, kind: input, shape index: {}]
  %s5 = inlined_call_operand.hbm [shape: f32[2,16,16,128], index: 5, kind: output, shape index: {}]
  %s6 = sld [smem:[#allocation0]]
  $region89: #{tpu_custom_call.1} parent=0
    _
  %s8 = ssub.s32 1, %s6
  %s9 = scalar_select 0, %s8, %s6
  $region1: #{tpu_custom_call.1} parent=0
    #allocation6 [shape = 'u8[262144]{0}', space=vmem, size = 0x40000, scoped, tag = 'input window, operand 0']
    #allocation7 [shape = 's32[2]{0}', space=sflag, size = 0x8, scoped, tag = 'scoped memory for tpu_custom_call.1']
    #allocation8 [shape = 's32[2]{0}', space=sflag, size = 0x8, scoped, tag = 'scoped memory for tpu_custom_call.1']
    #allocation9 [shape = 'u8[589824]{0}', space=vmem, size = 0x90000, scoped, tag = 'input window, operand 1, single buffered']
    #allocation10 [shape = 's32[1]{0}', space=sflag, size = 0x4, scoped, tag = 'scoped memory for tpu_custom_call.1']
    #allocation11 [shape = 'u8[589824]{0}', space=vmem, size = 0x90000, scoped, tag = 'input window, operand 3, single buffered']
    #allocation12 [shape = 'u8[131072]{0}', space=vmem, size = 0x20000, scoped, tag = 'output window, operand 0']
    %10 = vsyncpa [#allocation7], 0
    %s11 = scalar_lea.sflag [#allocation7], 1
    %12 = vsyncpa %s11, 0
    %13 = vsyncpa [#allocation10], 0
    %14 = vsyncpa [#allocation8], 0
    %s15 = scalar_lea.sflag [#allocation8], 1
    %16 = vsyncpa %s15, 0
    loop: start=0, step=1, limit=6
    $region2: #{tpu_custom_call.1} parent=1 // loop_pre_header
      _
    $region3: #{tpu_custom_call.1} parent=1 // loop_header
      %s18 = sphi 0, %s22
      %p19 = scmp.ge.s32.totalorder %s18, 6
      %s25 = sphi 0, %s37
      %s26 = sphi 0, %s33
      %s27 = sphi 0, %s25
      %s28 = sphi 0, %s26
      %s29 = sphi 0, %s27
      %s30 = sphi 0, %s28
      %s40 = sphi 0, %s42
      %s43 = sphi 0, %s40
      %s44 = sphi 0, %s43
      %s60 = sphi 0, %s44
      %s64 = sphi 0, %s64
      %s66 = sphi 0, %s64
      %s67 = sphi 0, %s66
      %s81 = sphi 0, %s67
      %s85 = sphi 0, %s85
      %s87 = sphi 0, %s85
      %s88 = sphi 0, %s87
      %s102 = sphi 0, %s88
      %s106 = sphi 0, %s106
      %s108 = sphi 0, %s106
      %s109 = sphi 0, %s108
      %s123 = sphi 0, %s109
      %s127 = sphi 0, %s127
      %s129 = sphi 0, %s127
      %s130 = sphi 0, %s129
      %s144 = sphi 0, %s130
      %s152 = sphi 0, %s154
      %s155 = sphi 0, %s152
      %s156 = sphi 0, %s155
      %s172 = sphi 0, %s156
    $region4: #{tpu_custom_call.1} parent=1 // loop_header_branch
      %21 = sbr.rel (%p19) target = $region8
    $region5: #{tpu_custom_call.1} parent=1 // loop_body
      %s23 = ssub.s32 %s18, 1
      %s24 = ssub.s32 %s18, 2
      %s31 = sadd.s32 1, %s26
      %p32 = scmp.ge.s32.totalorder %s31, 2
      %s33 = scalar_select %p32, 0, %s31
      %s34 = sadd.s32 1, %s25
      %s35 = scalar_select %p32, %s34, %s25
      %p36 = scmp.ge.s32.totalorder %s35, 2
      %s37 = scalar_select %p36, 0, %s35
      %s38 = ssub.s32 %s25, %s37
      %p39 = scmp.eq.s32.totalorder %s38, 0
      %s41 = sadd.s32 %s40, 1
      %s42 = scalar_select %p39, %s40, %s41
      %p45 = pneg %p39
      %p46 = scmp.eq.s32.totalorder %s18, 3
      %p47 = por %p45, %p46
      %p48 = scmp.ne.s32.totalorder %s40, %s43
      %p49 = scmp.eq.s32.totalorder %s18, 0
      %p50 = por %p48, %p49
      %p51 = scmp.ne.s32.totalorder %s40, %s43
      %p52 = scmp.eq.s32.totalorder %s23, 3
      %p53 = por %p51, %p52
      %p54 = scmp.ne.s32.totalorder %s43, %s44
      %p55 = scmp.eq.s32.totalorder %s23, 0
      %p56 = por %p54, %p55
      %p57 = scmp.ne.s32.totalorder %s43, %s44
      %p58 = scmp.eq.s32.totalorder %s24, 3
      %p59 = por %p57, %p58
      %p61 = scmp.ne.s32.totalorder %s44, %s60
      %p62 = scmp.eq.s32.totalorder %s24, 0
      %p63 = por %p61, %p62
      %s65 = sadd.s32 %s64, 1
      %p68 = scmp.eq.s32.totalorder %s18, 3
      %p69 = scmp.ne.s32.totalorder %s64, %s66
      %p70 = scmp.eq.s32.totalorder %s18, 0
      %p71 = por %p69, %p70
      %p72 = scmp.ne.s32.totalorder %s64, %s66
      %p73 = scmp.eq.s32.totalorder %s23, 3
      %p74 = por %p72, %p73
      %p75 = scmp.ne.s32.totalorder %s66, %s67
      %p76 = scmp.eq.s32.totalorder %s23, 0
      %p77 = por %p75, %p76
      %p78 = scmp.ne.s32.totalorder %s66, %s67
      %p79 = scmp.eq.s32.totalorder %s24, 3
      %p80 = por %p78, %p79
      %p82 = scmp.ne.s32.totalorder %s67, %s81
      %p83 = scmp.eq.s32.totalorder %s24, 0
      %p84 = por %p82, %p83
      %s86 = sadd.s32 %s85, 1
      %p89 = scmp.eq.s32.totalorder %s18, 3
      %p90 = scmp.ne.s32.totalorder %s85, %s87
      %p91 = scmp.eq.s32.totalorder %s18, 0
      %p92 = por %p90, %p91
      %p93 = scmp.ne.s32.totalorder %s85, %s87
      %p94 = scmp.eq.s32.totalorder %s23, 3
      %p95 = por %p93, %p94
      %p96 = scmp.ne.s32.totalorder %s87, %s88
      %p97 = scmp.eq.s32.totalorder %s23, 0
      %p98 = por %p96, %p97
      %p99 = scmp.ne.s32.totalorder %s87, %s88
      %p100 = scmp.eq.s32.totalorder %s24, 3
      %p101 = por %p99, %p100
      %p103 = scmp.ne.s32.totalorder %s88, %s102
      %p104 = scmp.eq.s32.totalorder %s24, 0
      %p105 = por %p103, %p104
      %s107 = sadd.s32 %s106, 1
      %p110 = scmp.eq.s32.totalorder %s18, 3
      %p111 = scmp.ne.s32.totalorder %s106, %s108
      %p112 = scmp.eq.s32.totalorder %s18, 0
      %p113 = por %p111, %p112
      %p114 = scmp.ne.s32.totalorder %s106, %s108
      %p115 = scmp.eq.s32.totalorder %s23, 3
      %p116 = por %p114, %p115
      %p117 = scmp.ne.s32.totalorder %s108, %s109
      %p118 = scmp.eq.s32.totalorder %s23, 0
      %p119 = por %p117, %p118
      %p120 = scmp.ne.s32.totalorder %s108, %s109
      %p121 = scmp.eq.s32.totalorder %s24, 3
      %p122 = por %p120, %p121
      %p124 = scmp.ne.s32.totalorder %s109, %s123
      %p125 = scmp.eq.s32.totalorder %s24, 0
      %p126 = por %p124, %p125
      %s128 = sadd.s32 %s127, 1
      %p131 = scmp.eq.s32.totalorder %s18, 3
      %p132 = scmp.ne.s32.totalorder %s127, %s129
      %p133 = scmp.eq.s32.totalorder %s18, 0
      %p134 = por %p132, %p133
      %p135 = scmp.ne.s32.totalorder %s127, %s129
      %p136 = scmp.eq.s32.totalorder %s23, 3
      %p137 = por %p135, %p136
      %p138 = scmp.ne.s32.totalorder %s129, %s130
      %p139 = scmp.eq.s32.totalorder %s23, 0
      %p140 = por %p138, %p139
      %p141 = scmp.ne.s32.totalorder %s129, %s130
      %p142 = scmp.eq.s32.totalorder %s24, 3
      %p143 = por %p141, %p142
      %p145 = scmp.ne.s32.totalorder %s130, %s144
      %p146 = scmp.eq.s32.totalorder %s24, 0
      %p147 = por %p145, %p146
      %s148 = ssub.s32 %s25, %s37
      %s149 = ssub.s32 %s26, %s33
      %s150 = sor.u32 %s148, %s149
      %p151 = scmp.eq.s32.totalorder %s150, 0
      %s153 = sadd.s32 %s152, 1
      %s154 = scalar_select %p151, %s152, %s153
      %p157 = pneg %p151
      %p158 = scmp.eq.s32.totalorder %s18, 3
      %p159 = por %p157, %p158
      %p160 = scmp.ne.s32.totalorder %s152, %s155
      %p161 = scmp.eq.s32.totalorder %s18, 0
      %p162 = por %p160, %p161
      %p163 = scmp.ne.s32.totalorder %s152, %s155
      %p164 = scmp.eq.s32.totalorder %s23, 3
      %p165 = por %p163, %p164
      %p166 = scmp.ne.s32.totalorder %s155, %s156
      %p167 = scmp.eq.s32.totalorder %s23, 0
      %p168 = por %p166, %p167
      %p169 = scmp.ne.s32.totalorder %s155, %s156
      %p170 = scmp.eq.s32.totalorder %s24, 3
      %p171 = por %p169, %p170
      %p173 = scmp.ne.s32.totalorder %s156, %s172
      %p174 = scmp.eq.s32.totalorder %s24, 0
      %p175 = por %p173, %p174
      %p176 = scmp.le.s32.totalorder 1, %s18
      %p177 = scmp.lt.s32.totalorder %s18, 5
      %p178 = pnand %p176, %p177
      %p179 = pneg %p178
      // Predicated region
      $region9: #{tpu_custom_call.1} parent=5 // pred_check
        _
      $region10: #{tpu_custom_call.1} parent=5 // pred_check_branch
        %181 = sbr.rel (%p178) target = $region12
      $region11: #{tpu_custom_call.1} parent=5 // pred_region
        %s182 = ssub.s32 %s18, 1
        // Predicated region
        $region13: #{tpu_custom_call.1} parent=11 // pred_check
          %p183 = pneg %p77
        $region14: #{tpu_custom_call.1} parent=11 // pred_check_branch
          %185 = sbr.rel (%p183) target = $region16
        $region15: #{tpu_custom_call.1} parent=11 // pred_region
          %s187 = ssub.s32 18432, 18432
          %188 = vsyncadd [#allocation10], %s187
          %s189 = sshll.u32 [#allocation9], 4
          %s190 = int_to_ptr.vmem [resolvable:$true] %s189
          %195 = dma.hbm_to_vmem [thread:$0]  %s1, 18432, %s190, [#allocation10], 128, 128, 8
        $region16: #{tpu_custom_call.1} parent=11 // pred_fallthru
          _
        // Predicated region
        $region17: #{tpu_custom_call.1} parent=11 // pred_check
          %p196 = pneg %p98
        $region18: #{tpu_custom_call.1} parent=11 // pred_check_branch
          %198 = sbr.rel (%p196) target = $region20
        $region19: #{tpu_custom_call.1} parent=11 // pred_region
          _
        $region20: #{tpu_custom_call.1} parent=11 // pred_fallthru
          _
        // Predicated region
        $region21: #{tpu_custom_call.1} parent=11 // pred_check
          %p199 = pneg %p119
        $region22: #{tpu_custom_call.1} parent=11 // pred_check_branch
          %201 = sbr.rel (%p199) target = $region24
        $region23: #{tpu_custom_call.1} parent=11 // pred_region
          %s203 = ssub.s32 18432, 18432
          %204 = vsyncadd [#allocation10], %s203
          %s205 = sshll.u32 [#allocation11], 4
          %s206 = int_to_ptr.vmem [resolvable:$true] %s205
          %211 = dma.hbm_to_vmem [thread:$0]  %s3, 18432, %s206, [#allocation10], 128, 128, 8
        $region24: #{tpu_custom_call.1} parent=11 // pred_fallthru
          _
        // Predicated region
        $region25: #{tpu_custom_call.1} parent=11 // pred_check
          %p212 = pneg %p140
        $region26: #{tpu_custom_call.1} parent=11 // pred_check_branch
          %214 = sbr.rel (%p212) target = $region28
        $region27: #{tpu_custom_call.1} parent=11 // pred_region
          _
        $region28: #{tpu_custom_call.1} parent=11 // pred_fallthru
          _
      $region12: #{tpu_custom_call.1} parent=5 // pred_fallthru
        _
      %p215 = scmp.lt.s32.totalorder %s18, 4
      // Predicated region
      $region29: #{tpu_custom_call.1} parent=5 // pred_check
        %p216 = pneg %p215
      $region30: #{tpu_custom_call.1} parent=5 // pred_check_branch
        %218 = sbr.rel (%p216) target = $region32
      $region31: #{tpu_custom_call.1} parent=5 // pred_region
        // Predicated region
        $region33: #{tpu_custom_call.1} parent=31 // pred_check
          %p219 = pneg %p50
        $region34: #{tpu_custom_call.1} parent=31 // pred_check_branch
          %221 = sbr.rel (%p219) target = $region36
        $region35: #{tpu_custom_call.1} parent=31 // pred_region
          %s222 = sand.u32 %s40, 1
          %s223 = scalar_lea.sflag [#allocation7], %s222
          %s224 = sand.u32 %s40, 1
          %s225 = smul.addr %s224, 256
          %s226 = scalar_lea.vmem [#allocation6], %s225
          %s228 = ssub.s32 4096, 4096
          %229 = vsyncadd %s223, %s228
          %s230 = smul.addr %s25, 32
          %s231 = smul.addr %s230, 128
          %s232 = scalar_lea.hbm %s0, %s231
          %s233 = sshll.u32 %s226, 4
          %s234 = int_to_ptr.vmem [resolvable:$true] %s233
          %239 = dma.hbm_to_vmem [thread:$0]  %s232, 4096, %s234, %s223, 128, 128, 8
        $region36: #{tpu_custom_call.1} parent=31 // pred_fallthru
          _
      $region32: #{tpu_custom_call.1} parent=5 // pred_fallthru
        _
      %p240 = scmp.le.s32.totalorder 1, %s18
      %p241 = scmp.lt.s32.totalorder %s18, 5
      %p242 = pnand %p240, %p241
      %p243 = pneg %p242
      // Predicated region
      $region37: #{tpu_custom_call.1} parent=5 // pred_check
        _
      $region38: #{tpu_custom_call.1} parent=5 // pred_check_branch
        %245 = sbr.rel (%p242) target = $region40
      $region39: #{tpu_custom_call.1} parent=5 // pred_region
        %s246 = ssub.s32 %s18, 1
        %s247 = sand.u32 %s43, 1
        %s248 = scalar_lea.sflag [#allocation7], %s247
        %s249 = sand.u32 %s43, 1
        %s250 = smul.addr %s249, 256
        %s251 = scalar_lea.vmem [#allocation6], %s250
        // Predicated region
        $region41: #{tpu_custom_call.1} parent=39 // pred_check
          %p252 = pneg %p56
        $region42: #{tpu_custom_call.1} parent=39 // pred_check_branch
          %254 = sbr.rel (%p252) target = $region44
        $region43: #{tpu_custom_call.1} parent=39 // pred_region
          %255 = dma.done %s248, 4096
        $region44: #{tpu_custom_call.1} parent=39 // pred_fallthru
          _
        // Predicated region
        $region45: #{tpu_custom_call.1} parent=39 // pred_check
          %p256 = pneg %p77
        $region46: #{tpu_custom_call.1} parent=39 // pred_check_branch
          %258 = sbr.rel (%p256) target = $region48
        $region47: #{tpu_custom_call.1} parent=39 // pred_region
          %259 = dma.done [#allocation10], 18432
        $region48: #{tpu_custom_call.1} parent=39 // pred_fallthru
          _
        // Predicated region
        $region49: #{tpu_custom_call.1} parent=39 // pred_check
          %p260 = pneg %p119
        $region50: #{tpu_custom_call.1} parent=39 // pred_check_branch
          %262 = sbr.rel (%p260) target = $region52
        $region51: #{tpu_custom_call.1} parent=39 // pred_region
          %263 = dma.done [#allocation10], 18432
        $region52: #{tpu_custom_call.1} parent=39 // pred_fallthru
          _
        %s264 = sand.u32 %s43, 1
        %s265 = scalar_lea.sflag [#allocation7], %s264
        %s266 = sand.u32 %s43, 1
        %s267 = smul.addr %s266, 256
        %s268 = scalar_lea.vmem [#allocation6], %s267
        %p269 = pneg %p56
        %p270 = pneg %p53
        %p271 = pneg %p77
        %p272 = pneg %p74
        %p273 = pneg %p98
        %p274 = pneg %p95
        %p275 = pneg %p119
        %p276 = pneg %p116
        %p277 = pneg %p140
        %p278 = pneg %p137
        %p279 = pneg %p168
        %p280 = pneg %p165
        %s281 = sand.u32 %s155, 1
        %s282 = scalar_lea.sflag [#allocation8], %s281
        %s283 = sand.u32 %s155, 1
        %s284 = smul.addr %s283, 128
        %s285 = scalar_lea.vmem [#allocation12], %s284
        %s286 = smul.u32 8, %s28
        %s287 = smul.u32 %s28, 8
        %s288 = smul.u32 %s287, 16
        %s289 = scalar_lea.vmem %s251, %s288 [#allocation6]
        %v290 = vld [vmem:[%s289] sm:$0xff]
        %v291 = vld [vmem:[%s289 + $0x8] sm:$0xff]
        %v292 = vld [vmem:[%s289 + $0x10] sm:$0xff]
        %v293 = vld [vmem:[%s289 + $0x18] sm:$0xff]
        %v294 = vld [vmem:[%s289 + $0x20] sm:$0xff]
        %v295 = vld [vmem:[%s289 + $0x28] sm:$0xff]
        %v296 = vld [vmem:[%s289 + $0x30] sm:$0xff]
        %v297 = vld [vmem:[%s289 + $0x38] sm:$0xff]
        %v298 = vld [vmem:[%s289 + $0x40] sm:$0xff]
        %v299 = vld [vmem:[%s289 + $0x48] sm:$0xff]
        %v300 = vld [vmem:[%s289 + $0x50] sm:$0xff]
        %v301 = vld [vmem:[%s289 + $0x58] sm:$0xff]
        %v302 = vld [vmem:[%s289 + $0x60] sm:$0xff]
        %v303 = vld [vmem:[%s289 + $0x68] sm:$0xff]
        %v304 = vld [vmem:[%s289 + $0x70] sm:$0xff]
        %v305 = vld [vmem:[%s289 + $0x78] sm:$0xff]
        %s306 = scalar_lea.vmem [#allocation2], 48
        %307 = vst [vmem:[%s306 + $0x1] sm:$0xff] %v290
        %308 = vst [vmem:[%s306 + $0x9] sm:$0xff] %v291
        %309 = vst [vmem:[%s306 + $0x19] sm:$0xff] %v292
        %310 = vst [vmem:[%s306 + $0x21] sm:$0xff] %v293
        %311 = vst [vmem:[%s306 + $0x31] sm:$0xff] %v294
        %312 = vst [vmem:[%s306 + $0x39] sm:$0xff] %v295
        %313 = vst [vmem:[%s306 + $0x49] sm:$0xff] %v296
        %314 = vst [vmem:[%s306 + $0x51] sm:$0xff] %v297
        %315 = vst [vmem:[%s306 + $0x61] sm:$0xff] %v298
        %316 = vst [vmem:[%s306 + $0x69] sm:$0xff] %v299
        %317 = vst [vmem:[%s306 + $0x79] sm:$0xff] %v300
        %318 = vst [vmem:[%s306 + $0x81] sm:$0xff] %v301
        %319 = vst [vmem:[%s306 + $0x91] sm:$0xff] %v302
        %320 = vst [vmem:[%s306 + $0x99] sm:$0xff] %v303
        %321 = vst [vmem:[%s306 + $0xa9] sm:$0xff] %v304
        %322 = vst [vmem:[%s306 + $0xb1] sm:$0xff] %v305
        %323 = vst [vmem:[#allocation2] sm:$0x1] 0.0
        %324 = vst [vmem:[#allocation2 + $0x18] sm:$0x1] 0.0
        %325 = vst [vmem:[#allocation2 + $0x30] sm:$0x1] 0.0
        %326 = vst [vmem:[#allocation2 + $0x48] sm:$0x1] 0.0
        %327 = vst [vmem:[#allocation2 + $0x60] sm:$0x1] 0.0
        %328 = vst [vmem:[#allocation2 + $0x78] sm:$0x1] 0.0
        %329 = vst [vmem:[#allocation2 + $0x90] sm:$0x1] 0.0
        %330 = vst [vmem:[#allocation2 + $0xa8] sm:$0x1] 0.0
        %331 = vst [vmem:[#allocation2 + $0xc0] sm:$0x1] 0.0
        %332 = vst [vmem:[#allocation2 + $0xd8] sm:$0x1] 0.0
        %333 = vst [vmem:[#allocation2 + $0xf0] sm:$0x1] 0.0
        %334 = vst [vmem:[#allocation2 + $0x108] sm:$0x1] 0.0
        %335 = vst [vmem:[#allocation2 + $0x11] sm:$0x1] 0.0
        %336 = vst [vmem:[#allocation2 + $0x29] sm:$0x1] 0.0
        %337 = vst [vmem:[#allocation2 + $0x41] sm:$0x1] 0.0
        %338 = vst [vmem:[#allocation2 + $0x59] sm:$0x1] 0.0
        %339 = vst [vmem:[#allocation2 + $0x71] sm:$0x1] 0.0
        %340 = vst [vmem:[#allocation2 + $0x89] sm:$0x1] 0.0
        %341 = vst [vmem:[#allocation2 + $0xa1] sm:$0x1] 0.0
        %342 = vst [vmem:[#allocation2 + $0xb9] sm:$0x1] 0.0
        %343 = vst [vmem:[#allocation2 + $0xd1] sm:$0x1] 0.0
        %344 = vst [vmem:[#allocation2 + $0xe9] sm:$0x1] 0.0
        %345 = vst [vmem:[#allocation2 + $0x101] sm:$0x1] 0.0
        %346 = vst [vmem:[#allocation2 + $0x119] sm:$0x1] 0.0
        %p347 = scmp.gt.s32.totalorder %s28, 0
        // Predicated region
        $region53: #{tpu_custom_call.1} parent=39 // pred_check
          %p348 = pneg %p347
        $region54: #{tpu_custom_call.1} parent=39 // pred_check_branch
          %350 = sbr.rel (%p348) target = $region56
        $region55: #{tpu_custom_call.1} parent=39 // pred_region
          %s351 = ssub.s32 %s287, 2
          %s352 = smul.u32 %s351, 16
          %s353 = scalar_lea.vmem %s251, %s352 [#allocation6]
          %v354 = vld [vmem:[%s353] sm:$0xff]
          %v355 = vld [vmem:[%s353 + $0x8] sm:$0xff]
          %v356 = vld [vmem:[%s353 + $0x10] sm:$0xff]
          %v357 = vld [vmem:[%s353 + $0x18] sm:$0xff]
          %358 = vst [vmem:[#allocation2 + $0x1] sm:$0xff] %v354
          %359 = vst [vmem:[#allocation2 + $0x9] sm:$0xff] %v355
          %360 = vst [vmem:[#allocation2 + $0x19] sm:$0xff] %v356
          %361 = vst [vmem:[#allocation2 + $0x21] sm:$0xff] %v357
        $region56: #{tpu_custom_call.1} parent=39 // pred_fallthru
          _
        %p362 = scmp.eq.s32.totalorder %s28, 0
        // Predicated region
        $region57: #{tpu_custom_call.1} parent=39 // pred_check
          %p363 = pneg %p362
        $region58: #{tpu_custom_call.1} parent=39 // pred_check_branch
          %365 = sbr.rel (%p363) target = $region60
        $region59: #{tpu_custom_call.1} parent=39 // pred_region
          %366 = vst [vmem:[#allocation2] sm:$0xff] 0.0
          %367 = vst [vmem:[#allocation2 + $0x8] sm:$0xff] 0.0
          %368 = vst [vmem:[#allocation2 + $0x10] sm:$0x3] 0.0
          %369 = vst [vmem:[#allocation2 + $0x18] sm:$0xff] 0.0
          %370 = vst [vmem:[#allocation2 + $0x20] sm:$0xff] 0.0
          %371 = vst [vmem:[#allocation2 + $0x28] sm:$0x3] 0.0
        $region60: #{tpu_custom_call.1} parent=39 // pred_fallthru
          _
        %p372 = scmp.lt.s32.totalorder %s28, 1
        // Predicated region
        $region61: #{tpu_custom_call.1} parent=39 // pred_check
          %p373 = pneg %p372
        $region62: #{tpu_custom_call.1} parent=39 // pred_check_branch
          %375 = sbr.rel (%p373) target = $region64
        $region63: #{tpu_custom_call.1} parent=39 // pred_region
          %s376 = sadd.s32 %s287, 8
          %s377 = smul.u32 %s376, 16
          %s378 = scalar_lea.vmem %s251, %s377 [#allocation6]
          %v379 = vld [vmem:[%s378] sm:$0xff]
          %v380 = vld [vmem:[%s378 + $0x8] sm:$0xff]
          %v381 = vld [vmem:[%s378 + $0x10] sm:$0xff]
          %v382 = vld [vmem:[%s378 + $0x18] sm:$0xff]
          %s383 = scalar_lea.vmem [#allocation2], 240
          %384 = vst [vmem:[%s383 + $0x1] sm:$0xff] %v379
          %385 = vst [vmem:[%s383 + $0x9] sm:$0xff] %v380
          %386 = vst [vmem:[%s383 + $0x19] sm:$0xff] %v381
          %387 = vst [vmem:[%s383 + $0x21] sm:$0xff] %v382
        $region64: #{tpu_custom_call.1} parent=39 // pred_fallthru
          _
        %p388 = scmp.eq.s32.totalorder %s28, 1
        // Predicated region
        $region65: #{tpu_custom_call.1} parent=39 // pred_check
          %p389 = pneg %p388
        $region66: #{tpu_custom_call.1} parent=39 // pred_check_branch
          %391 = sbr.rel (%p389) target = $region68
        $region67: #{tpu_custom_call.1} parent=39 // pred_region
          %s392 = scalar_lea.vmem [#allocation2], 240
          %393 = vst [vmem:[%s392] sm:$0xff] 0.0
          %394 = vst [vmem:[%s392 + $0x8] sm:$0xff] 0.0
          %395 = vst [vmem:[%s392 + $0x10] sm:$0x3] 0.0
          %396 = vst [vmem:[%s392 + $0x18] sm:$0xff] 0.0
          %397 = vst [vmem:[%s392 + $0x20] sm:$0xff] 0.0
          %398 = vst [vmem:[%s392 + $0x28] sm:$0x3] 0.0
        $region68: #{tpu_custom_call.1} parent=39 // pred_fallthru
          _
        %v399 = vld [vmem:[#allocation2] sm:$0xff]
        %v400 = vld [vmem:[#allocation2 + $0x8] sm:$0xff]
        %v401 = vld [vmem:[#allocation2 + $0x18] sm:$0xff]
        %v402 = vld [vmem:[#allocation2 + $0x20] sm:$0xff]
        %v403 = vld [vmem:[#allocation2 + $0x30] sm:$0xff]
        %v404 = vld [vmem:[#allocation2 + $0x38] sm:$0xff]
        %v405 = vld [vmem:[#allocation2 + $0x48] sm:$0xff]
        %v406 = vld [vmem:[#allocation2 + $0x50] sm:$0xff]
        %v407 = vld [vmem:[#allocation2 + $0x60] sm:$0xff]
        %v408 = vld [vmem:[#allocation2 + $0x68] sm:$0xff]
        %v409 = vld [vmem:[#allocation2 + $0x78] sm:$0xff]
        %v410 = vld [vmem:[#allocation2 + $0x80] sm:$0xff]
        %v411 = vld [vmem:[#allocation2 + $0x90] sm:$0xff]
        %v412 = vld [vmem:[#allocation2 + $0x98] sm:$0xff]
        %v413 = vld [vmem:[#allocation2 + $0xa8] sm:$0xff]
        %v414 = vld [vmem:[#allocation2 + $0xb0] sm:$0xff]
        %v415 = vld [vmem:[#allocation2 + $0xc0] sm:$0xff]
        %v416 = vld [vmem:[#allocation2 + $0xc8] sm:$0xff]
        %v417 = vld [vmem:[#allocation2 + $0xd8] sm:$0xff]
        %v418 = vld [vmem:[#allocation2 + $0xe0] sm:$0xff]
        %v419 = vld [vmem:[#allocation9] sm:$0xff]
        %v420 = vld [vmem:[#allocation9 + $0x8] sm:$0xff]
        %v421 = vld [vmem:[#allocation9 + $0x10] sm:$0xff]
        %v422 = vld [vmem:[#allocation9 + $0x18] sm:$0xff]
        %v423 = vld [vmem:[#allocation9 + $0x20] sm:$0xff]
        %v424 = vld [vmem:[#allocation9 + $0x28] sm:$0xff]
        %v425 = vld [vmem:[#allocation9 + $0x30] sm:$0xff]
        %v426 = vld [vmem:[#allocation9 + $0x38] sm:$0xff]
        %v427 = vld [vmem:[#allocation9 + $0x40] sm:$0xff]
        %v428 = vld [vmem:[#allocation9 + $0x48] sm:$0xff]
        %v429 = vld [vmem:[#allocation9 + $0x50] sm:$0xff]
        %v430 = vld [vmem:[#allocation9 + $0x58] sm:$0xff]
        %v431 = vld [vmem:[#allocation9 + $0x60] sm:$0xff]
        %v432 = vld [vmem:[#allocation9 + $0x68] sm:$0xff]
        %v433 = vld [vmem:[#allocation9 + $0x70] sm:$0xff]
        %v434 = vld [vmem:[#allocation9 + $0x78] sm:$0xff]
        %435 = vmatprep.subr.mxu0 0.0
        %436 = vmatpush1.msra.mxu0 %v419
        %437 = vmatprep.subr.mxu0 0.0
        %438 = vmatpush1.msra.mxu0 %v420
        %439 = vmatprep.subr.mxu0 0.0
        %440 = vmatpush1.msra.mxu0 %v421
        %441 = vmatprep.subr.mxu0 0.0
        %442 = vmatpush1.msra.mxu0 %v422
        %443 = vmatprep.subr.mxu0 0.0
        %444 = vmatpush1.msra.mxu0 %v423
        %445 = vmatprep.subr.mxu0 0.0
        %446 = vmatpush1.msra.mxu0 %v424
        %447 = vmatprep.subr.mxu0 0.0
        %448 = vmatpush1.msra.mxu0 %v425
        %449 = vmatprep.subr.mxu0 0.0
        %450 = vmatpush1.msra.mxu0 %v426
        %451 = vmatprep.subr.mxu0 0.0
        %452 = vmatpush1.msra.mxu0 %v427
        %453 = vmatprep.subr.mxu0 0.0
        %454 = vmatpush1.msra.mxu0 %v428
        %455 = vmatprep.subr.mxu0 0.0
        %456 = vmatpush1.msra.mxu0 %v429
        %457 = vmatprep.subr.mxu0 0.0
        %458 = vmatpush1.msra.mxu0 %v430
        %459 = vmatprep.subr.mxu0 0.0
        %460 = vmatpush1.msra.mxu0 %v431
        %461 = vmatprep.subr.mxu0 0.0
        %462 = vmatpush1.msra.mxu0 %v432
        %463 = vmatprep.subr.mxu0 0.0
        %464 = vmatpush1.msra.mxu0 %v433
        %465 = vmatprep.subr.mxu0 0.0
        %466 = vmatpush1.msra.mxu0 %v434
        %467 = vmatprep.subr.mxu0 0.0
        %468 = vmatpush1.msra.mxu0 0.0
        %469 = vmatprep.subr.mxu0 0.0
        %470 = vmatpush1.msra.mxu0 0.0
        %471 = vmatprep.subr.mxu0 0.0
        %472 = vmatpush1.msra.mxu0 0.0
        %473 = vmatprep.subr.mxu0 0.0
        %474 = vmatpush1.msra.mxu0 0.0
        %475 = vmatprep.subr.mxu0 0.0
        %476 = vmatpush1.msra.mxu0 0.0
        %477 = vmatprep.subr.mxu0 0.0
        %478 = vmatpush1.msra.mxu0 0.0
        %479 = vmatprep.subr.mxu0 0.0
        %480 = vmatpush1.msra.mxu0 0.0
        %481 = vmatprep.subr.mxu0 0.0
        %482 = vmatpush1.msra.mxu0 0.0
        %483 = vmatprep.subr.mxu0 0.0
        %484 = vmatpush1.msra.mxu0 0.0
        %485 = vmatprep.subr.mxu0 0.0
        %486 = vmatpush1.msra.mxu0 0.0
        %487 = vmatprep.subr.mxu0 0.0
        %488 = vmatpush1.msra.mxu0 0.0
        %489 = vmatprep.subr.mxu0 0.0
        %490 = vmatpush1.msra.mxu0 0.0
        %491 = vmatprep.subr.mxu0 0.0
        %492 = vmatpush1.msra.mxu0 0.0
        %493 = vmatprep.subr.mxu0 0.0
        %494 = vmatpush1.msra.mxu0 0.0
        %495 = vmatprep.subr.mxu0 0.0
        %496 = vmatpush1.msra.mxu0 0.0
        %497 = vmatprep.subr.mxu0 0.0
        %498 = vmatpush1.msra.mxu0 0.0
        %499 = vmatprep.mubr.f32.mxu0 0.0
        %500 = vmatmul.mubr.f32.gmra.mrb[0].mxu0 %v399
        %v501 = vpop.f32.mrb[0].mxu0
        %v502 = vadd.f32 0.0, %v501
        %v503 = vpop.f32.mrb[0].mxu0
        %504 = vmatprep.mubr.f32.mxu0 0.0
        %505 = vmatmul.mubr.f32.gmra.mrb[0].mxu0 %v400
        %v506 = vpop.f32.mrb[0].mxu0
        %v507 = vadd.f32 0.0, %v506
        %v508 = vpop.f32.mrb[0].mxu0
        %509 = vmatprep.mubr.f32.mxu0 0.0
        %510 = vmatmul.mubr.f32.gmra.mrb[0].mxu0 %v401
        %v511 = vpop.f32.mrb[0].mxu0
        %v512 = vadd.f32 0.0, %v511
        %v513 = vpop.f32.mrb[0].mxu0
        %514 = vmatprep.mubr.f32.mxu0 0.0
        %515 = vmatmul.mubr.f32.gmra.mrb[0].mxu0 %v402
        %v516 = vpop.f32.mrb[0].mxu0
        %v517 = vadd.f32 0.0, %v516
        %v518 = vpop.f32.mrb[0].mxu0
        %519 = vmatprep.mubr.f32.mxu0 0.0
        %520 = vmatmul.mubr.f32.gmra.mrb[0].mxu0 %v403
        %v521 = vpop.f32.mrb[0].mxu0
        %v522 = vadd.f32 0.0, %v521
        %v523 = vpop.f32.mrb[0].mxu0
        %524 = vmatprep.mubr.f32.mxu0 0.0
        %525 = vmatmul.mubr.f32.gmra.mrb[0].mxu0 %v404
        %v526 = vpop.f32.mrb[0].mxu0
        %v527 = vadd.f32 0.0, %v526
        %v528 = vpop.f32.mrb[0].mxu0
        %529 = vmatprep.mubr.f32.mxu0 0.0
        %530 = vmatmul.mubr.f32.gmra.mrb[0].mxu0 %v405
        %v531 = vpop.f32.mrb[0].mxu0
        %v532 = vadd.f32 0.0, %v531
        %v533 = vpop.f32.mrb[0].mxu0
        %534 = vmatprep.mubr.f32.mxu0 0.0
        %535 = vmatmul.mubr.f32.gmra.mrb[0].mxu0 %v406
        %v536 = vpop.f32.mrb[0].mxu0
        %v537 = vadd.f32 0.0, %v536
        %v538 = vpop.f32.mrb[0].mxu0
        %539 = vmatprep.mubr.f32.mxu0 0.0
        %540 = vmatmul.mubr.f32.gmra.mrb[0].mxu0 %v407
        %v541 = vpop.f32.mrb[0].mxu0
        %v542 = vadd.f32 0.0, %v541
        %v543 = vpop.f32.mrb[0].mxu0
        %544 = vmatprep.mubr.f32.mxu0 0.0
        %545 = vmatmul.mubr.f32.gmra.mrb[0].mxu0 %v408
        %v546 = vpop.f32.mrb[0].mxu0
        %v547 = vadd.f32 0.0, %v546
        %v548 = vpop.f32.mrb[0].mxu0
        %549 = vmatprep.mubr.f32.mxu0 0.0
        %550 = vmatmul.mubr.f32.gmra.mrb[0].mxu0 %v409
        %v551 = vpop.f32.mrb[0].mxu0
        %v552 = vadd.f32 0.0, %v551
        %v553 = vpop.f32.mrb[0].mxu0
        %554 = vmatprep.mubr.f32.mxu0 0.0
        %555 = vmatmul.mubr.f32.gmra.mrb[0].mxu0 %v410
        %v556 = vpop.f32.mrb[0].mxu0
        %v557 = vadd.f32 0.0, %v556
        %v558 = vpop.f32.mrb[0].mxu0
        %559 = vmatprep.mubr.f32.mxu0 0.0
        %560 = vmatmul.mubr.f32.gmra.mrb[0].mxu0 %v411
        %v561 = vpop.f32.mrb[0].mxu0
        %v562 = vadd.f32 0.0, %v561
        %v563 = vpop.f32.mrb[0].mxu0
        %564 = vmatprep.mubr.f32.mxu0 0.0
        %565 = vmatmul.mubr.f32.gmra.mrb[0].mxu0 %v412
        %v566 = vpop.f32.mrb[0].mxu0
        %v567 = vadd.f32 0.0, %v566
        %v568 = vpop.f32.mrb[0].mxu0
        %569 = vmatprep.mubr.f32.mxu0 0.0
        %570 = vmatmul.mubr.f32.gmra.mrb[0].mxu0 %v413
        %v571 = vpop.f32.mrb[0].mxu0
        %v572 = vadd.f32 0.0, %v571
        %v573 = vpop.f32.mrb[0].mxu0
        %574 = vmatprep.mubr.f32.mxu0 0.0
        %575 = vmatmul.mubr.f32.gmra.mrb[0].mxu0 %v414
        %v576 = vpop.f32.mrb[0].mxu0
        %v577 = vadd.f32 0.0, %v576
        %v578 = vpop.f32.mrb[0].mxu0
        %579 = vmatprep.mubr.f32.mxu0 0.0
        %580 = vmatmul.mubr.f32.gmra.mrb[0].mxu0 %v415
        %v581 = vpop.f32.mrb[0].mxu0
        %v582 = vadd.f32 0.0, %v581
        %v583 = vpop.f32.mrb[0].mxu0
        %584 = vmatprep.mubr.f32.mxu0 0.0
        %585 = vmatmul.mubr.f32.gmra.mrb[0].mxu0 %v416
        %v586 = vpop.f32.mrb[0].mxu0
        %v587 = vadd.f32 0.0, %v586
        %v588 = vpop.f32.mrb[0].mxu0
        %589 = vmatprep.mubr.f32.mxu0 0.0
        %590 = vmatmul.mubr.f32.gmra.mrb[0].mxu0 %v417
        %v591 = vpop.f32.mrb[0].mxu0
        %v592 = vadd.f32 0.0, %v591
        %v593 = vpop.f32.mrb[0].mxu0
        %594 = vmatprep.mubr.f32.mxu0 0.0
        %595 = vmatmul.mubr.f32.gmra.mrb[0].mxu0 %v418
        %v596 = vpop.f32.mrb[0].mxu0
        %v597 = vadd.f32 0.0, %v596
        %v598 = vpop.f32.mrb[0].mxu0
        %599 = vdwg.mxu0
        %600 = vst [vmem:[#allocation4] sm:$0xff] %v502
        %601 = vst [vmem:[#allocation4 + $0x8] sm:$0xff] %v507
        %602 = vst [vmem:[#allocation4 + $0x10] sm:$0xff] %v512
        %603 = vst [vmem:[#allocation4 + $0x18] sm:$0xff] %v517
        %604 = vst [vmem:[#allocation4 + $0x20] sm:$0xff] %v522
        %605 = vst [vmem:[#allocation4 + $0x28] sm:$0xff] %v527
        %606 = vst [vmem:[#allocation4 + $0x30] sm:$0xff] %v532
        %607 = vst [vmem:[#allocation4 + $0x38] sm:$0xff] %v537
        %608 = vst [vmem:[#allocation4 + $0x40] sm:$0xff] %v542
        %609 = vst [vmem:[#allocation4 + $0x48] sm:$0xff] %v547
        %610 = vst [vmem:[#allocation4 + $0x50] sm:$0xff] %v552
        %611 = vst [vmem:[#allocation4 + $0x58] sm:$0xff] %v557
        %612 = vst [vmem:[#allocation4 + $0x60] sm:$0xff] %v562
        %613 = vst [vmem:[#allocation4 + $0x68] sm:$0xff] %v567
        %614 = vst [vmem:[#allocation4 + $0x70] sm:$0xff] %v572
        %615 = vst [vmem:[#allocation4 + $0x78] sm:$0xff] %v577
        %616 = vst [vmem:[#allocation4 + $0x80] sm:$0xff] %v582
        %617 = vst [vmem:[#allocation4 + $0x88] sm:$0xff] %v587
        %618 = vst [vmem:[#allocation4 + $0x90] sm:$0xff] %v592
        %619 = vst [vmem:[#allocation4 + $0x98] sm:$0xff] %v597
        %v620 = vld [vmem:[#allocation2 + $0x1] sm:$0xff]
        %v621 = vld [vmem:[#allocation2 + $0x9] sm:$0xff]
        %v622 = vld [vmem:[#allocation2 + $0x19] sm:$0xff]
        %v623 = vld [vmem:[#allocation2 + $0x21] sm:$0xff]
        %v624 = vld [vmem:[#allocation2 + $0x31] sm:$0xff]
        %v625 = vld [vmem:[#allocation2 + $0x39] sm:$0xff]
        %v626 = vld [vmem:[#allocation2 + $0x49] sm:$0xff]
        %v627 = vld [vmem:[#allocation2 + $0x51] sm:$0xff]
        %v628 = vld [vmem:[#allocation2 + $0x61] sm:$0xff]
        %v629 = vld [vmem:[#allocation2 + $0x69] sm:$0xff]
        %v630 = vld [vmem:[#allocation2 + $0x79] sm:$0xff]
        %v631 = vld [vmem:[#allocation2 + $0x81] sm:$0xff]
        %v632 = vld [vmem:[#allocation2 + $0x91] sm:$0xff]
        %v633 = vld [vmem:[#allocation2 + $0x99] sm:$0xff]
        %v634 = vld [vmem:[#allocation2 + $0xa9] sm:$0xff]
        %v635 = vld [vmem:[#allocation2 + $0xb1] sm:$0xff]
        %v636 = vld [vmem:[#allocation2 + $0xc1] sm:$0xff]
        %v637 = vld [vmem:[#allocation2 + $0xc9] sm:$0xff]
        %v638 = vld [vmem:[#allocation2 + $0xd9] sm:$0xff]
        %v639 = vld [vmem:[#allocation2 + $0xe1] sm:$0xff]
        %s640 = scalar_lea.vmem [#allocation9], 128
        %v641 = vld [vmem:[%s640] sm:$0xff]
        %v642 = vld [vmem:[%s640 + $0x8] sm:$0xff]
        %v643 = vld [vmem:[%s640 + $0x10] sm:$0xff]
        %v644 = vld [vmem:[%s640 + $0x18] sm:$0xff]
        %v645 = vld [vmem:[%s640 + $0x20] sm:$0xff]
        %v646 = vld [vmem:[%s640 + $0x28] sm:$0xff]
        %v647 = vld [vmem:[%s640 + $0x30] sm:$0xff]
        %v648 = vld [vmem:[%s640 + $0x38] sm:$0xff]
        %v649 = vld [vmem:[%s640 + $0x40] sm:$0xff]
        %v650 = vld [vmem:[%s640 + $0x48] sm:$0xff]
        %v651 = vld [vmem:[%s640 + $0x50] sm:$0xff]
        %v652 = vld [vmem:[%s640 + $0x58] sm:$0xff]
        %v653 = vld [vmem:[%s640 + $0x60] sm:$0xff]
        %v654 = vld [vmem:[%s640 + $0x68] sm:$0xff]
        %v655 = vld [vmem:[%s640 + $0x70] sm:$0xff]
        %v656 = vld [vmem:[%s640 + $0x78] sm:$0xff]
        %657 = vmatprep.subr.mxu0 0.0
        %658 = vmatpush1.msra.mxu0 %v641
        %659 = vmatprep.subr.mxu0 0.0
        %660 = vmatpush1.msra.mxu0 %v642
        %661 = vmatprep.subr.mxu0 0.0
        %662 = vmatpush1.msra.mxu0 %v643
        %663 = vmatprep.subr.mxu0 0.0
        %664 = vmatpush1.msra.mxu0 %v644
        %665 = vmatprep.subr.mxu0 0.0
        %666 = vmatpush1.msra.mxu0 %v645
        %667 = vmatprep.subr.mxu0 0.0
        %668 = vmatpush1.msra.mxu0 %v646
        %669 = vmatprep.subr.mxu0 0.0
        %670 = vmatpush1.msra.mxu0 %v647
        %671 = vmatprep.subr.mxu0 0.0
        %672 = vmatpush1.msra.mxu0 %v648
        %673 = vmatprep.subr.mxu0 0.0
        %674 = vmatpush1.msra.mxu0 %v649
        %675 = vmatprep.subr.mxu0 0.0
        %676 = vmatpush1.msra.mxu0 %v650
        %677 = vmatprep.subr.mxu0 0.0
        %678 = vmatpush1.msra.mxu0 %v651
        %679 = vmatprep.subr.mxu0 0.0
        %680 = vmatpush1.msra.mxu0 %v652
        %681 = vmatprep.subr.mxu0 0.0
        %682 = vmatpush1.msra.mxu0 %v653
        %683 = vmatprep.subr.mxu0 0.0
        %684 = vmatpush1.msra.mxu0 %v654
        %685 = vmatprep.subr.mxu0 0.0
        %686 = vmatpush1.msra.mxu0 %v655
        %687 = vmatprep.subr.mxu0 0.0
        %688 = vmatpush1.msra.mxu0 %v656
        %689 = vmatprep.subr.mxu0 0.0
        %690 = vmatpush1.msra.mxu0 0.0
        %691 = vmatprep.subr.mxu0 0.0
        %692 = vmatpush1.msra.mxu0 0.0
        %693 = vmatprep.subr.mxu0 0.0
        %694 = vmatpush1.msra.mxu0 0.0
        %695 = vmatprep.subr.mxu0 0.0
        %696 = vmatpush1.msra.mxu0 0.0
        %697 = vmatprep.subr.mxu0 0.0
        %698 = vmatpush1.msra.mxu0 0.0
        %699 = vmatprep.subr.mxu0 0.0
        %700 = vmatpush1.msra.mxu0 0.0
        %701 = vmatprep.subr.mxu0 0.0
        %702 = vmatpush1.msra.mxu0 0.0
        %703 = vmatprep.subr.mxu0 0.0
        %704 = vmatpush1.msra.mxu0 0.0
        %705 = vmatprep.subr.mxu0 0.0
        %706 = vmatpush1.msra.mxu0 0.0
        %707 = vmatprep.subr.mxu0 0.0
        %708 = vmatpush1.msra.mxu0 0.0
        %709 = vmatprep.subr.mxu0 0.0
        %710 = vmatpush1.msra.mxu0 0.0
        %711 = vmatprep.subr.mxu0 0.0
        %712 = vmatpush1.msra.mxu0 0.0
        %713 = vmatprep.subr.mxu0 0.0
        %714 = vmatpush1.msra.mxu0 0.0
        %715 = vmatprep.subr.mxu0 0.0
        %716 = vmatpush1.msra.mxu0 0.0
        %717 = vmatprep.subr.mxu0 0.0
        %718 = vmatpush1.msra.mxu0 0.0
        %719 = vmatprep.subr.mxu0 0.0
        %720 = vmatpush1.msra.mxu0 0.0
        %721 = vmatprep.mubr.f32.mxu0 0.0
        %722 = vmatmul.mubr.f32.gmra.mrb[0].mxu0 %v620
        %v723 = vpop.f32.mrb[0].mxu0
        %v724 = vadd.f32 0.0, %v723
        %v725 = vpop.f32.mrb[0].mxu0
        %726 = vmatprep.mubr.f32.mxu0 0.0
        %727 = vmatmul.mubr.f32.gmra.mrb[0].mxu0 %v621
        %v728 = vpop.f32.mrb[0].mxu0
        %v729 = vadd.f32 0.0, %v728
        %v730 = vpop.f32.mrb[0].mxu0
        %731 = vmatprep.mubr.f32.mxu0 0.0
        %732 = vmatmul.mubr.f32.gmra.mrb[0].mxu0 %v622
        %v733 = vpop.f32.mrb[0].mxu0
        %v734 = vadd.f32 0.0, %v733
        %v735 = vpop.f32.mrb[0].mxu0
        %736 = vmatprep.mubr.f32.mxu0 0.0
        %737 = vmatmul.mubr.f32.gmra.mrb[0].mxu0 %v623
        %v738 = vpop.f32.mrb[0].mxu0
        %v739 = vadd.f32 0.0, %v738
        %v740 = vpop.f32.mrb[0].mxu0
        %741 = vmatprep.mubr.f32.mxu0 0.0
        %742 = vmatmul.mubr.f32.gmra.mrb[0].mxu0 %v624
        %v743 = vpop.f32.mrb[0].mxu0
        %v744 = vadd.f32 0.0, %v743
        %v745 = vpop.f32.mrb[0].mxu0
        %746 = vmatprep.mubr.f32.mxu0 0.0
        %747 = vmatmul.mubr.f32.gmra.mrb[0].mxu0 %v625
        %v748 = vpop.f32.mrb[0].mxu0
        %v749 = vadd.f32 0.0, %v748
        %v750 = vpop.f32.mrb[0].mxu0
        %751 = vmatprep.mubr.f32.mxu0 0.0
        %752 = vmatmul.mubr.f32.gmra.mrb[0].mxu0 %v626
        %v753 = vpop.f32.mrb[0].mxu0
        %v754 = vadd.f32 0.0, %v753
        %v755 = vpop.f32.mrb[0].mxu0
        %756 = vmatprep.mubr.f32.mxu0 0.0
        %757 = vmatmul.mubr.f32.gmra.mrb[0].mxu0 %v627
        %v758 = vpop.f32.mrb[0].mxu0
        %v759 = vadd.f32 0.0, %v758
        %v760 = vpop.f32.mrb[0].mxu0
        %761 = vmatprep.mubr.f32.mxu0 0.0
        %762 = vmatmul.mubr.f32.gmra.mrb[0].mxu0 %v628
        %v763 = vpop.f32.mrb[0].mxu0
        %v764 = vadd.f32 0.0, %v763
        %v765 = vpop.f32.mrb[0].mxu0
        %766 = vmatprep.mubr.f32.mxu0 0.0
        %767 = vmatmul.mubr.f32.gmra.mrb[0].mxu0 %v629
        %v768 = vpop.f32.mrb[0].mxu0
        %v769 = vadd.f32 0.0, %v768
        %v770 = vpop.f32.mrb[0].mxu0
        %771 = vmatprep.mubr.f32.mxu0 0.0
        %772 = vmatmul.mubr.f32.gmra.mrb[0].mxu0 %v630
        %v773 = vpop.f32.mrb[0].mxu0
        %v774 = vadd.f32 0.0, %v773
        %v775 = vpop.f32.mrb[0].mxu0
        %776 = vmatprep.mubr.f32.mxu0 0.0
        %777 = vmatmul.mubr.f32.gmra.mrb[0].mxu0 %v631
        %v778 = vpop.f32.mrb[0].mxu0
        %v779 = vadd.f32 0.0, %v778
        %v780 = vpop.f32.mrb[0].mxu0
        %781 = vmatprep.mubr.f32.mxu0 0.0
        %782 = vmatmul.mubr.f32.gmra.mrb[0].mxu0 %v632
        %v783 = vpop.f32.mrb[0].mxu0
        %v784 = vadd.f32 0.0, %v783
        %v785 = vpop.f32.mrb[0].mxu0
        %786 = vmatprep.mubr.f32.mxu0 0.0
        %787 = vmatmul.mubr.f32.gmra.mrb[0].mxu0 %v633
        %v788 = vpop.f32.mrb[0].mxu0
        %v789 = vadd.f32 0.0, %v788
        %v790 = vpop.f32.mrb[0].mxu0
        %791 = vmatprep.mubr.f32.mxu0 0.0
        %792 = vmatmul.mubr.f32.gmra.mrb[0].mxu0 %v634
        %v793 = vpop.f32.mrb[0].mxu0
        %v794 = vadd.f32 0.0, %v793
        %v795 = vpop.f32.mrb[0].mxu0
        %796 = vmatprep.mubr.f32.mxu0 0.0
        %797 = vmatmul.mubr.f32.gmra.mrb[0].mxu0 %v635
        %v798 = vpop.f32.mrb[0].mxu0
        %v799 = vadd.f32 0.0, %v798
        %v800 = vpop.f32.mrb[0].mxu0
        %801 = vmatprep.mubr.f32.mxu0 0.0
        %802 = vmatmul.mubr.f32.gmra.mrb[0].mxu0 %v636
        %v803 = vpop.f32.mrb[0].mxu0
        %v804 = vadd.f32 0.0, %v803
        %v805 = vpop.f32.mrb[0].mxu0
        %806 = vmatprep.mubr.f32.mxu0 0.0
        %807 = vmatmul.mubr.f32.gmra.mrb[0].mxu0 %v637
        %v808 = vpop.f32.mrb[0].mxu0
        %v809 = vadd.f32 0.0, %v808
        %v810 = vpop.f32.mrb[0].mxu0
        %811 = vmatprep.mubr.f32.mxu0 0.0
        %812 = vmatmul.mubr.f32.gmra.mrb[0].mxu0 %v638
        %v813 = vpop.f32.mrb[0].mxu0
        %v814 = vadd.f32 0.0, %v813
        %v815 = vpop.f32.mrb[0].mxu0
        %816 = vmatprep.mubr.f32.mxu0 0.0
        %817 = vmatmul.mubr.f32.gmra.mrb[0].mxu0 %v639
        %v818 = vpop.f32.mrb[0].mxu0
        %v819 = vadd.f32 0.0, %v818
        %v820 = vpop.f32.mrb[0].mxu0
        %821 = vdwg.mxu0
        %v822 = vld [vmem:[#allocation4] sm:$0xff]
        %v823 = vld [vmem:[#allocation4 + $0x8] sm:$0xff]
        %v824 = vld [vmem:[#allocation4 + $0x10] sm:$0xff]
        %v825 = vld [vmem:[#allocation4 + $0x18] sm:$0xff]
        %v826 = vld [vmem:[#allocation4 + $0x20] sm:$0xff]
        %v827 = vld [vmem:[#allocation4 + $0x28] sm:$0xff]
        %v828 = vld [vmem:[#allocation4 + $0x30] sm:$0xff]
        %v829 = vld [vmem:[#allocation4 + $0x38] sm:$0xff]
        %v830 = vld [vmem:[#allocation4 + $0x40] sm:$0xff]
        %v831 = vld [vmem:[#allocation4 + $0x48] sm:$0xff]
        %v832 = vld [vmem:[#allocation4 + $0x50] sm:$0xff]
        %v833 = vld [vmem:[#allocation4 + $0x58] sm:$0xff]
        %v834 = vld [vmem:[#allocation4 + $0x60] sm:$0xff]
        %v835 = vld [vmem:[#allocation4 + $0x68] sm:$0xff]
        %v836 = vld [vmem:[#allocation4 + $0x70] sm:$0xff]
        %v837 = vld [vmem:[#allocation4 + $0x78] sm:$0xff]
        %v838 = vld [vmem:[#allocation4 + $0x80] sm:$0xff]
        %v839 = vld [vmem:[#allocation4 + $0x88] sm:$0xff]
        %v840 = vld [vmem:[#allocation4 + $0x90] sm:$0xff]
        %v841 = vld [vmem:[#allocation4 + $0x98] sm:$0xff]
        %v842 = vadd.f32 %v822, %v724
        %v843 = vadd.f32 %v823, %v729
        %v844 = vadd.f32 %v824, %v734
        %v845 = vadd.f32 %v825, %v739
        %v846 = vadd.f32 %v826, %v744
        %v847 = vadd.f32 %v827, %v749
        %v848 = vadd.f32 %v828, %v754
        %v849 = vadd.f32 %v829, %v759
        %v850 = vadd.f32 %v830, %v764
        %v851 = vadd.f32 %v831, %v769
        %v852 = vadd.f32 %v832, %v774
        %v853 = vadd.f32 %v833, %v779
        %v854 = vadd.f32 %v834, %v784
        %v855 = vadd.f32 %v835, %v789
        %v856 = vadd.f32 %v836, %v794
        %v857 = vadd.f32 %v837, %v799
        %v858 = vadd.f32 %v838, %v804
        %v859 = vadd.f32 %v839, %v809
        %v860 = vadd.f32 %v840, %v814
        %v861 = vadd.f32 %v841, %v819
        %862 = vst [vmem:[#allocation4] sm:$0xff] %v842
        %863 = vst [vmem:[#allocation4 + $0x8] sm:$0xff] %v843
        %864 = vst [vmem:[#allocation4 + $0x10] sm:$0xff] %v844
        %865 = vst [vmem:[#allocation4 + $0x18] sm:$0xff] %v845
        %866 = vst [vmem:[#allocation4 + $0x20] sm:$0xff] %v846
        %867 = vst [vmem:[#allocation4 + $0x28] sm:$0xff] %v847
        %868 = vst [vmem:[#allocation4 + $0x30] sm:$0xff] %v848
        %869 = vst [vmem:[#allocation4 + $0x38] sm:$0xff] %v849
        %870 = vst [vmem:[#allocation4 + $0x40] sm:$0xff] %v850
        %871 = vst [vmem:[#allocation4 + $0x48] sm:$0xff] %v851
        %872 = vst [vmem:[#allocation4 + $0x50] sm:$0xff] %v852
        %873 = vst [vmem:[#allocation4 + $0x58] sm:$0xff] %v853
        %874 = vst [vmem:[#allocation4 + $0x60] sm:$0xff] %v854
        %875 = vst [vmem:[#allocation4 + $0x68] sm:$0xff] %v855
        %876 = vst [vmem:[#allocation4 + $0x70] sm:$0xff] %v856
        %877 = vst [vmem:[#allocation4 + $0x78] sm:$0xff] %v857
        %878 = vst [vmem:[#allocation4 + $0x80] sm:$0xff] %v858
        %879 = vst [vmem:[#allocation4 + $0x88] sm:$0xff] %v859
        %880 = vst [vmem:[#allocation4 + $0x90] sm:$0xff] %v860
        %881 = vst [vmem:[#allocation4 + $0x98] sm:$0xff] %v861
        %v882 = vld [vmem:[#allocation2 + $0x2] sm:$0xff]
        %v883 = vld [vmem:[#allocation2 + $0xa] sm:$0xff]
        %v884 = vld [vmem:[#allocation2 + $0x1a] sm:$0xff]
        %v885 = vld [vmem:[#allocation2 + $0x22] sm:$0xff]
        %v886 = vld [vmem:[#allocation2 + $0x32] sm:$0xff]
        %v887 = vld [vmem:[#allocation2 + $0x3a] sm:$0xff]
        %v888 = vld [vmem:[#allocation2 + $0x4a] sm:$0xff]
        %v889 = vld [vmem:[#allocation2 + $0x52] sm:$0xff]
        %v890 = vld [vmem:[#allocation2 + $0x62] sm:$0xff]
        %v891 = vld [vmem:[#allocation2 + $0x6a] sm:$0xff]
        %v892 = vld [vmem:[#allocation2 + $0x7a] sm:$0xff]
        %v893 = vld [vmem:[#allocation2 + $0x82] sm:$0xff]
        %v894 = vld [vmem:[#allocation2 + $0x92] sm:$0xff]
        %v895 = vld [vmem:[#allocation2 + $0x9a] sm:$0xff]
        %v896 = vld [vmem:[#allocation2 + $0xaa] sm:$0xff]
        %v897 = vld [vmem:[#allocation2 + $0xb2] sm:$0xff]
        %v898 = vld [vmem:[#allocation2 + $0xc2] sm:$0xff]
        %v899 = vld [vmem:[#allocation2 + $0xca] sm:$0xff]
        %v900 = vld [vmem:[#allocation2 + $0xda] sm:$0xff]
        %v901 = vld [vmem:[#allocation2 + $0xe2] sm:$0xff]
        %s902 = scalar_lea.vmem [#allocation9], 256
        %v903 = vld [vmem:[%s902] sm:$0xff]
        %v904 = vld [vmem:[%s902 + $0x8] sm:$0xff]
        %v905 = vld [vmem:[%s902 + $0x10] sm:$0xff]
        %v906 = vld [vmem:[%s902 + $0x18] sm:$0xff]
        %v907 = vld [vmem:[%s902 + $0x20] sm:$0xff]
        %v908 = vld [vmem:[%s902 + $0x28] sm:$0xff]
        %v909 = vld [vmem:[%s902 + $0x30] sm:$0xff]
        %v910 = vld [vmem:[%s902 + $0x38] sm:$0xff]
        %v911 = vld [vmem:[%s902 + $0x40] sm:$0xff]
        %v912 = vld [vmem:[%s902 + $0x48] sm:$0xff]
        %v913 = vld [vmem:[%s902 + $0x50] sm:$0xff]
        %v914 = vld [vmem:[%s902 + $0x58] sm:$0xff]
        %v915 = vld [vmem:[%s902 + $0x60] sm:$0xff]
        %v916 = vld [vmem:[%s902 + $0x68] sm:$0xff]
        %v917 = vld [vmem:[%s902 + $0x70] sm:$0xff]
        %v918 = vld [vmem:[%s902 + $0x78] sm:$0xff]
        %919 = vmatprep.subr.mxu0 0.0
        %920 = vmatpush1.msra.mxu0 %v903
        %921 = vmatprep.subr.mxu0 0.0
        %922 = vmatpush1.msra.mxu0 %v904
        %923 = vmatprep.subr.mxu0 0.0
        %924 = vmatpush1.msra.mxu0 %v905
        %925 = vmatprep.subr.mxu0 0.0
        %926 = vmatpush1.msra.mxu0 %v906
        %927 = vmatprep.subr.mxu0 0.0
        %928 = vmatpush1.msra.mxu0 %v907
        %929 = vmatprep.subr.mxu0 0.0
        %930 = vmatpush1.msra.mxu0 %v908
        %931 = vmatprep.subr.mxu0 0.0
        %932 = vmatpush1.msra.mxu0 %v909
        %933 = vmatprep.subr.mxu0 0.0
        %934 = vmatpush1.msra.mxu0 %v910
        %935 = vmatprep.subr.mxu0 0.0
        %936 = vmatpush1.msra.mxu0 %v911
        %937 = vmatprep.subr.mxu0 0.0
        %938 = vmatpush1.msra.mxu0 %v912
        %939 = vmatprep.subr.mxu0 0.0
        %940 = vmatpush1.msra.mxu0 %v913
        %941 = vmatprep.subr.mxu0 0.0
        %942 = vmatpush1.msra.mxu0 %v914
        %943 = vmatprep.subr.mxu0 0.0
        %944 = vmatpush1.msra.mxu0 %v915
        %945 = vmatprep.subr.mxu0 0.0
        %946 = vmatpush1.msra.mxu0 %v916
        %947 = vmatprep.subr.mxu0 0.0
        %948 = vmatpush1.msra.mxu0 %v917
        %949 = vmatprep.subr.mxu0 0.0
        %950 = vmatpush1.msra.mxu0 %v918
        %951 = vmatprep.subr.mxu0 0.0
        %952 = vmatpush1.msra.mxu0 0.0
        %953 = vmatprep.subr.mxu0 0.0
        %954 = vmatpush1.msra.mxu0 0.0
        %955 = vmatprep.subr.mxu0 0.0
        %956 = vmatpush1.msra.mxu0 0.0
        %957 = vmatprep.subr.mxu0 0.0
        %958 = vmatpush1.msra.mxu0 0.0
        %959 = vmatprep.subr.mxu0 0.0
        %960 = vmatpush1.msra.mxu0 0.0
        %961 = vmatprep.subr.mxu0 0.0
        %962 = vmatpush1.msra.mxu0 0.0
        %963 = vmatprep.subr.mxu0 0.0
        %964 = vmatpush1.msra.mxu0 0.0
        %965 = vmatprep.subr.mxu0 0.0
        %966 = vmatpush1.msra.mxu0 0.0
        %967 = vmatprep.subr.mxu0 0.0
        %968 = vmatpush1.msra.mxu0 0.0
        %969 = vmatprep.subr.mxu0 0.0
        %970 = vmatpush1.msra.mxu0 0.0
        %971 = vmatprep.subr.mxu0 0.0
        %972 = vmatpush1.msra.mxu0 0.0
        %973 = vmatprep.subr.mxu0 0.0
        %974 = vmatpush1.msra.mxu0 0.0
        %975 = vmatprep.subr.mxu0 0.0
        %976 = vmatpush1.msra.mxu0 0.0
        %977 = vmatprep.subr.mxu0 0.0
        %978 = vmatpush1.msra.mxu0 0.0
        %979 = vmatprep.subr.mxu0 0.0
        %980 = vmatpush1.msra.mxu0 0.0
        %981 = vmatprep.subr.mxu0 0.0
        %982 = vmatpush1.msra.mxu0 0.0
        %983 = vmatprep.mubr.f32.mxu0 0.0
        %984 = vmatmul.mubr.f32.gmra.mrb[0].mxu0 %v882
        %v985 = vpop.f32.mrb[0].mxu0
        %v986 = vadd.f32 0.0, %v985
        %v987 = vpop.f32.mrb[0].mxu0
        %988 = vmatprep.mubr.f32.mxu0 0.0
        %989 = vmatmul.mubr.f32.gmra.mrb[0].mxu0 %v883
        %v990 = vpop.f32.mrb[0].mxu0
        %v991 = vadd.f32 0.0, %v990
        %v992 = vpop.f32.mrb[0].mxu0
        %993 = vmatprep.mubr.f32.mxu0 0.0
        %994 = vmatmul.mubr.f32.gmra.mrb[0].mxu0 %v884
        %v995 = vpop.f32.mrb[0].mxu0
        %v996 = vadd.f32 0.0, %v995
        %v997 = vpop.f32.mrb[0].mxu0
        %998 = vmatprep.mubr.f32.mxu0 0.0
        %999 = vmatmul.mubr.f32.gmra.mrb[0].mxu0 %v885
        %v1000 = vpop.f32.mrb[0].mxu0
        %v1001 = vadd.f32 0.0, %v1000
        %v1002 = vpop.f32.mrb[0].mxu0
        %1003 = vmatprep.mubr.f32.mxu0 0.0
        %1004 = vmatmul.mubr.f32.gmra.mrb[0].mxu0 %v886
        %v1005 = vpop.f32.mrb[0].mxu0
        %v1006 = vadd.f32 0.0, %v1005
        %v1007 = vpop.f32.mrb[0].mxu0
        %1008 = vmatprep.mubr.f32.mxu0 0.0
        %1009 = vmatmul.mubr.f32.gmra.mrb[0].mxu0 %v887
        %v1010 = vpop.f32.mrb[0].mxu0
        %v1011 = vadd.f32 0.0, %v1010
        %v1012 = vpop.f32.mrb[0].mxu0
        %1013 = vmatprep.mubr.f32.mxu0 0.0
        %1014 = vmatmul.mubr.f32.gmra.mrb[0].mxu0 %v888
        %v1015 = vpop.f32.mrb[0].mxu0
        %v1016 = vadd.f32 0.0, %v1015
        %v1017 = vpop.f32.mrb[0].mxu0
        %1018 = vmatprep.mubr.f32.mxu0 0.0
        %1019 = vmatmul.mubr.f32.gmra.mrb[0].mxu0 %v889
        %v1020 = vpop.f32.mrb[0].mxu0
        %v1021 = vadd.f32 0.0, %v1020
        %v1022 = vpop.f32.mrb[0].mxu0
        %1023 = vmatprep.mubr.f32.mxu0 0.0
        %1024 = vmatmul.mubr.f32.gmra.mrb[0].mxu0 %v890
        %v1025 = vpop.f32.mrb[0].mxu0
        %v1026 = vadd.f32 0.0, %v1025
        %v1027 = vpop.f32.mrb[0].mxu0
        %1028 = vmatprep.mubr.f32.mxu0 0.0
        %1029 = vmatmul.mubr.f32.gmra.mrb[0].mxu0 %v891
        %v1030 = vpop.f32.mrb[0].mxu0
        %v1031 = vadd.f32 0.0, %v1030
        %v1032 = vpop.f32.mrb[0].mxu0
        %1033 = vmatprep.mubr.f32.mxu0 0.0
        %1034 = vmatmul.mubr.f32.gmra.mrb[0].mxu0 %v892
        %v1035 = vpop.f32.mrb[0].mxu0
        %v1036 = vadd.f32 0.0, %v1035
        %v1037 = vpop.f32.mrb[0].mxu0
        %1038 = vmatprep.mubr.f32.mxu0 0.0
        %1039 = vmatmul.mubr.f32.gmra.mrb[0].mxu0 %v893
        %v1040 = vpop.f32.mrb[0].mxu0
        %v1041 = vadd.f32 0.0, %v1040
        %v1042 = vpop.f32.mrb[0].mxu0
        %1043 = vmatprep.mubr.f32.mxu0 0.0
        %1044 = vmatmul.mubr.f32.gmra.mrb[0].mxu0 %v894
        %v1045 = vpop.f32.mrb[0].mxu0
        %v1046 = vadd.f32 0.0, %v1045
        %v1047 = vpop.f32.mrb[0].mxu0
        %1048 = vmatprep.mubr.f32.mxu0 0.0
        %1049 = vmatmul.mubr.f32.gmra.mrb[0].mxu0 %v895
        %v1050 = vpop.f32.mrb[0].mxu0
        %v1051 = vadd.f32 0.0, %v1050
        %v1052 = vpop.f32.mrb[0].mxu0
        %1053 = vmatprep.mubr.f32.mxu0 0.0
        %1054 = vmatmul.mubr.f32.gmra.mrb[0].mxu0 %v896
        %v1055 = vpop.f32.mrb[0].mxu0
        %v1056 = vadd.f32 0.0, %v1055
        %v1057 = vpop.f32.mrb[0].mxu0
        %1058 = vmatprep.mubr.f32.mxu0 0.0
        %1059 = vmatmul.mubr.f32.gmra.mrb[0].mxu0 %v897
        %v1060 = vpop.f32.mrb[0].mxu0
        %v1061 = vadd.f32 0.0, %v1060
        %v1062 = vpop.f32.mrb[0].mxu0
        %1063 = vmatprep.mubr.f32.mxu0 0.0
        %1064 = vmatmul.mubr.f32.gmra.mrb[0].mxu0 %v898
        %v1065 = vpop.f32.mrb[0].mxu0
        %v1066 = vadd.f32 0.0, %v1065
        %v1067 = vpop.f32.mrb[0].mxu0
        %1068 = vmatprep.mubr.f32.mxu0 0.0
        %1069 = vmatmul.mubr.f32.gmra.mrb[0].mxu0 %v899
        %v1070 = vpop.f32.mrb[0].mxu0
        %v1071 = vadd.f32 0.0, %v1070
        %v1072 = vpop.f32.mrb[0].mxu0
        %1073 = vmatprep.mubr.f32.mxu0 0.0
        %1074 = vmatmul.mubr.f32.gmra.mrb[0].mxu0 %v900
        %v1075 = vpop.f32.mrb[0].mxu0
        %v1076 = vadd.f32 0.0, %v1075
        %v1077 = vpop.f32.mrb[0].mxu0
        %1078 = vmatprep.mubr.f32.mxu0 0.0
        %1079 = vmatmul.mubr.f32.gmra.mrb[0].mxu0 %v901
        %v1080 = vpop.f32.mrb[0].mxu0
        %v1081 = vadd.f32 0.0, %v1080
        %v1082 = vpop.f32.mrb[0].mxu0
        %1083 = vdwg.mxu0
        %v1084 = vld [vmem:[#allocation4] sm:$0xff]
        %v1085 = vld [vmem:[#allocation4 + $0x8] sm:$0xff]
        %v1086 = vld [vmem:[#allocation4 + $0x10] sm:$0xff]
        %v1087 = vld [vmem:[#allocation4 + $0x18] sm:$0xff]
        %v1088 = vld [vmem:[#allocation4 + $0x20] sm:$0xff]
        %v1089 = vld [vmem:[#allocation4 + $0x28] sm:$0xff]
        %v1090 = vld [vmem:[#allocation4 + $0x30] sm:$0xff]
        %v1091 = vld [vmem:[#allocation4 + $0x38] sm:$0xff]
        %v1092 = vld [vmem:[#allocation4 + $0x40] sm:$0xff]
        %v1093 = vld [vmem:[#allocation4 + $0x48] sm:$0xff]
        %v1094 = vld [vmem:[#allocation4 + $0x50] sm:$0xff]
        %v1095 = vld [vmem:[#allocation4 + $0x58] sm:$0xff]
        %v1096 = vld [vmem:[#allocation4 + $0x60] sm:$0xff]
        %v1097 = vld [vmem:[#allocation4 + $0x68] sm:$0xff]
        %v1098 = vld [vmem:[#allocation4 + $0x70] sm:$0xff]
        %v1099 = vld [vmem:[#allocation4 + $0x78] sm:$0xff]
        %v1100 = vld [vmem:[#allocation4 + $0x80] sm:$0xff]
        %v1101 = vld [vmem:[#allocation4 + $0x88] sm:$0xff]
        %v1102 = vld [vmem:[#allocation4 + $0x90] sm:$0xff]
        %v1103 = vld [vmem:[#allocation4 + $0x98] sm:$0xff]
        %v1104 = vadd.f32 %v1084, %v986
        %v1105 = vadd.f32 %v1085, %v991
        %v1106 = vadd.f32 %v1086, %v996
        %v1107 = vadd.f32 %v1087, %v1001
        %v1108 = vadd.f32 %v1088, %v1006
        %v1109 = vadd.f32 %v1089, %v1011
        %v1110 = vadd.f32 %v1090, %v1016
        %v1111 = vadd.f32 %v1091, %v1021
        %v1112 = vadd.f32 %v1092, %v1026
        %v1113 = vadd.f32 %v1093, %v1031
        %v1114 = vadd.f32 %v1094, %v1036
        %v1115 = vadd.f32 %v1095, %v1041
        %v1116 = vadd.f32 %v1096, %v1046
        %v1117 = vadd.f32 %v1097, %v1051
        %v1118 = vadd.f32 %v1098, %v1056
        %v1119 = vadd.f32 %v1099, %v1061
        %v1120 = vadd.f32 %v1100, %v1066
        %v1121 = vadd.f32 %v1101, %v1071
        %v1122 = vadd.f32 %v1102, %v1076
        %v1123 = vadd.f32 %v1103, %v1081
        %1124 = vst [vmem:[#allocation4] sm:$0xff] %v1104
        %1125 = vst [vmem:[#allocation4 + $0x8] sm:$0xff] %v1105
        %1126 = vst [vmem:[#allocation4 + $0x10] sm:$0xff] %v1106
        %1127 = vst [vmem:[#allocation4 + $0x18] sm:$0xff] %v1107
        %1128 = vst [vmem:[#allocation4 + $0x20] sm:$0xff] %v1108
        %1129 = vst [vmem:[#allocation4 + $0x28] sm:$0xff] %v1109
        %1130 = vst [vmem:[#allocation4 + $0x30] sm:$0xff] %v1110
        %1131 = vst [vmem:[#allocation4 + $0x38] sm:$0xff] %v1111
        %1132 = vst [vmem:[#allocation4 + $0x40] sm:$0xff] %v1112
        %1133 = vst [vmem:[#allocation4 + $0x48] sm:$0xff] %v1113
        %1134 = vst [vmem:[#allocation4 + $0x50] sm:$0xff] %v1114
        %1135 = vst [vmem:[#allocation4 + $0x58] sm:$0xff] %v1115
        %1136 = vst [vmem:[#allocation4 + $0x60] sm:$0xff] %v1116
        %1137 = vst [vmem:[#allocation4 + $0x68] sm:$0xff] %v1117
        %1138 = vst [vmem:[#allocation4 + $0x70] sm:$0xff] %v1118
        %1139 = vst [vmem:[#allocation4 + $0x78] sm:$0xff] %v1119
        %1140 = vst [vmem:[#allocation4 + $0x80] sm:$0xff] %v1120
        %1141 = vst [vmem:[#allocation4 + $0x88] sm:$0xff] %v1121
        %1142 = vst [vmem:[#allocation4 + $0x90] sm:$0xff] %v1122
        %1143 = vst [vmem:[#allocation4 + $0x98] sm:$0xff] %v1123
        %s1144 = scalar_lea.vmem [#allocation2], 24
        %v1145 = vld [vmem:[%s1144] sm:$0xff]
        %v1146 = vld [vmem:[%s1144 + $0x8] sm:$0xff]
        %v1147 = vld [vmem:[%s1144 + $0x18] sm:$0xff]
        %v1148 = vld [vmem:[%s1144 + $0x20] sm:$0xff]
        %v1149 = vld [vmem:[%s1144 + $0x30] sm:$0xff]
        %v1150 = vld [vmem:[%s1144 + $0x38] sm:$0xff]
        %v1151 = vld [vmem:[%s1144 + $0x48] sm:$0xff]
        %v1152 = vld [vmem:[%s1144 + $0x50] sm:$0xff]
        %v1153 = vld [vmem:[%s1144 + $0x60] sm:$0xff]
        %v1154 = vld [vmem:[%s1144 + $0x68] sm:$0xff]
        %v1155 = vld [vmem:[%s1144 + $0x78] sm:$0xff]
        %v1156 = vld [vmem:[%s1144 + $0x80] sm:$0xff]
        %v1157 = vld [vmem:[%s1144 + $0x90] sm:$0xff]
        %v1158 = vld [vmem:[%s1144 + $0x98] sm:$0xff]
        %v1159 = vld [vmem:[%s1144 + $0xa8] sm:$0xff]
        %v1160 = vld [vmem:[%s1144 + $0xb0] sm:$0xff]
        %v1161 = vld [vmem:[%s1144 + $0xc0] sm:$0xff]
        %v1162 = vld [vmem:[%s1144 + $0xc8] sm:$0xff]
        %v1163 = vld [vmem:[%s1144 + $0xd8] sm:$0xff]
        %v1164 = vld [vmem:[%s1144 + $0xe0] sm:$0xff]
        %s1165 = scalar_lea.vmem [#allocation9], 384
        %v1166 = vld [vmem:[%s1165] sm:$0xff]
        %v1167 = vld [vmem:[%s1165 + $0x8] sm:$0xff]
        %v1168 = vld [vmem:[%s1165 + $0x10] sm:$0xff]
        %v1169 = vld [vmem:[%s1165 + $0x18] sm:$0xff]
        %v1170 = vld [vmem:[%s1165 + $0x20] sm:$0xff]
        %v1171 = vld [vmem:[%s1165 + $0x28] sm:$0xff]
        %v1172 = vld [vmem:[%s1165 + $0x30] sm:$0xff]
        %v1173 = vld [vmem:[%s1165 + $0x38] sm:$0xff]
        %v1174 = vld [vmem:[%s1165 + $0x40] sm:$0xff]
        %v1175 = vld [vmem:[%s1165 + $0x48] sm:$0xff]
        %v1176 = vld [vmem:[%s1165 + $0x50] sm:$0xff]
        %v1177 = vld [vmem:[%s1165 + $0x58] sm:$0xff]
        %v1178 = vld [vmem:[%s1165 + $0x60] sm:$0xff]
        %v1179 = vld [vmem:[%s1165 + $0x68] sm:$0xff]
        %v1180 = vld [vmem:[%s1165 + $0x70] sm:$0xff]
        %v1181 = vld [vmem:[%s1165 + $0x78] sm:$0xff]
        %1182 = vmatprep.subr.mxu0 0.0
        %1183 = vmatpush1.msra.mxu0 %v1166
        %1184 = vmatprep.subr.mxu0 0.0
        %1185 = vmatpush1.msra.mxu0 %v1167
        %1186 = vmatprep.subr.mxu0 0.0
        %1187 = vmatpush1.msra.mxu0 %v1168
        %1188 = vmatprep.subr.mxu0 0.0
        %1189 = vmatpush1.msra.mxu0 %v1169
        %1190 = vmatprep.subr.mxu0 0.0
        %1191 = vmatpush1.msra.mxu0 %v1170
        %1192 = vmatprep.subr.mxu0 0.0
        %1193 = vmatpush1.msra.mxu0 %v1171
        %1194 = vmatprep.subr.mxu0 0.0
        %1195 = vmatpush1.msra.mxu0 %v1172
        %1196 = vmatprep.subr.mxu0 0.0
        %1197 = vmatpush1.msra.mxu0 %v1173
        %1198 = vmatprep.subr.mxu0 0.0
        %1199 = vmatpush1.msra.mxu0 %v1174
        %1200 = vmatprep.subr.mxu0 0.0
        %1201 = vmatpush1.msra.mxu0 %v1175
        %1202 = vmatprep.subr.mxu0 0.0
        %1203 = vmatpush1.msra.mxu0 %v1176
        %1204 = vmatprep.subr.mxu0 0.0
        %1205 = vmatpush1.msra.mxu0 %v1177
        %1206 = vmatprep.subr.mxu0 0.0
        %1207 = vmatpush1.msra.mxu0 %v1178
        %1208 = vmatprep.subr.mxu0 0.0
        %1209 = vmatpush1.msra.mxu0 %v1179
        %1210 = vmatprep.subr.mxu0 0.0
        %1211 = vmatpush1.msra.mxu0 %v1180
        %1212 = vmatprep.subr.mxu0 0.0
        %1213 = vmatpush1.msra.mxu0 %v1181
        %1214 = vmatprep.subr.mxu0 0.0
        %1215 = vmatpush1.msra.mxu0 0.0
        %1216 = vmatprep.subr.mxu0 0.0
        %1217 = vmatpush1.msra.mxu0 0.0
        %1218 = vmatprep.subr.mxu0 0.0
        %1219 = vmatpush1.msra.mxu0 0.0
        %1220 = vmatprep.subr.mxu0 0.0
        %1221 = vmatpush1.msra.mxu0 0.0
        %1222 = vmatprep.subr.mxu0 0.0
        %1223 = vmatpush1.msra.mxu0 0.0
        %1224 = vmatprep.subr.mxu0 0.0
        %1225 = vmatpush1.msra.mxu0 0.0
        %1226 = vmatprep.subr.mxu0 0.0
        %1227 = vmatpush1.msra.mxu0 0.0
        %1228 = vmatprep.subr.mxu0 0.0
        %1229 = vmatpush1.msra.mxu0 0.0
        %1230 = vmatprep.subr.mxu0 0.0
        %1231 = vmatpush1.msra.mxu0 0.0
        %1232 = vmatprep.subr.mxu0 0.0
        %1233 = vmatpush1.msra.mxu0 0.0
        %1234 = vmatprep.subr.mxu0 0.0
        %1235 = vmatpush1.msra.mxu0 0.0
        %1236 = vmatprep.subr.mxu0 0.0
        %1237 = vmatpush1.msra.mxu0 0.0
        %1238 = vmatprep.subr.mxu0 0.0
        %1239 = vmatpush1.msra.mxu0 0.0
        %1240 = vmatprep.subr.mxu0 0.0
        %1241 = vmatpush1.msra.mxu0 0.0
        %1242 = vmatprep.subr.mxu0 0.0
        %1243 = vmatpush1.msra.mxu0 0.0
        %1244 = vmatprep.subr.mxu0 0.0
        %1245 = vmatpush1.msra.mxu0 0.0
        %1246 = vmatprep.mubr.f32.mxu0 0.0
        %1247 = vmatmul.mubr.f32.gmra.mrb[0].mxu0 %v1145
        %v1248 = vpop.f32.mrb[0].mxu0
        %v1249 = vadd.f32 0.0, %v1248
        %v1250 = vpop.f32.mrb[0].mxu0
        %1251 = vmatprep.mubr.f32.mxu0 0.0
        %1252 = vmatmul.mubr.f32.gmra.mrb[0].mxu0 %v1146
        %v1253 = vpop.f32.mrb[0].mxu0
        %v1254 = vadd.f32 0.0, %v1253
        %v1255 = vpop.f32.mrb[0].mxu0
        %1256 = vmatprep.mubr.f32.mxu0 0.0
        %1257 = vmatmul.mubr.f32.gmra.mrb[0].mxu0 %v1147
        %v1258 = vpop.f32.mrb[0].mxu0
        %v1259 = vadd.f32 0.0, %v1258
        %v1260 = vpop.f32.mrb[0].mxu0
        %1261 = vmatprep.mubr.f32.mxu0 0.0
        %1262 = vmatmul.mubr.f32.gmra.mrb[0].mxu0 %v1148
        %v1263 = vpop.f32.mrb[0].mxu0
        %v1264 = vadd.f32 0.0, %v1263
        %v1265 = vpop.f32.mrb[0].mxu0
        %1266 = vmatprep.mubr.f32.mxu0 0.0
        %1267 = vmatmul.mubr.f32.gmra.mrb[0].mxu0 %v1149
        %v1268 = vpop.f32.mrb[0].mxu0
        %v1269 = vadd.f32 0.0, %v1268
        %v1270 = vpop.f32.mrb[0].mxu0
        %1271 = vmatprep.mubr.f32.mxu0 0.0
        %1272 = vmatmul.mubr.f32.gmra.mrb[0].mxu0 %v1150
        %v1273 = vpop.f32.mrb[0].mxu0
        %v1274 = vadd.f32 0.0, %v1273
        %v1275 = vpop.f32.mrb[0].mxu0
        %1276 = vmatprep.mubr.f32.mxu0 0.0
        %1277 = vmatmul.mubr.f32.gmra.mrb[0].mxu0 %v1151
        %v1278 = vpop.f32.mrb[0].mxu0
        %v1279 = vadd.f32 0.0, %v1278
        %v1280 = vpop.f32.mrb[0].mxu0
        %1281 = vmatprep.mubr.f32.mxu0 0.0
        %1282 = vmatmul.mubr.f32.gmra.mrb[0].mxu0 %v1152
        %v1283 = vpop.f32.mrb[0].mxu0
        %v1284 = vadd.f32 0.0, %v1283
        %v1285 = vpop.f32.mrb[0].mxu0
        %1286 = vmatprep.mubr.f32.mxu0 0.0
        %1287 = vmatmul.mubr.f32.gmra.mrb[0].mxu0 %v1153
        %v1288 = vpop.f32.mrb[0].mxu0
        %v1289 = vadd.f32 0.0, %v1288
        %v1290 = vpop.f32.mrb[0].mxu0
        %1291 = vmatprep.mubr.f32.mxu0 0.0
        %1292 = vmatmul.mubr.f32.gmra.mrb[0].mxu0 %v1154
        %v1293 = vpop.f32.mrb[0].mxu0
        %v1294 = vadd.f32 0.0, %v1293
        %v1295 = vpop.f32.mrb[0].mxu0
        %1296 = vmatprep.mubr.f32.mxu0 0.0
        %1297 = vmatmul.mubr.f32.gmra.mrb[0].mxu0 %v1155
        %v1298 = vpop.f32.mrb[0].mxu0
        %v1299 = vadd.f32 0.0, %v1298
        %v1300 = vpop.f32.mrb[0].mxu0
        %1301 = vmatprep.mubr.f32.mxu0 0.0
        %1302 = vmatmul.mubr.f32.gmra.mrb[0].mxu0 %v1156
        %v1303 = vpop.f32.mrb[0].mxu0
        %v1304 = vadd.f32 0.0, %v1303
        %v1305 = vpop.f32.mrb[0].mxu0
        %1306 = vmatprep.mubr.f32.mxu0 0.0
        %1307 = vmatmul.mubr.f32.gmra.mrb[0].mxu0 %v1157
        %v1308 = vpop.f32.mrb[0].mxu0
        %v1309 = vadd.f32 0.0, %v1308
        %v1310 = vpop.f32.mrb[0].mxu0
        %1311 = vmatprep.mubr.f32.mxu0 0.0
        %1312 = vmatmul.mubr.f32.gmra.mrb[0].mxu0 %v1158
        %v1313 = vpop.f32.mrb[0].mxu0
        %v1314 = vadd.f32 0.0, %v1313
        %v1315 = vpop.f32.mrb[0].mxu0
        %1316 = vmatprep.mubr.f32.mxu0 0.0
        %1317 = vmatmul.mubr.f32.gmra.mrb[0].mxu0 %v1159
        %v1318 = vpop.f32.mrb[0].mxu0
        %v1319 = vadd.f32 0.0, %v1318
        %v1320 = vpop.f32.mrb[0].mxu0
        %1321 = vmatprep.mubr.f32.mxu0 0.0
        %1322 = vmatmul.mubr.f32.gmra.mrb[0].mxu0 %v1160
        %v1323 = vpop.f32.mrb[0].mxu0
        %v1324 = vadd.f32 0.0, %v1323
        %v1325 = vpop.f32.mrb[0].mxu0
        %1326 = vmatprep.mubr.f32.mxu0 0.0
        %1327 = vmatmul.mubr.f32.gmra.mrb[0].mxu0 %v1161
        %v1328 = vpop.f32.mrb[0].mxu0
        %v1329 = vadd.f32 0.0, %v1328
        %v1330 = vpop.f32.mrb[0].mxu0
        %1331 = vmatprep.mubr.f32.mxu0 0.0
        %1332 = vmatmul.mubr.f32.gmra.mrb[0].mxu0 %v1162
        %v1333 = vpop.f32.mrb[0].mxu0
        %v1334 = vadd.f32 0.0, %v1333
        %v1335 = vpop.f32.mrb[0].mxu0
        %1336 = vmatprep.mubr.f32.mxu0 0.0
        %1337 = vmatmul.mubr.f32.gmra.mrb[0].mxu0 %v1163
        %v1338 = vpop.f32.mrb[0].mxu0
        %v1339 = vadd.f32 0.0, %v1338
        %v1340 = vpop.f32.mrb[0].mxu0
        %1341 = vmatprep.mubr.f32.mxu0 0.0
        %1342 = vmatmul.mubr.f32.gmra.mrb[0].mxu0 %v1164
        %v1343 = vpop.f32.mrb[0].mxu0
        %v1344 = vadd.f32 0.0, %v1343
        %v1345 = vpop.f32.mrb[0].mxu0
        %1346 = vdwg.mxu0
        %v1347 = vld [vmem:[#allocation4] sm:$0xff]
        %v1348 = vld [vmem:[#allocation4 + $0x8] sm:$0xff]
        %v1349 = vld [vmem:[#allocation4 + $0x10] sm:$0xff]
        %v1350 = vld [vmem:[#allocation4 + $0x18] sm:$0xff]
        %v1351 = vld [vmem:[#allocation4 + $0x20] sm:$0xff]
        %v1352 = vld [vmem:[#allocation4 + $0x28] sm:$0xff]
        %v1353 = vld [vmem:[#allocation4 + $0x30] sm:$0xff]
        %v1354 = vld [vmem:[#allocation4 + $0x38] sm:$0xff]
        %v1355 = vld [vmem:[#allocation4 + $0x40] sm:$0xff]
        %v1356 = vld [vmem:[#allocation4 + $0x48] sm:$0xff]
        %v1357 = vld [vmem:[#allocation4 + $0x50] sm:$0xff]
        %v1358 = vld [vmem:[#allocation4 + $0x58] sm:$0xff]
        %v1359 = vld [vmem:[#allocation4 + $0x60] sm:$0xff]
        %v1360 = vld [vmem:[#allocation4 + $0x68] sm:$0xff]
        %v1361 = vld [vmem:[#allocation4 + $0x70] sm:$0xff]
        %v1362 = vld [vmem:[#allocation4 + $0x78] sm:$0xff]
        %v1363 = vld [vmem:[#allocation4 + $0x80] sm:$0xff]
        %v1364 = vld [vmem:[#allocation4 + $0x88] sm:$0xff]
        %v1365 = vld [vmem:[#allocation4 + $0x90] sm:$0xff]
        %v1366 = vld [vmem:[#allocation4 + $0x98] sm:$0xff]
        %v1367 = vadd.f32 %v1347, %v1249
        %v1368 = vadd.f32 %v1348, %v1254
        %v1369 = vadd.f32 %v1349, %v1259
        %v1370 = vadd.f32 %v1350, %v1264
        %v1371 = vadd.f32 %v1351, %v1269
        %v1372 = vadd.f32 %v1352, %v1274
        %v1373 = vadd.f32 %v1353, %v1279
        %v1374 = vadd.f32 %v1354, %v1284
        %v1375 = vadd.f32 %v1355, %v1289
        %v1376 = vadd.f32 %v1356, %v1294
        %v1377 = vadd.f32 %v1357, %v1299
        %v1378 = vadd.f32 %v1358, %v1304
        %v1379 = vadd.f32 %v1359, %v1309
        %v1380 = vadd.f32 %v1360, %v1314
        %v1381 = vadd.f32 %v1361, %v1319
        %v1382 = vadd.f32 %v1362, %v1324
        %v1383 = vadd.f32 %v1363, %v1329
        %v1384 = vadd.f32 %v1364, %v1334
        %v1385 = vadd.f32 %v1365, %v1339
        %v1386 = vadd.f32 %v1366, %v1344
        %1387 = vst [vmem:[#allocation4] sm:$0xff] %v1367
        %1388 = vst [vmem:[#allocation4 + $0x8] sm:$0xff] %v1368
        %1389 = vst [vmem:[#allocation4 + $0x10] sm:$0xff] %v1369
        %1390 = vst [vmem:[#allocation4 + $0x18] sm:$0xff] %v1370
        %1391 = vst [vmem:[#allocation4 + $0x20] sm:$0xff] %v1371
        %1392 = vst [vmem:[#allocation4 + $0x28] sm:$0xff] %v1372
        %1393 = vst [vmem:[#allocation4 + $0x30] sm:$0xff] %v1373
        %1394 = vst [vmem:[#allocation4 + $0x38] sm:$0xff] %v1374
        %1395 = vst [vmem:[#allocation4 + $0x40] sm:$0xff] %v1375
        %1396 = vst [vmem:[#allocation4 + $0x48] sm:$0xff] %v1376
        %1397 = vst [vmem:[#allocation4 + $0x50] sm:$0xff] %v1377
        %1398 = vst [vmem:[#allocation4 + $0x58] sm:$0xff] %v1378
        %1399 = vst [vmem:[#allocation4 + $0x60] sm:$0xff] %v1379
        %1400 = vst [vmem:[#allocation4 + $0x68] sm:$0xff] %v1380
        %1401 = vst [vmem:[#allocation4 + $0x70] sm:$0xff] %v1381
        %1402 = vst [vmem:[#allocation4 + $0x78] sm:$0xff] %v1382
        %1403 = vst [vmem:[#allocation4 + $0x80] sm:$0xff] %v1383
        %1404 = vst [vmem:[#allocation4 + $0x88] sm:$0xff] %v1384
        %1405 = vst [vmem:[#allocation4 + $0x90] sm:$0xff] %v1385
        %1406 = vst [vmem:[#allocation4 + $0x98] sm:$0xff] %v1386
        %v1407 = vld [vmem:[%s1144 + $0x1] sm:$0xff]
        %v1408 = vld [vmem:[%s1144 + $0x9] sm:$0xff]
        %v1409 = vld [vmem:[%s1144 + $0x19] sm:$0xff]
        %v1410 = vld [vmem:[%s1144 + $0x21] sm:$0xff]
        %v1411 = vld [vmem:[%s1144 + $0x31] sm:$0xff]
        %v1412 = vld [vmem:[%s1144 + $0x39] sm:$0xff]
        %v1413 = vld [vmem:[%s1144 + $0x49] sm:$0xff]
        %v1414 = vld [vmem:[%s1144 + $0x51] sm:$0xff]
        %v1415 = vld [vmem:[%s1144 + $0x61] sm:$0xff]
        %v1416 = vld [vmem:[%s1144 + $0x69] sm:$0xff]
        %v1417 = vld [vmem:[%s1144 + $0x79] sm:$0xff]
        %v1418 = vld [vmem:[%s1144 + $0x81] sm:$0xff]
        %v1419 = vld [vmem:[%s1144 + $0x91] sm:$0xff]
        %v1420 = vld [vmem:[%s1144 + $0x99] sm:$0xff]
        %v1421 = vld [vmem:[%s1144 + $0xa9] sm:$0xff]
        %v1422 = vld [vmem:[%s1144 + $0xb1] sm:$0xff]
        %v1423 = vld [vmem:[%s1144 + $0xc1] sm:$0xff]
        %v1424 = vld [vmem:[%s1144 + $0xc9] sm:$0xff]
        %v1425 = vld [vmem:[%s1144 + $0xd9] sm:$0xff]
        %v1426 = vld [vmem:[%s1144 + $0xe1] sm:$0xff]
        %s1427 = scalar_lea.vmem [#allocation9], 512
        %v1428 = vld [vmem:[%s1427] sm:$0xff]
        %v1429 = vld [vmem:[%s1427 + $0x8] sm:$0xff]
        %v1430 = vld [vmem:[%s1427 + $0x10] sm:$0xff]
        %v1431 = vld [vmem:[%s1427 + $0x18] sm:$0xff]
        %v1432 = vld [vmem:[%s1427 + $0x20] sm:$0xff]
        %v1433 = vld [vmem:[%s1427 + $0x28] sm:$0xff]
        %v1434 = vld [vmem:[%s1427 + $0x30] sm:$0xff]
        %v1435 = vld [vmem:[%s1427 + $0x38] sm:$0xff]
        %v1436 = vld [vmem:[%s1427 + $0x40] sm:$0xff]
        %v1437 = vld [vmem:[%s1427 + $0x48] sm:$0xff]
        %v1438 = vld [vmem:[%s1427 + $0x50] sm:$0xff]
        %v1439 = vld [vmem:[%s1427 + $0x58] sm:$0xff]
        %v1440 = vld [vmem:[%s1427 + $0x60] sm:$0xff]
        %v1441 = vld [vmem:[%s1427 + $0x68] sm:$0xff]
        %v1442 = vld [vmem:[%s1427 + $0x70] sm:$0xff]
        %v1443 = vld [vmem:[%s1427 + $0x78] sm:$0xff]
        %1444 = vmatprep.subr.mxu0 0.0
        %1445 = vmatpush1.msra.mxu0 %v1428
        %1446 = vmatprep.subr.mxu0 0.0
        %1447 = vmatpush1.msra.mxu0 %v1429
        %1448 = vmatprep.subr.mxu0 0.0
        %1449 = vmatpush1.msra.mxu0 %v1430
        %1450 = vmatprep.subr.mxu0 0.0
        %1451 = vmatpush1.msra.mxu0 %v1431
        %1452 = vmatprep.subr.mxu0 0.0
        %1453 = vmatpush1.msra.mxu0 %v1432
        %1454 = vmatprep.subr.mxu0 0.0
        %1455 = vmatpush1.msra.mxu0 %v1433
        %1456 = vmatprep.subr.mxu0 0.0
        %1457 = vmatpush1.msra.mxu0 %v1434
        %1458 = vmatprep.subr.mxu0 0.0
        %1459 = vmatpush1.msra.mxu0 %v1435
        %1460 = vmatprep.subr.mxu0 0.0
        %1461 = vmatpush1.msra.mxu0 %v1436
        %1462 = vmatprep.subr.mxu0 0.0
        %1463 = vmatpush1.msra.mxu0 %v1437
        %1464 = vmatprep.subr.mxu0 0.0
        %1465 = vmatpush1.msra.mxu0 %v1438
        %1466 = vmatprep.subr.mxu0 0.0
        %1467 = vmatpush1.msra.mxu0 %v1439
        %1468 = vmatprep.subr.mxu0 0.0
        %1469 = vmatpush1.msra.mxu0 %v1440
        %1470 = vmatprep.subr.mxu0 0.0
        %1471 = vmatpush1.msra.mxu0 %v1441
        %1472 = vmatprep.subr.mxu0 0.0
        %1473 = vmatpush1.msra.mxu0 %v1442
        %1474 = vmatprep.subr.mxu0 0.0
        %1475 = vmatpush1.msra.mxu0 %v1443
        %1476 = vmatprep.subr.mxu0 0.0
        %1477 = vmatpush1.msra.mxu0 0.0
        %1478 = vmatprep.subr.mxu0 0.0
        %1479 = vmatpush1.msra.mxu0 0.0
        %1480 = vmatprep.subr.mxu0 0.0
        %1481 = vmatpush1.msra.mxu0 0.0
        %1482 = vmatprep.subr.mxu0 0.0
        %1483 = vmatpush1.msra.mxu0 0.0
        %1484 = vmatprep.subr.mxu0 0.0
        %1485 = vmatpush1.msra.mxu0 0.0
        %1486 = vmatprep.subr.mxu0 0.0
        %1487 = vmatpush1.msra.mxu0 0.0
        %1488 = vmatprep.subr.mxu0 0.0
        %1489 = vmatpush1.msra.mxu0 0.0
        %1490 = vmatprep.subr.mxu0 0.0
        %1491 = vmatpush1.msra.mxu0 0.0
        %1492 = vmatprep.subr.mxu0 0.0
        %1493 = vmatpush1.msra.mxu0 0.0
        %1494 = vmatprep.subr.mxu0 0.0
        %1495 = vmatpush1.msra.mxu0 0.0
        %1496 = vmatprep.subr.mxu0 0.0
        %1497 = vmatpush1.msra.mxu0 0.0
        %1498 = vmatprep.subr.mxu0 0.0
        %1499 = vmatpush1.msra.mxu0 0.0
        %1500 = vmatprep.subr.mxu0 0.0
        %1501 = vmatpush1.msra.mxu0 0.0
        %1502 = vmatprep.subr.mxu0 0.0
        %1503 = vmatpush1.msra.mxu0 0.0
        %1504 = vmatprep.subr.mxu0 0.0
        %1505 = vmatpush1.msra.mxu0 0.0
        %1506 = vmatprep.subr.mxu0 0.0
        %1507 = vmatpush1.msra.mxu0 0.0
        %1508 = vmatprep.mubr.f32.mxu0 0.0
        %1509 = vmatmul.mubr.f32.gmra.mrb[0].mxu0 %v1407
        %v1510 = vpop.f32.mrb[0].mxu0
        %v1511 = vadd.f32 0.0, %v1510
        %v1512 = vpop.f32.mrb[0].mxu0
        %1513 = vmatprep.mubr.f32.mxu0 0.0
        %1514 = vmatmul.mubr.f32.gmra.mrb[0].mxu0 %v1408
        %v1515 = vpop.f32.mrb[0].mxu0
        %v1516 = vadd.f32 0.0, %v1515
        %v1517 = vpop.f32.mrb[0].mxu0
        %1518 = vmatprep.mubr.f32.mxu0 0.0
        %1519 = vmatmul.mubr.f32.gmra.mrb[0].mxu0 %v1409
        %v1520 = vpop.f32.mrb[0].mxu0
        %v1521 = vadd.f32 0.0, %v1520
        %v1522 = vpop.f32.mrb[0].mxu0
        %1523 = vmatprep.mubr.f32.mxu0 0.0
        %1524 = vmatmul.mubr.f32.gmra.mrb[0].mxu0 %v1410
        %v1525 = vpop.f32.mrb[0].mxu0
        %v1526 = vadd.f32 0.0, %v1525
        %v1527 = vpop.f32.mrb[0].mxu0
        %1528 = vmatprep.mubr.f32.mxu0 0.0
        %1529 = vmatmul.mubr.f32.gmra.mrb[0].mxu0 %v1411
        %v1530 = vpop.f32.mrb[0].mxu0
        %v1531 = vadd.f32 0.0, %v1530
        %v1532 = vpop.f32.mrb[0].mxu0
        %1533 = vmatprep.mubr.f32.mxu0 0.0
        %1534 = vmatmul.mubr.f32.gmra.mrb[0].mxu0 %v1412
        %v1535 = vpop.f32.mrb[0].mxu0
        %v1536 = vadd.f32 0.0, %v1535
        %v1537 = vpop.f32.mrb[0].mxu0
        %1538 = vmatprep.mubr.f32.mxu0 0.0
        %1539 = vmatmul.mubr.f32.gmra.mrb[0].mxu0 %v1413
        %v1540 = vpop.f32.mrb[0].mxu0
        %v1541 = vadd.f32 0.0, %v1540
        %v1542 = vpop.f32.mrb[0].mxu0
        %1543 = vmatprep.mubr.f32.mxu0 0.0
        %1544 = vmatmul.mubr.f32.gmra.mrb[0].mxu0 %v1414
        %v1545 = vpop.f32.mrb[0].mxu0
        %v1546 = vadd.f32 0.0, %v1545
        %v1547 = vpop.f32.mrb[0].mxu0
        %1548 = vmatprep.mubr.f32.mxu0 0.0
        %1549 = vmatmul.mubr.f32.gmra.mrb[0].mxu0 %v1415
        %v1550 = vpop.f32.mrb[0].mxu0
        %v1551 = vadd.f32 0.0, %v1550
        %v1552 = vpop.f32.mrb[0].mxu0
        %1553 = vmatprep.mubr.f32.mxu0 0.0
        %1554 = vmatmul.mubr.f32.gmra.mrb[0].mxu0 %v1416
        %v1555 = vpop.f32.mrb[0].mxu0
        %v1556 = vadd.f32 0.0, %v1555
        %v1557 = vpop.f32.mrb[0].mxu0
        %1558 = vmatprep.mubr.f32.mxu0 0.0
        %1559 = vmatmul.mubr.f32.gmra.mrb[0].mxu0 %v1417
        %v1560 = vpop.f32.mrb[0].mxu0
        %v1561 = vadd.f32 0.0, %v1560
        %v1562 = vpop.f32.mrb[0].mxu0
        %1563 = vmatprep.mubr.f32.mxu0 0.0
        %1564 = vmatmul.mubr.f32.gmra.mrb[0].mxu0 %v1418
        %v1565 = vpop.f32.mrb[0].mxu0
        %v1566 = vadd.f32 0.0, %v1565
        %v1567 = vpop.f32.mrb[0].mxu0
        %1568 = vmatprep.mubr.f32.mxu0 0.0
        %1569 = vmatmul.mubr.f32.gmra.mrb[0].mxu0 %v1419
        %v1570 = vpop.f32.mrb[0].mxu0
        %v1571 = vadd.f32 0.0, %v1570
        %v1572 = vpop.f32.mrb[0].mxu0
        %1573 = vmatprep.mubr.f32.mxu0 0.0
        %1574 = vmatmul.mubr.f32.gmra.mrb[0].mxu0 %v1420
        %v1575 = vpop.f32.mrb[0].mxu0
        %v1576 = vadd.f32 0.0, %v1575
        %v1577 = vpop.f32.mrb[0].mxu0
        %1578 = vmatprep.mubr.f32.mxu0 0.0
        %1579 = vmatmul.mubr.f32.gmra.mrb[0].mxu0 %v1421
        %v1580 = vpop.f32.mrb[0].mxu0
        %v1581 = vadd.f32 0.0, %v1580
        %v1582 = vpop.f32.mrb[0].mxu0
        %1583 = vmatprep.mubr.f32.mxu0 0.0
        %1584 = vmatmul.mubr.f32.gmra.mrb[0].mxu0 %v1422
        %v1585 = vpop.f32.mrb[0].mxu0
        %v1586 = vadd.f32 0.0, %v1585
        %v1587 = vpop.f32.mrb[0].mxu0
        %1588 = vmatprep.mubr.f32.mxu0 0.0
        %1589 = vmatmul.mubr.f32.gmra.mrb[0].mxu0 %v1423
        %v1590 = vpop.f32.mrb[0].mxu0
        %v1591 = vadd.f32 0.0, %v1590
        %v1592 = vpop.f32.mrb[0].mxu0
        %1593 = vmatprep.mubr.f32.mxu0 0.0
        %1594 = vmatmul.mubr.f32.gmra.mrb[0].mxu0 %v1424
        %v1595 = vpop.f32.mrb[0].mxu0
        %v1596 = vadd.f32 0.0, %v1595
        %v1597 = vpop.f32.mrb[0].mxu0
        %1598 = vmatprep.mubr.f32.mxu0 0.0
        %1599 = vmatmul.mubr.f32.gmra.mrb[0].mxu0 %v1425
        %v1600 = vpop.f32.mrb[0].mxu0
        %v1601 = vadd.f32 0.0, %v1600
        %v1602 = vpop.f32.mrb[0].mxu0
        %1603 = vmatprep.mubr.f32.mxu0 0.0
        %1604 = vmatmul.mubr.f32.gmra.mrb[0].mxu0 %v1426
        %v1605 = vpop.f32.mrb[0].mxu0
        %v1606 = vadd.f32 0.0, %v1605
        %v1607 = vpop.f32.mrb[0].mxu0
        %1608 = vdwg.mxu0
        %v1609 = vld [vmem:[#allocation4] sm:$0xff]
        %v1610 = vld [vmem:[#allocation4 + $0x8] sm:$0xff]
        %v1611 = vld [vmem:[#allocation4 + $0x10] sm:$0xff]
        %v1612 = vld [vmem:[#allocation4 + $0x18] sm:$0xff]
        %v1613 = vld [vmem:[#allocation4 + $0x20] sm:$0xff]
        %v1614 = vld [vmem:[#allocation4 + $0x28] sm:$0xff]
        %v1615 = vld [vmem:[#allocation4 + $0x30] sm:$0xff]
        %v1616 = vld [vmem:[#allocation4 + $0x38] sm:$0xff]
        %v1617 = vld [vmem:[#allocation4 + $0x40] sm:$0xff]
        %v1618 = vld [vmem:[#allocation4 + $0x48] sm:$0xff]
        %v1619 = vld [vmem:[#allocation4 + $0x50] sm:$0xff]
        %v1620 = vld [vmem:[#allocation4 + $0x58] sm:$0xff]
        %v1621 = vld [vmem:[#allocation4 + $0x60] sm:$0xff]
        %v1622 = vld [vmem:[#allocation4 + $0x68] sm:$0xff]
        %v1623 = vld [vmem:[#allocation4 + $0x70] sm:$0xff]
        %v1624 = vld [vmem:[#allocation4 + $0x78] sm:$0xff]
        %v1625 = vld [vmem:[#allocation4 + $0x80] sm:$0xff]
        %v1626 = vld [vmem:[#allocation4 + $0x88] sm:$0xff]
        %v1627 = vld [vmem:[#allocation4 + $0x90] sm:$0xff]
        %v1628 = vld [vmem:[#allocation4 + $0x98] sm:$0xff]
        %v1629 = vadd.f32 %v1609, %v1511
        %v1630 = vadd.f32 %v1610, %v1516
        %v1631 = vadd.f32 %v1611, %v1521
        %v1632 = vadd.f32 %v1612, %v1526
        %v1633 = vadd.f32 %v1613, %v1531
        %v1634 = vadd.f32 %v1614, %v1536
        %v1635 = vadd.f32 %v1615, %v1541
        %v1636 = vadd.f32 %v1616, %v1546
        %v1637 = vadd.f32 %v1617, %v1551
        %v1638 = vadd.f32 %v1618, %v1556
        %v1639 = vadd.f32 %v1619, %v1561
        %v1640 = vadd.f32 %v1620, %v1566
        %v1641 = vadd.f32 %v1621, %v1571
        %v1642 = vadd.f32 %v1622, %v1576
        %v1643 = vadd.f32 %v1623, %v1581
        %v1644 = vadd.f32 %v1624, %v1586
        %v1645 = vadd.f32 %v1625, %v1591
        %v1646 = vadd.f32 %v1626, %v1596
        %v1647 = vadd.f32 %v1627, %v1601
        %v1648 = vadd.f32 %v1628, %v1606
        %1649 = vst [vmem:[#allocation4] sm:$0xff] %v1629
        %1650 = vst [vmem:[#allocation4 + $0x8] sm:$0xff] %v1630
        %1651 = vst [vmem:[#allocation4 + $0x10] sm:$0xff] %v1631
        %1652 = vst [vmem:[#allocation4 + $0x18] sm:$0xff] %v1632
        %1653 = vst [vmem:[#allocation4 + $0x20] sm:$0xff] %v1633
        %1654 = vst [vmem:[#allocation4 + $0x28] sm:$0xff] %v1634
        %1655 = vst [vmem:[#allocation4 + $0x30] sm:$0xff] %v1635
        %1656 = vst [vmem:[#allocation4 + $0x38] sm:$0xff] %v1636
        %1657 = vst [vmem:[#allocation4 + $0x40] sm:$0xff] %v1637
        %1658 = vst [vmem:[#allocation4 + $0x48] sm:$0xff] %v1638
        %1659 = vst [vmem:[#allocation4 + $0x50] sm:$0xff] %v1639
        %1660 = vst [vmem:[#allocation4 + $0x58] sm:$0xff] %v1640
        %1661 = vst [vmem:[#allocation4 + $0x60] sm:$0xff] %v1641
        %1662 = vst [vmem:[#allocation4 + $0x68] sm:$0xff] %v1642
        %1663 = vst [vmem:[#allocation4 + $0x70] sm:$0xff] %v1643
        %1664 = vst [vmem:[#allocation4 + $0x78] sm:$0xff] %v1644
        %1665 = vst [vmem:[#allocation4 + $0x80] sm:$0xff] %v1645
        %1666 = vst [vmem:[#allocation4 + $0x88] sm:$0xff] %v1646
        %1667 = vst [vmem:[#allocation4 + $0x90] sm:$0xff] %v1647
        %1668 = vst [vmem:[#allocation4 + $0x98] sm:$0xff] %v1648
        %v1669 = vld [vmem:[%s1144 + $0x2] sm:$0xff]
        %v1670 = vld [vmem:[%s1144 + $0xa] sm:$0xff]
        %v1671 = vld [vmem:[%s1144 + $0x1a] sm:$0xff]
        %v1672 = vld [vmem:[%s1144 + $0x22] sm:$0xff]
        %v1673 = vld [vmem:[%s1144 + $0x32] sm:$0xff]
        %v1674 = vld [vmem:[%s1144 + $0x3a] sm:$0xff]
        %v1675 = vld [vmem:[%s1144 + $0x4a] sm:$0xff]
        %v1676 = vld [vmem:[%s1144 + $0x52] sm:$0xff]
        %v1677 = vld [vmem:[%s1144 + $0x62] sm:$0xff]
        %v1678 = vld [vmem:[%s1144 + $0x6a] sm:$0xff]
        %v1679 = vld [vmem:[%s1144 + $0x7a] sm:$0xff]
        %v1680 = vld [vmem:[%s1144 + $0x82] sm:$0xff]
        %v1681 = vld [vmem:[%s1144 + $0x92] sm:$0xff]
        %v1682 = vld [vmem:[%s1144 + $0x9a] sm:$0xff]
        %v1683 = vld [vmem:[%s1144 + $0xaa] sm:$0xff]
        %v1684 = vld [vmem:[%s1144 + $0xb2] sm:$0xff]
        %v1685 = vld [vmem:[%s1144 + $0xc2] sm:$0xff]
        %v1686 = vld [vmem:[%s1144 + $0xca] sm:$0xff]
        %v1687 = vld [vmem:[%s1144 + $0xda] sm:$0xff]
        %v1688 = vld [vmem:[%s1144 + $0xe2] sm:$0xff]
        %s1689 = scalar_lea.vmem [#allocation9], 640
        %v1690 = vld [vmem:[%s1689] sm:$0xff]
        %v1691 = vld [vmem:[%s1689 + $0x8] sm:$0xff]
        %v1692 = vld [vmem:[%s1689 + $0x10] sm:$0xff]
        %v1693 = vld [vmem:[%s1689 + $0x18] sm:$0xff]
        %v1694 = vld [vmem:[%s1689 + $0x20] sm:$0xff]
        %v1695 = vld [vmem:[%s1689 + $0x28] sm:$0xff]
        %v1696 = vld [vmem:[%s1689 + $0x30] sm:$0xff]
        %v1697 = vld [vmem:[%s1689 + $0x38] sm:$0xff]
        %v1698 = vld [vmem:[%s1689 + $0x40] sm:$0xff]
        %v1699 = vld [vmem:[%s1689 + $0x48] sm:$0xff]
        %v1700 = vld [vmem:[%s1689 + $0x50] sm:$0xff]
        %v1701 = vld [vmem:[%s1689 + $0x58] sm:$0xff]
        %v1702 = vld [vmem:[%s1689 + $0x60] sm:$0xff]
        %v1703 = vld [vmem:[%s1689 + $0x68] sm:$0xff]
        %v1704 = vld [vmem:[%s1689 + $0x70] sm:$0xff]
        %v1705 = vld [vmem:[%s1689 + $0x78] sm:$0xff]
        %1706 = vmatprep.subr.mxu0 0.0
        %1707 = vmatpush1.msra.mxu0 %v1690
        %1708 = vmatprep.subr.mxu0 0.0
        %1709 = vmatpush1.msra.mxu0 %v1691
        %1710 = vmatprep.subr.mxu0 0.0
        %1711 = vmatpush1.msra.mxu0 %v1692
        %1712 = vmatprep.subr.mxu0 0.0
        %1713 = vmatpush1.msra.mxu0 %v1693
        %1714 = vmatprep.subr.mxu0 0.0
        %1715 = vmatpush1.msra.mxu0 %v1694
        %1716 = vmatprep.subr.mxu0 0.0
        %1717 = vmatpush1.msra.mxu0 %v1695
        %1718 = vmatprep.subr.mxu0 0.0
        %1719 = vmatpush1.msra.mxu0 %v1696
        %1720 = vmatprep.subr.mxu0 0.0
        %1721 = vmatpush1.msra.mxu0 %v1697
        %1722 = vmatprep.subr.mxu0 0.0
        %1723 = vmatpush1.msra.mxu0 %v1698
        %1724 = vmatprep.subr.mxu0 0.0
        %1725 = vmatpush1.msra.mxu0 %v1699
        %1726 = vmatprep.subr.mxu0 0.0
        %1727 = vmatpush1.msra.mxu0 %v1700
        %1728 = vmatprep.subr.mxu0 0.0
        %1729 = vmatpush1.msra.mxu0 %v1701
        %1730 = vmatprep.subr.mxu0 0.0
        %1731 = vmatpush1.msra.mxu0 %v1702
        %1732 = vmatprep.subr.mxu0 0.0
        %1733 = vmatpush1.msra.mxu0 %v1703
        %1734 = vmatprep.subr.mxu0 0.0
        %1735 = vmatpush1.msra.mxu0 %v1704
        %1736 = vmatprep.subr.mxu0 0.0
        %1737 = vmatpush1.msra.mxu0 %v1705
        %1738 = vmatprep.subr.mxu0 0.0
        %1739 = vmatpush1.msra.mxu0 0.0
        %1740 = vmatprep.subr.mxu0 0.0
        %1741 = vmatpush1.msra.mxu0 0.0
        %1742 = vmatprep.subr.mxu0 0.0
        %1743 = vmatpush1.msra.mxu0 0.0
        %1744 = vmatprep.subr.mxu0 0.0
        %1745 = vmatpush1.msra.mxu0 0.0
        %1746 = vmatprep.subr.mxu0 0.0
        %1747 = vmatpush1.msra.mxu0 0.0
        %1748 = vmatprep.subr.mxu0 0.0
        %1749 = vmatpush1.msra.mxu0 0.0
        %1750 = vmatprep.subr.mxu0 0.0
        %1751 = vmatpush1.msra.mxu0 0.0
        %1752 = vmatprep.subr.mxu0 0.0
        %1753 = vmatpush1.msra.mxu0 0.0
        %1754 = vmatprep.subr.mxu0 0.0
        %1755 = vmatpush1.msra.mxu0 0.0
        %1756 = vmatprep.subr.mxu0 0.0
        %1757 = vmatpush1.msra.mxu0 0.0
        %1758 = vmatprep.subr.mxu0 0.0
        %1759 = vmatpush1.msra.mxu0 0.0
        %1760 = vmatprep.subr.mxu0 0.0
        %1761 = vmatpush1.msra.mxu0 0.0
        %1762 = vmatprep.subr.mxu0 0.0
        %1763 = vmatpush1.msra.mxu0 0.0
        %1764 = vmatprep.subr.mxu0 0.0
        %1765 = vmatpush1.msra.mxu0 0.0
        %1766 = vmatprep.subr.mxu0 0.0
        %1767 = vmatpush1.msra.mxu0 0.0
        %1768 = vmatprep.subr.mxu0 0.0
        %1769 = vmatpush1.msra.mxu0 0.0
        %1770 = vmatprep.mubr.f32.mxu0 0.0
        %1771 = vmatmul.mubr.f32.gmra.mrb[0].mxu0 %v1669
        %v1772 = vpop.f32.mrb[0].mxu0
        %v1773 = vadd.f32 0.0, %v1772
        %v1774 = vpop.f32.mrb[0].mxu0
        %1775 = vmatprep.mubr.f32.mxu0 0.0
        %1776 = vmatmul.mubr.f32.gmra.mrb[0].mxu0 %v1670
        %v1777 = vpop.f32.mrb[0].mxu0
        %v1778 = vadd.f32 0.0, %v1777
        %v1779 = vpop.f32.mrb[0].mxu0
        %1780 = vmatprep.mubr.f32.mxu0 0.0
        %1781 = vmatmul.mubr.f32.gmra.mrb[0].mxu0 %v1671
        %v1782 = vpop.f32.mrb[0].mxu0
        %v1783 = vadd.f32 0.0, %v1782
        %v1784 = vpop.f32.mrb[0].mxu0
        %1785 = vmatprep.mubr.f32.mxu0 0.0
        %1786 = vmatmul.mubr.f32.gmra.mrb[0].mxu0 %v1672
        %v1787 = vpop.f32.mrb[0].mxu0
        %v1788 = vadd.f32 0.0, %v1787
        %v1789 = vpop.f32.mrb[0].mxu0
        %1790 = vmatprep.mubr.f32.mxu0 0.0
        %1791 = vmatmul.mubr.f32.gmra.mrb[0].mxu0 %v1673
        %v1792 = vpop.f32.mrb[0].mxu0
        %v1793 = vadd.f32 0.0, %v1792
        %v1794 = vpop.f32.mrb[0].mxu0
        %1795 = vmatprep.mubr.f32.mxu0 0.0
        %1796 = vmatmul.mubr.f32.gmra.mrb[0].mxu0 %v1674
        %v1797 = vpop.f32.mrb[0].mxu0
        %v1798 = vadd.f32 0.0, %v1797
        %v1799 = vpop.f32.mrb[0].mxu0
        %1800 = vmatprep.mubr.f32.mxu0 0.0
        %1801 = vmatmul.mubr.f32.gmra.mrb[0].mxu0 %v1675
        %v1802 = vpop.f32.mrb[0].mxu0
        %v1803 = vadd.f32 0.0, %v1802
        %v1804 = vpop.f32.mrb[0].mxu0
        %1805 = vmatprep.mubr.f32.mxu0 0.0
        %1806 = vmatmul.mubr.f32.gmra.mrb[0].mxu0 %v1676
        %v1807 = vpop.f32.mrb[0].mxu0
        %v1808 = vadd.f32 0.0, %v1807
        %v1809 = vpop.f32.mrb[0].mxu0
        %1810 = vmatprep.mubr.f32.mxu0 0.0
        %1811 = vmatmul.mubr.f32.gmra.mrb[0].mxu0 %v1677
        %v1812 = vpop.f32.mrb[0].mxu0
        %v1813 = vadd.f32 0.0, %v1812
        %v1814 = vpop.f32.mrb[0].mxu0
        %1815 = vmatprep.mubr.f32.mxu0 0.0
        %1816 = vmatmul.mubr.f32.gmra.mrb[0].mxu0 %v1678
        %v1817 = vpop.f32.mrb[0].mxu0
        %v1818 = vadd.f32 0.0, %v1817
        %v1819 = vpop.f32.mrb[0].mxu0
        %1820 = vmatprep.mubr.f32.mxu0 0.0
        %1821 = vmatmul.mubr.f32.gmra.mrb[0].mxu0 %v1679
        %v1822 = vpop.f32.mrb[0].mxu0
        %v1823 = vadd.f32 0.0, %v1822
        %v1824 = vpop.f32.mrb[0].mxu0
        %1825 = vmatprep.mubr.f32.mxu0 0.0
        %1826 = vmatmul.mubr.f32.gmra.mrb[0].mxu0 %v1680
        %v1827 = vpop.f32.mrb[0].mxu0
        %v1828 = vadd.f32 0.0, %v1827
        %v1829 = vpop.f32.mrb[0].mxu0
        %1830 = vmatprep.mubr.f32.mxu0 0.0
        %1831 = vmatmul.mubr.f32.gmra.mrb[0].mxu0 %v1681
        %v1832 = vpop.f32.mrb[0].mxu0
        %v1833 = vadd.f32 0.0, %v1832
        %v1834 = vpop.f32.mrb[0].mxu0
        %1835 = vmatprep.mubr.f32.mxu0 0.0
        %1836 = vmatmul.mubr.f32.gmra.mrb[0].mxu0 %v1682
        %v1837 = vpop.f32.mrb[0].mxu0
        %v1838 = vadd.f32 0.0, %v1837
        %v1839 = vpop.f32.mrb[0].mxu0
        %1840 = vmatprep.mubr.f32.mxu0 0.0
        %1841 = vmatmul.mubr.f32.gmra.mrb[0].mxu0 %v1683
        %v1842 = vpop.f32.mrb[0].mxu0
        %v1843 = vadd.f32 0.0, %v1842
        %v1844 = vpop.f32.mrb[0].mxu0
        %1845 = vmatprep.mubr.f32.mxu0 0.0
        %1846 = vmatmul.mubr.f32.gmra.mrb[0].mxu0 %v1684
        %v1847 = vpop.f32.mrb[0].mxu0
        %v1848 = vadd.f32 0.0, %v1847
        %v1849 = vpop.f32.mrb[0].mxu0
        %1850 = vmatprep.mubr.f32.mxu0 0.0
        %1851 = vmatmul.mubr.f32.gmra.mrb[0].mxu0 %v1685
        %v1852 = vpop.f32.mrb[0].mxu0
        %v1853 = vadd.f32 0.0, %v1852
        %v1854 = vpop.f32.mrb[0].mxu0
        %1855 = vmatprep.mubr.f32.mxu0 0.0
        %1856 = vmatmul.mubr.f32.gmra.mrb[0].mxu0 %v1686
        %v1857 = vpop.f32.mrb[0].mxu0
        %v1858 = vadd.f32 0.0, %v1857
        %v1859 = vpop.f32.mrb[0].mxu0
        %1860 = vmatprep.mubr.f32.mxu0 0.0
        %1861 = vmatmul.mubr.f32.gmra.mrb[0].mxu0 %v1687
        %v1862 = vpop.f32.mrb[0].mxu0
        %v1863 = vadd.f32 0.0, %v1862
        %v1864 = vpop.f32.mrb[0].mxu0
        %1865 = vmatprep.mubr.f32.mxu0 0.0
        %1866 = vmatmul.mubr.f32.gmra.mrb[0].mxu0 %v1688
        %v1867 = vpop.f32.mrb[0].mxu0
        %v1868 = vadd.f32 0.0, %v1867
        %v1869 = vpop.f32.mrb[0].mxu0
        %1870 = vdwg.mxu0
        %v1871 = vld [vmem:[#allocation4] sm:$0xff]
        %v1872 = vld [vmem:[#allocation4 + $0x8] sm:$0xff]
        %v1873 = vld [vmem:[#allocation4 + $0x10] sm:$0xff]
        %v1874 = vld [vmem:[#allocation4 + $0x18] sm:$0xff]
        %v1875 = vld [vmem:[#allocation4 + $0x20] sm:$0xff]
        %v1876 = vld [vmem:[#allocation4 + $0x28] sm:$0xff]
        %v1877 = vld [vmem:[#allocation4 + $0x30] sm:$0xff]
        %v1878 = vld [vmem:[#allocation4 + $0x38] sm:$0xff]
        %v1879 = vld [vmem:[#allocation4 + $0x40] sm:$0xff]
        %v1880 = vld [vmem:[#allocation4 + $0x48] sm:$0xff]
        %v1881 = vld [vmem:[#allocation4 + $0x50] sm:$0xff]
        %v1882 = vld [vmem:[#allocation4 + $0x58] sm:$0xff]
        %v1883 = vld [vmem:[#allocation4 + $0x60] sm:$0xff]
        %v1884 = vld [vmem:[#allocation4 + $0x68] sm:$0xff]
        %v1885 = vld [vmem:[#allocation4 + $0x70] sm:$0xff]
        %v1886 = vld [vmem:[#allocation4 + $0x78] sm:$0xff]
        %v1887 = vld [vmem:[#allocation4 + $0x80] sm:$0xff]
        %v1888 = vld [vmem:[#allocation4 + $0x88] sm:$0xff]
        %v1889 = vld [vmem:[#allocation4 + $0x90] sm:$0xff]
        %v1890 = vld [vmem:[#allocation4 + $0x98] sm:$0xff]
        %v1891 = vadd.f32 %v1871, %v1773
        %v1892 = vadd.f32 %v1872, %v1778
        %v1893 = vadd.f32 %v1873, %v1783
        %v1894 = vadd.f32 %v1874, %v1788
        %v1895 = vadd.f32 %v1875, %v1793
        %v1896 = vadd.f32 %v1876, %v1798
        %v1897 = vadd.f32 %v1877, %v1803
        %v1898 = vadd.f32 %v1878, %v1808
        %v1899 = vadd.f32 %v1879, %v1813
        %v1900 = vadd.f32 %v1880, %v1818
        %v1901 = vadd.f32 %v1881, %v1823
        %v1902 = vadd.f32 %v1882, %v1828
        %v1903 = vadd.f32 %v1883, %v1833
        %v1904 = vadd.f32 %v1884, %v1838
        %v1905 = vadd.f32 %v1885, %v1843
        %v1906 = vadd.f32 %v1886, %v1848
        %v1907 = vadd.f32 %v1887, %v1853
        %v1908 = vadd.f32 %v1888, %v1858
        %v1909 = vadd.f32 %v1889, %v1863
        %v1910 = vadd.f32 %v1890, %v1868
        %1911 = vst [vmem:[#allocation4] sm:$0xff] %v1891
        %1912 = vst [vmem:[#allocation4 + $0x8] sm:$0xff] %v1892
        %1913 = vst [vmem:[#allocation4 + $0x10] sm:$0xff] %v1893
        %1914 = vst [vmem:[#allocation4 + $0x18] sm:$0xff] %v1894
        %1915 = vst [vmem:[#allocation4 + $0x20] sm:$0xff] %v1895
        %1916 = vst [vmem:[#allocation4 + $0x28] sm:$0xff] %v1896
        %1917 = vst [vmem:[#allocation4 + $0x30] sm:$0xff] %v1897
        %1918 = vst [vmem:[#allocation4 + $0x38] sm:$0xff] %v1898
        %1919 = vst [vmem:[#allocation4 + $0x40] sm:$0xff] %v1899
        %1920 = vst [vmem:[#allocation4 + $0x48] sm:$0xff] %v1900
        %1921 = vst [vmem:[#allocation4 + $0x50] sm:$0xff] %v1901
        %1922 = vst [vmem:[#allocation4 + $0x58] sm:$0xff] %v1902
        %1923 = vst [vmem:[#allocation4 + $0x60] sm:$0xff] %v1903
        %1924 = vst [vmem:[#allocation4 + $0x68] sm:$0xff] %v1904
        %1925 = vst [vmem:[#allocation4 + $0x70] sm:$0xff] %v1905
        %1926 = vst [vmem:[#allocation4 + $0x78] sm:$0xff] %v1906
        %1927 = vst [vmem:[#allocation4 + $0x80] sm:$0xff] %v1907
        %1928 = vst [vmem:[#allocation4 + $0x88] sm:$0xff] %v1908
        %1929 = vst [vmem:[#allocation4 + $0x90] sm:$0xff] %v1909
        %1930 = vst [vmem:[#allocation4 + $0x98] sm:$0xff] %v1910
        %v1931 = vld [vmem:[%s306] sm:$0xff]
        %v1932 = vld [vmem:[%s306 + $0x8] sm:$0xff]
        %v1933 = vld [vmem:[%s306 + $0x18] sm:$0xff]
        %v1934 = vld [vmem:[%s306 + $0x20] sm:$0xff]
        %v1935 = vld [vmem:[%s306 + $0x30] sm:$0xff]
        %v1936 = vld [vmem:[%s306 + $0x38] sm:$0xff]
        %v1937 = vld [vmem:[%s306 + $0x48] sm:$0xff]
        %v1938 = vld [vmem:[%s306 + $0x50] sm:$0xff]
        %v1939 = vld [vmem:[%s306 + $0x60] sm:$0xff]
        %v1940 = vld [vmem:[%s306 + $0x68] sm:$0xff]
        %v1941 = vld [vmem:[%s306 + $0x78] sm:$0xff]
        %v1942 = vld [vmem:[%s306 + $0x80] sm:$0xff]
        %v1943 = vld [vmem:[%s306 + $0x90] sm:$0xff]
        %v1944 = vld [vmem:[%s306 + $0x98] sm:$0xff]
        %v1945 = vld [vmem:[%s306 + $0xa8] sm:$0xff]
        %v1946 = vld [vmem:[%s306 + $0xb0] sm:$0xff]
        %v1947 = vld [vmem:[%s306 + $0xc0] sm:$0xff]
        %v1948 = vld [vmem:[%s306 + $0xc8] sm:$0xff]
        %v1949 = vld [vmem:[%s306 + $0xd8] sm:$0xff]
        %v1950 = vld [vmem:[%s306 + $0xe0] sm:$0xff]
        %s1951 = scalar_lea.vmem [#allocation9], 768
        %v1952 = vld [vmem:[%s1951] sm:$0xff]
        %v1953 = vld [vmem:[%s1951 + $0x8] sm:$0xff]
        %v1954 = vld [vmem:[%s1951 + $0x10] sm:$0xff]
        %v1955 = vld [vmem:[%s1951 + $0x18] sm:$0xff]
        %v1956 = vld [vmem:[%s1951 + $0x20] sm:$0xff]
        %v1957 = vld [vmem:[%s1951 + $0x28] sm:$0xff]
        %v1958 = vld [vmem:[%s1951 + $0x30] sm:$0xff]
        %v1959 = vld [vmem:[%s1951 + $0x38] sm:$0xff]
        %v1960 = vld [vmem:[%s1951 + $0x40] sm:$0xff]
        %v1961 = vld [vmem:[%s1951 + $0x48] sm:$0xff]
        %v1962 = vld [vmem:[%s1951 + $0x50] sm:$0xff]
        %v1963 = vld [vmem:[%s1951 + $0x58] sm:$0xff]
        %v1964 = vld [vmem:[%s1951 + $0x60] sm:$0xff]
        %v1965 = vld [vmem:[%s1951 + $0x68] sm:$0xff]
        %v1966 = vld [vmem:[%s1951 + $0x70] sm:$0xff]
        %v1967 = vld [vmem:[%s1951 + $0x78] sm:$0xff]
        %1968 = vmatprep.subr.mxu0 0.0
        %1969 = vmatpush1.msra.mxu0 %v1952
        %1970 = vmatprep.subr.mxu0 0.0
        %1971 = vmatpush1.msra.mxu0 %v1953
        %1972 = vmatprep.subr.mxu0 0.0
        %1973 = vmatpush1.msra.mxu0 %v1954
        %1974 = vmatprep.subr.mxu0 0.0
        %1975 = vmatpush1.msra.mxu0 %v1955
        %1976 = vmatprep.subr.mxu0 0.0
        %1977 = vmatpush1.msra.mxu0 %v1956
        %1978 = vmatprep.subr.mxu0 0.0
        %1979 = vmatpush1.msra.mxu0 %v1957
        %1980 = vmatprep.subr.mxu0 0.0
        %1981 = vmatpush1.msra.mxu0 %v1958
        %1982 = vmatprep.subr.mxu0 0.0
        %1983 = vmatpush1.msra.mxu0 %v1959
        %1984 = vmatprep.subr.mxu0 0.0
        %1985 = vmatpush1.msra.mxu0 %v1960
        %1986 = vmatprep.subr.mxu0 0.0
        %1987 = vmatpush1.msra.mxu0 %v1961
        %1988 = vmatprep.subr.mxu0 0.0
        %1989 = vmatpush1.msra.mxu0 %v1962
        %1990 = vmatprep.subr.mxu0 0.0
        %1991 = vmatpush1.msra.mxu0 %v1963
        %1992 = vmatprep.subr.mxu0 0.0
        %1993 = vmatpush1.msra.mxu0 %v1964
        %1994 = vmatprep.subr.mxu0 0.0
        %1995 = vmatpush1.msra.mxu0 %v1965
        %1996 = vmatprep.subr.mxu0 0.0
        %1997 = vmatpush1.msra.mxu0 %v1966
        %1998 = vmatprep.subr.mxu0 0.0
        %1999 = vmatpush1.msra.mxu0 %v1967
        %2000 = vmatprep.subr.mxu0 0.0
        %2001 = vmatpush1.msra.mxu0 0.0
        %2002 = vmatprep.subr.mxu0 0.0
        %2003 = vmatpush1.msra.mxu0 0.0
        %2004 = vmatprep.subr.mxu0 0.0
        %2005 = vmatpush1.msra.mxu0 0.0
        %2006 = vmatprep.subr.mxu0 0.0
        %2007 = vmatpush1.msra.mxu0 0.0
        %2008 = vmatprep.subr.mxu0 0.0
        %2009 = vmatpush1.msra.mxu0 0.0
        %2010 = vmatprep.subr.mxu0 0.0
        %2011 = vmatpush1.msra.mxu0 0.0
        %2012 = vmatprep.subr.mxu0 0.0
        %2013 = vmatpush1.msra.mxu0 0.0
        %2014 = vmatprep.subr.mxu0 0.0
        %2015 = vmatpush1.msra.mxu0 0.0
        %2016 = vmatprep.subr.mxu0 0.0
        %2017 = vmatpush1.msra.mxu0 0.0
        %2018 = vmatprep.subr.mxu0 0.0
        %2019 = vmatpush1.msra.mxu0 0.0
        %2020 = vmatprep.subr.mxu0 0.0
        %2021 = vmatpush1.msra.mxu0 0.0
        %2022 = vmatprep.subr.mxu0 0.0
        %2023 = vmatpush1.msra.mxu0 0.0
        %2024 = vmatprep.subr.mxu0 0.0
        %2025 = vmatpush1.msra.mxu0 0.0
        %2026 = vmatprep.subr.mxu0 0.0
        %2027 = vmatpush1.msra.mxu0 0.0
        %2028 = vmatprep.subr.mxu0 0.0
        %2029 = vmatpush1.msra.mxu0 0.0
        %2030 = vmatprep.subr.mxu0 0.0
        %2031 = vmatpush1.msra.mxu0 0.0
        %2032 = vmatprep.mubr.f32.mxu0 0.0
        %2033 = vmatmul.mubr.f32.gmra.mrb[0].mxu0 %v1931
        %v2034 = vpop.f32.mrb[0].mxu0
        %v2035 = vadd.f32 0.0, %v2034
        %v2036 = vpop.f32.mrb[0].mxu0
        %2037 = vmatprep.mubr.f32.mxu0 0.0
        %2038 = vmatmul.mubr.f32.gmra.mrb[0].mxu0 %v1932
        %v2039 = vpop.f32.mrb[0].mxu0
        %v2040 = vadd.f32 0.0, %v2039
        %v2041 = vpop.f32.mrb[0].mxu0
        %2042 = vmatprep.mubr.f32.mxu0 0.0
        %2043 = vmatmul.mubr.f32.gmra.mrb[0].mxu0 %v1933
        %v2044 = vpop.f32.mrb[0].mxu0
        %v2045 = vadd.f32 0.0, %v2044
        %v2046 = vpop.f32.mrb[0].mxu0
        %2047 = vmatprep.mubr.f32.mxu0 0.0
        %2048 = vmatmul.mubr.f32.gmra.mrb[0].mxu0 %v1934
        %v2049 = vpop.f32.mrb[0].mxu0
        %v2050 = vadd.f32 0.0, %v2049
        %v2051 = vpop.f32.mrb[0].mxu0
        %2052 = vmatprep.mubr.f32.mxu0 0.0
        %2053 = vmatmul.mubr.f32.gmra.mrb[0].mxu0 %v1935
        %v2054 = vpop.f32.mrb[0].mxu0
        %v2055 = vadd.f32 0.0, %v2054
        %v2056 = vpop.f32.mrb[0].mxu0
        %2057 = vmatprep.mubr.f32.mxu0 0.0
        %2058 = vmatmul.mubr.f32.gmra.mrb[0].mxu0 %v1936
        %v2059 = vpop.f32.mrb[0].mxu0
        %v2060 = vadd.f32 0.0, %v2059
        %v2061 = vpop.f32.mrb[0].mxu0
        %2062 = vmatprep.mubr.f32.mxu0 0.0
        %2063 = vmatmul.mubr.f32.gmra.mrb[0].mxu0 %v1937
        %v2064 = vpop.f32.mrb[0].mxu0
        %v2065 = vadd.f32 0.0, %v2064
        %v2066 = vpop.f32.mrb[0].mxu0
        %2067 = vmatprep.mubr.f32.mxu0 0.0
        %2068 = vmatmul.mubr.f32.gmra.mrb[0].mxu0 %v1938
        %v2069 = vpop.f32.mrb[0].mxu0
        %v2070 = vadd.f32 0.0, %v2069
        %v2071 = vpop.f32.mrb[0].mxu0
        %2072 = vmatprep.mubr.f32.mxu0 0.0
        %2073 = vmatmul.mubr.f32.gmra.mrb[0].mxu0 %v1939
        %v2074 = vpop.f32.mrb[0].mxu0
        %v2075 = vadd.f32 0.0, %v2074
        %v2076 = vpop.f32.mrb[0].mxu0
        %2077 = vmatprep.mubr.f32.mxu0 0.0
        %2078 = vmatmul.mubr.f32.gmra.mrb[0].mxu0 %v1940
        %v2079 = vpop.f32.mrb[0].mxu0
        %v2080 = vadd.f32 0.0, %v2079
        %v2081 = vpop.f32.mrb[0].mxu0
        %2082 = vmatprep.mubr.f32.mxu0 0.0
        %2083 = vmatmul.mubr.f32.gmra.mrb[0].mxu0 %v1941
        %v2084 = vpop.f32.mrb[0].mxu0
        %v2085 = vadd.f32 0.0, %v2084
        %v2086 = vpop.f32.mrb[0].mxu0
        %2087 = vmatprep.mubr.f32.mxu0 0.0
        %2088 = vmatmul.mubr.f32.gmra.mrb[0].mxu0 %v1942
        %v2089 = vpop.f32.mrb[0].mxu0
        %v2090 = vadd.f32 0.0, %v2089
        %v2091 = vpop.f32.mrb[0].mxu0
        %2092 = vmatprep.mubr.f32.mxu0 0.0
        %2093 = vmatmul.mubr.f32.gmra.mrb[0].mxu0 %v1943
        %v2094 = vpop.f32.mrb[0].mxu0
        %v2095 = vadd.f32 0.0, %v2094
        %v2096 = vpop.f32.mrb[0].mxu0
        %2097 = vmatprep.mubr.f32.mxu0 0.0
        %2098 = vmatmul.mubr.f32.gmra.mrb[0].mxu0 %v1944
        %v2099 = vpop.f32.mrb[0].mxu0
        %v2100 = vadd.f32 0.0, %v2099
        %v2101 = vpop.f32.mrb[0].mxu0
        %2102 = vmatprep.mubr.f32.mxu0 0.0
        %2103 = vmatmul.mubr.f32.gmra.mrb[0].mxu0 %v1945
        %v2104 = vpop.f32.mrb[0].mxu0
        %v2105 = vadd.f32 0.0, %v2104
        %v2106 = vpop.f32.mrb[0].mxu0
        %2107 = vmatprep.mubr.f32.mxu0 0.0
        %2108 = vmatmul.mubr.f32.gmra.mrb[0].mxu0 %v1946
        %v2109 = vpop.f32.mrb[0].mxu0
        %v2110 = vadd.f32 0.0, %v2109
        %v2111 = vpop.f32.mrb[0].mxu0
        %2112 = vmatprep.mubr.f32.mxu0 0.0
        %2113 = vmatmul.mubr.f32.gmra.mrb[0].mxu0 %v1947
        %v2114 = vpop.f32.mrb[0].mxu0
        %v2115 = vadd.f32 0.0, %v2114
        %v2116 = vpop.f32.mrb[0].mxu0
        %2117 = vmatprep.mubr.f32.mxu0 0.0
        %2118 = vmatmul.mubr.f32.gmra.mrb[0].mxu0 %v1948
        %v2119 = vpop.f32.mrb[0].mxu0
        %v2120 = vadd.f32 0.0, %v2119
        %v2121 = vpop.f32.mrb[0].mxu0
        %2122 = vmatprep.mubr.f32.mxu0 0.0
        %2123 = vmatmul.mubr.f32.gmra.mrb[0].mxu0 %v1949
        %v2124 = vpop.f32.mrb[0].mxu0
        %v2125 = vadd.f32 0.0, %v2124
        %v2126 = vpop.f32.mrb[0].mxu0
        %2127 = vmatprep.mubr.f32.mxu0 0.0
        %2128 = vmatmul.mubr.f32.gmra.mrb[0].mxu0 %v1950
        %v2129 = vpop.f32.mrb[0].mxu0
        %v2130 = vadd.f32 0.0, %v2129
        %v2131 = vpop.f32.mrb[0].mxu0
        %2132 = vdwg.mxu0
        %v2133 = vld [vmem:[#allocation4] sm:$0xff]
        %v2134 = vld [vmem:[#allocation4 + $0x8] sm:$0xff]
        %v2135 = vld [vmem:[#allocation4 + $0x10] sm:$0xff]
        %v2136 = vld [vmem:[#allocation4 + $0x18] sm:$0xff]
        %v2137 = vld [vmem:[#allocation4 + $0x20] sm:$0xff]
        %v2138 = vld [vmem:[#allocation4 + $0x28] sm:$0xff]
        %v2139 = vld [vmem:[#allocation4 + $0x30] sm:$0xff]
        %v2140 = vld [vmem:[#allocation4 + $0x38] sm:$0xff]
        %v2141 = vld [vmem:[#allocation4 + $0x40] sm:$0xff]
        %v2142 = vld [vmem:[#allocation4 + $0x48] sm:$0xff]
        %v2143 = vld [vmem:[#allocation4 + $0x50] sm:$0xff]
        %v2144 = vld [vmem:[#allocation4 + $0x58] sm:$0xff]
        %v2145 = vld [vmem:[#allocation4 + $0x60] sm:$0xff]
        %v2146 = vld [vmem:[#allocation4 + $0x68] sm:$0xff]
        %v2147 = vld [vmem:[#allocation4 + $0x70] sm:$0xff]
        %v2148 = vld [vmem:[#allocation4 + $0x78] sm:$0xff]
        %v2149 = vld [vmem:[#allocation4 + $0x80] sm:$0xff]
        %v2150 = vld [vmem:[#allocation4 + $0x88] sm:$0xff]
        %v2151 = vld [vmem:[#allocation4 + $0x90] sm:$0xff]
        %v2152 = vld [vmem:[#allocation4 + $0x98] sm:$0xff]
        %v2153 = vadd.f32 %v2133, %v2035
        %v2154 = vadd.f32 %v2134, %v2040
        %v2155 = vadd.f32 %v2135, %v2045
        %v2156 = vadd.f32 %v2136, %v2050
        %v2157 = vadd.f32 %v2137, %v2055
        %v2158 = vadd.f32 %v2138, %v2060
        %v2159 = vadd.f32 %v2139, %v2065
        %v2160 = vadd.f32 %v2140, %v2070
        %v2161 = vadd.f32 %v2141, %v2075
        %v2162 = vadd.f32 %v2142, %v2080
        %v2163 = vadd.f32 %v2143, %v2085
        %v2164 = vadd.f32 %v2144, %v2090
        %v2165 = vadd.f32 %v2145, %v2095
        %v2166 = vadd.f32 %v2146, %v2100
        %v2167 = vadd.f32 %v2147, %v2105
        %v2168 = vadd.f32 %v2148, %v2110
        %v2169 = vadd.f32 %v2149, %v2115
        %v2170 = vadd.f32 %v2150, %v2120
        %v2171 = vadd.f32 %v2151, %v2125
        %v2172 = vadd.f32 %v2152, %v2130
        %2173 = vst [vmem:[#allocation4] sm:$0xff] %v2153
        %2174 = vst [vmem:[#allocation4 + $0x8] sm:$0xff] %v2154
        %2175 = vst [vmem:[#allocation4 + $0x10] sm:$0xff] %v2155
        %2176 = vst [vmem:[#allocation4 + $0x18] sm:$0xff] %v2156
        %2177 = vst [vmem:[#allocation4 + $0x20] sm:$0xff] %v2157
        %2178 = vst [vmem:[#allocation4 + $0x28] sm:$0xff] %v2158
        %2179 = vst [vmem:[#allocation4 + $0x30] sm:$0xff] %v2159
        %2180 = vst [vmem:[#allocation4 + $0x38] sm:$0xff] %v2160
        %2181 = vst [vmem:[#allocation4 + $0x40] sm:$0xff] %v2161
        %2182 = vst [vmem:[#allocation4 + $0x48] sm:$0xff] %v2162
        %2183 = vst [vmem:[#allocation4 + $0x50] sm:$0xff] %v2163
        %2184 = vst [vmem:[#allocation4 + $0x58] sm:$0xff] %v2164
        %2185 = vst [vmem:[#allocation4 + $0x60] sm:$0xff] %v2165
        %2186 = vst [vmem:[#allocation4 + $0x68] sm:$0xff] %v2166
        %2187 = vst [vmem:[#allocation4 + $0x70] sm:$0xff] %v2167
        %2188 = vst [vmem:[#allocation4 + $0x78] sm:$0xff] %v2168
        %2189 = vst [vmem:[#allocation4 + $0x80] sm:$0xff] %v2169
        %2190 = vst [vmem:[#allocation4 + $0x88] sm:$0xff] %v2170
        %2191 = vst [vmem:[#allocation4 + $0x90] sm:$0xff] %v2171
        %2192 = vst [vmem:[#allocation4 + $0x98] sm:$0xff] %v2172
        %v2193 = vld [vmem:[%s306 + $0x1] sm:$0xff]
        %v2194 = vld [vmem:[%s306 + $0x9] sm:$0xff]
        %v2195 = vld [vmem:[%s306 + $0x19] sm:$0xff]
        %v2196 = vld [vmem:[%s306 + $0x21] sm:$0xff]
        %v2197 = vld [vmem:[%s306 + $0x31] sm:$0xff]
        %v2198 = vld [vmem:[%s306 + $0x39] sm:$0xff]
        %v2199 = vld [vmem:[%s306 + $0x49] sm:$0xff]
        %v2200 = vld [vmem:[%s306 + $0x51] sm:$0xff]
        %v2201 = vld [vmem:[%s306 + $0x61] sm:$0xff]
        %v2202 = vld [vmem:[%s306 + $0x69] sm:$0xff]
        %v2203 = vld [vmem:[%s306 + $0x79] sm:$0xff]
        %v2204 = vld [vmem:[%s306 + $0x81] sm:$0xff]
        %v2205 = vld [vmem:[%s306 + $0x91] sm:$0xff]
        %v2206 = vld [vmem:[%s306 + $0x99] sm:$0xff]
        %v2207 = vld [vmem:[%s306 + $0xa9] sm:$0xff]
        %v2208 = vld [vmem:[%s306 + $0xb1] sm:$0xff]
        %v2209 = vld [vmem:[%s306 + $0xc1] sm:$0xff]
        %v2210 = vld [vmem:[%s306 + $0xc9] sm:$0xff]
        %v2211 = vld [vmem:[%s306 + $0xd9] sm:$0xff]
        %v2212 = vld [vmem:[%s306 + $0xe1] sm:$0xff]
        %s2213 = scalar_lea.vmem [#allocation9], 896
        %v2214 = vld [vmem:[%s2213] sm:$0xff]
        %v2215 = vld [vmem:[%s2213 + $0x8] sm:$0xff]
        %v2216 = vld [vmem:[%s2213 + $0x10] sm:$0xff]
        %v2217 = vld [vmem:[%s2213 + $0x18] sm:$0xff]
        %v2218 = vld [vmem:[%s2213 + $0x20] sm:$0xff]
        %v2219 = vld [vmem:[%s2213 + $0x28] sm:$0xff]
        %v2220 = vld [vmem:[%s2213 + $0x30] sm:$0xff]
        %v2221 = vld [vmem:[%s2213 + $0x38] sm:$0xff]
        %v2222 = vld [vmem:[%s2213 + $0x40] sm:$0xff]
        %v2223 = vld [vmem:[%s2213 + $0x48] sm:$0xff]
        %v2224 = vld [vmem:[%s2213 + $0x50] sm:$0xff]
        %v2225 = vld [vmem:[%s2213 + $0x58] sm:$0xff]
        %v2226 = vld [vmem:[%s2213 + $0x60] sm:$0xff]
        %v2227 = vld [vmem:[%s2213 + $0x68] sm:$0xff]
        %v2228 = vld [vmem:[%s2213 + $0x70] sm:$0xff]
        %v2229 = vld [vmem:[%s2213 + $0x78] sm:$0xff]
        %2230 = vmatprep.subr.mxu0 0.0
        %2231 = vmatpush1.msra.mxu0 %v2214
        %2232 = vmatprep.subr.mxu0 0.0
        %2233 = vmatpush1.msra.mxu0 %v2215
        %2234 = vmatprep.subr.mxu0 0.0
        %2235 = vmatpush1.msra.mxu0 %v2216
        %2236 = vmatprep.subr.mxu0 0.0
        %2237 = vmatpush1.msra.mxu0 %v2217
        %2238 = vmatprep.subr.mxu0 0.0
        %2239 = vmatpush1.msra.mxu0 %v2218
        %2240 = vmatprep.subr.mxu0 0.0
        %2241 = vmatpush1.msra.mxu0 %v2219
        %2242 = vmatprep.subr.mxu0 0.0
        %2243 = vmatpush1.msra.mxu0 %v2220
        %2244 = vmatprep.subr.mxu0 0.0
        %2245 = vmatpush1.msra.mxu0 %v2221
        %2246 = vmatprep.subr.mxu0 0.0
        %2247 = vmatpush1.msra.mxu0 %v2222
        %2248 = vmatprep.subr.mxu0 0.0
        %2249 = vmatpush1.msra.mxu0 %v2223
        %2250 = vmatprep.subr.mxu0 0.0
        %2251 = vmatpush1.msra.mxu0 %v2224
        %2252 = vmatprep.subr.mxu0 0.0
        %2253 = vmatpush1.msra.mxu0 %v2225
        %2254 = vmatprep.subr.mxu0 0.0
        %2255 = vmatpush1.msra.mxu0 %v2226
        %2256 = vmatprep.subr.mxu0 0.0
        %2257 = vmatpush1.msra.mxu0 %v2227
        %2258 = vmatprep.subr.mxu0 0.0
        %2259 = vmatpush1.msra.mxu0 %v2228
        %2260 = vmatprep.subr.mxu0 0.0
        %2261 = vmatpush1.msra.mxu0 %v2229
        %2262 = vmatprep.subr.mxu0 0.0
        %2263 = vmatpush1.msra.mxu0 0.0
        %2264 = vmatprep.subr.mxu0 0.0
        %2265 = vmatpush1.msra.mxu0 0.0
        %2266 = vmatprep.subr.mxu0 0.0
        %2267 = vmatpush1.msra.mxu0 0.0
        %2268 = vmatprep.subr.mxu0 0.0
        %2269 = vmatpush1.msra.mxu0 0.0
        %2270 = vmatprep.subr.mxu0 0.0
        %2271 = vmatpush1.msra.mxu0 0.0
        %2272 = vmatprep.subr.mxu0 0.0
        %2273 = vmatpush1.msra.mxu0 0.0
        %2274 = vmatprep.subr.mxu0 0.0
        %2275 = vmatpush1.msra.mxu0 0.0
        %2276 = vmatprep.subr.mxu0 0.0
        %2277 = vmatpush1.msra.mxu0 0.0
        %2278 = vmatprep.subr.mxu0 0.0
        %2279 = vmatpush1.msra.mxu0 0.0
        %2280 = vmatprep.subr.mxu0 0.0
        %2281 = vmatpush1.msra.mxu0 0.0
        %2282 = vmatprep.subr.mxu0 0.0
        %2283 = vmatpush1.msra.mxu0 0.0
        %2284 = vmatprep.subr.mxu0 0.0
        %2285 = vmatpush1.msra.mxu0 0.0
        %2286 = vmatprep.subr.mxu0 0.0
        %2287 = vmatpush1.msra.mxu0 0.0
        %2288 = vmatprep.subr.mxu0 0.0
        %2289 = vmatpush1.msra.mxu0 0.0
        %2290 = vmatprep.subr.mxu0 0.0
        %2291 = vmatpush1.msra.mxu0 0.0
        %2292 = vmatprep.subr.mxu0 0.0
        %2293 = vmatpush1.msra.mxu0 0.0
        %2294 = vmatprep.mubr.f32.mxu0 0.0
        %2295 = vmatmul.mubr.f32.gmra.mrb[0].mxu0 %v2193
        %v2296 = vpop.f32.mrb[0].mxu0
        %v2297 = vadd.f32 0.0, %v2296
        %v2298 = vpop.f32.mrb[0].mxu0
        %2299 = vmatprep.mubr.f32.mxu0 0.0
        %2300 = vmatmul.mubr.f32.gmra.mrb[0].mxu0 %v2194
        %v2301 = vpop.f32.mrb[0].mxu0
        %v2302 = vadd.f32 0.0, %v2301
        %v2303 = vpop.f32.mrb[0].mxu0
        %2304 = vmatprep.mubr.f32.mxu0 0.0
        %2305 = vmatmul.mubr.f32.gmra.mrb[0].mxu0 %v2195
        %v2306 = vpop.f32.mrb[0].mxu0
        %v2307 = vadd.f32 0.0, %v2306
        %v2308 = vpop.f32.mrb[0].mxu0
        %2309 = vmatprep.mubr.f32.mxu0 0.0
        %2310 = vmatmul.mubr.f32.gmra.mrb[0].mxu0 %v2196
        %v2311 = vpop.f32.mrb[0].mxu0
        %v2312 = vadd.f32 0.0, %v2311
        %v2313 = vpop.f32.mrb[0].mxu0
        %2314 = vmatprep.mubr.f32.mxu0 0.0
        %2315 = vmatmul.mubr.f32.gmra.mrb[0].mxu0 %v2197
        %v2316 = vpop.f32.mrb[0].mxu0
        %v2317 = vadd.f32 0.0, %v2316
        %v2318 = vpop.f32.mrb[0].mxu0
        %2319 = vmatprep.mubr.f32.mxu0 0.0
        %2320 = vmatmul.mubr.f32.gmra.mrb[0].mxu0 %v2198
        %v2321 = vpop.f32.mrb[0].mxu0
        %v2322 = vadd.f32 0.0, %v2321
        %v2323 = vpop.f32.mrb[0].mxu0
        %2324 = vmatprep.mubr.f32.mxu0 0.0
        %2325 = vmatmul.mubr.f32.gmra.mrb[0].mxu0 %v2199
        %v2326 = vpop.f32.mrb[0].mxu0
        %v2327 = vadd.f32 0.0, %v2326
        %v2328 = vpop.f32.mrb[0].mxu0
        %2329 = vmatprep.mubr.f32.mxu0 0.0
        %2330 = vmatmul.mubr.f32.gmra.mrb[0].mxu0 %v2200
        %v2331 = vpop.f32.mrb[0].mxu0
        %v2332 = vadd.f32 0.0, %v2331
        %v2333 = vpop.f32.mrb[0].mxu0
        %2334 = vmatprep.mubr.f32.mxu0 0.0
        %2335 = vmatmul.mubr.f32.gmra.mrb[0].mxu0 %v2201
        %v2336 = vpop.f32.mrb[0].mxu0
        %v2337 = vadd.f32 0.0, %v2336
        %v2338 = vpop.f32.mrb[0].mxu0
        %2339 = vmatprep.mubr.f32.mxu0 0.0
        %2340 = vmatmul.mubr.f32.gmra.mrb[0].mxu0 %v2202
        %v2341 = vpop.f32.mrb[0].mxu0
        %v2342 = vadd.f32 0.0, %v2341
        %v2343 = vpop.f32.mrb[0].mxu0
        %2344 = vmatprep.mubr.f32.mxu0 0.0
        %2345 = vmatmul.mubr.f32.gmra.mrb[0].mxu0 %v2203
        %v2346 = vpop.f32.mrb[0].mxu0
        %v2347 = vadd.f32 0.0, %v2346
        %v2348 = vpop.f32.mrb[0].mxu0
        %2349 = vmatprep.mubr.f32.mxu0 0.0
        %2350 = vmatmul.mubr.f32.gmra.mrb[0].mxu0 %v2204
        %v2351 = vpop.f32.mrb[0].mxu0
        %v2352 = vadd.f32 0.0, %v2351
        %v2353 = vpop.f32.mrb[0].mxu0
        %2354 = vmatprep.mubr.f32.mxu0 0.0
        %2355 = vmatmul.mubr.f32.gmra.mrb[0].mxu0 %v2205
        %v2356 = vpop.f32.mrb[0].mxu0
        %v2357 = vadd.f32 0.0, %v2356
        %v2358 = vpop.f32.mrb[0].mxu0
        %2359 = vmatprep.mubr.f32.mxu0 0.0
        %2360 = vmatmul.mubr.f32.gmra.mrb[0].mxu0 %v2206
        %v2361 = vpop.f32.mrb[0].mxu0
        %v2362 = vadd.f32 0.0, %v2361
        %v2363 = vpop.f32.mrb[0].mxu0
        %2364 = vmatprep.mubr.f32.mxu0 0.0
        %2365 = vmatmul.mubr.f32.gmra.mrb[0].mxu0 %v2207
        %v2366 = vpop.f32.mrb[0].mxu0
        %v2367 = vadd.f32 0.0, %v2366
        %v2368 = vpop.f32.mrb[0].mxu0
        %2369 = vmatprep.mubr.f32.mxu0 0.0
        %2370 = vmatmul.mubr.f32.gmra.mrb[0].mxu0 %v2208
        %v2371 = vpop.f32.mrb[0].mxu0
        %v2372 = vadd.f32 0.0, %v2371
        %v2373 = vpop.f32.mrb[0].mxu0
        %2374 = vmatprep.mubr.f32.mxu0 0.0
        %2375 = vmatmul.mubr.f32.gmra.mrb[0].mxu0 %v2209
        %v2376 = vpop.f32.mrb[0].mxu0
        %v2377 = vadd.f32 0.0, %v2376
        %v2378 = vpop.f32.mrb[0].mxu0
        %2379 = vmatprep.mubr.f32.mxu0 0.0
        %2380 = vmatmul.mubr.f32.gmra.mrb[0].mxu0 %v2210
        %v2381 = vpop.f32.mrb[0].mxu0
        %v2382 = vadd.f32 0.0, %v2381
        %v2383 = vpop.f32.mrb[0].mxu0
        %2384 = vmatprep.mubr.f32.mxu0 0.0
        %2385 = vmatmul.mubr.f32.gmra.mrb[0].mxu0 %v2211
        %v2386 = vpop.f32.mrb[0].mxu0
        %v2387 = vadd.f32 0.0, %v2386
        %v2388 = vpop.f32.mrb[0].mxu0
        %2389 = vmatprep.mubr.f32.mxu0 0.0
        %2390 = vmatmul.mubr.f32.gmra.mrb[0].mxu0 %v2212
        %v2391 = vpop.f32.mrb[0].mxu0
        %v2392 = vadd.f32 0.0, %v2391
        %v2393 = vpop.f32.mrb[0].mxu0
        %2394 = vdwg.mxu0
        %v2395 = vld [vmem:[#allocation4] sm:$0xff]
        %v2396 = vld [vmem:[#allocation4 + $0x8] sm:$0xff]
        %v2397 = vld [vmem:[#allocation4 + $0x10] sm:$0xff]
        %v2398 = vld [vmem:[#allocation4 + $0x18] sm:$0xff]
        %v2399 = vld [vmem:[#allocation4 + $0x20] sm:$0xff]
        %v2400 = vld [vmem:[#allocation4 + $0x28] sm:$0xff]
        %v2401 = vld [vmem:[#allocation4 + $0x30] sm:$0xff]
        %v2402 = vld [vmem:[#allocation4 + $0x38] sm:$0xff]
        %v2403 = vld [vmem:[#allocation4 + $0x40] sm:$0xff]
        %v2404 = vld [vmem:[#allocation4 + $0x48] sm:$0xff]
        %v2405 = vld [vmem:[#allocation4 + $0x50] sm:$0xff]
        %v2406 = vld [vmem:[#allocation4 + $0x58] sm:$0xff]
        %v2407 = vld [vmem:[#allocation4 + $0x60] sm:$0xff]
        %v2408 = vld [vmem:[#allocation4 + $0x68] sm:$0xff]
        %v2409 = vld [vmem:[#allocation4 + $0x70] sm:$0xff]
        %v2410 = vld [vmem:[#allocation4 + $0x78] sm:$0xff]
        %v2411 = vld [vmem:[#allocation4 + $0x80] sm:$0xff]
        %v2412 = vld [vmem:[#allocation4 + $0x88] sm:$0xff]
        %v2413 = vld [vmem:[#allocation4 + $0x90] sm:$0xff]
        %v2414 = vld [vmem:[#allocation4 + $0x98] sm:$0xff]
        %v2415 = vadd.f32 %v2395, %v2297
        %v2416 = vadd.f32 %v2396, %v2302
        %v2417 = vadd.f32 %v2397, %v2307
        %v2418 = vadd.f32 %v2398, %v2312
        %v2419 = vadd.f32 %v2399, %v2317
        %v2420 = vadd.f32 %v2400, %v2322
        %v2421 = vadd.f32 %v2401, %v2327
        %v2422 = vadd.f32 %v2402, %v2332
        %v2423 = vadd.f32 %v2403, %v2337
        %v2424 = vadd.f32 %v2404, %v2342
        %v2425 = vadd.f32 %v2405, %v2347
        %v2426 = vadd.f32 %v2406, %v2352
        %v2427 = vadd.f32 %v2407, %v2357
        %v2428 = vadd.f32 %v2408, %v2362
        %v2429 = vadd.f32 %v2409, %v2367
        %v2430 = vadd.f32 %v2410, %v2372
        %v2431 = vadd.f32 %v2411, %v2377
        %v2432 = vadd.f32 %v2412, %v2382
        %v2433 = vadd.f32 %v2413, %v2387
        %v2434 = vadd.f32 %v2414, %v2392
        %2435 = vst [vmem:[#allocation4] sm:$0xff] %v2415
        %2436 = vst [vmem:[#allocation4 + $0x8] sm:$0xff] %v2416
        %2437 = vst [vmem:[#allocation4 + $0x10] sm:$0xff] %v2417
        %2438 = vst [vmem:[#allocation4 + $0x18] sm:$0xff] %v2418
        %2439 = vst [vmem:[#allocation4 + $0x20] sm:$0xff] %v2419
        %2440 = vst [vmem:[#allocation4 + $0x28] sm:$0xff] %v2420
        %2441 = vst [vmem:[#allocation4 + $0x30] sm:$0xff] %v2421
        %2442 = vst [vmem:[#allocation4 + $0x38] sm:$0xff] %v2422
        %2443 = vst [vmem:[#allocation4 + $0x40] sm:$0xff] %v2423
        %2444 = vst [vmem:[#allocation4 + $0x48] sm:$0xff] %v2424
        %2445 = vst [vmem:[#allocation4 + $0x50] sm:$0xff] %v2425
        %2446 = vst [vmem:[#allocation4 + $0x58] sm:$0xff] %v2426
        %2447 = vst [vmem:[#allocation4 + $0x60] sm:$0xff] %v2427
        %2448 = vst [vmem:[#allocation4 + $0x68] sm:$0xff] %v2428
        %2449 = vst [vmem:[#allocation4 + $0x70] sm:$0xff] %v2429
        %2450 = vst [vmem:[#allocation4 + $0x78] sm:$0xff] %v2430
        %2451 = vst [vmem:[#allocation4 + $0x80] sm:$0xff] %v2431
        %2452 = vst [vmem:[#allocation4 + $0x88] sm:$0xff] %v2432
        %2453 = vst [vmem:[#allocation4 + $0x90] sm:$0xff] %v2433
        %2454 = vst [vmem:[#allocation4 + $0x98] sm:$0xff] %v2434
        %v2455 = vld [vmem:[%s306 + $0x2] sm:$0xff]
        %v2456 = vld [vmem:[%s306 + $0xa] sm:$0xff]
        %v2457 = vld [vmem:[%s306 + $0x1a] sm:$0xff]
        %v2458 = vld [vmem:[%s306 + $0x22] sm:$0xff]
        %v2459 = vld [vmem:[%s306 + $0x32] sm:$0xff]
        %v2460 = vld [vmem:[%s306 + $0x3a] sm:$0xff]
        %v2461 = vld [vmem:[%s306 + $0x4a] sm:$0xff]
        %v2462 = vld [vmem:[%s306 + $0x52] sm:$0xff]
        %v2463 = vld [vmem:[%s306 + $0x62] sm:$0xff]
        %v2464 = vld [vmem:[%s306 + $0x6a] sm:$0xff]
        %v2465 = vld [vmem:[%s306 + $0x7a] sm:$0xff]
        %v2466 = vld [vmem:[%s306 + $0x82] sm:$0xff]
        %v2467 = vld [vmem:[%s306 + $0x92] sm:$0xff]
        %v2468 = vld [vmem:[%s306 + $0x9a] sm:$0xff]
        %v2469 = vld [vmem:[%s306 + $0xaa] sm:$0xff]
        %v2470 = vld [vmem:[%s306 + $0xb2] sm:$0xff]
        %v2471 = vld [vmem:[%s306 + $0xc2] sm:$0xff]
        %v2472 = vld [vmem:[%s306 + $0xca] sm:$0xff]
        %v2473 = vld [vmem:[%s306 + $0xda] sm:$0xff]
        %v2474 = vld [vmem:[%s306 + $0xe2] sm:$0xff]
        %s2475 = scalar_lea.vmem [#allocation9], 1024
        %v2476 = vld [vmem:[%s2475] sm:$0xff]
        %v2477 = vld [vmem:[%s2475 + $0x8] sm:$0xff]
        %v2478 = vld [vmem:[%s2475 + $0x10] sm:$0xff]
        %v2479 = vld [vmem:[%s2475 + $0x18] sm:$0xff]
        %v2480 = vld [vmem:[%s2475 + $0x20] sm:$0xff]
        %v2481 = vld [vmem:[%s2475 + $0x28] sm:$0xff]
        %v2482 = vld [vmem:[%s2475 + $0x30] sm:$0xff]
        %v2483 = vld [vmem:[%s2475 + $0x38] sm:$0xff]
        %v2484 = vld [vmem:[%s2475 + $0x40] sm:$0xff]
        %v2485 = vld [vmem:[%s2475 + $0x48] sm:$0xff]
        %v2486 = vld [vmem:[%s2475 + $0x50] sm:$0xff]
        %v2487 = vld [vmem:[%s2475 + $0x58] sm:$0xff]
        %v2488 = vld [vmem:[%s2475 + $0x60] sm:$0xff]
        %v2489 = vld [vmem:[%s2475 + $0x68] sm:$0xff]
        %v2490 = vld [vmem:[%s2475 + $0x70] sm:$0xff]
        %v2491 = vld [vmem:[%s2475 + $0x78] sm:$0xff]
        %2492 = vmatprep.subr.mxu0 0.0
        %2493 = vmatpush1.msra.mxu0 %v2476
        %2494 = vmatprep.subr.mxu0 0.0
        %2495 = vmatpush1.msra.mxu0 %v2477
        %2496 = vmatprep.subr.mxu0 0.0
        %2497 = vmatpush1.msra.mxu0 %v2478
        %2498 = vmatprep.subr.mxu0 0.0
        %2499 = vmatpush1.msra.mxu0 %v2479
        %2500 = vmatprep.subr.mxu0 0.0
        %2501 = vmatpush1.msra.mxu0 %v2480
        %2502 = vmatprep.subr.mxu0 0.0
        %2503 = vmatpush1.msra.mxu0 %v2481
        %2504 = vmatprep.subr.mxu0 0.0
        %2505 = vmatpush1.msra.mxu0 %v2482
        %2506 = vmatprep.subr.mxu0 0.0
        %2507 = vmatpush1.msra.mxu0 %v2483
        %2508 = vmatprep.subr.mxu0 0.0
        %2509 = vmatpush1.msra.mxu0 %v2484
        %2510 = vmatprep.subr.mxu0 0.0
        %2511 = vmatpush1.msra.mxu0 %v2485
        %2512 = vmatprep.subr.mxu0 0.0
        %2513 = vmatpush1.msra.mxu0 %v2486
        %2514 = vmatprep.subr.mxu0 0.0
        %2515 = vmatpush1.msra.mxu0 %v2487
        %2516 = vmatprep.subr.mxu0 0.0
        %2517 = vmatpush1.msra.mxu0 %v2488
        %2518 = vmatprep.subr.mxu0 0.0
        %2519 = vmatpush1.msra.mxu0 %v2489
        %2520 = vmatprep.subr.mxu0 0.0
        %2521 = vmatpush1.msra.mxu0 %v2490
        %2522 = vmatprep.subr.mxu0 0.0
        %2523 = vmatpush1.msra.mxu0 %v2491
        %2524 = vmatprep.subr.mxu0 0.0
        %2525 = vmatpush1.msra.mxu0 0.0
        %2526 = vmatprep.subr.mxu0 0.0
        %2527 = vmatpush1.msra.mxu0 0.0
        %2528 = vmatprep.subr.mxu0 0.0
        %2529 = vmatpush1.msra.mxu0 0.0
        %2530 = vmatprep.subr.mxu0 0.0
        %2531 = vmatpush1.msra.mxu0 0.0
        %2532 = vmatprep.subr.mxu0 0.0
        %2533 = vmatpush1.msra.mxu0 0.0
        %2534 = vmatprep.subr.mxu0 0.0
        %2535 = vmatpush1.msra.mxu0 0.0
        %2536 = vmatprep.subr.mxu0 0.0
        %2537 = vmatpush1.msra.mxu0 0.0
        %2538 = vmatprep.subr.mxu0 0.0
        %2539 = vmatpush1.msra.mxu0 0.0
        %2540 = vmatprep.subr.mxu0 0.0
        %2541 = vmatpush1.msra.mxu0 0.0
        %2542 = vmatprep.subr.mxu0 0.0
        %2543 = vmatpush1.msra.mxu0 0.0
        %2544 = vmatprep.subr.mxu0 0.0
        %2545 = vmatpush1.msra.mxu0 0.0
        %2546 = vmatprep.subr.mxu0 0.0
        %2547 = vmatpush1.msra.mxu0 0.0
        %2548 = vmatprep.subr.mxu0 0.0
        %2549 = vmatpush1.msra.mxu0 0.0
        %2550 = vmatprep.subr.mxu0 0.0
        %2551 = vmatpush1.msra.mxu0 0.0
        %2552 = vmatprep.subr.mxu0 0.0
        %2553 = vmatpush1.msra.mxu0 0.0
        %2554 = vmatprep.subr.mxu0 0.0
        %2555 = vmatpush1.msra.mxu0 0.0
        %2556 = vmatprep.mubr.f32.mxu0 0.0
        %2557 = vmatmul.mubr.f32.gmra.mrb[0].mxu0 %v2455
        %v2558 = vpop.f32.mrb[0].mxu0
        %v2559 = vadd.f32 0.0, %v2558
        %v2560 = vpop.f32.mrb[0].mxu0
        %2561 = vmatprep.mubr.f32.mxu0 0.0
        %2562 = vmatmul.mubr.f32.gmra.mrb[0].mxu0 %v2456
        %v2563 = vpop.f32.mrb[0].mxu0
        %v2564 = vadd.f32 0.0, %v2563
        %v2565 = vpop.f32.mrb[0].mxu0
        %2566 = vmatprep.mubr.f32.mxu0 0.0
        %2567 = vmatmul.mubr.f32.gmra.mrb[0].mxu0 %v2457
        %v2568 = vpop.f32.mrb[0].mxu0
        %v2569 = vadd.f32 0.0, %v2568
        %v2570 = vpop.f32.mrb[0].mxu0
        %2571 = vmatprep.mubr.f32.mxu0 0.0
        %2572 = vmatmul.mubr.f32.gmra.mrb[0].mxu0 %v2458
        %v2573 = vpop.f32.mrb[0].mxu0
        %v2574 = vadd.f32 0.0, %v2573
        %v2575 = vpop.f32.mrb[0].mxu0
        %2576 = vmatprep.mubr.f32.mxu0 0.0
        %2577 = vmatmul.mubr.f32.gmra.mrb[0].mxu0 %v2459
        %v2578 = vpop.f32.mrb[0].mxu0
        %v2579 = vadd.f32 0.0, %v2578
        %v2580 = vpop.f32.mrb[0].mxu0
        %2581 = vmatprep.mubr.f32.mxu0 0.0
        %2582 = vmatmul.mubr.f32.gmra.mrb[0].mxu0 %v2460
        %v2583 = vpop.f32.mrb[0].mxu0
        %v2584 = vadd.f32 0.0, %v2583
        %v2585 = vpop.f32.mrb[0].mxu0
        %2586 = vmatprep.mubr.f32.mxu0 0.0
        %2587 = vmatmul.mubr.f32.gmra.mrb[0].mxu0 %v2461
        %v2588 = vpop.f32.mrb[0].mxu0
        %v2589 = vadd.f32 0.0, %v2588
        %v2590 = vpop.f32.mrb[0].mxu0
        %2591 = vmatprep.mubr.f32.mxu0 0.0
        %2592 = vmatmul.mubr.f32.gmra.mrb[0].mxu0 %v2462
        %v2593 = vpop.f32.mrb[0].mxu0
        %v2594 = vadd.f32 0.0, %v2593
        %v2595 = vpop.f32.mrb[0].mxu0
        %2596 = vmatprep.mubr.f32.mxu0 0.0
        %2597 = vmatmul.mubr.f32.gmra.mrb[0].mxu0 %v2463
        %v2598 = vpop.f32.mrb[0].mxu0
        %v2599 = vadd.f32 0.0, %v2598
        %v2600 = vpop.f32.mrb[0].mxu0
        %2601 = vmatprep.mubr.f32.mxu0 0.0
        %2602 = vmatmul.mubr.f32.gmra.mrb[0].mxu0 %v2464
        %v2603 = vpop.f32.mrb[0].mxu0
        %v2604 = vadd.f32 0.0, %v2603
        %v2605 = vpop.f32.mrb[0].mxu0
        %2606 = vmatprep.mubr.f32.mxu0 0.0
        %2607 = vmatmul.mubr.f32.gmra.mrb[0].mxu0 %v2465
        %v2608 = vpop.f32.mrb[0].mxu0
        %v2609 = vadd.f32 0.0, %v2608
        %v2610 = vpop.f32.mrb[0].mxu0
        %2611 = vmatprep.mubr.f32.mxu0 0.0
        %2612 = vmatmul.mubr.f32.gmra.mrb[0].mxu0 %v2466
        %v2613 = vpop.f32.mrb[0].mxu0
        %v2614 = vadd.f32 0.0, %v2613
        %v2615 = vpop.f32.mrb[0].mxu0
        %2616 = vmatprep.mubr.f32.mxu0 0.0
        %2617 = vmatmul.mubr.f32.gmra.mrb[0].mxu0 %v2467
        %v2618 = vpop.f32.mrb[0].mxu0
        %v2619 = vadd.f32 0.0, %v2618
        %v2620 = vpop.f32.mrb[0].mxu0
        %2621 = vmatprep.mubr.f32.mxu0 0.0
        %2622 = vmatmul.mubr.f32.gmra.mrb[0].mxu0 %v2468
        %v2623 = vpop.f32.mrb[0].mxu0
        %v2624 = vadd.f32 0.0, %v2623
        %v2625 = vpop.f32.mrb[0].mxu0
        %2626 = vmatprep.mubr.f32.mxu0 0.0
        %2627 = vmatmul.mubr.f32.gmra.mrb[0].mxu0 %v2469
        %v2628 = vpop.f32.mrb[0].mxu0
        %v2629 = vadd.f32 0.0, %v2628
        %v2630 = vpop.f32.mrb[0].mxu0
        %2631 = vmatprep.mubr.f32.mxu0 0.0
        %2632 = vmatmul.mubr.f32.gmra.mrb[0].mxu0 %v2470
        %v2633 = vpop.f32.mrb[0].mxu0
        %v2634 = vadd.f32 0.0, %v2633
        %v2635 = vpop.f32.mrb[0].mxu0
        %2636 = vmatprep.mubr.f32.mxu0 0.0
        %2637 = vmatmul.mubr.f32.gmra.mrb[0].mxu0 %v2471
        %v2638 = vpop.f32.mrb[0].mxu0
        %v2639 = vadd.f32 0.0, %v2638
        %v2640 = vpop.f32.mrb[0].mxu0
        %2641 = vmatprep.mubr.f32.mxu0 0.0
        %2642 = vmatmul.mubr.f32.gmra.mrb[0].mxu0 %v2472
        %v2643 = vpop.f32.mrb[0].mxu0
        %v2644 = vadd.f32 0.0, %v2643
        %v2645 = vpop.f32.mrb[0].mxu0
        %2646 = vmatprep.mubr.f32.mxu0 0.0
        %2647 = vmatmul.mubr.f32.gmra.mrb[0].mxu0 %v2473
        %v2648 = vpop.f32.mrb[0].mxu0
        %v2649 = vadd.f32 0.0, %v2648
        %v2650 = vpop.f32.mrb[0].mxu0
        %2651 = vmatprep.mubr.f32.mxu0 0.0
        %2652 = vmatmul.mubr.f32.gmra.mrb[0].mxu0 %v2474
        %v2653 = vpop.f32.mrb[0].mxu0
        %v2654 = vadd.f32 0.0, %v2653
        %v2655 = vpop.f32.mrb[0].mxu0
        %2656 = vdwg.mxu0
        %v2657 = vld [vmem:[#allocation4] sm:$0xff]
        %v2658 = vld [vmem:[#allocation4 + $0x8] sm:$0xff]
        %v2659 = vld [vmem:[#allocation4 + $0x10] sm:$0xff]
        %v2660 = vld [vmem:[#allocation4 + $0x18] sm:$0xff]
        %v2661 = vld [vmem:[#allocation4 + $0x20] sm:$0xff]
        %v2662 = vld [vmem:[#allocation4 + $0x28] sm:$0xff]
        %v2663 = vld [vmem:[#allocation4 + $0x30] sm:$0xff]
        %v2664 = vld [vmem:[#allocation4 + $0x38] sm:$0xff]
        %v2665 = vld [vmem:[#allocation4 + $0x40] sm:$0xff]
        %v2666 = vld [vmem:[#allocation4 + $0x48] sm:$0xff]
        %v2667 = vld [vmem:[#allocation4 + $0x50] sm:$0xff]
        %v2668 = vld [vmem:[#allocation4 + $0x58] sm:$0xff]
        %v2669 = vld [vmem:[#allocation4 + $0x60] sm:$0xff]
        %v2670 = vld [vmem:[#allocation4 + $0x68] sm:$0xff]
        %v2671 = vld [vmem:[#allocation4 + $0x70] sm:$0xff]
        %v2672 = vld [vmem:[#allocation4 + $0x78] sm:$0xff]
        %v2673 = vld [vmem:[#allocation4 + $0x80] sm:$0xff]
        %v2674 = vld [vmem:[#allocation4 + $0x88] sm:$0xff]
        %v2675 = vld [vmem:[#allocation4 + $0x90] sm:$0xff]
        %v2676 = vld [vmem:[#allocation4 + $0x98] sm:$0xff]
        %v2677 = vadd.f32 %v2657, %v2559
        %v2678 = vadd.f32 %v2658, %v2564
        %v2679 = vadd.f32 %v2659, %v2569
        %v2680 = vadd.f32 %v2660, %v2574
        %v2681 = vadd.f32 %v2661, %v2579
        %v2682 = vadd.f32 %v2662, %v2584
        %v2683 = vadd.f32 %v2663, %v2589
        %v2684 = vadd.f32 %v2664, %v2594
        %v2685 = vadd.f32 %v2665, %v2599
        %v2686 = vadd.f32 %v2666, %v2604
        %v2687 = vadd.f32 %v2667, %v2609
        %v2688 = vadd.f32 %v2668, %v2614
        %v2689 = vadd.f32 %v2669, %v2619
        %v2690 = vadd.f32 %v2670, %v2624
        %v2691 = vadd.f32 %v2671, %v2629
        %v2692 = vadd.f32 %v2672, %v2634
        %v2693 = vadd.f32 %v2673, %v2639
        %v2694 = vadd.f32 %v2674, %v2644
        %v2695 = vadd.f32 %v2675, %v2649
        %v2696 = vadd.f32 %v2676, %v2654
        %2697 = vst [vmem:[#allocation4] sm:$0xff] %v2677
        %2698 = vst [vmem:[#allocation4 + $0x8] sm:$0xff] %v2678
        %2699 = vst [vmem:[#allocation4 + $0x10] sm:$0xff] %v2679
        %2700 = vst [vmem:[#allocation4 + $0x18] sm:$0xff] %v2680
        %2701 = vst [vmem:[#allocation4 + $0x20] sm:$0xff] %v2681
        %2702 = vst [vmem:[#allocation4 + $0x28] sm:$0xff] %v2682
        %2703 = vst [vmem:[#allocation4 + $0x30] sm:$0xff] %v2683
        %2704 = vst [vmem:[#allocation4 + $0x38] sm:$0xff] %v2684
        %2705 = vst [vmem:[#allocation4 + $0x40] sm:$0xff] %v2685
        %2706 = vst [vmem:[#allocation4 + $0x48] sm:$0xff] %v2686
        %2707 = vst [vmem:[#allocation4 + $0x50] sm:$0xff] %v2687
        %2708 = vst [vmem:[#allocation4 + $0x58] sm:$0xff] %v2688
        %2709 = vst [vmem:[#allocation4 + $0x60] sm:$0xff] %v2689
        %2710 = vst [vmem:[#allocation4 + $0x68] sm:$0xff] %v2690
        %2711 = vst [vmem:[#allocation4 + $0x70] sm:$0xff] %v2691
        %2712 = vst [vmem:[#allocation4 + $0x78] sm:$0xff] %v2692
        %2713 = vst [vmem:[#allocation4 + $0x80] sm:$0xff] %v2693
        %2714 = vst [vmem:[#allocation4 + $0x88] sm:$0xff] %v2694
        %2715 = vst [vmem:[#allocation4 + $0x90] sm:$0xff] %v2695
        %2716 = vst [vmem:[#allocation4 + $0x98] sm:$0xff] %v2696
        %v2717 = vld [vmem:[#allocation4] sm:$0xff]
        %v2718 = vld [vmem:[#allocation4 + $0x8] sm:$0xff]
        %v2719 = vld [vmem:[#allocation4 + $0x10] sm:$0xff]
        %v2720 = vld [vmem:[#allocation4 + $0x18] sm:$0xff]
        %v2721 = vld [vmem:[#allocation4 + $0x20] sm:$0xff]
        %v2722 = vld [vmem:[#allocation4 + $0x28] sm:$0xff]
        %v2723 = vld [vmem:[#allocation4 + $0x30] sm:$0xff]
        %v2724 = vld [vmem:[#allocation4 + $0x38] sm:$0xff]
        %v2725 = vld [vmem:[#allocation4 + $0x40] sm:$0xff]
        %v2726 = vld [vmem:[#allocation4 + $0x48] sm:$0xff]
        %v2727 = vld [vmem:[#allocation4 + $0x50] sm:$0xff]
        %v2728 = vld [vmem:[#allocation4 + $0x58] sm:$0xff]
        %v2729 = vld [vmem:[#allocation4 + $0x60] sm:$0xff]
        %v2730 = vld [vmem:[#allocation4 + $0x68] sm:$0xff]
        %v2731 = vld [vmem:[#allocation4 + $0x70] sm:$0xff]
        %v2732 = vld [vmem:[#allocation4 + $0x78] sm:$0xff]
        %v2733 = vld [vmem:[#allocation4 + $0x80] sm:$0xff]
        %v2734 = vld [vmem:[#allocation4 + $0x88] sm:$0xff]
        %v2735 = vld [vmem:[#allocation4 + $0x90] sm:$0xff]
        %v2736 = vld [vmem:[#allocation4 + $0x98] sm:$0xff]
        %v2737 = vld [vmem:[%s2] sm:$0x1]
        %v2739 = vlaneseq
        %v2740 = vshrl.u32 %v2739, 7
        %v2741 = vsub.s32 0, %v2740
        %v2742 = vrot.slane %v2737, %v2741
        %v2744 = vadd.f32 %v2717, %v2742
        %v2745 = vadd.f32 %v2718, %v2742
        %v2746 = vadd.f32 %v2719, %v2742
        %v2747 = vadd.f32 %v2720, %v2742
        %v2748 = vadd.f32 %v2721, %v2742
        %v2749 = vadd.f32 %v2722, %v2742
        %v2750 = vadd.f32 %v2723, %v2742
        %v2751 = vadd.f32 %v2724, %v2742
        %v2752 = vadd.f32 %v2725, %v2742
        %v2753 = vadd.f32 %v2726, %v2742
        %v2754 = vadd.f32 %v2727, %v2742
        %v2755 = vadd.f32 %v2728, %v2742
        %v2756 = vadd.f32 %v2729, %v2742
        %v2757 = vadd.f32 %v2730, %v2742
        %v2758 = vadd.f32 %v2731, %v2742
        %v2759 = vadd.f32 %v2732, %v2742
        %v2760 = vadd.f32 %v2733, %v2742
        %v2761 = vadd.f32 %v2734, %v2742
        %v2762 = vadd.f32 %v2735, %v2742
        %v2763 = vadd.f32 %v2736, %v2742
        %v2764 = vxor.u32 %v2744, 2147483648
        %v2765 = vxor.u32 %v2745, 2147483648
        %v2766 = vxor.u32 %v2746, 2147483648
        %v2767 = vxor.u32 %v2747, 2147483648
        %v2768 = vxor.u32 %v2748, 2147483648
        %v2769 = vxor.u32 %v2749, 2147483648
        %v2770 = vxor.u32 %v2750, 2147483648
        %v2771 = vxor.u32 %v2751, 2147483648
        %v2772 = vxor.u32 %v2752, 2147483648
        %v2773 = vxor.u32 %v2753, 2147483648
        %v2774 = vxor.u32 %v2754, 2147483648
        %v2775 = vxor.u32 %v2755, 2147483648
        %v2776 = vxor.u32 %v2756, 2147483648
        %v2777 = vxor.u32 %v2757, 2147483648
        %v2778 = vxor.u32 %v2758, 2147483648
        %v2779 = vxor.u32 %v2759, 2147483648
        %v2780 = vxor.u32 %v2760, 2147483648
        %v2781 = vxor.u32 %v2761, 2147483648
        %v2782 = vxor.u32 %v2762, 2147483648
        %v2783 = vxor.u32 %v2763, 2147483648
        %v2784 = vmul.f32 %v2764, 1.442695
        %v2785 = vpow.pop %v2784
        %v2786 = vmul.f32 %v2765, 1.442695
        %v2787 = vpow.pop %v2786
        %v2788 = vmul.f32 %v2766, 1.442695
        %v2789 = vpow.pop %v2788
        %v2790 = vmul.f32 %v2767, 1.442695
        %v2791 = vpow.pop %v2790
        %v2792 = vmul.f32 %v2768, 1.442695
        %v2793 = vpow.pop %v2792
        %v2794 = vmul.f32 %v2769, 1.442695
        %v2795 = vpow.pop %v2794
        %v2796 = vmul.f32 %v2770, 1.442695
        %v2797 = vpow.pop %v2796
        %v2798 = vmul.f32 %v2771, 1.442695
        %v2799 = vpow.pop %v2798
        %v2800 = vmul.f32 %v2772, 1.442695
        %v2801 = vpow.pop %v2800
        %v2802 = vmul.f32 %v2773, 1.442695
        %v2803 = vpow.pop %v2802
        %v2804 = vmul.f32 %v2774, 1.442695
        %v2805 = vpow.pop %v2804
        %v2806 = vmul.f32 %v2775, 1.442695
        %v2807 = vpow.pop %v2806
        %v2808 = vmul.f32 %v2776, 1.442695
        %v2809 = vpow.pop %v2808
        %v2810 = vmul.f32 %v2777, 1.442695
        %v2811 = vpow.pop %v2810
        %v2812 = vmul.f32 %v2778, 1.442695
        %v2813 = vpow.pop %v2812
        %v2814 = vmul.f32 %v2779, 1.442695
        %v2815 = vpow.pop %v2814
        %v2816 = vmul.f32 %v2780, 1.442695
        %v2817 = vpow.pop %v2816
        %v2818 = vmul.f32 %v2781, 1.442695
        %v2819 = vpow.pop %v2818
        %v2820 = vmul.f32 %v2782, 1.442695
        %v2821 = vpow.pop %v2820
        %v2822 = vmul.f32 %v2783, 1.442695
        %v2823 = vpow.pop %v2822
        %v2824 = vadd.f32 %v2785, 1.0
        %v2825 = vadd.f32 %v2787, 1.0
        %v2826 = vadd.f32 %v2789, 1.0
        %v2827 = vadd.f32 %v2791, 1.0
        %v2828 = vadd.f32 %v2793, 1.0
        %v2829 = vadd.f32 %v2795, 1.0
        %v2830 = vadd.f32 %v2797, 1.0
        %v2831 = vadd.f32 %v2799, 1.0
        %v2832 = vadd.f32 %v2801, 1.0
        %v2833 = vadd.f32 %v2803, 1.0
        %v2834 = vadd.f32 %v2805, 1.0
        %v2835 = vadd.f32 %v2807, 1.0
        %v2836 = vadd.f32 %v2809, 1.0
        %v2837 = vadd.f32 %v2811, 1.0
        %v2838 = vadd.f32 %v2813, 1.0
        %v2839 = vadd.f32 %v2815, 1.0
        %v2840 = vadd.f32 %v2817, 1.0
        %v2841 = vadd.f32 %v2819, 1.0
        %v2842 = vadd.f32 %v2821, 1.0
        %v2843 = vadd.f32 %v2823, 1.0
        %v2844 = vrcp.pop %v2824
        %v2845 = vmul.f32 1.0, %v2844
        %v2846 = vrcp.pop %v2825
        %v2847 = vmul.f32 1.0, %v2846
        %v2848 = vrcp.pop %v2826
        %v2849 = vmul.f32 1.0, %v2848
        %v2850 = vrcp.pop %v2827
        %v2851 = vmul.f32 1.0, %v2850
        %v2852 = vrcp.pop %v2828
        %v2853 = vmul.f32 1.0, %v2852
        %v2854 = vrcp.pop %v2829
        %v2855 = vmul.f32 1.0, %v2854
        %v2856 = vrcp.pop %v2830
        %v2857 = vmul.f32 1.0, %v2856
        %v2858 = vrcp.pop %v2831
        %v2859 = vmul.f32 1.0, %v2858
        %v2860 = vrcp.pop %v2832
        %v2861 = vmul.f32 1.0, %v2860
        %v2862 = vrcp.pop %v2833
        %v2863 = vmul.f32 1.0, %v2862
        %v2864 = vrcp.pop %v2834
        %v2865 = vmul.f32 1.0, %v2864
        %v2866 = vrcp.pop %v2835
        %v2867 = vmul.f32 1.0, %v2866
        %v2868 = vrcp.pop %v2836
        %v2869 = vmul.f32 1.0, %v2868
        %v2870 = vrcp.pop %v2837
        %v2871 = vmul.f32 1.0, %v2870
        %v2872 = vrcp.pop %v2838
        %v2873 = vmul.f32 1.0, %v2872
        %v2874 = vrcp.pop %v2839
        %v2875 = vmul.f32 1.0, %v2874
        %v2876 = vrcp.pop %v2840
        %v2877 = vmul.f32 1.0, %v2876
        %v2878 = vrcp.pop %v2841
        %v2879 = vmul.f32 1.0, %v2878
        %v2880 = vrcp.pop %v2842
        %v2881 = vmul.f32 1.0, %v2880
        %v2882 = vrcp.pop %v2843
        %v2883 = vmul.f32 1.0, %v2882
        %v2884 = vmul.f32 %v2744, %v2845
        %v2885 = vmul.f32 %v2745, %v2847
        %v2886 = vmul.f32 %v2746, %v2849
        %v2887 = vmul.f32 %v2747, %v2851
        %v2888 = vmul.f32 %v2748, %v2853
        %v2889 = vmul.f32 %v2749, %v2855
        %v2890 = vmul.f32 %v2750, %v2857
        %v2891 = vmul.f32 %v2751, %v2859
        %v2892 = vmul.f32 %v2752, %v2861
        %v2893 = vmul.f32 %v2753, %v2863
        %v2894 = vmul.f32 %v2754, %v2865
        %v2895 = vmul.f32 %v2755, %v2867
        %v2896 = vmul.f32 %v2756, %v2869
        %v2897 = vmul.f32 %v2757, %v2871
        %v2898 = vmul.f32 %v2758, %v2873
        %v2899 = vmul.f32 %v2759, %v2875
        %v2900 = vmul.f32 %v2760, %v2877
        %v2901 = vmul.f32 %v2761, %v2879
        %v2902 = vmul.f32 %v2762, %v2881
        %v2903 = vmul.f32 %v2763, %v2883
        %2904 = vst [vmem:[#allocation3 + $0x1] sm:$0xff] %v2884
        %2905 = vst [vmem:[#allocation3 + $0x9] sm:$0xff] %v2885
        %2906 = vst [vmem:[#allocation3 + $0x19] sm:$0xff] %v2886
        %2907 = vst [vmem:[#allocation3 + $0x21] sm:$0xff] %v2887
        %2908 = vst [vmem:[#allocation3 + $0x31] sm:$0xff] %v2888
        %2909 = vst [vmem:[#allocation3 + $0x39] sm:$0xff] %v2889
        %2910 = vst [vmem:[#allocation3 + $0x49] sm:$0xff] %v2890
        %2911 = vst [vmem:[#allocation3 + $0x51] sm:$0xff] %v2891
        %2912 = vst [vmem:[#allocation3 + $0x61] sm:$0xff] %v2892
        %2913 = vst [vmem:[#allocation3 + $0x69] sm:$0xff] %v2893
        %2914 = vst [vmem:[#allocation3 + $0x79] sm:$0xff] %v2894
        %2915 = vst [vmem:[#allocation3 + $0x81] sm:$0xff] %v2895
        %2916 = vst [vmem:[#allocation3 + $0x91] sm:$0xff] %v2896
        %2917 = vst [vmem:[#allocation3 + $0x99] sm:$0xff] %v2897
        %2918 = vst [vmem:[#allocation3 + $0xa9] sm:$0xff] %v2898
        %2919 = vst [vmem:[#allocation3 + $0xb1] sm:$0xff] %v2899
        %2920 = vst [vmem:[#allocation3 + $0xc1] sm:$0xff] %v2900
        %2921 = vst [vmem:[#allocation3 + $0xc9] sm:$0xff] %v2901
        %2922 = vst [vmem:[#allocation3 + $0xd9] sm:$0xff] %v2902
        %2923 = vst [vmem:[#allocation3 + $0xe1] sm:$0xff] %v2903
        %2924 = vst [vmem:[#allocation3] sm:$0x1] 0.0
        %2925 = vst [vmem:[#allocation3 + $0x18] sm:$0x1] 0.0
        %2926 = vst [vmem:[#allocation3 + $0x30] sm:$0x1] 0.0
        %2927 = vst [vmem:[#allocation3 + $0x48] sm:$0x1] 0.0
        %2928 = vst [vmem:[#allocation3 + $0x60] sm:$0x1] 0.0
        %2929 = vst [vmem:[#allocation3 + $0x78] sm:$0x1] 0.0
        %2930 = vst [vmem:[#allocation3 + $0x90] sm:$0x1] 0.0
        %2931 = vst [vmem:[#allocation3 + $0xa8] sm:$0x1] 0.0
        %2932 = vst [vmem:[#allocation3 + $0xc0] sm:$0x1] 0.0
        %2933 = vst [vmem:[#allocation3 + $0xd8] sm:$0x1] 0.0
        %2934 = vst [vmem:[#allocation3 + $0x11] sm:$0x1] 0.0
        %2935 = vst [vmem:[#allocation3 + $0x29] sm:$0x1] 0.0
        %2936 = vst [vmem:[#allocation3 + $0x41] sm:$0x1] 0.0
        %2937 = vst [vmem:[#allocation3 + $0x59] sm:$0x1] 0.0
        %2938 = vst [vmem:[#allocation3 + $0x71] sm:$0x1] 0.0
        %2939 = vst [vmem:[#allocation3 + $0x89] sm:$0x1] 0.0
        %2940 = vst [vmem:[#allocation3 + $0xa1] sm:$0x1] 0.0
        %2941 = vst [vmem:[#allocation3 + $0xb9] sm:$0x1] 0.0
        %2942 = vst [vmem:[#allocation3 + $0xd1] sm:$0x1] 0.0
        %2943 = vst [vmem:[#allocation3 + $0xe9] sm:$0x1] 0.0
        // Predicated region
        $region69: #{tpu_custom_call.1} parent=39 // pred_check
          %p2944 = pneg %p362
        $region70: #{tpu_custom_call.1} parent=39 // pred_check_branch
          %2946 = sbr.rel (%p2944) target = $region72
        $region71: #{tpu_custom_call.1} parent=39 // pred_region
          %2947 = vst [vmem:[#allocation3] sm:$0xff] 0.0
          %2948 = vst [vmem:[#allocation3 + $0x8] sm:$0xff] 0.0
          %2949 = vst [vmem:[#allocation3 + $0x10] sm:$0x3] 0.0
        $region72: #{tpu_custom_call.1} parent=39 // pred_fallthru
          _
        // Predicated region
        $region73: #{tpu_custom_call.1} parent=39 // pred_check
          %p2950 = pneg %p388
        $region74: #{tpu_custom_call.1} parent=39 // pred_check_branch
          %2952 = sbr.rel (%p2950) target = $region76
        $region75: #{tpu_custom_call.1} parent=39 // pred_region
          %s2953 = scalar_lea.vmem [#allocation3], 216
          %2954 = vst [vmem:[%s2953] sm:$0xff] 0.0
          %2955 = vst [vmem:[%s2953 + $0x8] sm:$0xff] 0.0
          %2956 = vst [vmem:[%s2953 + $0x10] sm:$0x3] 0.0
        $region76: #{tpu_custom_call.1} parent=39 // pred_fallthru
          _
        %v2957 = vld [vmem:[#allocation3] sm:$0xff]
        %v2958 = vld [vmem:[#allocation3 + $0x8] sm:$0xff]
        %v2959 = vld [vmem:[#allocation3 + $0x18] sm:$0xff]
        %v2960 = vld [vmem:[#allocation3 + $0x20] sm:$0xff]
        %v2961 = vld [vmem:[#allocation3 + $0x30] sm:$0xff]
        %v2962 = vld [vmem:[#allocation3 + $0x38] sm:$0xff]
        %v2963 = vld [vmem:[#allocation3 + $0x48] sm:$0xff]
        %v2964 = vld [vmem:[#allocation3 + $0x50] sm:$0xff]
        %v2965 = vld [vmem:[#allocation3 + $0x60] sm:$0xff]
        %v2966 = vld [vmem:[#allocation3 + $0x68] sm:$0xff]
        %v2967 = vld [vmem:[#allocation3 + $0x78] sm:$0xff]
        %v2968 = vld [vmem:[#allocation3 + $0x80] sm:$0xff]
        %v2969 = vld [vmem:[#allocation3 + $0x90] sm:$0xff]
        %v2970 = vld [vmem:[#allocation3 + $0x98] sm:$0xff]
        %v2971 = vld [vmem:[#allocation3 + $0xa8] sm:$0xff]
        %v2972 = vld [vmem:[#allocation3 + $0xb0] sm:$0xff]
        %v2973 = vld [vmem:[#allocation11] sm:$0xff]
        %v2974 = vld [vmem:[#allocation11 + $0x8] sm:$0xff]
        %v2975 = vld [vmem:[#allocation11 + $0x10] sm:$0xff]
        %v2976 = vld [vmem:[#allocation11 + $0x18] sm:$0xff]
        %v2977 = vld [vmem:[#allocation11 + $0x20] sm:$0xff]
        %v2978 = vld [vmem:[#allocation11 + $0x28] sm:$0xff]
        %v2979 = vld [vmem:[#allocation11 + $0x30] sm:$0xff]
        %v2980 = vld [vmem:[#allocation11 + $0x38] sm:$0xff]
        %v2981 = vld [vmem:[#allocation11 + $0x40] sm:$0xff]
        %v2982 = vld [vmem:[#allocation11 + $0x48] sm:$0xff]
        %v2983 = vld [vmem:[#allocation11 + $0x50] sm:$0xff]
        %v2984 = vld [vmem:[#allocation11 + $0x58] sm:$0xff]
        %v2985 = vld [vmem:[#allocation11 + $0x60] sm:$0xff]
        %v2986 = vld [vmem:[#allocation11 + $0x68] sm:$0xff]
        %v2987 = vld [vmem:[#allocation11 + $0x70] sm:$0xff]
        %v2988 = vld [vmem:[#allocation11 + $0x78] sm:$0xff]
        %2989 = vmatprep.subr.mxu0 0.0
        %2990 = vmatpush1.msra.mxu0 %v2973
        %2991 = vmatprep.subr.mxu0 0.0
        %2992 = vmatpush1.msra.mxu0 %v2974
        %2993 = vmatprep.subr.mxu0 0.0
        %2994 = vmatpush1.msra.mxu0 %v2975
        %2995 = vmatprep.subr.mxu0 0.0
        %2996 = vmatpush1.msra.mxu0 %v2976
        %2997 = vmatprep.subr.mxu0 0.0
        %2998 = vmatpush1.msra.mxu0 %v2977
        %2999 = vmatprep.subr.mxu0 0.0
        %3000 = vmatpush1.msra.mxu0 %v2978
        %3001 = vmatprep.subr.mxu0 0.0
        %3002 = vmatpush1.msra.mxu0 %v2979
        %3003 = vmatprep.subr.mxu0 0.0
        %3004 = vmatpush1.msra.mxu0 %v2980
        %3005 = vmatprep.subr.mxu0 0.0
        %3006 = vmatpush1.msra.mxu0 %v2981
        %3007 = vmatprep.subr.mxu0 0.0
        %3008 = vmatpush1.msra.mxu0 %v2982
        %3009 = vmatprep.subr.mxu0 0.0
        %3010 = vmatpush1.msra.mxu0 %v2983
        %3011 = vmatprep.subr.mxu0 0.0
        %3012 = vmatpush1.msra.mxu0 %v2984
        %3013 = vmatprep.subr.mxu0 0.0
        %3014 = vmatpush1.msra.mxu0 %v2985
        %3015 = vmatprep.subr.mxu0 0.0
        %3016 = vmatpush1.msra.mxu0 %v2986
        %3017 = vmatprep.subr.mxu0 0.0
        %3018 = vmatpush1.msra.mxu0 %v2987
        %3019 = vmatprep.subr.mxu0 0.0
        %3020 = vmatpush1.msra.mxu0 %v2988
        %3021 = vmatprep.subr.mxu0 0.0
        %3022 = vmatpush1.msra.mxu0 0.0
        %3023 = vmatprep.subr.mxu0 0.0
        %3024 = vmatpush1.msra.mxu0 0.0
        %3025 = vmatprep.subr.mxu0 0.0
        %3026 = vmatpush1.msra.mxu0 0.0
        %3027 = vmatprep.subr.mxu0 0.0
        %3028 = vmatpush1.msra.mxu0 0.0
        %3029 = vmatprep.subr.mxu0 0.0
        %3030 = vmatpush1.msra.mxu0 0.0
        %3031 = vmatprep.subr.mxu0 0.0
        %3032 = vmatpush1.msra.mxu0 0.0
        %3033 = vmatprep.subr.mxu0 0.0
        %3034 = vmatpush1.msra.mxu0 0.0
        %3035 = vmatprep.subr.mxu0 0.0
        %3036 = vmatpush1.msra.mxu0 0.0
        %3037 = vmatprep.subr.mxu0 0.0
        %3038 = vmatpush1.msra.mxu0 0.0
        %3039 = vmatprep.subr.mxu0 0.0
        %3040 = vmatpush1.msra.mxu0 0.0
        %3041 = vmatprep.subr.mxu0 0.0
        %3042 = vmatpush1.msra.mxu0 0.0
        %3043 = vmatprep.subr.mxu0 0.0
        %3044 = vmatpush1.msra.mxu0 0.0
        %3045 = vmatprep.subr.mxu0 0.0
        %3046 = vmatpush1.msra.mxu0 0.0
        %3047 = vmatprep.subr.mxu0 0.0
        %3048 = vmatpush1.msra.mxu0 0.0
        %3049 = vmatprep.subr.mxu0 0.0
        %3050 = vmatpush1.msra.mxu0 0.0
        %3051 = vmatprep.subr.mxu0 0.0
        %3052 = vmatpush1.msra.mxu0 0.0
        %3053 = vmatprep.mubr.f32.mxu0 0.0
        %3054 = vmatmul.mubr.f32.gmra.mrb[0].mxu0 %v2957
        %v3055 = vpop.f32.mrb[0].mxu0
        %v3056 = vadd.f32 0.0, %v3055
        %v3057 = vpop.f32.mrb[0].mxu0
        %3058 = vmatprep.mubr.f32.mxu0 0.0
        %3059 = vmatmul.mubr.f32.gmra.mrb[0].mxu0 %v2958
        %v3060 = vpop.f32.mrb[0].mxu0
        %v3061 = vadd.f32 0.0, %v3060
        %v3062 = vpop.f32.mrb[0].mxu0
        %3063 = vmatprep.mubr.f32.mxu0 0.0
        %3064 = vmatmul.mubr.f32.gmra.mrb[0].mxu0 %v2959
        %v3065 = vpop.f32.mrb[0].mxu0
        %v3066 = vadd.f32 0.0, %v3065
        %v3067 = vpop.f32.mrb[0].mxu0
        %3068 = vmatprep.mubr.f32.mxu0 0.0
        %3069 = vmatmul.mubr.f32.gmra.mrb[0].mxu0 %v2960
        %v3070 = vpop.f32.mrb[0].mxu0
        %v3071 = vadd.f32 0.0, %v3070
        %v3072 = vpop.f32.mrb[0].mxu0
        %3073 = vmatprep.mubr.f32.mxu0 0.0
        %3074 = vmatmul.mubr.f32.gmra.mrb[0].mxu0 %v2961
        %v3075 = vpop.f32.mrb[0].mxu0
        %v3076 = vadd.f32 0.0, %v3075
        %v3077 = vpop.f32.mrb[0].mxu0
        %3078 = vmatprep.mubr.f32.mxu0 0.0
        %3079 = vmatmul.mubr.f32.gmra.mrb[0].mxu0 %v2962
        %v3080 = vpop.f32.mrb[0].mxu0
        %v3081 = vadd.f32 0.0, %v3080
        %v3082 = vpop.f32.mrb[0].mxu0
        %3083 = vmatprep.mubr.f32.mxu0 0.0
        %3084 = vmatmul.mubr.f32.gmra.mrb[0].mxu0 %v2963
        %v3085 = vpop.f32.mrb[0].mxu0
        %v3086 = vadd.f32 0.0, %v3085
        %v3087 = vpop.f32.mrb[0].mxu0
        %3088 = vmatprep.mubr.f32.mxu0 0.0
        %3089 = vmatmul.mubr.f32.gmra.mrb[0].mxu0 %v2964
        %v3090 = vpop.f32.mrb[0].mxu0
        %v3091 = vadd.f32 0.0, %v3090
        %v3092 = vpop.f32.mrb[0].mxu0
        %3093 = vmatprep.mubr.f32.mxu0 0.0
        %3094 = vmatmul.mubr.f32.gmra.mrb[0].mxu0 %v2965
        %v3095 = vpop.f32.mrb[0].mxu0
        %v3096 = vadd.f32 0.0, %v3095
        %v3097 = vpop.f32.mrb[0].mxu0
        %3098 = vmatprep.mubr.f32.mxu0 0.0
        %3099 = vmatmul.mubr.f32.gmra.mrb[0].mxu0 %v2966
        %v3100 = vpop.f32.mrb[0].mxu0
        %v3101 = vadd.f32 0.0, %v3100
        %v3102 = vpop.f32.mrb[0].mxu0
        %3103 = vmatprep.mubr.f32.mxu0 0.0
        %3104 = vmatmul.mubr.f32.gmra.mrb[0].mxu0 %v2967
        %v3105 = vpop.f32.mrb[0].mxu0
        %v3106 = vadd.f32 0.0, %v3105
        %v3107 = vpop.f32.mrb[0].mxu0
        %3108 = vmatprep.mubr.f32.mxu0 0.0
        %3109 = vmatmul.mubr.f32.gmra.mrb[0].mxu0 %v2968
        %v3110 = vpop.f32.mrb[0].mxu0
        %v3111 = vadd.f32 0.0, %v3110
        %v3112 = vpop.f32.mrb[0].mxu0
        %3113 = vmatprep.mubr.f32.mxu0 0.0
        %3114 = vmatmul.mubr.f32.gmra.mrb[0].mxu0 %v2969
        %v3115 = vpop.f32.mrb[0].mxu0
        %v3116 = vadd.f32 0.0, %v3115
        %v3117 = vpop.f32.mrb[0].mxu0
        %3118 = vmatprep.mubr.f32.mxu0 0.0
        %3119 = vmatmul.mubr.f32.gmra.mrb[0].mxu0 %v2970
        %v3120 = vpop.f32.mrb[0].mxu0
        %v3121 = vadd.f32 0.0, %v3120
        %v3122 = vpop.f32.mrb[0].mxu0
        %3123 = vmatprep.mubr.f32.mxu0 0.0
        %3124 = vmatmul.mubr.f32.gmra.mrb[0].mxu0 %v2971
        %v3125 = vpop.f32.mrb[0].mxu0
        %v3126 = vadd.f32 0.0, %v3125
        %v3127 = vpop.f32.mrb[0].mxu0
        %3128 = vmatprep.mubr.f32.mxu0 0.0
        %3129 = vmatmul.mubr.f32.gmra.mrb[0].mxu0 %v2972
        %v3130 = vpop.f32.mrb[0].mxu0
        %v3131 = vadd.f32 0.0, %v3130
        %v3132 = vpop.f32.mrb[0].mxu0
        %3133 = vdwg.mxu0
        %3134 = vst [vmem:[#allocation5] sm:$0xff] %v3056
        %3135 = vst [vmem:[#allocation5 + $0x8] sm:$0xff] %v3061
        %3136 = vst [vmem:[#allocation5 + $0x10] sm:$0xff] %v3066
        %3137 = vst [vmem:[#allocation5 + $0x18] sm:$0xff] %v3071
        %3138 = vst [vmem:[#allocation5 + $0x20] sm:$0xff] %v3076
        %3139 = vst [vmem:[#allocation5 + $0x28] sm:$0xff] %v3081
        %3140 = vst [vmem:[#allocation5 + $0x30] sm:$0xff] %v3086
        %3141 = vst [vmem:[#allocation5 + $0x38] sm:$0xff] %v3091
        %3142 = vst [vmem:[#allocation5 + $0x40] sm:$0xff] %v3096
        %3143 = vst [vmem:[#allocation5 + $0x48] sm:$0xff] %v3101
        %3144 = vst [vmem:[#allocation5 + $0x50] sm:$0xff] %v3106
        %3145 = vst [vmem:[#allocation5 + $0x58] sm:$0xff] %v3111
        %3146 = vst [vmem:[#allocation5 + $0x60] sm:$0xff] %v3116
        %3147 = vst [vmem:[#allocation5 + $0x68] sm:$0xff] %v3121
        %3148 = vst [vmem:[#allocation5 + $0x70] sm:$0xff] %v3126
        %3149 = vst [vmem:[#allocation5 + $0x78] sm:$0xff] %v3131
        %v3150 = vld [vmem:[#allocation3 + $0x1] sm:$0xff]
        %v3151 = vld [vmem:[#allocation3 + $0x9] sm:$0xff]
        %v3152 = vld [vmem:[#allocation3 + $0x19] sm:$0xff]
        %v3153 = vld [vmem:[#allocation3 + $0x21] sm:$0xff]
        %v3154 = vld [vmem:[#allocation3 + $0x31] sm:$0xff]
        %v3155 = vld [vmem:[#allocation3 + $0x39] sm:$0xff]
        %v3156 = vld [vmem:[#allocation3 + $0x49] sm:$0xff]
        %v3157 = vld [vmem:[#allocation3 + $0x51] sm:$0xff]
        %v3158 = vld [vmem:[#allocation3 + $0x61] sm:$0xff]
        %v3159 = vld [vmem:[#allocation3 + $0x69] sm:$0xff]
        %v3160 = vld [vmem:[#allocation3 + $0x79] sm:$0xff]
        %v3161 = vld [vmem:[#allocation3 + $0x81] sm:$0xff]
        %v3162 = vld [vmem:[#allocation3 + $0x91] sm:$0xff]
        %v3163 = vld [vmem:[#allocation3 + $0x99] sm:$0xff]
        %v3164 = vld [vmem:[#allocation3 + $0xa9] sm:$0xff]
        %v3165 = vld [vmem:[#allocation3 + $0xb1] sm:$0xff]
        %s3166 = scalar_lea.vmem [#allocation11], 128
        %v3167 = vld [vmem:[%s3166] sm:$0xff]
        %v3168 = vld [vmem:[%s3166 + $0x8] sm:$0xff]
        %v3169 = vld [vmem:[%s3166 + $0x10] sm:$0xff]
        %v3170 = vld [vmem:[%s3166 + $0x18] sm:$0xff]
        %v3171 = vld [vmem:[%s3166 + $0x20] sm:$0xff]
        %v3172 = vld [vmem:[%s3166 + $0x28] sm:$0xff]
        %v3173 = vld [vmem:[%s3166 + $0x30] sm:$0xff]
        %v3174 = vld [vmem:[%s3166 + $0x38] sm:$0xff]
        %v3175 = vld [vmem:[%s3166 + $0x40] sm:$0xff]
        %v3176 = vld [vmem:[%s3166 + $0x48] sm:$0xff]
        %v3177 = vld [vmem:[%s3166 + $0x50] sm:$0xff]
        %v3178 = vld [vmem:[%s3166 + $0x58] sm:$0xff]
        %v3179 = vld [vmem:[%s3166 + $0x60] sm:$0xff]
        %v3180 = vld [vmem:[%s3166 + $0x68] sm:$0xff]
        %v3181 = vld [vmem:[%s3166 + $0x70] sm:$0xff]
        %v3182 = vld [vmem:[%s3166 + $0x78] sm:$0xff]
        %3183 = vmatprep.subr.mxu0 0.0
        %3184 = vmatpush1.msra.mxu0 %v3167
        %3185 = vmatprep.subr.mxu0 0.0
        %3186 = vmatpush1.msra.mxu0 %v3168
        %3187 = vmatprep.subr.mxu0 0.0
        %3188 = vmatpush1.msra.mxu0 %v3169
        %3189 = vmatprep.subr.mxu0 0.0
        %3190 = vmatpush1.msra.mxu0 %v3170
        %3191 = vmatprep.subr.mxu0 0.0
        %3192 = vmatpush1.msra.mxu0 %v3171
        %3193 = vmatprep.subr.mxu0 0.0
        %3194 = vmatpush1.msra.mxu0 %v3172
        %3195 = vmatprep.subr.mxu0 0.0
        %3196 = vmatpush1.msra.mxu0 %v3173
        %3197 = vmatprep.subr.mxu0 0.0
        %3198 = vmatpush1.msra.mxu0 %v3174
        %3199 = vmatprep.subr.mxu0 0.0
        %3200 = vmatpush1.msra.mxu0 %v3175
        %3201 = vmatprep.subr.mxu0 0.0
        %3202 = vmatpush1.msra.mxu0 %v3176
        %3203 = vmatprep.subr.mxu0 0.0
        %3204 = vmatpush1.msra.mxu0 %v3177
        %3205 = vmatprep.subr.mxu0 0.0
        %3206 = vmatpush1.msra.mxu0 %v3178
        %3207 = vmatprep.subr.mxu0 0.0
        %3208 = vmatpush1.msra.mxu0 %v3179
        %3209 = vmatprep.subr.mxu0 0.0
        %3210 = vmatpush1.msra.mxu0 %v3180
        %3211 = vmatprep.subr.mxu0 0.0
        %3212 = vmatpush1.msra.mxu0 %v3181
        %3213 = vmatprep.subr.mxu0 0.0
        %3214 = vmatpush1.msra.mxu0 %v3182
        %3215 = vmatprep.subr.mxu0 0.0
        %3216 = vmatpush1.msra.mxu0 0.0
        %3217 = vmatprep.subr.mxu0 0.0
        %3218 = vmatpush1.msra.mxu0 0.0
        %3219 = vmatprep.subr.mxu0 0.0
        %3220 = vmatpush1.msra.mxu0 0.0
        %3221 = vmatprep.subr.mxu0 0.0
        %3222 = vmatpush1.msra.mxu0 0.0
        %3223 = vmatprep.subr.mxu0 0.0
        %3224 = vmatpush1.msra.mxu0 0.0
        %3225 = vmatprep.subr.mxu0 0.0
        %3226 = vmatpush1.msra.mxu0 0.0
        %3227 = vmatprep.subr.mxu0 0.0
        %3228 = vmatpush1.msra.mxu0 0.0
        %3229 = vmatprep.subr.mxu0 0.0
        %3230 = vmatpush1.msra.mxu0 0.0
        %3231 = vmatprep.subr.mxu0 0.0
        %3232 = vmatpush1.msra.mxu0 0.0
        %3233 = vmatprep.subr.mxu0 0.0
        %3234 = vmatpush1.msra.mxu0 0.0
        %3235 = vmatprep.subr.mxu0 0.0
        %3236 = vmatpush1.msra.mxu0 0.0
        %3237 = vmatprep.subr.mxu0 0.0
        %3238 = vmatpush1.msra.mxu0 0.0
        %3239 = vmatprep.subr.mxu0 0.0
        %3240 = vmatpush1.msra.mxu0 0.0
        %3241 = vmatprep.subr.mxu0 0.0
        %3242 = vmatpush1.msra.mxu0 0.0
        %3243 = vmatprep.subr.mxu0 0.0
        %3244 = vmatpush1.msra.mxu0 0.0
        %3245 = vmatprep.subr.mxu0 0.0
        %3246 = vmatpush1.msra.mxu0 0.0
        %3247 = vmatprep.mubr.f32.mxu0 0.0
        %3248 = vmatmul.mubr.f32.gmra.mrb[0].mxu0 %v3150
        %v3249 = vpop.f32.mrb[0].mxu0
        %v3250 = vadd.f32 0.0, %v3249
        %v3251 = vpop.f32.mrb[0].mxu0
        %3252 = vmatprep.mubr.f32.mxu0 0.0
        %3253 = vmatmul.mubr.f32.gmra.mrb[0].mxu0 %v3151
        %v3254 = vpop.f32.mrb[0].mxu0
        %v3255 = vadd.f32 0.0, %v3254
        %v3256 = vpop.f32.mrb[0].mxu0
        %3257 = vmatprep.mubr.f32.mxu0 0.0
        %3258 = vmatmul.mubr.f32.gmra.mrb[0].mxu0 %v3152
        %v3259 = vpop.f32.mrb[0].mxu0
        %v3260 = vadd.f32 0.0, %v3259
        %v3261 = vpop.f32.mrb[0].mxu0
        %3262 = vmatprep.mubr.f32.mxu0 0.0
        %3263 = vmatmul.mubr.f32.gmra.mrb[0].mxu0 %v3153
        %v3264 = vpop.f32.mrb[0].mxu0
        %v3265 = vadd.f32 0.0, %v3264
        %v3266 = vpop.f32.mrb[0].mxu0
        %3267 = vmatprep.mubr.f32.mxu0 0.0
        %3268 = vmatmul.mubr.f32.gmra.mrb[0].mxu0 %v3154
        %v3269 = vpop.f32.mrb[0].mxu0
        %v3270 = vadd.f32 0.0, %v3269
        %v3271 = vpop.f32.mrb[0].mxu0
        %3272 = vmatprep.mubr.f32.mxu0 0.0
        %3273 = vmatmul.mubr.f32.gmra.mrb[0].mxu0 %v3155
        %v3274 = vpop.f32.mrb[0].mxu0
        %v3275 = vadd.f32 0.0, %v3274
        %v3276 = vpop.f32.mrb[0].mxu0
        %3277 = vmatprep.mubr.f32.mxu0 0.0
        %3278 = vmatmul.mubr.f32.gmra.mrb[0].mxu0 %v3156
        %v3279 = vpop.f32.mrb[0].mxu0
        %v3280 = vadd.f32 0.0, %v3279
        %v3281 = vpop.f32.mrb[0].mxu0
        %3282 = vmatprep.mubr.f32.mxu0 0.0
        %3283 = vmatmul.mubr.f32.gmra.mrb[0].mxu0 %v3157
        %v3284 = vpop.f32.mrb[0].mxu0
        %v3285 = vadd.f32 0.0, %v3284
        %v3286 = vpop.f32.mrb[0].mxu0
        %3287 = vmatprep.mubr.f32.mxu0 0.0
        %3288 = vmatmul.mubr.f32.gmra.mrb[0].mxu0 %v3158
        %v3289 = vpop.f32.mrb[0].mxu0
        %v3290 = vadd.f32 0.0, %v3289
        %v3291 = vpop.f32.mrb[0].mxu0
        %3292 = vmatprep.mubr.f32.mxu0 0.0
        %3293 = vmatmul.mubr.f32.gmra.mrb[0].mxu0 %v3159
        %v3294 = vpop.f32.mrb[0].mxu0
        %v3295 = vadd.f32 0.0, %v3294
        %v3296 = vpop.f32.mrb[0].mxu0
        %3297 = vmatprep.mubr.f32.mxu0 0.0
        %3298 = vmatmul.mubr.f32.gmra.mrb[0].mxu0 %v3160
        %v3299 = vpop.f32.mrb[0].mxu0
        %v3300 = vadd.f32 0.0, %v3299
        %v3301 = vpop.f32.mrb[0].mxu0
        %3302 = vmatprep.mubr.f32.mxu0 0.0
        %3303 = vmatmul.mubr.f32.gmra.mrb[0].mxu0 %v3161
        %v3304 = vpop.f32.mrb[0].mxu0
        %v3305 = vadd.f32 0.0, %v3304
        %v3306 = vpop.f32.mrb[0].mxu0
        %3307 = vmatprep.mubr.f32.mxu0 0.0
        %3308 = vmatmul.mubr.f32.gmra.mrb[0].mxu0 %v3162
        %v3309 = vpop.f32.mrb[0].mxu0
        %v3310 = vadd.f32 0.0, %v3309
        %v3311 = vpop.f32.mrb[0].mxu0
        %3312 = vmatprep.mubr.f32.mxu0 0.0
        %3313 = vmatmul.mubr.f32.gmra.mrb[0].mxu0 %v3163
        %v3314 = vpop.f32.mrb[0].mxu0
        %v3315 = vadd.f32 0.0, %v3314
        %v3316 = vpop.f32.mrb[0].mxu0
        %3317 = vmatprep.mubr.f32.mxu0 0.0
        %3318 = vmatmul.mubr.f32.gmra.mrb[0].mxu0 %v3164
        %v3319 = vpop.f32.mrb[0].mxu0
        %v3320 = vadd.f32 0.0, %v3319
        %v3321 = vpop.f32.mrb[0].mxu0
        %3322 = vmatprep.mubr.f32.mxu0 0.0
        %3323 = vmatmul.mubr.f32.gmra.mrb[0].mxu0 %v3165
        %v3324 = vpop.f32.mrb[0].mxu0
        %v3325 = vadd.f32 0.0, %v3324
        %v3326 = vpop.f32.mrb[0].mxu0
        %3327 = vdwg.mxu0
        %v3328 = vld [vmem:[#allocation5] sm:$0xff]
        %v3329 = vld [vmem:[#allocation5 + $0x8] sm:$0xff]
        %v3330 = vld [vmem:[#allocation5 + $0x10] sm:$0xff]
        %v3331 = vld [vmem:[#allocation5 + $0x18] sm:$0xff]
        %v3332 = vld [vmem:[#allocation5 + $0x20] sm:$0xff]
        %v3333 = vld [vmem:[#allocation5 + $0x28] sm:$0xff]
        %v3334 = vld [vmem:[#allocation5 + $0x30] sm:$0xff]
        %v3335 = vld [vmem:[#allocation5 + $0x38] sm:$0xff]
        %v3336 = vld [vmem:[#allocation5 + $0x40] sm:$0xff]
        %v3337 = vld [vmem:[#allocation5 + $0x48] sm:$0xff]
        %v3338 = vld [vmem:[#allocation5 + $0x50] sm:$0xff]
        %v3339 = vld [vmem:[#allocation5 + $0x58] sm:$0xff]
        %v3340 = vld [vmem:[#allocation5 + $0x60] sm:$0xff]
        %v3341 = vld [vmem:[#allocation5 + $0x68] sm:$0xff]
        %v3342 = vld [vmem:[#allocation5 + $0x70] sm:$0xff]
        %v3343 = vld [vmem:[#allocation5 + $0x78] sm:$0xff]
        %v3344 = vadd.f32 %v3328, %v3250
        %v3345 = vadd.f32 %v3329, %v3255
        %v3346 = vadd.f32 %v3330, %v3260
        %v3347 = vadd.f32 %v3331, %v3265
        %v3348 = vadd.f32 %v3332, %v3270
        %v3349 = vadd.f32 %v3333, %v3275
        %v3350 = vadd.f32 %v3334, %v3280
        %v3351 = vadd.f32 %v3335, %v3285
        %v3352 = vadd.f32 %v3336, %v3290
        %v3353 = vadd.f32 %v3337, %v3295
        %v3354 = vadd.f32 %v3338, %v3300
        %v3355 = vadd.f32 %v3339, %v3305
        %v3356 = vadd.f32 %v3340, %v3310
        %v3357 = vadd.f32 %v3341, %v3315
        %v3358 = vadd.f32 %v3342, %v3320
        %v3359 = vadd.f32 %v3343, %v3325
        %3360 = vst [vmem:[#allocation5] sm:$0xff] %v3344
        %3361 = vst [vmem:[#allocation5 + $0x8] sm:$0xff] %v3345
        %3362 = vst [vmem:[#allocation5 + $0x10] sm:$0xff] %v3346
        %3363 = vst [vmem:[#allocation5 + $0x18] sm:$0xff] %v3347
        %3364 = vst [vmem:[#allocation5 + $0x20] sm:$0xff] %v3348
        %3365 = vst [vmem:[#allocation5 + $0x28] sm:$0xff] %v3349
        %3366 = vst [vmem:[#allocation5 + $0x30] sm:$0xff] %v3350
        %3367 = vst [vmem:[#allocation5 + $0x38] sm:$0xff] %v3351
        %3368 = vst [vmem:[#allocation5 + $0x40] sm:$0xff] %v3352
        %3369 = vst [vmem:[#allocation5 + $0x48] sm:$0xff] %v3353
        %3370 = vst [vmem:[#allocation5 + $0x50] sm:$0xff] %v3354
        %3371 = vst [vmem:[#allocation5 + $0x58] sm:$0xff] %v3355
        %3372 = vst [vmem:[#allocation5 + $0x60] sm:$0xff] %v3356
        %3373 = vst [vmem:[#allocation5 + $0x68] sm:$0xff] %v3357
        %3374 = vst [vmem:[#allocation5 + $0x70] sm:$0xff] %v3358
        %3375 = vst [vmem:[#allocation5 + $0x78] sm:$0xff] %v3359
        %v3376 = vld [vmem:[#allocation3 + $0x2] sm:$0xff]
        %v3377 = vld [vmem:[#allocation3 + $0xa] sm:$0xff]
        %v3378 = vld [vmem:[#allocation3 + $0x1a] sm:$0xff]
        %v3379 = vld [vmem:[#allocation3 + $0x22] sm:$0xff]
        %v3380 = vld [vmem:[#allocation3 + $0x32] sm:$0xff]
        %v3381 = vld [vmem:[#allocation3 + $0x3a] sm:$0xff]
        %v3382 = vld [vmem:[#allocation3 + $0x4a] sm:$0xff]
        %v3383 = vld [vmem:[#allocation3 + $0x52] sm:$0xff]
        %v3384 = vld [vmem:[#allocation3 + $0x62] sm:$0xff]
        %v3385 = vld [vmem:[#allocation3 + $0x6a] sm:$0xff]
        %v3386 = vld [vmem:[#allocation3 + $0x7a] sm:$0xff]
        %v3387 = vld [vmem:[#allocation3 + $0x82] sm:$0xff]
        %v3388 = vld [vmem:[#allocation3 + $0x92] sm:$0xff]
        %v3389 = vld [vmem:[#allocation3 + $0x9a] sm:$0xff]
        %v3390 = vld [vmem:[#allocation3 + $0xaa] sm:$0xff]
        %v3391 = vld [vmem:[#allocation3 + $0xb2] sm:$0xff]
        %s3392 = scalar_lea.vmem [#allocation11], 256
        %v3393 = vld [vmem:[%s3392] sm:$0xff]
        %v3394 = vld [vmem:[%s3392 + $0x8] sm:$0xff]
        %v3395 = vld [vmem:[%s3392 + $0x10] sm:$0xff]
        %v3396 = vld [vmem:[%s3392 + $0x18] sm:$0xff]
        %v3397 = vld [vmem:[%s3392 + $0x20] sm:$0xff]
        %v3398 = vld [vmem:[%s3392 + $0x28] sm:$0xff]
        %v3399 = vld [vmem:[%s3392 + $0x30] sm:$0xff]
        %v3400 = vld [vmem:[%s3392 + $0x38] sm:$0xff]
        %v3401 = vld [vmem:[%s3392 + $0x40] sm:$0xff]
        %v3402 = vld [vmem:[%s3392 + $0x48] sm:$0xff]
        %v3403 = vld [vmem:[%s3392 + $0x50] sm:$0xff]
        %v3404 = vld [vmem:[%s3392 + $0x58] sm:$0xff]
        %v3405 = vld [vmem:[%s3392 + $0x60] sm:$0xff]
        %v3406 = vld [vmem:[%s3392 + $0x68] sm:$0xff]
        %v3407 = vld [vmem:[%s3392 + $0x70] sm:$0xff]
        %v3408 = vld [vmem:[%s3392 + $0x78] sm:$0xff]
        %3409 = vmatprep.subr.mxu0 0.0
        %3410 = vmatpush1.msra.mxu0 %v3393
        %3411 = vmatprep.subr.mxu0 0.0
        %3412 = vmatpush1.msra.mxu0 %v3394
        %3413 = vmatprep.subr.mxu0 0.0
        %3414 = vmatpush1.msra.mxu0 %v3395
        %3415 = vmatprep.subr.mxu0 0.0
        %3416 = vmatpush1.msra.mxu0 %v3396
        %3417 = vmatprep.subr.mxu0 0.0
        %3418 = vmatpush1.msra.mxu0 %v3397
        %3419 = vmatprep.subr.mxu0 0.0
        %3420 = vmatpush1.msra.mxu0 %v3398
        %3421 = vmatprep.subr.mxu0 0.0
        %3422 = vmatpush1.msra.mxu0 %v3399
        %3423 = vmatprep.subr.mxu0 0.0
        %3424 = vmatpush1.msra.mxu0 %v3400
        %3425 = vmatprep.subr.mxu0 0.0
        %3426 = vmatpush1.msra.mxu0 %v3401
        %3427 = vmatprep.subr.mxu0 0.0
        %3428 = vmatpush1.msra.mxu0 %v3402
        %3429 = vmatprep.subr.mxu0 0.0
        %3430 = vmatpush1.msra.mxu0 %v3403
        %3431 = vmatprep.subr.mxu0 0.0
        %3432 = vmatpush1.msra.mxu0 %v3404
        %3433 = vmatprep.subr.mxu0 0.0
        %3434 = vmatpush1.msra.mxu0 %v3405
        %3435 = vmatprep.subr.mxu0 0.0
        %3436 = vmatpush1.msra.mxu0 %v3406
        %3437 = vmatprep.subr.mxu0 0.0
        %3438 = vmatpush1.msra.mxu0 %v3407
        %3439 = vmatprep.subr.mxu0 0.0
        %3440 = vmatpush1.msra.mxu0 %v3408
        %3441 = vmatprep.subr.mxu0 0.0
        %3442 = vmatpush1.msra.mxu0 0.0
        %3443 = vmatprep.subr.mxu0 0.0
        %3444 = vmatpush1.msra.mxu0 0.0
        %3445 = vmatprep.subr.mxu0 0.0
        %3446 = vmatpush1.msra.mxu0 0.0
        %3447 = vmatprep.subr.mxu0 0.0
        %3448 = vmatpush1.msra.mxu0 0.0
        %3449 = vmatprep.subr.mxu0 0.0
        %3450 = vmatpush1.msra.mxu0 0.0
        %3451 = vmatprep.subr.mxu0 0.0
        %3452 = vmatpush1.msra.mxu0 0.0
        %3453 = vmatprep.subr.mxu0 0.0
        %3454 = vmatpush1.msra.mxu0 0.0
        %3455 = vmatprep.subr.mxu0 0.0
        %3456 = vmatpush1.msra.mxu0 0.0
        %3457 = vmatprep.subr.mxu0 0.0
        %3458 = vmatpush1.msra.mxu0 0.0
        %3459 = vmatprep.subr.mxu0 0.0
        %3460 = vmatpush1.msra.mxu0 0.0
        %3461 = vmatprep.subr.mxu0 0.0
        %3462 = vmatpush1.msra.mxu0 0.0
        %3463 = vmatprep.subr.mxu0 0.0
        %3464 = vmatpush1.msra.mxu0 0.0
        %3465 = vmatprep.subr.mxu0 0.0
        %3466 = vmatpush1.msra.mxu0 0.0
        %3467 = vmatprep.subr.mxu0 0.0
        %3468 = vmatpush1.msra.mxu0 0.0
        %3469 = vmatprep.subr.mxu0 0.0
        %3470 = vmatpush1.msra.mxu0 0.0
        %3471 = vmatprep.subr.mxu0 0.0
        %3472 = vmatpush1.msra.mxu0 0.0
        %3473 = vmatprep.mubr.f32.mxu0 0.0
        %3474 = vmatmul.mubr.f32.gmra.mrb[0].mxu0 %v3376
        %v3475 = vpop.f32.mrb[0].mxu0
        %v3476 = vadd.f32 0.0, %v3475
        %v3477 = vpop.f32.mrb[0].mxu0
        %3478 = vmatprep.mubr.f32.mxu0 0.0
        %3479 = vmatmul.mubr.f32.gmra.mrb[0].mxu0 %v3377
        %v3480 = vpop.f32.mrb[0].mxu0
        %v3481 = vadd.f32 0.0, %v3480
        %v3482 = vpop.f32.mrb[0].mxu0
        %3483 = vmatprep.mubr.f32.mxu0 0.0
        %3484 = vmatmul.mubr.f32.gmra.mrb[0].mxu0 %v3378
        %v3485 = vpop.f32.mrb[0].mxu0
        %v3486 = vadd.f32 0.0, %v3485
        %v3487 = vpop.f32.mrb[0].mxu0
        %3488 = vmatprep.mubr.f32.mxu0 0.0
        %3489 = vmatmul.mubr.f32.gmra.mrb[0].mxu0 %v3379
        %v3490 = vpop.f32.mrb[0].mxu0
        %v3491 = vadd.f32 0.0, %v3490
        %v3492 = vpop.f32.mrb[0].mxu0
        %3493 = vmatprep.mubr.f32.mxu0 0.0
        %3494 = vmatmul.mubr.f32.gmra.mrb[0].mxu0 %v3380
        %v3495 = vpop.f32.mrb[0].mxu0
        %v3496 = vadd.f32 0.0, %v3495
        %v3497 = vpop.f32.mrb[0].mxu0
        %3498 = vmatprep.mubr.f32.mxu0 0.0
        %3499 = vmatmul.mubr.f32.gmra.mrb[0].mxu0 %v3381
        %v3500 = vpop.f32.mrb[0].mxu0
        %v3501 = vadd.f32 0.0, %v3500
        %v3502 = vpop.f32.mrb[0].mxu0
        %3503 = vmatprep.mubr.f32.mxu0 0.0
        %3504 = vmatmul.mubr.f32.gmra.mrb[0].mxu0 %v3382
        %v3505 = vpop.f32.mrb[0].mxu0
        %v3506 = vadd.f32 0.0, %v3505
        %v3507 = vpop.f32.mrb[0].mxu0
        %3508 = vmatprep.mubr.f32.mxu0 0.0
        %3509 = vmatmul.mubr.f32.gmra.mrb[0].mxu0 %v3383
        %v3510 = vpop.f32.mrb[0].mxu0
        %v3511 = vadd.f32 0.0, %v3510
        %v3512 = vpop.f32.mrb[0].mxu0
        %3513 = vmatprep.mubr.f32.mxu0 0.0
        %3514 = vmatmul.mubr.f32.gmra.mrb[0].mxu0 %v3384
        %v3515 = vpop.f32.mrb[0].mxu0
        %v3516 = vadd.f32 0.0, %v3515
        %v3517 = vpop.f32.mrb[0].mxu0
        %3518 = vmatprep.mubr.f32.mxu0 0.0
        %3519 = vmatmul.mubr.f32.gmra.mrb[0].mxu0 %v3385
        %v3520 = vpop.f32.mrb[0].mxu0
        %v3521 = vadd.f32 0.0, %v3520
        %v3522 = vpop.f32.mrb[0].mxu0
        %3523 = vmatprep.mubr.f32.mxu0 0.0
        %3524 = vmatmul.mubr.f32.gmra.mrb[0].mxu0 %v3386
        %v3525 = vpop.f32.mrb[0].mxu0
        %v3526 = vadd.f32 0.0, %v3525
        %v3527 = vpop.f32.mrb[0].mxu0
        %3528 = vmatprep.mubr.f32.mxu0 0.0
        %3529 = vmatmul.mubr.f32.gmra.mrb[0].mxu0 %v3387
        %v3530 = vpop.f32.mrb[0].mxu0
        %v3531 = vadd.f32 0.0, %v3530
        %v3532 = vpop.f32.mrb[0].mxu0
        %3533 = vmatprep.mubr.f32.mxu0 0.0
        %3534 = vmatmul.mubr.f32.gmra.mrb[0].mxu0 %v3388
        %v3535 = vpop.f32.mrb[0].mxu0
        %v3536 = vadd.f32 0.0, %v3535
        %v3537 = vpop.f32.mrb[0].mxu0
        %3538 = vmatprep.mubr.f32.mxu0 0.0
        %3539 = vmatmul.mubr.f32.gmra.mrb[0].mxu0 %v3389
        %v3540 = vpop.f32.mrb[0].mxu0
        %v3541 = vadd.f32 0.0, %v3540
        %v3542 = vpop.f32.mrb[0].mxu0
        %3543 = vmatprep.mubr.f32.mxu0 0.0
        %3544 = vmatmul.mubr.f32.gmra.mrb[0].mxu0 %v3390
        %v3545 = vpop.f32.mrb[0].mxu0
        %v3546 = vadd.f32 0.0, %v3545
        %v3547 = vpop.f32.mrb[0].mxu0
        %3548 = vmatprep.mubr.f32.mxu0 0.0
        %3549 = vmatmul.mubr.f32.gmra.mrb[0].mxu0 %v3391
        %v3550 = vpop.f32.mrb[0].mxu0
        %v3551 = vadd.f32 0.0, %v3550
        %v3552 = vpop.f32.mrb[0].mxu0
        %3553 = vdwg.mxu0
        %v3554 = vld [vmem:[#allocation5] sm:$0xff]
        %v3555 = vld [vmem:[#allocation5 + $0x8] sm:$0xff]
        %v3556 = vld [vmem:[#allocation5 + $0x10] sm:$0xff]
        %v3557 = vld [vmem:[#allocation5 + $0x18] sm:$0xff]
        %v3558 = vld [vmem:[#allocation5 + $0x20] sm:$0xff]
        %v3559 = vld [vmem:[#allocation5 + $0x28] sm:$0xff]
        %v3560 = vld [vmem:[#allocation5 + $0x30] sm:$0xff]
        %v3561 = vld [vmem:[#allocation5 + $0x38] sm:$0xff]
        %v3562 = vld [vmem:[#allocation5 + $0x40] sm:$0xff]
        %v3563 = vld [vmem:[#allocation5 + $0x48] sm:$0xff]
        %v3564 = vld [vmem:[#allocation5 + $0x50] sm:$0xff]
        %v3565 = vld [vmem:[#allocation5 + $0x58] sm:$0xff]
        %v3566 = vld [vmem:[#allocation5 + $0x60] sm:$0xff]
        %v3567 = vld [vmem:[#allocation5 + $0x68] sm:$0xff]
        %v3568 = vld [vmem:[#allocation5 + $0x70] sm:$0xff]
        %v3569 = vld [vmem:[#allocation5 + $0x78] sm:$0xff]
        %v3570 = vadd.f32 %v3554, %v3476
        %v3571 = vadd.f32 %v3555, %v3481
        %v3572 = vadd.f32 %v3556, %v3486
        %v3573 = vadd.f32 %v3557, %v3491
        %v3574 = vadd.f32 %v3558, %v3496
        %v3575 = vadd.f32 %v3559, %v3501
        %v3576 = vadd.f32 %v3560, %v3506
        %v3577 = vadd.f32 %v3561, %v3511
        %v3578 = vadd.f32 %v3562, %v3516
        %v3579 = vadd.f32 %v3563, %v3521
        %v3580 = vadd.f32 %v3564, %v3526
        %v3581 = vadd.f32 %v3565, %v3531
        %v3582 = vadd.f32 %v3566, %v3536
        %v3583 = vadd.f32 %v3567, %v3541
        %v3584 = vadd.f32 %v3568, %v3546
        %v3585 = vadd.f32 %v3569, %v3551
        %3586 = vst [vmem:[#allocation5] sm:$0xff] %v3570
        %3587 = vst [vmem:[#allocation5 + $0x8] sm:$0xff] %v3571
        %3588 = vst [vmem:[#allocation5 + $0x10] sm:$0xff] %v3572
        %3589 = vst [vmem:[#allocation5 + $0x18] sm:$0xff] %v3573
        %3590 = vst [vmem:[#allocation5 + $0x20] sm:$0xff] %v3574
        %3591 = vst [vmem:[#allocation5 + $0x28] sm:$0xff] %v3575
        %3592 = vst [vmem:[#allocation5 + $0x30] sm:$0xff] %v3576
        %3593 = vst [vmem:[#allocation5 + $0x38] sm:$0xff] %v3577
        %3594 = vst [vmem:[#allocation5 + $0x40] sm:$0xff] %v3578
        %3595 = vst [vmem:[#allocation5 + $0x48] sm:$0xff] %v3579
        %3596 = vst [vmem:[#allocation5 + $0x50] sm:$0xff] %v3580
        %3597 = vst [vmem:[#allocation5 + $0x58] sm:$0xff] %v3581
        %3598 = vst [vmem:[#allocation5 + $0x60] sm:$0xff] %v3582
        %3599 = vst [vmem:[#allocation5 + $0x68] sm:$0xff] %v3583
        %3600 = vst [vmem:[#allocation5 + $0x70] sm:$0xff] %v3584
        %3601 = vst [vmem:[#allocation5 + $0x78] sm:$0xff] %v3585
        %s3602 = scalar_lea.vmem [#allocation3], 24
        %v3603 = vld [vmem:[%s3602] sm:$0xff]
        %v3604 = vld [vmem:[%s3602 + $0x8] sm:$0xff]
        %v3605 = vld [vmem:[%s3602 + $0x18] sm:$0xff]
        %v3606 = vld [vmem:[%s3602 + $0x20] sm:$0xff]
        %v3607 = vld [vmem:[%s3602 + $0x30] sm:$0xff]
        %v3608 = vld [vmem:[%s3602 + $0x38] sm:$0xff]
        %v3609 = vld [vmem:[%s3602 + $0x48] sm:$0xff]
        %v3610 = vld [vmem:[%s3602 + $0x50] sm:$0xff]
        %v3611 = vld [vmem:[%s3602 + $0x60] sm:$0xff]
        %v3612 = vld [vmem:[%s3602 + $0x68] sm:$0xff]
        %v3613 = vld [vmem:[%s3602 + $0x78] sm:$0xff]
        %v3614 = vld [vmem:[%s3602 + $0x80] sm:$0xff]
        %v3615 = vld [vmem:[%s3602 + $0x90] sm:$0xff]
        %v3616 = vld [vmem:[%s3602 + $0x98] sm:$0xff]
        %v3617 = vld [vmem:[%s3602 + $0xa8] sm:$0xff]
        %v3618 = vld [vmem:[%s3602 + $0xb0] sm:$0xff]
        %s3619 = scalar_lea.vmem [#allocation11], 384
        %v3620 = vld [vmem:[%s3619] sm:$0xff]
        %v3621 = vld [vmem:[%s3619 + $0x8] sm:$0xff]
        %v3622 = vld [vmem:[%s3619 + $0x10] sm:$0xff]
        %v3623 = vld [vmem:[%s3619 + $0x18] sm:$0xff]
        %v3624 = vld [vmem:[%s3619 + $0x20] sm:$0xff]
        %v3625 = vld [vmem:[%s3619 + $0x28] sm:$0xff]
        %v3626 = vld [vmem:[%s3619 + $0x30] sm:$0xff]
        %v3627 = vld [vmem:[%s3619 + $0x38] sm:$0xff]
        %v3628 = vld [vmem:[%s3619 + $0x40] sm:$0xff]
        %v3629 = vld [vmem:[%s3619 + $0x48] sm:$0xff]
        %v3630 = vld [vmem:[%s3619 + $0x50] sm:$0xff]
        %v3631 = vld [vmem:[%s3619 + $0x58] sm:$0xff]
        %v3632 = vld [vmem:[%s3619 + $0x60] sm:$0xff]
        %v3633 = vld [vmem:[%s3619 + $0x68] sm:$0xff]
        %v3634 = vld [vmem:[%s3619 + $0x70] sm:$0xff]
        %v3635 = vld [vmem:[%s3619 + $0x78] sm:$0xff]
        %3636 = vmatprep.subr.mxu0 0.0
        %3637 = vmatpush1.msra.mxu0 %v3620
        %3638 = vmatprep.subr.mxu0 0.0
        %3639 = vmatpush1.msra.mxu0 %v3621
        %3640 = vmatprep.subr.mxu0 0.0
        %3641 = vmatpush1.msra.mxu0 %v3622
        %3642 = vmatprep.subr.mxu0 0.0
        %3643 = vmatpush1.msra.mxu0 %v3623
        %3644 = vmatprep.subr.mxu0 0.0
        %3645 = vmatpush1.msra.mxu0 %v3624
        %3646 = vmatprep.subr.mxu0 0.0
        %3647 = vmatpush1.msra.mxu0 %v3625
        %3648 = vmatprep.subr.mxu0 0.0
        %3649 = vmatpush1.msra.mxu0 %v3626
        %3650 = vmatprep.subr.mxu0 0.0
        %3651 = vmatpush1.msra.mxu0 %v3627
        %3652 = vmatprep.subr.mxu0 0.0
        %3653 = vmatpush1.msra.mxu0 %v3628
        %3654 = vmatprep.subr.mxu0 0.0
        %3655 = vmatpush1.msra.mxu0 %v3629
        %3656 = vmatprep.subr.mxu0 0.0
        %3657 = vmatpush1.msra.mxu0 %v3630
        %3658 = vmatprep.subr.mxu0 0.0
        %3659 = vmatpush1.msra.mxu0 %v3631
        %3660 = vmatprep.subr.mxu0 0.0
        %3661 = vmatpush1.msra.mxu0 %v3632
        %3662 = vmatprep.subr.mxu0 0.0
        %3663 = vmatpush1.msra.mxu0 %v3633
        %3664 = vmatprep.subr.mxu0 0.0
        %3665 = vmatpush1.msra.mxu0 %v3634
        %3666 = vmatprep.subr.mxu0 0.0
        %3667 = vmatpush1.msra.mxu0 %v3635
        %3668 = vmatprep.subr.mxu0 0.0
        %3669 = vmatpush1.msra.mxu0 0.0
        %3670 = vmatprep.subr.mxu0 0.0
        %3671 = vmatpush1.msra.mxu0 0.0
        %3672 = vmatprep.subr.mxu0 0.0
        %3673 = vmatpush1.msra.mxu0 0.0
        %3674 = vmatprep.subr.mxu0 0.0
        %3675 = vmatpush1.msra.mxu0 0.0
        %3676 = vmatprep.subr.mxu0 0.0
        %3677 = vmatpush1.msra.mxu0 0.0
        %3678 = vmatprep.subr.mxu0 0.0
        %3679 = vmatpush1.msra.mxu0 0.0
        %3680 = vmatprep.subr.mxu0 0.0
        %3681 = vmatpush1.msra.mxu0 0.0
        %3682 = vmatprep.subr.mxu0 0.0
        %3683 = vmatpush1.msra.mxu0 0.0
        %3684 = vmatprep.subr.mxu0 0.0
        %3685 = vmatpush1.msra.mxu0 0.0
        %3686 = vmatprep.subr.mxu0 0.0
        %3687 = vmatpush1.msra.mxu0 0.0
        %3688 = vmatprep.subr.mxu0 0.0
        %3689 = vmatpush1.msra.mxu0 0.0
        %3690 = vmatprep.subr.mxu0 0.0
        %3691 = vmatpush1.msra.mxu0 0.0
        %3692 = vmatprep.subr.mxu0 0.0
        %3693 = vmatpush1.msra.mxu0 0.0
        %3694 = vmatprep.subr.mxu0 0.0
        %3695 = vmatpush1.msra.mxu0 0.0
        %3696 = vmatprep.subr.mxu0 0.0
        %3697 = vmatpush1.msra.mxu0 0.0
        %3698 = vmatprep.subr.mxu0 0.0
        %3699 = vmatpush1.msra.mxu0 0.0
        %3700 = vmatprep.mubr.f32.mxu0 0.0
        %3701 = vmatmul.mubr.f32.gmra.mrb[0].mxu0 %v3603
        %v3702 = vpop.f32.mrb[0].mxu0
        %v3703 = vadd.f32 0.0, %v3702
        %v3704 = vpop.f32.mrb[0].mxu0
        %3705 = vmatprep.mubr.f32.mxu0 0.0
        %3706 = vmatmul.mubr.f32.gmra.mrb[0].mxu0 %v3604
        %v3707 = vpop.f32.mrb[0].mxu0
        %v3708 = vadd.f32 0.0, %v3707
        %v3709 = vpop.f32.mrb[0].mxu0
        %3710 = vmatprep.mubr.f32.mxu0 0.0
        %3711 = vmatmul.mubr.f32.gmra.mrb[0].mxu0 %v3605
        %v3712 = vpop.f32.mrb[0].mxu0
        %v3713 = vadd.f32 0.0, %v3712
        %v3714 = vpop.f32.mrb[0].mxu0
        %3715 = vmatprep.mubr.f32.mxu0 0.0
        %3716 = vmatmul.mubr.f32.gmra.mrb[0].mxu0 %v3606
        %v3717 = vpop.f32.mrb[0].mxu0
        %v3718 = vadd.f32 0.0, %v3717
        %v3719 = vpop.f32.mrb[0].mxu0
        %3720 = vmatprep.mubr.f32.mxu0 0.0
        %3721 = vmatmul.mubr.f32.gmra.mrb[0].mxu0 %v3607
        %v3722 = vpop.f32.mrb[0].mxu0
        %v3723 = vadd.f32 0.0, %v3722
        %v3724 = vpop.f32.mrb[0].mxu0
        %3725 = vmatprep.mubr.f32.mxu0 0.0
        %3726 = vmatmul.mubr.f32.gmra.mrb[0].mxu0 %v3608
        %v3727 = vpop.f32.mrb[0].mxu0
        %v3728 = vadd.f32 0.0, %v3727
        %v3729 = vpop.f32.mrb[0].mxu0
        %3730 = vmatprep.mubr.f32.mxu0 0.0
        %3731 = vmatmul.mubr.f32.gmra.mrb[0].mxu0 %v3609
        %v3732 = vpop.f32.mrb[0].mxu0
        %v3733 = vadd.f32 0.0, %v3732
        %v3734 = vpop.f32.mrb[0].mxu0
        %3735 = vmatprep.mubr.f32.mxu0 0.0
        %3736 = vmatmul.mubr.f32.gmra.mrb[0].mxu0 %v3610
        %v3737 = vpop.f32.mrb[0].mxu0
        %v3738 = vadd.f32 0.0, %v3737
        %v3739 = vpop.f32.mrb[0].mxu0
        %3740 = vmatprep.mubr.f32.mxu0 0.0
        %3741 = vmatmul.mubr.f32.gmra.mrb[0].mxu0 %v3611
        %v3742 = vpop.f32.mrb[0].mxu0
        %v3743 = vadd.f32 0.0, %v3742
        %v3744 = vpop.f32.mrb[0].mxu0
        %3745 = vmatprep.mubr.f32.mxu0 0.0
        %3746 = vmatmul.mubr.f32.gmra.mrb[0].mxu0 %v3612
        %v3747 = vpop.f32.mrb[0].mxu0
        %v3748 = vadd.f32 0.0, %v3747
        %v3749 = vpop.f32.mrb[0].mxu0
        %3750 = vmatprep.mubr.f32.mxu0 0.0
        %3751 = vmatmul.mubr.f32.gmra.mrb[0].mxu0 %v3613
        %v3752 = vpop.f32.mrb[0].mxu0
        %v3753 = vadd.f32 0.0, %v3752
        %v3754 = vpop.f32.mrb[0].mxu0
        %3755 = vmatprep.mubr.f32.mxu0 0.0
        %3756 = vmatmul.mubr.f32.gmra.mrb[0].mxu0 %v3614
        %v3757 = vpop.f32.mrb[0].mxu0
        %v3758 = vadd.f32 0.0, %v3757
        %v3759 = vpop.f32.mrb[0].mxu0
        %3760 = vmatprep.mubr.f32.mxu0 0.0
        %3761 = vmatmul.mubr.f32.gmra.mrb[0].mxu0 %v3615
        %v3762 = vpop.f32.mrb[0].mxu0
        %v3763 = vadd.f32 0.0, %v3762
        %v3764 = vpop.f32.mrb[0].mxu0
        %3765 = vmatprep.mubr.f32.mxu0 0.0
        %3766 = vmatmul.mubr.f32.gmra.mrb[0].mxu0 %v3616
        %v3767 = vpop.f32.mrb[0].mxu0
        %v3768 = vadd.f32 0.0, %v3767
        %v3769 = vpop.f32.mrb[0].mxu0
        %3770 = vmatprep.mubr.f32.mxu0 0.0
        %3771 = vmatmul.mubr.f32.gmra.mrb[0].mxu0 %v3617
        %v3772 = vpop.f32.mrb[0].mxu0
        %v3773 = vadd.f32 0.0, %v3772
        %v3774 = vpop.f32.mrb[0].mxu0
        %3775 = vmatprep.mubr.f32.mxu0 0.0
        %3776 = vmatmul.mubr.f32.gmra.mrb[0].mxu0 %v3618
        %v3777 = vpop.f32.mrb[0].mxu0
        %v3778 = vadd.f32 0.0, %v3777
        %v3779 = vpop.f32.mrb[0].mxu0
        %3780 = vdwg.mxu0
        %v3781 = vld [vmem:[#allocation5] sm:$0xff]
        %v3782 = vld [vmem:[#allocation5 + $0x8] sm:$0xff]
        %v3783 = vld [vmem:[#allocation5 + $0x10] sm:$0xff]
        %v3784 = vld [vmem:[#allocation5 + $0x18] sm:$0xff]
        %v3785 = vld [vmem:[#allocation5 + $0x20] sm:$0xff]
        %v3786 = vld [vmem:[#allocation5 + $0x28] sm:$0xff]
        %v3787 = vld [vmem:[#allocation5 + $0x30] sm:$0xff]
        %v3788 = vld [vmem:[#allocation5 + $0x38] sm:$0xff]
        %v3789 = vld [vmem:[#allocation5 + $0x40] sm:$0xff]
        %v3790 = vld [vmem:[#allocation5 + $0x48] sm:$0xff]
        %v3791 = vld [vmem:[#allocation5 + $0x50] sm:$0xff]
        %v3792 = vld [vmem:[#allocation5 + $0x58] sm:$0xff]
        %v3793 = vld [vmem:[#allocation5 + $0x60] sm:$0xff]
        %v3794 = vld [vmem:[#allocation5 + $0x68] sm:$0xff]
        %v3795 = vld [vmem:[#allocation5 + $0x70] sm:$0xff]
        %v3796 = vld [vmem:[#allocation5 + $0x78] sm:$0xff]
        %v3797 = vadd.f32 %v3781, %v3703
        %v3798 = vadd.f32 %v3782, %v3708
        %v3799 = vadd.f32 %v3783, %v3713
        %v3800 = vadd.f32 %v3784, %v3718
        %v3801 = vadd.f32 %v3785, %v3723
        %v3802 = vadd.f32 %v3786, %v3728
        %v3803 = vadd.f32 %v3787, %v3733
        %v3804 = vadd.f32 %v3788, %v3738
        %v3805 = vadd.f32 %v3789, %v3743
        %v3806 = vadd.f32 %v3790, %v3748
        %v3807 = vadd.f32 %v3791, %v3753
        %v3808 = vadd.f32 %v3792, %v3758
        %v3809 = vadd.f32 %v3793, %v3763
        %v3810 = vadd.f32 %v3794, %v3768
        %v3811 = vadd.f32 %v3795, %v3773
        %v3812 = vadd.f32 %v3796, %v3778
        %3813 = vst [vmem:[#allocation5] sm:$0xff] %v3797
        %3814 = vst [vmem:[#allocation5 + $0x8] sm:$0xff] %v3798
        %3815 = vst [vmem:[#allocation5 + $0x10] sm:$0xff] %v3799
        %3816 = vst [vmem:[#allocation5 + $0x18] sm:$0xff] %v3800
        %3817 = vst [vmem:[#allocation5 + $0x20] sm:$0xff] %v3801
        %3818 = vst [vmem:[#allocation5 + $0x28] sm:$0xff] %v3802
        %3819 = vst [vmem:[#allocation5 + $0x30] sm:$0xff] %v3803
        %3820 = vst [vmem:[#allocation5 + $0x38] sm:$0xff] %v3804
        %3821 = vst [vmem:[#allocation5 + $0x40] sm:$0xff] %v3805
        %3822 = vst [vmem:[#allocation5 + $0x48] sm:$0xff] %v3806
        %3823 = vst [vmem:[#allocation5 + $0x50] sm:$0xff] %v3807
        %3824 = vst [vmem:[#allocation5 + $0x58] sm:$0xff] %v3808
        %3825 = vst [vmem:[#allocation5 + $0x60] sm:$0xff] %v3809
        %3826 = vst [vmem:[#allocation5 + $0x68] sm:$0xff] %v3810
        %3827 = vst [vmem:[#allocation5 + $0x70] sm:$0xff] %v3811
        %3828 = vst [vmem:[#allocation5 + $0x78] sm:$0xff] %v3812
        %v3829 = vld [vmem:[%s3602 + $0x1] sm:$0xff]
        %v3830 = vld [vmem:[%s3602 + $0x9] sm:$0xff]
        %v3831 = vld [vmem:[%s3602 + $0x19] sm:$0xff]
        %v3832 = vld [vmem:[%s3602 + $0x21] sm:$0xff]
        %v3833 = vld [vmem:[%s3602 + $0x31] sm:$0xff]
        %v3834 = vld [vmem:[%s3602 + $0x39] sm:$0xff]
        %v3835 = vld [vmem:[%s3602 + $0x49] sm:$0xff]
        %v3836 = vld [vmem:[%s3602 + $0x51] sm:$0xff]
        %v3837 = vld [vmem:[%s3602 + $0x61] sm:$0xff]
        %v3838 = vld [vmem:[%s3602 + $0x69] sm:$0xff]
        %v3839 = vld [vmem:[%s3602 + $0x79] sm:$0xff]
        %v3840 = vld [vmem:[%s3602 + $0x81] sm:$0xff]
        %v3841 = vld [vmem:[%s3602 + $0x91] sm:$0xff]
        %v3842 = vld [vmem:[%s3602 + $0x99] sm:$0xff]
        %v3843 = vld [vmem:[%s3602 + $0xa9] sm:$0xff]
        %v3844 = vld [vmem:[%s3602 + $0xb1] sm:$0xff]
        %s3845 = scalar_lea.vmem [#allocation11], 512
        %v3846 = vld [vmem:[%s3845] sm:$0xff]
        %v3847 = vld [vmem:[%s3845 + $0x8] sm:$0xff]
        %v3848 = vld [vmem:[%s3845 + $0x10] sm:$0xff]
        %v3849 = vld [vmem:[%s3845 + $0x18] sm:$0xff]
        %v3850 = vld [vmem:[%s3845 + $0x20] sm:$0xff]
        %v3851 = vld [vmem:[%s3845 + $0x28] sm:$0xff]
        %v3852 = vld [vmem:[%s3845 + $0x30] sm:$0xff]
        %v3853 = vld [vmem:[%s3845 + $0x38] sm:$0xff]
        %v3854 = vld [vmem:[%s3845 + $0x40] sm:$0xff]
        %v3855 = vld [vmem:[%s3845 + $0x48] sm:$0xff]
        %v3856 = vld [vmem:[%s3845 + $0x50] sm:$0xff]
        %v3857 = vld [vmem:[%s3845 + $0x58] sm:$0xff]
        %v3858 = vld [vmem:[%s3845 + $0x60] sm:$0xff]
        %v3859 = vld [vmem:[%s3845 + $0x68] sm:$0xff]
        %v3860 = vld [vmem:[%s3845 + $0x70] sm:$0xff]
        %v3861 = vld [vmem:[%s3845 + $0x78] sm:$0xff]
        %3862 = vmatprep.subr.mxu0 0.0
        %3863 = vmatpush1.msra.mxu0 %v3846
        %3864 = vmatprep.subr.mxu0 0.0
        %3865 = vmatpush1.msra.mxu0 %v3847
        %3866 = vmatprep.subr.mxu0 0.0
        %3867 = vmatpush1.msra.mxu0 %v3848
        %3868 = vmatprep.subr.mxu0 0.0
        %3869 = vmatpush1.msra.mxu0 %v3849
        %3870 = vmatprep.subr.mxu0 0.0
        %3871 = vmatpush1.msra.mxu0 %v3850
        %3872 = vmatprep.subr.mxu0 0.0
        %3873 = vmatpush1.msra.mxu0 %v3851
        %3874 = vmatprep.subr.mxu0 0.0
        %3875 = vmatpush1.msra.mxu0 %v3852
        %3876 = vmatprep.subr.mxu0 0.0
        %3877 = vmatpush1.msra.mxu0 %v3853
        %3878 = vmatprep.subr.mxu0 0.0
        %3879 = vmatpush1.msra.mxu0 %v3854
        %3880 = vmatprep.subr.mxu0 0.0
        %3881 = vmatpush1.msra.mxu0 %v3855
        %3882 = vmatprep.subr.mxu0 0.0
        %3883 = vmatpush1.msra.mxu0 %v3856
        %3884 = vmatprep.subr.mxu0 0.0
        %3885 = vmatpush1.msra.mxu0 %v3857
        %3886 = vmatprep.subr.mxu0 0.0
        %3887 = vmatpush1.msra.mxu0 %v3858
        %3888 = vmatprep.subr.mxu0 0.0
        %3889 = vmatpush1.msra.mxu0 %v3859
        %3890 = vmatprep.subr.mxu0 0.0
        %3891 = vmatpush1.msra.mxu0 %v3860
        %3892 = vmatprep.subr.mxu0 0.0
        %3893 = vmatpush1.msra.mxu0 %v3861
        %3894 = vmatprep.subr.mxu0 0.0
        %3895 = vmatpush1.msra.mxu0 0.0
        %3896 = vmatprep.subr.mxu0 0.0
        %3897 = vmatpush1.msra.mxu0 0.0
        %3898 = vmatprep.subr.mxu0 0.0
        %3899 = vmatpush1.msra.mxu0 0.0
        %3900 = vmatprep.subr.mxu0 0.0
        %3901 = vmatpush1.msra.mxu0 0.0
        %3902 = vmatprep.subr.mxu0 0.0
        %3903 = vmatpush1.msra.mxu0 0.0
        %3904 = vmatprep.subr.mxu0 0.0
        %3905 = vmatpush1.msra.mxu0 0.0
        %3906 = vmatprep.subr.mxu0 0.0
        %3907 = vmatpush1.msra.mxu0 0.0
        %3908 = vmatprep.subr.mxu0 0.0
        %3909 = vmatpush1.msra.mxu0 0.0
        %3910 = vmatprep.subr.mxu0 0.0
        %3911 = vmatpush1.msra.mxu0 0.0
        %3912 = vmatprep.subr.mxu0 0.0
        %3913 = vmatpush1.msra.mxu0 0.0
        %3914 = vmatprep.subr.mxu0 0.0
        %3915 = vmatpush1.msra.mxu0 0.0
        %3916 = vmatprep.subr.mxu0 0.0
        %3917 = vmatpush1.msra.mxu0 0.0
        %3918 = vmatprep.subr.mxu0 0.0
        %3919 = vmatpush1.msra.mxu0 0.0
        %3920 = vmatprep.subr.mxu0 0.0
        %3921 = vmatpush1.msra.mxu0 0.0
        %3922 = vmatprep.subr.mxu0 0.0
        %3923 = vmatpush1.msra.mxu0 0.0
        %3924 = vmatprep.subr.mxu0 0.0
        %3925 = vmatpush1.msra.mxu0 0.0
        %3926 = vmatprep.mubr.f32.mxu0 0.0
        %3927 = vmatmul.mubr.f32.gmra.mrb[0].mxu0 %v3829
        %v3928 = vpop.f32.mrb[0].mxu0
        %v3929 = vadd.f32 0.0, %v3928
        %v3930 = vpop.f32.mrb[0].mxu0
        %3931 = vmatprep.mubr.f32.mxu0 0.0
        %3932 = vmatmul.mubr.f32.gmra.mrb[0].mxu0 %v3830
        %v3933 = vpop.f32.mrb[0].mxu0
        %v3934 = vadd.f32 0.0, %v3933
        %v3935 = vpop.f32.mrb[0].mxu0
        %3936 = vmatprep.mubr.f32.mxu0 0.0
        %3937 = vmatmul.mubr.f32.gmra.mrb[0].mxu0 %v3831
        %v3938 = vpop.f32.mrb[0].mxu0
        %v3939 = vadd.f32 0.0, %v3938
        %v3940 = vpop.f32.mrb[0].mxu0
        %3941 = vmatprep.mubr.f32.mxu0 0.0
        %3942 = vmatmul.mubr.f32.gmra.mrb[0].mxu0 %v3832
        %v3943 = vpop.f32.mrb[0].mxu0
        %v3944 = vadd.f32 0.0, %v3943
        %v3945 = vpop.f32.mrb[0].mxu0
        %3946 = vmatprep.mubr.f32.mxu0 0.0
        %3947 = vmatmul.mubr.f32.gmra.mrb[0].mxu0 %v3833
        %v3948 = vpop.f32.mrb[0].mxu0
        %v3949 = vadd.f32 0.0, %v3948
        %v3950 = vpop.f32.mrb[0].mxu0
        %3951 = vmatprep.mubr.f32.mxu0 0.0
        %3952 = vmatmul.mubr.f32.gmra.mrb[0].mxu0 %v3834
        %v3953 = vpop.f32.mrb[0].mxu0
        %v3954 = vadd.f32 0.0, %v3953
        %v3955 = vpop.f32.mrb[0].mxu0
        %3956 = vmatprep.mubr.f32.mxu0 0.0
        %3957 = vmatmul.mubr.f32.gmra.mrb[0].mxu0 %v3835
        %v3958 = vpop.f32.mrb[0].mxu0
        %v3959 = vadd.f32 0.0, %v3958
        %v3960 = vpop.f32.mrb[0].mxu0
        %3961 = vmatprep.mubr.f32.mxu0 0.0
        %3962 = vmatmul.mubr.f32.gmra.mrb[0].mxu0 %v3836
        %v3963 = vpop.f32.mrb[0].mxu0
        %v3964 = vadd.f32 0.0, %v3963
        %v3965 = vpop.f32.mrb[0].mxu0
        %3966 = vmatprep.mubr.f32.mxu0 0.0
        %3967 = vmatmul.mubr.f32.gmra.mrb[0].mxu0 %v3837
        %v3968 = vpop.f32.mrb[0].mxu0
        %v3969 = vadd.f32 0.0, %v3968
        %v3970 = vpop.f32.mrb[0].mxu0
        %3971 = vmatprep.mubr.f32.mxu0 0.0
        %3972 = vmatmul.mubr.f32.gmra.mrb[0].mxu0 %v3838
        %v3973 = vpop.f32.mrb[0].mxu0
        %v3974 = vadd.f32 0.0, %v3973
        %v3975 = vpop.f32.mrb[0].mxu0
        %3976 = vmatprep.mubr.f32.mxu0 0.0
        %3977 = vmatmul.mubr.f32.gmra.mrb[0].mxu0 %v3839
        %v3978 = vpop.f32.mrb[0].mxu0
        %v3979 = vadd.f32 0.0, %v3978
        %v3980 = vpop.f32.mrb[0].mxu0
        %3981 = vmatprep.mubr.f32.mxu0 0.0
        %3982 = vmatmul.mubr.f32.gmra.mrb[0].mxu0 %v3840
        %v3983 = vpop.f32.mrb[0].mxu0
        %v3984 = vadd.f32 0.0, %v3983
        %v3985 = vpop.f32.mrb[0].mxu0
        %3986 = vmatprep.mubr.f32.mxu0 0.0
        %3987 = vmatmul.mubr.f32.gmra.mrb[0].mxu0 %v3841
        %v3988 = vpop.f32.mrb[0].mxu0
        %v3989 = vadd.f32 0.0, %v3988
        %v3990 = vpop.f32.mrb[0].mxu0
        %3991 = vmatprep.mubr.f32.mxu0 0.0
        %3992 = vmatmul.mubr.f32.gmra.mrb[0].mxu0 %v3842
        %v3993 = vpop.f32.mrb[0].mxu0
        %v3994 = vadd.f32 0.0, %v3993
        %v3995 = vpop.f32.mrb[0].mxu0
        %3996 = vmatprep.mubr.f32.mxu0 0.0
        %3997 = vmatmul.mubr.f32.gmra.mrb[0].mxu0 %v3843
        %v3998 = vpop.f32.mrb[0].mxu0
        %v3999 = vadd.f32 0.0, %v3998
        %v4000 = vpop.f32.mrb[0].mxu0
        %4001 = vmatprep.mubr.f32.mxu0 0.0
        %4002 = vmatmul.mubr.f32.gmra.mrb[0].mxu0 %v3844
        %v4003 = vpop.f32.mrb[0].mxu0
        %v4004 = vadd.f32 0.0, %v4003
        %v4005 = vpop.f32.mrb[0].mxu0
        %4006 = vdwg.mxu0
        %v4007 = vld [vmem:[#allocation5] sm:$0xff]
        %v4008 = vld [vmem:[#allocation5 + $0x8] sm:$0xff]
        %v4009 = vld [vmem:[#allocation5 + $0x10] sm:$0xff]
        %v4010 = vld [vmem:[#allocation5 + $0x18] sm:$0xff]
        %v4011 = vld [vmem:[#allocation5 + $0x20] sm:$0xff]
        %v4012 = vld [vmem:[#allocation5 + $0x28] sm:$0xff]
        %v4013 = vld [vmem:[#allocation5 + $0x30] sm:$0xff]
        %v4014 = vld [vmem:[#allocation5 + $0x38] sm:$0xff]
        %v4015 = vld [vmem:[#allocation5 + $0x40] sm:$0xff]
        %v4016 = vld [vmem:[#allocation5 + $0x48] sm:$0xff]
        %v4017 = vld [vmem:[#allocation5 + $0x50] sm:$0xff]
        %v4018 = vld [vmem:[#allocation5 + $0x58] sm:$0xff]
        %v4019 = vld [vmem:[#allocation5 + $0x60] sm:$0xff]
        %v4020 = vld [vmem:[#allocation5 + $0x68] sm:$0xff]
        %v4021 = vld [vmem:[#allocation5 + $0x70] sm:$0xff]
        %v4022 = vld [vmem:[#allocation5 + $0x78] sm:$0xff]
        %v4023 = vadd.f32 %v4007, %v3929
        %v4024 = vadd.f32 %v4008, %v3934
        %v4025 = vadd.f32 %v4009, %v3939
        %v4026 = vadd.f32 %v4010, %v3944
        %v4027 = vadd.f32 %v4011, %v3949
        %v4028 = vadd.f32 %v4012, %v3954
        %v4029 = vadd.f32 %v4013, %v3959
        %v4030 = vadd.f32 %v4014, %v3964
        %v4031 = vadd.f32 %v4015, %v3969
        %v4032 = vadd.f32 %v4016, %v3974
        %v4033 = vadd.f32 %v4017, %v3979
        %v4034 = vadd.f32 %v4018, %v3984
        %v4035 = vadd.f32 %v4019, %v3989
        %v4036 = vadd.f32 %v4020, %v3994
        %v4037 = vadd.f32 %v4021, %v3999
        %v4038 = vadd.f32 %v4022, %v4004
        %4039 = vst [vmem:[#allocation5] sm:$0xff] %v4023
        %4040 = vst [vmem:[#allocation5 + $0x8] sm:$0xff] %v4024
        %4041 = vst [vmem:[#allocation5 + $0x10] sm:$0xff] %v4025
        %4042 = vst [vmem:[#allocation5 + $0x18] sm:$0xff] %v4026
        %4043 = vst [vmem:[#allocation5 + $0x20] sm:$0xff] %v4027
        %4044 = vst [vmem:[#allocation5 + $0x28] sm:$0xff] %v4028
        %4045 = vst [vmem:[#allocation5 + $0x30] sm:$0xff] %v4029
        %4046 = vst [vmem:[#allocation5 + $0x38] sm:$0xff] %v4030
        %4047 = vst [vmem:[#allocation5 + $0x40] sm:$0xff] %v4031
        %4048 = vst [vmem:[#allocation5 + $0x48] sm:$0xff] %v4032
        %4049 = vst [vmem:[#allocation5 + $0x50] sm:$0xff] %v4033
        %4050 = vst [vmem:[#allocation5 + $0x58] sm:$0xff] %v4034
        %4051 = vst [vmem:[#allocation5 + $0x60] sm:$0xff] %v4035
        %4052 = vst [vmem:[#allocation5 + $0x68] sm:$0xff] %v4036
        %4053 = vst [vmem:[#allocation5 + $0x70] sm:$0xff] %v4037
        %4054 = vst [vmem:[#allocation5 + $0x78] sm:$0xff] %v4038
        %v4055 = vld [vmem:[%s3602 + $0x2] sm:$0xff]
        %v4056 = vld [vmem:[%s3602 + $0xa] sm:$0xff]
        %v4057 = vld [vmem:[%s3602 + $0x1a] sm:$0xff]
        %v4058 = vld [vmem:[%s3602 + $0x22] sm:$0xff]
        %v4059 = vld [vmem:[%s3602 + $0x32] sm:$0xff]
        %v4060 = vld [vmem:[%s3602 + $0x3a] sm:$0xff]
        %v4061 = vld [vmem:[%s3602 + $0x4a] sm:$0xff]
        %v4062 = vld [vmem:[%s3602 + $0x52] sm:$0xff]
        %v4063 = vld [vmem:[%s3602 + $0x62] sm:$0xff]
        %v4064 = vld [vmem:[%s3602 + $0x6a] sm:$0xff]
        %v4065 = vld [vmem:[%s3602 + $0x7a] sm:$0xff]
        %v4066 = vld [vmem:[%s3602 + $0x82] sm:$0xff]
        %v4067 = vld [vmem:[%s3602 + $0x92] sm:$0xff]
        %v4068 = vld [vmem:[%s3602 + $0x9a] sm:$0xff]
        %v4069 = vld [vmem:[%s3602 + $0xaa] sm:$0xff]
        %v4070 = vld [vmem:[%s3602 + $0xb2] sm:$0xff]
        %s4071 = scalar_lea.vmem [#allocation11], 640
        %v4072 = vld [vmem:[%s4071] sm:$0xff]
        %v4073 = vld [vmem:[%s4071 + $0x8] sm:$0xff]
        %v4074 = vld [vmem:[%s4071 + $0x10] sm:$0xff]
        %v4075 = vld [vmem:[%s4071 + $0x18] sm:$0xff]
        %v4076 = vld [vmem:[%s4071 + $0x20] sm:$0xff]
        %v4077 = vld [vmem:[%s4071 + $0x28] sm:$0xff]
        %v4078 = vld [vmem:[%s4071 + $0x30] sm:$0xff]
        %v4079 = vld [vmem:[%s4071 + $0x38] sm:$0xff]
        %v4080 = vld [vmem:[%s4071 + $0x40] sm:$0xff]
        %v4081 = vld [vmem:[%s4071 + $0x48] sm:$0xff]
        %v4082 = vld [vmem:[%s4071 + $0x50] sm:$0xff]
        %v4083 = vld [vmem:[%s4071 + $0x58] sm:$0xff]
        %v4084 = vld [vmem:[%s4071 + $0x60] sm:$0xff]
        %v4085 = vld [vmem:[%s4071 + $0x68] sm:$0xff]
        %v4086 = vld [vmem:[%s4071 + $0x70] sm:$0xff]
        %v4087 = vld [vmem:[%s4071 + $0x78] sm:$0xff]
        %4088 = vmatprep.subr.mxu0 0.0
        %4089 = vmatpush1.msra.mxu0 %v4072
        %4090 = vmatprep.subr.mxu0 0.0
        %4091 = vmatpush1.msra.mxu0 %v4073
        %4092 = vmatprep.subr.mxu0 0.0
        %4093 = vmatpush1.msra.mxu0 %v4074
        %4094 = vmatprep.subr.mxu0 0.0
        %4095 = vmatpush1.msra.mxu0 %v4075
        %4096 = vmatprep.subr.mxu0 0.0
        %4097 = vmatpush1.msra.mxu0 %v4076
        %4098 = vmatprep.subr.mxu0 0.0
        %4099 = vmatpush1.msra.mxu0 %v4077
        %4100 = vmatprep.subr.mxu0 0.0
        %4101 = vmatpush1.msra.mxu0 %v4078
        %4102 = vmatprep.subr.mxu0 0.0
        %4103 = vmatpush1.msra.mxu0 %v4079
        %4104 = vmatprep.subr.mxu0 0.0
        %4105 = vmatpush1.msra.mxu0 %v4080
        %4106 = vmatprep.subr.mxu0 0.0
        %4107 = vmatpush1.msra.mxu0 %v4081
        %4108 = vmatprep.subr.mxu0 0.0
        %4109 = vmatpush1.msra.mxu0 %v4082
        %4110 = vmatprep.subr.mxu0 0.0
        %4111 = vmatpush1.msra.mxu0 %v4083
        %4112 = vmatprep.subr.mxu0 0.0
        %4113 = vmatpush1.msra.mxu0 %v4084
        %4114 = vmatprep.subr.mxu0 0.0
        %4115 = vmatpush1.msra.mxu0 %v4085
        %4116 = vmatprep.subr.mxu0 0.0
        %4117 = vmatpush1.msra.mxu0 %v4086
        %4118 = vmatprep.subr.mxu0 0.0
        %4119 = vmatpush1.msra.mxu0 %v4087
        %4120 = vmatprep.subr.mxu0 0.0
        %4121 = vmatpush1.msra.mxu0 0.0
        %4122 = vmatprep.subr.mxu0 0.0
        %4123 = vmatpush1.msra.mxu0 0.0
        %4124 = vmatprep.subr.mxu0 0.0
        %4125 = vmatpush1.msra.mxu0 0.0
        %4126 = vmatprep.subr.mxu0 0.0
        %4127 = vmatpush1.msra.mxu0 0.0
        %4128 = vmatprep.subr.mxu0 0.0
        %4129 = vmatpush1.msra.mxu0 0.0
        %4130 = vmatprep.subr.mxu0 0.0
        %4131 = vmatpush1.msra.mxu0 0.0
        %4132 = vmatprep.subr.mxu0 0.0
        %4133 = vmatpush1.msra.mxu0 0.0
        %4134 = vmatprep.subr.mxu0 0.0
        %4135 = vmatpush1.msra.mxu0 0.0
        %4136 = vmatprep.subr.mxu0 0.0
        %4137 = vmatpush1.msra.mxu0 0.0
        %4138 = vmatprep.subr.mxu0 0.0
        %4139 = vmatpush1.msra.mxu0 0.0
        %4140 = vmatprep.subr.mxu0 0.0
        %4141 = vmatpush1.msra.mxu0 0.0
        %4142 = vmatprep.subr.mxu0 0.0
        %4143 = vmatpush1.msra.mxu0 0.0
        %4144 = vmatprep.subr.mxu0 0.0
        %4145 = vmatpush1.msra.mxu0 0.0
        %4146 = vmatprep.subr.mxu0 0.0
        %4147 = vmatpush1.msra.mxu0 0.0
        %4148 = vmatprep.subr.mxu0 0.0
        %4149 = vmatpush1.msra.mxu0 0.0
        %4150 = vmatprep.subr.mxu0 0.0
        %4151 = vmatpush1.msra.mxu0 0.0
        %4152 = vmatprep.mubr.f32.mxu0 0.0
        %4153 = vmatmul.mubr.f32.gmra.mrb[0].mxu0 %v4055
        %v4154 = vpop.f32.mrb[0].mxu0
        %v4155 = vadd.f32 0.0, %v4154
        %v4156 = vpop.f32.mrb[0].mxu0
        %4157 = vmatprep.mubr.f32.mxu0 0.0
        %4158 = vmatmul.mubr.f32.gmra.mrb[0].mxu0 %v4056
        %v4159 = vpop.f32.mrb[0].mxu0
        %v4160 = vadd.f32 0.0, %v4159
        %v4161 = vpop.f32.mrb[0].mxu0
        %4162 = vmatprep.mubr.f32.mxu0 0.0
        %4163 = vmatmul.mubr.f32.gmra.mrb[0].mxu0 %v4057
        %v4164 = vpop.f32.mrb[0].mxu0
        %v4165 = vadd.f32 0.0, %v4164
        %v4166 = vpop.f32.mrb[0].mxu0
        %4167 = vmatprep.mubr.f32.mxu0 0.0
        %4168 = vmatmul.mubr.f32.gmra.mrb[0].mxu0 %v4058
        %v4169 = vpop.f32.mrb[0].mxu0
        %v4170 = vadd.f32 0.0, %v4169
        %v4171 = vpop.f32.mrb[0].mxu0
        %4172 = vmatprep.mubr.f32.mxu0 0.0
        %4173 = vmatmul.mubr.f32.gmra.mrb[0].mxu0 %v4059
        %v4174 = vpop.f32.mrb[0].mxu0
        %v4175 = vadd.f32 0.0, %v4174
        %v4176 = vpop.f32.mrb[0].mxu0
        %4177 = vmatprep.mubr.f32.mxu0 0.0
        %4178 = vmatmul.mubr.f32.gmra.mrb[0].mxu0 %v4060
        %v4179 = vpop.f32.mrb[0].mxu0
        %v4180 = vadd.f32 0.0, %v4179
        %v4181 = vpop.f32.mrb[0].mxu0
        %4182 = vmatprep.mubr.f32.mxu0 0.0
        %4183 = vmatmul.mubr.f32.gmra.mrb[0].mxu0 %v4061
        %v4184 = vpop.f32.mrb[0].mxu0
        %v4185 = vadd.f32 0.0, %v4184
        %v4186 = vpop.f32.mrb[0].mxu0
        %4187 = vmatprep.mubr.f32.mxu0 0.0
        %4188 = vmatmul.mubr.f32.gmra.mrb[0].mxu0 %v4062
        %v4189 = vpop.f32.mrb[0].mxu0
        %v4190 = vadd.f32 0.0, %v4189
        %v4191 = vpop.f32.mrb[0].mxu0
        %4192 = vmatprep.mubr.f32.mxu0 0.0
        %4193 = vmatmul.mubr.f32.gmra.mrb[0].mxu0 %v4063
        %v4194 = vpop.f32.mrb[0].mxu0
        %v4195 = vadd.f32 0.0, %v4194
        %v4196 = vpop.f32.mrb[0].mxu0
        %4197 = vmatprep.mubr.f32.mxu0 0.0
        %4198 = vmatmul.mubr.f32.gmra.mrb[0].mxu0 %v4064
        %v4199 = vpop.f32.mrb[0].mxu0
        %v4200 = vadd.f32 0.0, %v4199
        %v4201 = vpop.f32.mrb[0].mxu0
        %4202 = vmatprep.mubr.f32.mxu0 0.0
        %4203 = vmatmul.mubr.f32.gmra.mrb[0].mxu0 %v4065
        %v4204 = vpop.f32.mrb[0].mxu0
        %v4205 = vadd.f32 0.0, %v4204
        %v4206 = vpop.f32.mrb[0].mxu0
        %4207 = vmatprep.mubr.f32.mxu0 0.0
        %4208 = vmatmul.mubr.f32.gmra.mrb[0].mxu0 %v4066
        %v4209 = vpop.f32.mrb[0].mxu0
        %v4210 = vadd.f32 0.0, %v4209
        %v4211 = vpop.f32.mrb[0].mxu0
        %4212 = vmatprep.mubr.f32.mxu0 0.0
        %4213 = vmatmul.mubr.f32.gmra.mrb[0].mxu0 %v4067
        %v4214 = vpop.f32.mrb[0].mxu0
        %v4215 = vadd.f32 0.0, %v4214
        %v4216 = vpop.f32.mrb[0].mxu0
        %4217 = vmatprep.mubr.f32.mxu0 0.0
        %4218 = vmatmul.mubr.f32.gmra.mrb[0].mxu0 %v4068
        %v4219 = vpop.f32.mrb[0].mxu0
        %v4220 = vadd.f32 0.0, %v4219
        %v4221 = vpop.f32.mrb[0].mxu0
        %4222 = vmatprep.mubr.f32.mxu0 0.0
        %4223 = vmatmul.mubr.f32.gmra.mrb[0].mxu0 %v4069
        %v4224 = vpop.f32.mrb[0].mxu0
        %v4225 = vadd.f32 0.0, %v4224
        %v4226 = vpop.f32.mrb[0].mxu0
        %4227 = vmatprep.mubr.f32.mxu0 0.0
        %4228 = vmatmul.mubr.f32.gmra.mrb[0].mxu0 %v4070
        %v4229 = vpop.f32.mrb[0].mxu0
        %v4230 = vadd.f32 0.0, %v4229
        %v4231 = vpop.f32.mrb[0].mxu0
        %4232 = vdwg.mxu0
        %v4233 = vld [vmem:[#allocation5] sm:$0xff]
        %v4234 = vld [vmem:[#allocation5 + $0x8] sm:$0xff]
        %v4235 = vld [vmem:[#allocation5 + $0x10] sm:$0xff]
        %v4236 = vld [vmem:[#allocation5 + $0x18] sm:$0xff]
        %v4237 = vld [vmem:[#allocation5 + $0x20] sm:$0xff]
        %v4238 = vld [vmem:[#allocation5 + $0x28] sm:$0xff]
        %v4239 = vld [vmem:[#allocation5 + $0x30] sm:$0xff]
        %v4240 = vld [vmem:[#allocation5 + $0x38] sm:$0xff]
        %v4241 = vld [vmem:[#allocation5 + $0x40] sm:$0xff]
        %v4242 = vld [vmem:[#allocation5 + $0x48] sm:$0xff]
        %v4243 = vld [vmem:[#allocation5 + $0x50] sm:$0xff]
        %v4244 = vld [vmem:[#allocation5 + $0x58] sm:$0xff]
        %v4245 = vld [vmem:[#allocation5 + $0x60] sm:$0xff]
        %v4246 = vld [vmem:[#allocation5 + $0x68] sm:$0xff]
        %v4247 = vld [vmem:[#allocation5 + $0x70] sm:$0xff]
        %v4248 = vld [vmem:[#allocation5 + $0x78] sm:$0xff]
        %v4249 = vadd.f32 %v4233, %v4155
        %v4250 = vadd.f32 %v4234, %v4160
        %v4251 = vadd.f32 %v4235, %v4165
        %v4252 = vadd.f32 %v4236, %v4170
        %v4253 = vadd.f32 %v4237, %v4175
        %v4254 = vadd.f32 %v4238, %v4180
        %v4255 = vadd.f32 %v4239, %v4185
        %v4256 = vadd.f32 %v4240, %v4190
        %v4257 = vadd.f32 %v4241, %v4195
        %v4258 = vadd.f32 %v4242, %v4200
        %v4259 = vadd.f32 %v4243, %v4205
        %v4260 = vadd.f32 %v4244, %v4210
        %v4261 = vadd.f32 %v4245, %v4215
        %v4262 = vadd.f32 %v4246, %v4220
        %v4263 = vadd.f32 %v4247, %v4225
        %v4264 = vadd.f32 %v4248, %v4230
        %4265 = vst [vmem:[#allocation5] sm:$0xff] %v4249
        %4266 = vst [vmem:[#allocation5 + $0x8] sm:$0xff] %v4250
        %4267 = vst [vmem:[#allocation5 + $0x10] sm:$0xff] %v4251
        %4268 = vst [vmem:[#allocation5 + $0x18] sm:$0xff] %v4252
        %4269 = vst [vmem:[#allocation5 + $0x20] sm:$0xff] %v4253
        %4270 = vst [vmem:[#allocation5 + $0x28] sm:$0xff] %v4254
        %4271 = vst [vmem:[#allocation5 + $0x30] sm:$0xff] %v4255
        %4272 = vst [vmem:[#allocation5 + $0x38] sm:$0xff] %v4256
        %4273 = vst [vmem:[#allocation5 + $0x40] sm:$0xff] %v4257
        %4274 = vst [vmem:[#allocation5 + $0x48] sm:$0xff] %v4258
        %4275 = vst [vmem:[#allocation5 + $0x50] sm:$0xff] %v4259
        %4276 = vst [vmem:[#allocation5 + $0x58] sm:$0xff] %v4260
        %4277 = vst [vmem:[#allocation5 + $0x60] sm:$0xff] %v4261
        %4278 = vst [vmem:[#allocation5 + $0x68] sm:$0xff] %v4262
        %4279 = vst [vmem:[#allocation5 + $0x70] sm:$0xff] %v4263
        %4280 = vst [vmem:[#allocation5 + $0x78] sm:$0xff] %v4264
        %s4281 = scalar_lea.vmem [#allocation3], 48
        %v4282 = vld [vmem:[%s4281] sm:$0xff]
        %v4283 = vld [vmem:[%s4281 + $0x8] sm:$0xff]
        %v4284 = vld [vmem:[%s4281 + $0x18] sm:$0xff]
        %v4285 = vld [vmem:[%s4281 + $0x20] sm:$0xff]
        %v4286 = vld [vmem:[%s4281 + $0x30] sm:$0xff]
        %v4287 = vld [vmem:[%s4281 + $0x38] sm:$0xff]
        %v4288 = vld [vmem:[%s4281 + $0x48] sm:$0xff]
        %v4289 = vld [vmem:[%s4281 + $0x50] sm:$0xff]
        %v4290 = vld [vmem:[%s4281 + $0x60] sm:$0xff]
        %v4291 = vld [vmem:[%s4281 + $0x68] sm:$0xff]
        %v4292 = vld [vmem:[%s4281 + $0x78] sm:$0xff]
        %v4293 = vld [vmem:[%s4281 + $0x80] sm:$0xff]
        %v4294 = vld [vmem:[%s4281 + $0x90] sm:$0xff]
        %v4295 = vld [vmem:[%s4281 + $0x98] sm:$0xff]
        %v4296 = vld [vmem:[%s4281 + $0xa8] sm:$0xff]
        %v4297 = vld [vmem:[%s4281 + $0xb0] sm:$0xff]
        %s4298 = scalar_lea.vmem [#allocation11], 768
        %v4299 = vld [vmem:[%s4298] sm:$0xff]
        %v4300 = vld [vmem:[%s4298 + $0x8] sm:$0xff]
        %v4301 = vld [vmem:[%s4298 + $0x10] sm:$0xff]
        %v4302 = vld [vmem:[%s4298 + $0x18] sm:$0xff]
        %v4303 = vld [vmem:[%s4298 + $0x20] sm:$0xff]
        %v4304 = vld [vmem:[%s4298 + $0x28] sm:$0xff]
        %v4305 = vld [vmem:[%s4298 + $0x30] sm:$0xff]
        %v4306 = vld [vmem:[%s4298 + $0x38] sm:$0xff]
        %v4307 = vld [vmem:[%s4298 + $0x40] sm:$0xff]
        %v4308 = vld [vmem:[%s4298 + $0x48] sm:$0xff]
        %v4309 = vld [vmem:[%s4298 + $0x50] sm:$0xff]
        %v4310 = vld [vmem:[%s4298 + $0x58] sm:$0xff]
        %v4311 = vld [vmem:[%s4298 + $0x60] sm:$0xff]
        %v4312 = vld [vmem:[%s4298 + $0x68] sm:$0xff]
        %v4313 = vld [vmem:[%s4298 + $0x70] sm:$0xff]
        %v4314 = vld [vmem:[%s4298 + $0x78] sm:$0xff]
        %4315 = vmatprep.subr.mxu0 0.0
        %4316 = vmatpush1.msra.mxu0 %v4299
        %4317 = vmatprep.subr.mxu0 0.0
        %4318 = vmatpush1.msra.mxu0 %v4300
        %4319 = vmatprep.subr.mxu0 0.0
        %4320 = vmatpush1.msra.mxu0 %v4301
        %4321 = vmatprep.subr.mxu0 0.0
        %4322 = vmatpush1.msra.mxu0 %v4302
        %4323 = vmatprep.subr.mxu0 0.0
        %4324 = vmatpush1.msra.mxu0 %v4303
        %4325 = vmatprep.subr.mxu0 0.0
        %4326 = vmatpush1.msra.mxu0 %v4304
        %4327 = vmatprep.subr.mxu0 0.0
        %4328 = vmatpush1.msra.mxu0 %v4305
        %4329 = vmatprep.subr.mxu0 0.0
        %4330 = vmatpush1.msra.mxu0 %v4306
        %4331 = vmatprep.subr.mxu0 0.0
        %4332 = vmatpush1.msra.mxu0 %v4307
        %4333 = vmatprep.subr.mxu0 0.0
        %4334 = vmatpush1.msra.mxu0 %v4308
        %4335 = vmatprep.subr.mxu0 0.0
        %4336 = vmatpush1.msra.mxu0 %v4309
        %4337 = vmatprep.subr.mxu0 0.0
        %4338 = vmatpush1.msra.mxu0 %v4310
        %4339 = vmatprep.subr.mxu0 0.0
        %4340 = vmatpush1.msra.mxu0 %v4311
        %4341 = vmatprep.subr.mxu0 0.0
        %4342 = vmatpush1.msra.mxu0 %v4312
        %4343 = vmatprep.subr.mxu0 0.0
        %4344 = vmatpush1.msra.mxu0 %v4313
        %4345 = vmatprep.subr.mxu0 0.0
        %4346 = vmatpush1.msra.mxu0 %v4314
        %4347 = vmatprep.subr.mxu0 0.0
        %4348 = vmatpush1.msra.mxu0 0.0
        %4349 = vmatprep.subr.mxu0 0.0
        %4350 = vmatpush1.msra.mxu0 0.0
        %4351 = vmatprep.subr.mxu0 0.0
        %4352 = vmatpush1.msra.mxu0 0.0
        %4353 = vmatprep.subr.mxu0 0.0
        %4354 = vmatpush1.msra.mxu0 0.0
        %4355 = vmatprep.subr.mxu0 0.0
        %4356 = vmatpush1.msra.mxu0 0.0
        %4357 = vmatprep.subr.mxu0 0.0
        %4358 = vmatpush1.msra.mxu0 0.0
        %4359 = vmatprep.subr.mxu0 0.0
        %4360 = vmatpush1.msra.mxu0 0.0
        %4361 = vmatprep.subr.mxu0 0.0
        %4362 = vmatpush1.msra.mxu0 0.0
        %4363 = vmatprep.subr.mxu0 0.0
        %4364 = vmatpush1.msra.mxu0 0.0
        %4365 = vmatprep.subr.mxu0 0.0
        %4366 = vmatpush1.msra.mxu0 0.0
        %4367 = vmatprep.subr.mxu0 0.0
        %4368 = vmatpush1.msra.mxu0 0.0
        %4369 = vmatprep.subr.mxu0 0.0
        %4370 = vmatpush1.msra.mxu0 0.0
        %4371 = vmatprep.subr.mxu0 0.0
        %4372 = vmatpush1.msra.mxu0 0.0
        %4373 = vmatprep.subr.mxu0 0.0
        %4374 = vmatpush1.msra.mxu0 0.0
        %4375 = vmatprep.subr.mxu0 0.0
        %4376 = vmatpush1.msra.mxu0 0.0
        %4377 = vmatprep.subr.mxu0 0.0
        %4378 = vmatpush1.msra.mxu0 0.0
        %4379 = vmatprep.mubr.f32.mxu0 0.0
        %4380 = vmatmul.mubr.f32.gmra.mrb[0].mxu0 %v4282
        %v4381 = vpop.f32.mrb[0].mxu0
        %v4382 = vadd.f32 0.0, %v4381
        %v4383 = vpop.f32.mrb[0].mxu0
        %4384 = vmatprep.mubr.f32.mxu0 0.0
        %4385 = vmatmul.mubr.f32.gmra.mrb[0].mxu0 %v4283
        %v4386 = vpop.f32.mrb[0].mxu0
        %v4387 = vadd.f32 0.0, %v4386
        %v4388 = vpop.f32.mrb[0].mxu0
        %4389 = vmatprep.mubr.f32.mxu0 0.0
        %4390 = vmatmul.mubr.f32.gmra.mrb[0].mxu0 %v4284
        %v4391 = vpop.f32.mrb[0].mxu0
        %v4392 = vadd.f32 0.0, %v4391
        %v4393 = vpop.f32.mrb[0].mxu0
        %4394 = vmatprep.mubr.f32.mxu0 0.0
        %4395 = vmatmul.mubr.f32.gmra.mrb[0].mxu0 %v4285
        %v4396 = vpop.f32.mrb[0].mxu0
        %v4397 = vadd.f32 0.0, %v4396
        %v4398 = vpop.f32.mrb[0].mxu0
        %4399 = vmatprep.mubr.f32.mxu0 0.0
        %4400 = vmatmul.mubr.f32.gmra.mrb[0].mxu0 %v4286
        %v4401 = vpop.f32.mrb[0].mxu0
        %v4402 = vadd.f32 0.0, %v4401
        %v4403 = vpop.f32.mrb[0].mxu0
        %4404 = vmatprep.mubr.f32.mxu0 0.0
        %4405 = vmatmul.mubr.f32.gmra.mrb[0].mxu0 %v4287
        %v4406 = vpop.f32.mrb[0].mxu0
        %v4407 = vadd.f32 0.0, %v4406
        %v4408 = vpop.f32.mrb[0].mxu0
        %4409 = vmatprep.mubr.f32.mxu0 0.0
        %4410 = vmatmul.mubr.f32.gmra.mrb[0].mxu0 %v4288
        %v4411 = vpop.f32.mrb[0].mxu0
        %v4412 = vadd.f32 0.0, %v4411
        %v4413 = vpop.f32.mrb[0].mxu0
        %4414 = vmatprep.mubr.f32.mxu0 0.0
        %4415 = vmatmul.mubr.f32.gmra.mrb[0].mxu0 %v4289
        %v4416 = vpop.f32.mrb[0].mxu0
        %v4417 = vadd.f32 0.0, %v4416
        %v4418 = vpop.f32.mrb[0].mxu0
        %4419 = vmatprep.mubr.f32.mxu0 0.0
        %4420 = vmatmul.mubr.f32.gmra.mrb[0].mxu0 %v4290
        %v4421 = vpop.f32.mrb[0].mxu0
        %v4422 = vadd.f32 0.0, %v4421
        %v4423 = vpop.f32.mrb[0].mxu0
        %4424 = vmatprep.mubr.f32.mxu0 0.0
        %4425 = vmatmul.mubr.f32.gmra.mrb[0].mxu0 %v4291
        %v4426 = vpop.f32.mrb[0].mxu0
        %v4427 = vadd.f32 0.0, %v4426
        %v4428 = vpop.f32.mrb[0].mxu0
        %4429 = vmatprep.mubr.f32.mxu0 0.0
        %4430 = vmatmul.mubr.f32.gmra.mrb[0].mxu0 %v4292
        %v4431 = vpop.f32.mrb[0].mxu0
        %v4432 = vadd.f32 0.0, %v4431
        %v4433 = vpop.f32.mrb[0].mxu0
        %4434 = vmatprep.mubr.f32.mxu0 0.0
        %4435 = vmatmul.mubr.f32.gmra.mrb[0].mxu0 %v4293
        %v4436 = vpop.f32.mrb[0].mxu0
        %v4437 = vadd.f32 0.0, %v4436
        %v4438 = vpop.f32.mrb[0].mxu0
        %4439 = vmatprep.mubr.f32.mxu0 0.0
        %4440 = vmatmul.mubr.f32.gmra.mrb[0].mxu0 %v4294
        %v4441 = vpop.f32.mrb[0].mxu0
        %v4442 = vadd.f32 0.0, %v4441
        %v4443 = vpop.f32.mrb[0].mxu0
        %4444 = vmatprep.mubr.f32.mxu0 0.0
        %4445 = vmatmul.mubr.f32.gmra.mrb[0].mxu0 %v4295
        %v4446 = vpop.f32.mrb[0].mxu0
        %v4447 = vadd.f32 0.0, %v4446
        %v4448 = vpop.f32.mrb[0].mxu0
        %4449 = vmatprep.mubr.f32.mxu0 0.0
        %4450 = vmatmul.mubr.f32.gmra.mrb[0].mxu0 %v4296
        %v4451 = vpop.f32.mrb[0].mxu0
        %v4452 = vadd.f32 0.0, %v4451
        %v4453 = vpop.f32.mrb[0].mxu0
        %4454 = vmatprep.mubr.f32.mxu0 0.0
        %4455 = vmatmul.mubr.f32.gmra.mrb[0].mxu0 %v4297
        %v4456 = vpop.f32.mrb[0].mxu0
        %v4457 = vadd.f32 0.0, %v4456
        %v4458 = vpop.f32.mrb[0].mxu0
        %4459 = vdwg.mxu0
        %v4460 = vld [vmem:[#allocation5] sm:$0xff]
        %v4461 = vld [vmem:[#allocation5 + $0x8] sm:$0xff]
        %v4462 = vld [vmem:[#allocation5 + $0x10] sm:$0xff]
        %v4463 = vld [vmem:[#allocation5 + $0x18] sm:$0xff]
        %v4464 = vld [vmem:[#allocation5 + $0x20] sm:$0xff]
        %v4465 = vld [vmem:[#allocation5 + $0x28] sm:$0xff]
        %v4466 = vld [vmem:[#allocation5 + $0x30] sm:$0xff]
        %v4467 = vld [vmem:[#allocation5 + $0x38] sm:$0xff]
        %v4468 = vld [vmem:[#allocation5 + $0x40] sm:$0xff]
        %v4469 = vld [vmem:[#allocation5 + $0x48] sm:$0xff]
        %v4470 = vld [vmem:[#allocation5 + $0x50] sm:$0xff]
        %v4471 = vld [vmem:[#allocation5 + $0x58] sm:$0xff]
        %v4472 = vld [vmem:[#allocation5 + $0x60] sm:$0xff]
        %v4473 = vld [vmem:[#allocation5 + $0x68] sm:$0xff]
        %v4474 = vld [vmem:[#allocation5 + $0x70] sm:$0xff]
        %v4475 = vld [vmem:[#allocation5 + $0x78] sm:$0xff]
        %v4476 = vadd.f32 %v4460, %v4382
        %v4477 = vadd.f32 %v4461, %v4387
        %v4478 = vadd.f32 %v4462, %v4392
        %v4479 = vadd.f32 %v4463, %v4397
        %v4480 = vadd.f32 %v4464, %v4402
        %v4481 = vadd.f32 %v4465, %v4407
        %v4482 = vadd.f32 %v4466, %v4412
        %v4483 = vadd.f32 %v4467, %v4417
        %v4484 = vadd.f32 %v4468, %v4422
        %v4485 = vadd.f32 %v4469, %v4427
        %v4486 = vadd.f32 %v4470, %v4432
        %v4487 = vadd.f32 %v4471, %v4437
        %v4488 = vadd.f32 %v4472, %v4442
        %v4489 = vadd.f32 %v4473, %v4447
        %v4490 = vadd.f32 %v4474, %v4452
        %v4491 = vadd.f32 %v4475, %v4457
        %4492 = vst [vmem:[#allocation5] sm:$0xff] %v4476
        %4493 = vst [vmem:[#allocation5 + $0x8] sm:$0xff] %v4477
        %4494 = vst [vmem:[#allocation5 + $0x10] sm:$0xff] %v4478
        %4495 = vst [vmem:[#allocation5 + $0x18] sm:$0xff] %v4479
        %4496 = vst [vmem:[#allocation5 + $0x20] sm:$0xff] %v4480
        %4497 = vst [vmem:[#allocation5 + $0x28] sm:$0xff] %v4481
        %4498 = vst [vmem:[#allocation5 + $0x30] sm:$0xff] %v4482
        %4499 = vst [vmem:[#allocation5 + $0x38] sm:$0xff] %v4483
        %4500 = vst [vmem:[#allocation5 + $0x40] sm:$0xff] %v4484
        %4501 = vst [vmem:[#allocation5 + $0x48] sm:$0xff] %v4485
        %4502 = vst [vmem:[#allocation5 + $0x50] sm:$0xff] %v4486
        %4503 = vst [vmem:[#allocation5 + $0x58] sm:$0xff] %v4487
        %4504 = vst [vmem:[#allocation5 + $0x60] sm:$0xff] %v4488
        %4505 = vst [vmem:[#allocation5 + $0x68] sm:$0xff] %v4489
        %4506 = vst [vmem:[#allocation5 + $0x70] sm:$0xff] %v4490
        %4507 = vst [vmem:[#allocation5 + $0x78] sm:$0xff] %v4491
        %v4508 = vld [vmem:[%s4281 + $0x1] sm:$0xff]
        %v4509 = vld [vmem:[%s4281 + $0x9] sm:$0xff]
        %v4510 = vld [vmem:[%s4281 + $0x19] sm:$0xff]
        %v4511 = vld [vmem:[%s4281 + $0x21] sm:$0xff]
        %v4512 = vld [vmem:[%s4281 + $0x31] sm:$0xff]
        %v4513 = vld [vmem:[%s4281 + $0x39] sm:$0xff]
        %v4514 = vld [vmem:[%s4281 + $0x49] sm:$0xff]
        %v4515 = vld [vmem:[%s4281 + $0x51] sm:$0xff]
        %v4516 = vld [vmem:[%s4281 + $0x61] sm:$0xff]
        %v4517 = vld [vmem:[%s4281 + $0x69] sm:$0xff]
        %v4518 = vld [vmem:[%s4281 + $0x79] sm:$0xff]
        %v4519 = vld [vmem:[%s4281 + $0x81] sm:$0xff]
        %v4520 = vld [vmem:[%s4281 + $0x91] sm:$0xff]
        %v4521 = vld [vmem:[%s4281 + $0x99] sm:$0xff]
        %v4522 = vld [vmem:[%s4281 + $0xa9] sm:$0xff]
        %v4523 = vld [vmem:[%s4281 + $0xb1] sm:$0xff]
        %s4524 = scalar_lea.vmem [#allocation11], 896
        %v4525 = vld [vmem:[%s4524] sm:$0xff]
        %v4526 = vld [vmem:[%s4524 + $0x8] sm:$0xff]
        %v4527 = vld [vmem:[%s4524 + $0x10] sm:$0xff]
        %v4528 = vld [vmem:[%s4524 + $0x18] sm:$0xff]
        %v4529 = vld [vmem:[%s4524 + $0x20] sm:$0xff]
        %v4530 = vld [vmem:[%s4524 + $0x28] sm:$0xff]
        %v4531 = vld [vmem:[%s4524 + $0x30] sm:$0xff]
        %v4532 = vld [vmem:[%s4524 + $0x38] sm:$0xff]
        %v4533 = vld [vmem:[%s4524 + $0x40] sm:$0xff]
        %v4534 = vld [vmem:[%s4524 + $0x48] sm:$0xff]
        %v4535 = vld [vmem:[%s4524 + $0x50] sm:$0xff]
        %v4536 = vld [vmem:[%s4524 + $0x58] sm:$0xff]
        %v4537 = vld [vmem:[%s4524 + $0x60] sm:$0xff]
        %v4538 = vld [vmem:[%s4524 + $0x68] sm:$0xff]
        %v4539 = vld [vmem:[%s4524 + $0x70] sm:$0xff]
        %v4540 = vld [vmem:[%s4524 + $0x78] sm:$0xff]
        %4541 = vmatprep.subr.mxu0 0.0
        %4542 = vmatpush1.msra.mxu0 %v4525
        %4543 = vmatprep.subr.mxu0 0.0
        %4544 = vmatpush1.msra.mxu0 %v4526
        %4545 = vmatprep.subr.mxu0 0.0
        %4546 = vmatpush1.msra.mxu0 %v4527
        %4547 = vmatprep.subr.mxu0 0.0
        %4548 = vmatpush1.msra.mxu0 %v4528
        %4549 = vmatprep.subr.mxu0 0.0
        %4550 = vmatpush1.msra.mxu0 %v4529
        %4551 = vmatprep.subr.mxu0 0.0
        %4552 = vmatpush1.msra.mxu0 %v4530
        %4553 = vmatprep.subr.mxu0 0.0
        %4554 = vmatpush1.msra.mxu0 %v4531
        %4555 = vmatprep.subr.mxu0 0.0
        %4556 = vmatpush1.msra.mxu0 %v4532
        %4557 = vmatprep.subr.mxu0 0.0
        %4558 = vmatpush1.msra.mxu0 %v4533
        %4559 = vmatprep.subr.mxu0 0.0
        %4560 = vmatpush1.msra.mxu0 %v4534
        %4561 = vmatprep.subr.mxu0 0.0
        %4562 = vmatpush1.msra.mxu0 %v4535
        %4563 = vmatprep.subr.mxu0 0.0
        %4564 = vmatpush1.msra.mxu0 %v4536
        %4565 = vmatprep.subr.mxu0 0.0
        %4566 = vmatpush1.msra.mxu0 %v4537
        %4567 = vmatprep.subr.mxu0 0.0
        %4568 = vmatpush1.msra.mxu0 %v4538
        %4569 = vmatprep.subr.mxu0 0.0
        %4570 = vmatpush1.msra.mxu0 %v4539
        %4571 = vmatprep.subr.mxu0 0.0
        %4572 = vmatpush1.msra.mxu0 %v4540
        %4573 = vmatprep.subr.mxu0 0.0
        %4574 = vmatpush1.msra.mxu0 0.0
        %4575 = vmatprep.subr.mxu0 0.0
        %4576 = vmatpush1.msra.mxu0 0.0
        %4577 = vmatprep.subr.mxu0 0.0
        %4578 = vmatpush1.msra.mxu0 0.0
        %4579 = vmatprep.subr.mxu0 0.0
        %4580 = vmatpush1.msra.mxu0 0.0
        %4581 = vmatprep.subr.mxu0 0.0
        %4582 = vmatpush1.msra.mxu0 0.0
        %4583 = vmatprep.subr.mxu0 0.0
        %4584 = vmatpush1.msra.mxu0 0.0
        %4585 = vmatprep.subr.mxu0 0.0
        %4586 = vmatpush1.msra.mxu0 0.0
        %4587 = vmatprep.subr.mxu0 0.0
        %4588 = vmatpush1.msra.mxu0 0.0
        %4589 = vmatprep.subr.mxu0 0.0
        %4590 = vmatpush1.msra.mxu0 0.0
        %4591 = vmatprep.subr.mxu0 0.0
        %4592 = vmatpush1.msra.mxu0 0.0
        %4593 = vmatprep.subr.mxu0 0.0
        %4594 = vmatpush1.msra.mxu0 0.0
        %4595 = vmatprep.subr.mxu0 0.0
        %4596 = vmatpush1.msra.mxu0 0.0
        %4597 = vmatprep.subr.mxu0 0.0
        %4598 = vmatpush1.msra.mxu0 0.0
        %4599 = vmatprep.subr.mxu0 0.0
        %4600 = vmatpush1.msra.mxu0 0.0
        %4601 = vmatprep.subr.mxu0 0.0
        %4602 = vmatpush1.msra.mxu0 0.0
        %4603 = vmatprep.subr.mxu0 0.0
        %4604 = vmatpush1.msra.mxu0 0.0
        %4605 = vmatprep.mubr.f32.mxu0 0.0
        %4606 = vmatmul.mubr.f32.gmra.mrb[0].mxu0 %v4508
        %v4607 = vpop.f32.mrb[0].mxu0
        %v4608 = vadd.f32 0.0, %v4607
        %v4609 = vpop.f32.mrb[0].mxu0
        %4610 = vmatprep.mubr.f32.mxu0 0.0
        %4611 = vmatmul.mubr.f32.gmra.mrb[0].mxu0 %v4509
        %v4612 = vpop.f32.mrb[0].mxu0
        %v4613 = vadd.f32 0.0, %v4612
        %v4614 = vpop.f32.mrb[0].mxu0
        %4615 = vmatprep.mubr.f32.mxu0 0.0
        %4616 = vmatmul.mubr.f32.gmra.mrb[0].mxu0 %v4510
        %v4617 = vpop.f32.mrb[0].mxu0
        %v4618 = vadd.f32 0.0, %v4617
        %v4619 = vpop.f32.mrb[0].mxu0
        %4620 = vmatprep.mubr.f32.mxu0 0.0
        %4621 = vmatmul.mubr.f32.gmra.mrb[0].mxu0 %v4511
        %v4622 = vpop.f32.mrb[0].mxu0
        %v4623 = vadd.f32 0.0, %v4622
        %v4624 = vpop.f32.mrb[0].mxu0
        %4625 = vmatprep.mubr.f32.mxu0 0.0
        %4626 = vmatmul.mubr.f32.gmra.mrb[0].mxu0 %v4512
        %v4627 = vpop.f32.mrb[0].mxu0
        %v4628 = vadd.f32 0.0, %v4627
        %v4629 = vpop.f32.mrb[0].mxu0
        %4630 = vmatprep.mubr.f32.mxu0 0.0
        %4631 = vmatmul.mubr.f32.gmra.mrb[0].mxu0 %v4513
        %v4632 = vpop.f32.mrb[0].mxu0
        %v4633 = vadd.f32 0.0, %v4632
        %v4634 = vpop.f32.mrb[0].mxu0
        %4635 = vmatprep.mubr.f32.mxu0 0.0
        %4636 = vmatmul.mubr.f32.gmra.mrb[0].mxu0 %v4514
        %v4637 = vpop.f32.mrb[0].mxu0
        %v4638 = vadd.f32 0.0, %v4637
        %v4639 = vpop.f32.mrb[0].mxu0
        %4640 = vmatprep.mubr.f32.mxu0 0.0
        %4641 = vmatmul.mubr.f32.gmra.mrb[0].mxu0 %v4515
        %v4642 = vpop.f32.mrb[0].mxu0
        %v4643 = vadd.f32 0.0, %v4642
        %v4644 = vpop.f32.mrb[0].mxu0
        %4645 = vmatprep.mubr.f32.mxu0 0.0
        %4646 = vmatmul.mubr.f32.gmra.mrb[0].mxu0 %v4516
        %v4647 = vpop.f32.mrb[0].mxu0
        %v4648 = vadd.f32 0.0, %v4647
        %v4649 = vpop.f32.mrb[0].mxu0
        %4650 = vmatprep.mubr.f32.mxu0 0.0
        %4651 = vmatmul.mubr.f32.gmra.mrb[0].mxu0 %v4517
        %v4652 = vpop.f32.mrb[0].mxu0
        %v4653 = vadd.f32 0.0, %v4652
        %v4654 = vpop.f32.mrb[0].mxu0
        %4655 = vmatprep.mubr.f32.mxu0 0.0
        %4656 = vmatmul.mubr.f32.gmra.mrb[0].mxu0 %v4518
        %v4657 = vpop.f32.mrb[0].mxu0
        %v4658 = vadd.f32 0.0, %v4657
        %v4659 = vpop.f32.mrb[0].mxu0
        %4660 = vmatprep.mubr.f32.mxu0 0.0
        %4661 = vmatmul.mubr.f32.gmra.mrb[0].mxu0 %v4519
        %v4662 = vpop.f32.mrb[0].mxu0
        %v4663 = vadd.f32 0.0, %v4662
        %v4664 = vpop.f32.mrb[0].mxu0
        %4665 = vmatprep.mubr.f32.mxu0 0.0
        %4666 = vmatmul.mubr.f32.gmra.mrb[0].mxu0 %v4520
        %v4667 = vpop.f32.mrb[0].mxu0
        %v4668 = vadd.f32 0.0, %v4667
        %v4669 = vpop.f32.mrb[0].mxu0
        %4670 = vmatprep.mubr.f32.mxu0 0.0
        %4671 = vmatmul.mubr.f32.gmra.mrb[0].mxu0 %v4521
        %v4672 = vpop.f32.mrb[0].mxu0
        %v4673 = vadd.f32 0.0, %v4672
        %v4674 = vpop.f32.mrb[0].mxu0
        %4675 = vmatprep.mubr.f32.mxu0 0.0
        %4676 = vmatmul.mubr.f32.gmra.mrb[0].mxu0 %v4522
        %v4677 = vpop.f32.mrb[0].mxu0
        %v4678 = vadd.f32 0.0, %v4677
        %v4679 = vpop.f32.mrb[0].mxu0
        %4680 = vmatprep.mubr.f32.mxu0 0.0
        %4681 = vmatmul.mubr.f32.gmra.mrb[0].mxu0 %v4523
        %v4682 = vpop.f32.mrb[0].mxu0
        %v4683 = vadd.f32 0.0, %v4682
        %v4684 = vpop.f32.mrb[0].mxu0
        %4685 = vdwg.mxu0
        %v4686 = vld [vmem:[#allocation5] sm:$0xff]
        %v4687 = vld [vmem:[#allocation5 + $0x8] sm:$0xff]
        %v4688 = vld [vmem:[#allocation5 + $0x10] sm:$0xff]
        %v4689 = vld [vmem:[#allocation5 + $0x18] sm:$0xff]
        %v4690 = vld [vmem:[#allocation5 + $0x20] sm:$0xff]
        %v4691 = vld [vmem:[#allocation5 + $0x28] sm:$0xff]
        %v4692 = vld [vmem:[#allocation5 + $0x30] sm:$0xff]
        %v4693 = vld [vmem:[#allocation5 + $0x38] sm:$0xff]
        %v4694 = vld [vmem:[#allocation5 + $0x40] sm:$0xff]
        %v4695 = vld [vmem:[#allocation5 + $0x48] sm:$0xff]
        %v4696 = vld [vmem:[#allocation5 + $0x50] sm:$0xff]
        %v4697 = vld [vmem:[#allocation5 + $0x58] sm:$0xff]
        %v4698 = vld [vmem:[#allocation5 + $0x60] sm:$0xff]
        %v4699 = vld [vmem:[#allocation5 + $0x68] sm:$0xff]
        %v4700 = vld [vmem:[#allocation5 + $0x70] sm:$0xff]
        %v4701 = vld [vmem:[#allocation5 + $0x78] sm:$0xff]
        %v4702 = vadd.f32 %v4686, %v4608
        %v4703 = vadd.f32 %v4687, %v4613
        %v4704 = vadd.f32 %v4688, %v4618
        %v4705 = vadd.f32 %v4689, %v4623
        %v4706 = vadd.f32 %v4690, %v4628
        %v4707 = vadd.f32 %v4691, %v4633
        %v4708 = vadd.f32 %v4692, %v4638
        %v4709 = vadd.f32 %v4693, %v4643
        %v4710 = vadd.f32 %v4694, %v4648
        %v4711 = vadd.f32 %v4695, %v4653
        %v4712 = vadd.f32 %v4696, %v4658
        %v4713 = vadd.f32 %v4697, %v4663
        %v4714 = vadd.f32 %v4698, %v4668
        %v4715 = vadd.f32 %v4699, %v4673
        %v4716 = vadd.f32 %v4700, %v4678
        %v4717 = vadd.f32 %v4701, %v4683
        %4718 = vst [vmem:[#allocation5] sm:$0xff] %v4702
        %4719 = vst [vmem:[#allocation5 + $0x8] sm:$0xff] %v4703
        %4720 = vst [vmem:[#allocation5 + $0x10] sm:$0xff] %v4704
        %4721 = vst [vmem:[#allocation5 + $0x18] sm:$0xff] %v4705
        %4722 = vst [vmem:[#allocation5 + $0x20] sm:$0xff] %v4706
        %4723 = vst [vmem:[#allocation5 + $0x28] sm:$0xff] %v4707
        %4724 = vst [vmem:[#allocation5 + $0x30] sm:$0xff] %v4708
        %4725 = vst [vmem:[#allocation5 + $0x38] sm:$0xff] %v4709
        %4726 = vst [vmem:[#allocation5 + $0x40] sm:$0xff] %v4710
        %4727 = vst [vmem:[#allocation5 + $0x48] sm:$0xff] %v4711
        %4728 = vst [vmem:[#allocation5 + $0x50] sm:$0xff] %v4712
        %4729 = vst [vmem:[#allocation5 + $0x58] sm:$0xff] %v4713
        %4730 = vst [vmem:[#allocation5 + $0x60] sm:$0xff] %v4714
        %4731 = vst [vmem:[#allocation5 + $0x68] sm:$0xff] %v4715
        %4732 = vst [vmem:[#allocation5 + $0x70] sm:$0xff] %v4716
        %4733 = vst [vmem:[#allocation5 + $0x78] sm:$0xff] %v4717
        %v4734 = vld [vmem:[%s4281 + $0x2] sm:$0xff]
        %v4735 = vld [vmem:[%s4281 + $0xa] sm:$0xff]
        %v4736 = vld [vmem:[%s4281 + $0x1a] sm:$0xff]
        %v4737 = vld [vmem:[%s4281 + $0x22] sm:$0xff]
        %v4738 = vld [vmem:[%s4281 + $0x32] sm:$0xff]
        %v4739 = vld [vmem:[%s4281 + $0x3a] sm:$0xff]
        %v4740 = vld [vmem:[%s4281 + $0x4a] sm:$0xff]
        %v4741 = vld [vmem:[%s4281 + $0x52] sm:$0xff]
        %v4742 = vld [vmem:[%s4281 + $0x62] sm:$0xff]
        %v4743 = vld [vmem:[%s4281 + $0x6a] sm:$0xff]
        %v4744 = vld [vmem:[%s4281 + $0x7a] sm:$0xff]
        %v4745 = vld [vmem:[%s4281 + $0x82] sm:$0xff]
        %v4746 = vld [vmem:[%s4281 + $0x92] sm:$0xff]
        %v4747 = vld [vmem:[%s4281 + $0x9a] sm:$0xff]
        %v4748 = vld [vmem:[%s4281 + $0xaa] sm:$0xff]
        %v4749 = vld [vmem:[%s4281 + $0xb2] sm:$0xff]
        %s4750 = scalar_lea.vmem [#allocation11], 1024
        %v4751 = vld [vmem:[%s4750] sm:$0xff]
        %v4752 = vld [vmem:[%s4750 + $0x8] sm:$0xff]
        %v4753 = vld [vmem:[%s4750 + $0x10] sm:$0xff]
        %v4754 = vld [vmem:[%s4750 + $0x18] sm:$0xff]
        %v4755 = vld [vmem:[%s4750 + $0x20] sm:$0xff]
        %v4756 = vld [vmem:[%s4750 + $0x28] sm:$0xff]
        %v4757 = vld [vmem:[%s4750 + $0x30] sm:$0xff]
        %v4758 = vld [vmem:[%s4750 + $0x38] sm:$0xff]
        %v4759 = vld [vmem:[%s4750 + $0x40] sm:$0xff]
        %v4760 = vld [vmem:[%s4750 + $0x48] sm:$0xff]
        %v4761 = vld [vmem:[%s4750 + $0x50] sm:$0xff]
        %v4762 = vld [vmem:[%s4750 + $0x58] sm:$0xff]
        %v4763 = vld [vmem:[%s4750 + $0x60] sm:$0xff]
        %v4764 = vld [vmem:[%s4750 + $0x68] sm:$0xff]
        %v4765 = vld [vmem:[%s4750 + $0x70] sm:$0xff]
        %v4766 = vld [vmem:[%s4750 + $0x78] sm:$0xff]
        %4767 = vmatprep.subr.mxu0 0.0
        %4768 = vmatpush1.msra.mxu0 %v4751
        %4769 = vmatprep.subr.mxu0 0.0
        %4770 = vmatpush1.msra.mxu0 %v4752
        %4771 = vmatprep.subr.mxu0 0.0
        %4772 = vmatpush1.msra.mxu0 %v4753
        %4773 = vmatprep.subr.mxu0 0.0
        %4774 = vmatpush1.msra.mxu0 %v4754
        %4775 = vmatprep.subr.mxu0 0.0
        %4776 = vmatpush1.msra.mxu0 %v4755
        %4777 = vmatprep.subr.mxu0 0.0
        %4778 = vmatpush1.msra.mxu0 %v4756
        %4779 = vmatprep.subr.mxu0 0.0
        %4780 = vmatpush1.msra.mxu0 %v4757
        %4781 = vmatprep.subr.mxu0 0.0
        %4782 = vmatpush1.msra.mxu0 %v4758
        %4783 = vmatprep.subr.mxu0 0.0
        %4784 = vmatpush1.msra.mxu0 %v4759
        %4785 = vmatprep.subr.mxu0 0.0
        %4786 = vmatpush1.msra.mxu0 %v4760
        %4787 = vmatprep.subr.mxu0 0.0
        %4788 = vmatpush1.msra.mxu0 %v4761
        %4789 = vmatprep.subr.mxu0 0.0
        %4790 = vmatpush1.msra.mxu0 %v4762
        %4791 = vmatprep.subr.mxu0 0.0
        %4792 = vmatpush1.msra.mxu0 %v4763
        %4793 = vmatprep.subr.mxu0 0.0
        %4794 = vmatpush1.msra.mxu0 %v4764
        %4795 = vmatprep.subr.mxu0 0.0
        %4796 = vmatpush1.msra.mxu0 %v4765
        %4797 = vmatprep.subr.mxu0 0.0
        %4798 = vmatpush1.msra.mxu0 %v4766
        %4799 = vmatprep.subr.mxu0 0.0
        %4800 = vmatpush1.msra.mxu0 0.0
        %4801 = vmatprep.subr.mxu0 0.0
        %4802 = vmatpush1.msra.mxu0 0.0
        %4803 = vmatprep.subr.mxu0 0.0
        %4804 = vmatpush1.msra.mxu0 0.0
        %4805 = vmatprep.subr.mxu0 0.0
        %4806 = vmatpush1.msra.mxu0 0.0
        %4807 = vmatprep.subr.mxu0 0.0
        %4808 = vmatpush1.msra.mxu0 0.0
        %4809 = vmatprep.subr.mxu0 0.0
        %4810 = vmatpush1.msra.mxu0 0.0
        %4811 = vmatprep.subr.mxu0 0.0
        %4812 = vmatpush1.msra.mxu0 0.0
        %4813 = vmatprep.subr.mxu0 0.0
        %4814 = vmatpush1.msra.mxu0 0.0
        %4815 = vmatprep.subr.mxu0 0.0
        %4816 = vmatpush1.msra.mxu0 0.0
        %4817 = vmatprep.subr.mxu0 0.0
        %4818 = vmatpush1.msra.mxu0 0.0
        %4819 = vmatprep.subr.mxu0 0.0
        %4820 = vmatpush1.msra.mxu0 0.0
        %4821 = vmatprep.subr.mxu0 0.0
        %4822 = vmatpush1.msra.mxu0 0.0
        %4823 = vmatprep.subr.mxu0 0.0
        %4824 = vmatpush1.msra.mxu0 0.0
        %4825 = vmatprep.subr.mxu0 0.0
        %4826 = vmatpush1.msra.mxu0 0.0
        %4827 = vmatprep.subr.mxu0 0.0
        %4828 = vmatpush1.msra.mxu0 0.0
        %4829 = vmatprep.subr.mxu0 0.0
        %4830 = vmatpush1.msra.mxu0 0.0
        %4831 = vmatprep.mubr.f32.mxu0 0.0
        %4832 = vmatmul.mubr.f32.gmra.mrb[0].mxu0 %v4734
        %v4833 = vpop.f32.mrb[0].mxu0
        %v4834 = vadd.f32 0.0, %v4833
        %v4835 = vpop.f32.mrb[0].mxu0
        %4836 = vmatprep.mubr.f32.mxu0 0.0
        %4837 = vmatmul.mubr.f32.gmra.mrb[0].mxu0 %v4735
        %v4838 = vpop.f32.mrb[0].mxu0
        %v4839 = vadd.f32 0.0, %v4838
        %v4840 = vpop.f32.mrb[0].mxu0
        %4841 = vmatprep.mubr.f32.mxu0 0.0
        %4842 = vmatmul.mubr.f32.gmra.mrb[0].mxu0 %v4736
        %v4843 = vpop.f32.mrb[0].mxu0
        %v4844 = vadd.f32 0.0, %v4843
        %v4845 = vpop.f32.mrb[0].mxu0
        %4846 = vmatprep.mubr.f32.mxu0 0.0
        %4847 = vmatmul.mubr.f32.gmra.mrb[0].mxu0 %v4737
        %v4848 = vpop.f32.mrb[0].mxu0
        %v4849 = vadd.f32 0.0, %v4848
        %v4850 = vpop.f32.mrb[0].mxu0
        %4851 = vmatprep.mubr.f32.mxu0 0.0
        %4852 = vmatmul.mubr.f32.gmra.mrb[0].mxu0 %v4738
        %v4853 = vpop.f32.mrb[0].mxu0
        %v4854 = vadd.f32 0.0, %v4853
        %v4855 = vpop.f32.mrb[0].mxu0
        %4856 = vmatprep.mubr.f32.mxu0 0.0
        %4857 = vmatmul.mubr.f32.gmra.mrb[0].mxu0 %v4739
        %v4858 = vpop.f32.mrb[0].mxu0
        %v4859 = vadd.f32 0.0, %v4858
        %v4860 = vpop.f32.mrb[0].mxu0
        %4861 = vmatprep.mubr.f32.mxu0 0.0
        %4862 = vmatmul.mubr.f32.gmra.mrb[0].mxu0 %v4740
        %v4863 = vpop.f32.mrb[0].mxu0
        %v4864 = vadd.f32 0.0, %v4863
        %v4865 = vpop.f32.mrb[0].mxu0
        %4866 = vmatprep.mubr.f32.mxu0 0.0
        %4867 = vmatmul.mubr.f32.gmra.mrb[0].mxu0 %v4741
        %v4868 = vpop.f32.mrb[0].mxu0
        %v4869 = vadd.f32 0.0, %v4868
        %v4870 = vpop.f32.mrb[0].mxu0
        %4871 = vmatprep.mubr.f32.mxu0 0.0
        %4872 = vmatmul.mubr.f32.gmra.mrb[0].mxu0 %v4742
        %v4873 = vpop.f32.mrb[0].mxu0
        %v4874 = vadd.f32 0.0, %v4873
        %v4875 = vpop.f32.mrb[0].mxu0
        %4876 = vmatprep.mubr.f32.mxu0 0.0
        %4877 = vmatmul.mubr.f32.gmra.mrb[0].mxu0 %v4743
        %v4878 = vpop.f32.mrb[0].mxu0
        %v4879 = vadd.f32 0.0, %v4878
        %v4880 = vpop.f32.mrb[0].mxu0
        %4881 = vmatprep.mubr.f32.mxu0 0.0
        %4882 = vmatmul.mubr.f32.gmra.mrb[0].mxu0 %v4744
        %v4883 = vpop.f32.mrb[0].mxu0
        %v4884 = vadd.f32 0.0, %v4883
        %v4885 = vpop.f32.mrb[0].mxu0
        %4886 = vmatprep.mubr.f32.mxu0 0.0
        %4887 = vmatmul.mubr.f32.gmra.mrb[0].mxu0 %v4745
        %v4888 = vpop.f32.mrb[0].mxu0
        %v4889 = vadd.f32 0.0, %v4888
        %v4890 = vpop.f32.mrb[0].mxu0
        %4891 = vmatprep.mubr.f32.mxu0 0.0
        %4892 = vmatmul.mubr.f32.gmra.mrb[0].mxu0 %v4746
        %v4893 = vpop.f32.mrb[0].mxu0
        %v4894 = vadd.f32 0.0, %v4893
        %v4895 = vpop.f32.mrb[0].mxu0
        %4896 = vmatprep.mubr.f32.mxu0 0.0
        %4897 = vmatmul.mubr.f32.gmra.mrb[0].mxu0 %v4747
        %v4898 = vpop.f32.mrb[0].mxu0
        %v4899 = vadd.f32 0.0, %v4898
        %v4900 = vpop.f32.mrb[0].mxu0
        %4901 = vmatprep.mubr.f32.mxu0 0.0
        %4902 = vmatmul.mubr.f32.gmra.mrb[0].mxu0 %v4748
        %v4903 = vpop.f32.mrb[0].mxu0
        %v4904 = vadd.f32 0.0, %v4903
        %v4905 = vpop.f32.mrb[0].mxu0
        %4906 = vmatprep.mubr.f32.mxu0 0.0
        %4907 = vmatmul.mubr.f32.gmra.mrb[0].mxu0 %v4749
        %v4908 = vpop.f32.mrb[0].mxu0
        %v4909 = vadd.f32 0.0, %v4908
        %v4910 = vpop.f32.mrb[0].mxu0
        %4911 = vdwg.mxu0
        %v4912 = vld [vmem:[#allocation5] sm:$0xff]
        %v4913 = vld [vmem:[#allocation5 + $0x8] sm:$0xff]
        %v4914 = vld [vmem:[#allocation5 + $0x10] sm:$0xff]
        %v4915 = vld [vmem:[#allocation5 + $0x18] sm:$0xff]
        %v4916 = vld [vmem:[#allocation5 + $0x20] sm:$0xff]
        %v4917 = vld [vmem:[#allocation5 + $0x28] sm:$0xff]
        %v4918 = vld [vmem:[#allocation5 + $0x30] sm:$0xff]
        %v4919 = vld [vmem:[#allocation5 + $0x38] sm:$0xff]
        %v4920 = vld [vmem:[#allocation5 + $0x40] sm:$0xff]
        %v4921 = vld [vmem:[#allocation5 + $0x48] sm:$0xff]
        %v4922 = vld [vmem:[#allocation5 + $0x50] sm:$0xff]
        %v4923 = vld [vmem:[#allocation5 + $0x58] sm:$0xff]
        %v4924 = vld [vmem:[#allocation5 + $0x60] sm:$0xff]
        %v4925 = vld [vmem:[#allocation5 + $0x68] sm:$0xff]
        %v4926 = vld [vmem:[#allocation5 + $0x70] sm:$0xff]
        %v4927 = vld [vmem:[#allocation5 + $0x78] sm:$0xff]
        %v4928 = vadd.f32 %v4912, %v4834
        %v4929 = vadd.f32 %v4913, %v4839
        %v4930 = vadd.f32 %v4914, %v4844
        %v4931 = vadd.f32 %v4915, %v4849
        %v4932 = vadd.f32 %v4916, %v4854
        %v4933 = vadd.f32 %v4917, %v4859
        %v4934 = vadd.f32 %v4918, %v4864
        %v4935 = vadd.f32 %v4919, %v4869
        %v4936 = vadd.f32 %v4920, %v4874
        %v4937 = vadd.f32 %v4921, %v4879
        %v4938 = vadd.f32 %v4922, %v4884
        %v4939 = vadd.f32 %v4923, %v4889
        %v4940 = vadd.f32 %v4924, %v4894
        %v4941 = vadd.f32 %v4925, %v4899
        %v4942 = vadd.f32 %v4926, %v4904
        %v4943 = vadd.f32 %v4927, %v4909
        %4944 = vst [vmem:[#allocation5] sm:$0xff] %v4928
        %4945 = vst [vmem:[#allocation5 + $0x8] sm:$0xff] %v4929
        %4946 = vst [vmem:[#allocation5 + $0x10] sm:$0xff] %v4930
        %4947 = vst [vmem:[#allocation5 + $0x18] sm:$0xff] %v4931
        %4948 = vst [vmem:[#allocation5 + $0x20] sm:$0xff] %v4932
        %4949 = vst [vmem:[#allocation5 + $0x28] sm:$0xff] %v4933
        %4950 = vst [vmem:[#allocation5 + $0x30] sm:$0xff] %v4934
        %4951 = vst [vmem:[#allocation5 + $0x38] sm:$0xff] %v4935
        %4952 = vst [vmem:[#allocation5 + $0x40] sm:$0xff] %v4936
        %4953 = vst [vmem:[#allocation5 + $0x48] sm:$0xff] %v4937
        %4954 = vst [vmem:[#allocation5 + $0x50] sm:$0xff] %v4938
        %4955 = vst [vmem:[#allocation5 + $0x58] sm:$0xff] %v4939
        %4956 = vst [vmem:[#allocation5 + $0x60] sm:$0xff] %v4940
        %4957 = vst [vmem:[#allocation5 + $0x68] sm:$0xff] %v4941
        %4958 = vst [vmem:[#allocation5 + $0x70] sm:$0xff] %v4942
        %4959 = vst [vmem:[#allocation5 + $0x78] sm:$0xff] %v4943
        %v4960 = vld [vmem:[#allocation5] sm:$0xff]
        %v4961 = vld [vmem:[#allocation5 + $0x8] sm:$0xff]
        %v4962 = vld [vmem:[#allocation5 + $0x10] sm:$0xff]
        %v4963 = vld [vmem:[#allocation5 + $0x18] sm:$0xff]
        %v4964 = vld [vmem:[#allocation5 + $0x20] sm:$0xff]
        %v4965 = vld [vmem:[#allocation5 + $0x28] sm:$0xff]
        %v4966 = vld [vmem:[#allocation5 + $0x30] sm:$0xff]
        %v4967 = vld [vmem:[#allocation5 + $0x38] sm:$0xff]
        %v4968 = vld [vmem:[#allocation5 + $0x40] sm:$0xff]
        %v4969 = vld [vmem:[#allocation5 + $0x48] sm:$0xff]
        %v4970 = vld [vmem:[#allocation5 + $0x50] sm:$0xff]
        %v4971 = vld [vmem:[#allocation5 + $0x58] sm:$0xff]
        %v4972 = vld [vmem:[#allocation5 + $0x60] sm:$0xff]
        %v4973 = vld [vmem:[#allocation5 + $0x68] sm:$0xff]
        %v4974 = vld [vmem:[#allocation5 + $0x70] sm:$0xff]
        %v4975 = vld [vmem:[#allocation5 + $0x78] sm:$0xff]
        %v4976 = vld [vmem:[%s4] sm:$0x1]
        %v4978 = vlaneseq
        %v4979 = vshrl.u32 %v4978, 7
        %v4980 = vsub.s32 0, %v4979
        %v4981 = vrot.slane %v4976, %v4980
        %v4983 = vadd.f32 %v4960, %v4981
        %v4984 = vadd.f32 %v4961, %v4981
        %v4985 = vadd.f32 %v4962, %v4981
        %v4986 = vadd.f32 %v4963, %v4981
        %v4987 = vadd.f32 %v4964, %v4981
        %v4988 = vadd.f32 %v4965, %v4981
        %v4989 = vadd.f32 %v4966, %v4981
        %v4990 = vadd.f32 %v4967, %v4981
        %v4991 = vadd.f32 %v4968, %v4981
        %v4992 = vadd.f32 %v4969, %v4981
        %v4993 = vadd.f32 %v4970, %v4981
        %v4994 = vadd.f32 %v4971, %v4981
        %v4995 = vadd.f32 %v4972, %v4981
        %v4996 = vadd.f32 %v4973, %v4981
        %v4997 = vadd.f32 %v4974, %v4981
        %v4998 = vadd.f32 %v4975, %v4981
        %v4999 = vxor.u32 %v4983, 2147483648
        %v5000 = vxor.u32 %v4984, 2147483648
        %v5001 = vxor.u32 %v4985, 2147483648
        %v5002 = vxor.u32 %v4986, 2147483648
        %v5003 = vxor.u32 %v4987, 2147483648
        %v5004 = vxor.u32 %v4988, 2147483648
        %v5005 = vxor.u32 %v4989, 2147483648
        %v5006 = vxor.u32 %v4990, 2147483648
        %v5007 = vxor.u32 %v4991, 2147483648
        %v5008 = vxor.u32 %v4992, 2147483648
        %v5009 = vxor.u32 %v4993, 2147483648
        %v5010 = vxor.u32 %v4994, 2147483648
        %v5011 = vxor.u32 %v4995, 2147483648
        %v5012 = vxor.u32 %v4996, 2147483648
        %v5013 = vxor.u32 %v4997, 2147483648
        %v5014 = vxor.u32 %v4998, 2147483648
        %v5015 = vmul.f32 %v4999, 1.442695
        %v5016 = vpow.pop %v5015
        %v5017 = vmul.f32 %v5000, 1.442695
        %v5018 = vpow.pop %v5017
        %v5019 = vmul.f32 %v5001, 1.442695
        %v5020 = vpow.pop %v5019
        %v5021 = vmul.f32 %v5002, 1.442695
        %v5022 = vpow.pop %v5021
        %v5023 = vmul.f32 %v5003, 1.442695
        %v5024 = vpow.pop %v5023
        %v5025 = vmul.f32 %v5004, 1.442695
        %v5026 = vpow.pop %v5025
        %v5027 = vmul.f32 %v5005, 1.442695
        %v5028 = vpow.pop %v5027
        %v5029 = vmul.f32 %v5006, 1.442695
        %v5030 = vpow.pop %v5029
        %v5031 = vmul.f32 %v5007, 1.442695
        %v5032 = vpow.pop %v5031
        %v5033 = vmul.f32 %v5008, 1.442695
        %v5034 = vpow.pop %v5033
        %v5035 = vmul.f32 %v5009, 1.442695
        %v5036 = vpow.pop %v5035
        %v5037 = vmul.f32 %v5010, 1.442695
        %v5038 = vpow.pop %v5037
        %v5039 = vmul.f32 %v5011, 1.442695
        %v5040 = vpow.pop %v5039
        %v5041 = vmul.f32 %v5012, 1.442695
        %v5042 = vpow.pop %v5041
        %v5043 = vmul.f32 %v5013, 1.442695
        %v5044 = vpow.pop %v5043
        %v5045 = vmul.f32 %v5014, 1.442695
        %v5046 = vpow.pop %v5045
        %v5047 = vadd.f32 %v5016, 1.0
        %v5048 = vadd.f32 %v5018, 1.0
        %v5049 = vadd.f32 %v5020, 1.0
        %v5050 = vadd.f32 %v5022, 1.0
        %v5051 = vadd.f32 %v5024, 1.0
        %v5052 = vadd.f32 %v5026, 1.0
        %v5053 = vadd.f32 %v5028, 1.0
        %v5054 = vadd.f32 %v5030, 1.0
        %v5055 = vadd.f32 %v5032, 1.0
        %v5056 = vadd.f32 %v5034, 1.0
        %v5057 = vadd.f32 %v5036, 1.0
        %v5058 = vadd.f32 %v5038, 1.0
        %v5059 = vadd.f32 %v5040, 1.0
        %v5060 = vadd.f32 %v5042, 1.0
        %v5061 = vadd.f32 %v5044, 1.0
        %v5062 = vadd.f32 %v5046, 1.0
        %v5063 = vrcp.pop %v5047
        %v5064 = vmul.f32 1.0, %v5063
        %v5065 = vrcp.pop %v5048
        %v5066 = vmul.f32 1.0, %v5065
        %v5067 = vrcp.pop %v5049
        %v5068 = vmul.f32 1.0, %v5067
        %v5069 = vrcp.pop %v5050
        %v5070 = vmul.f32 1.0, %v5069
        %v5071 = vrcp.pop %v5051
        %v5072 = vmul.f32 1.0, %v5071
        %v5073 = vrcp.pop %v5052
        %v5074 = vmul.f32 1.0, %v5073
        %v5075 = vrcp.pop %v5053
        %v5076 = vmul.f32 1.0, %v5075
        %v5077 = vrcp.pop %v5054
        %v5078 = vmul.f32 1.0, %v5077
        %v5079 = vrcp.pop %v5055
        %v5080 = vmul.f32 1.0, %v5079
        %v5081 = vrcp.pop %v5056
        %v5082 = vmul.f32 1.0, %v5081
        %v5083 = vrcp.pop %v5057
        %v5084 = vmul.f32 1.0, %v5083
        %v5085 = vrcp.pop %v5058
        %v5086 = vmul.f32 1.0, %v5085
        %v5087 = vrcp.pop %v5059
        %v5088 = vmul.f32 1.0, %v5087
        %v5089 = vrcp.pop %v5060
        %v5090 = vmul.f32 1.0, %v5089
        %v5091 = vrcp.pop %v5061
        %v5092 = vmul.f32 1.0, %v5091
        %v5093 = vrcp.pop %v5062
        %v5094 = vmul.f32 1.0, %v5093
        %v5095 = vmul.f32 %v4983, %v5064
        %v5096 = vmul.f32 %v4984, %v5066
        %v5097 = vmul.f32 %v4985, %v5068
        %v5098 = vmul.f32 %v4986, %v5070
        %v5099 = vmul.f32 %v4987, %v5072
        %v5100 = vmul.f32 %v4988, %v5074
        %v5101 = vmul.f32 %v4989, %v5076
        %v5102 = vmul.f32 %v4990, %v5078
        %v5103 = vmul.f32 %v4991, %v5080
        %v5104 = vmul.f32 %v4992, %v5082
        %v5105 = vmul.f32 %v4993, %v5084
        %v5106 = vmul.f32 %v4994, %v5086
        %v5107 = vmul.f32 %v4995, %v5088
        %v5108 = vmul.f32 %v4996, %v5090
        %v5109 = vmul.f32 %v4997, %v5092
        %v5110 = vmul.f32 %v4998, %v5094
        %v5111 = vld [vmem:[%s306 + $0x1] sm:$0xff]
        %v5112 = vld [vmem:[%s306 + $0x9] sm:$0xff]
        %v5113 = vld [vmem:[%s306 + $0x19] sm:$0xff]
        %v5114 = vld [vmem:[%s306 + $0x21] sm:$0xff]
        %v5115 = vld [vmem:[%s306 + $0x31] sm:$0xff]
        %v5116 = vld [vmem:[%s306 + $0x39] sm:$0xff]
        %v5117 = vld [vmem:[%s306 + $0x49] sm:$0xff]
        %v5118 = vld [vmem:[%s306 + $0x51] sm:$0xff]
        %v5119 = vld [vmem:[%s306 + $0x61] sm:$0xff]
        %v5120 = vld [vmem:[%s306 + $0x69] sm:$0xff]
        %v5121 = vld [vmem:[%s306 + $0x79] sm:$0xff]
        %v5122 = vld [vmem:[%s306 + $0x81] sm:$0xff]
        %v5123 = vld [vmem:[%s306 + $0x91] sm:$0xff]
        %v5124 = vld [vmem:[%s306 + $0x99] sm:$0xff]
        %v5125 = vld [vmem:[%s306 + $0xa9] sm:$0xff]
        %v5126 = vld [vmem:[%s306 + $0xb1] sm:$0xff]
        %v5127 = vadd.f32 %v5095, %v5111
        %v5128 = vadd.f32 %v5096, %v5112
        %v5129 = vadd.f32 %v5097, %v5113
        %v5130 = vadd.f32 %v5098, %v5114
        %v5131 = vadd.f32 %v5099, %v5115
        %v5132 = vadd.f32 %v5100, %v5116
        %v5133 = vadd.f32 %v5101, %v5117
        %v5134 = vadd.f32 %v5102, %v5118
        %v5135 = vadd.f32 %v5103, %v5119
        %v5136 = vadd.f32 %v5104, %v5120
        %v5137 = vadd.f32 %v5105, %v5121
        %v5138 = vadd.f32 %v5106, %v5122
        %v5139 = vadd.f32 %v5107, %v5123
        %v5140 = vadd.f32 %v5108, %v5124
        %v5141 = vadd.f32 %v5109, %v5125
        %v5142 = vadd.f32 %v5110, %v5126
        %5143 = vst [vmem:[%s285] sm:$0xff] %v5127
        %5144 = vst [vmem:[%s285 + $0x8] sm:$0xff] %v5128
        %5145 = vst [vmem:[%s285 + $0x10] sm:$0xff] %v5129
        %5146 = vst [vmem:[%s285 + $0x18] sm:$0xff] %v5130
        %5147 = vst [vmem:[%s285 + $0x20] sm:$0xff] %v5131
        %5148 = vst [vmem:[%s285 + $0x28] sm:$0xff] %v5132
        %5149 = vst [vmem:[%s285 + $0x30] sm:$0xff] %v5133
        %5150 = vst [vmem:[%s285 + $0x38] sm:$0xff] %v5134
        %5151 = vst [vmem:[%s285 + $0x40] sm:$0xff] %v5135
        %5152 = vst [vmem:[%s285 + $0x48] sm:$0xff] %v5136
        %5153 = vst [vmem:[%s285 + $0x50] sm:$0xff] %v5137
        %5154 = vst [vmem:[%s285 + $0x58] sm:$0xff] %v5138
        %5155 = vst [vmem:[%s285 + $0x60] sm:$0xff] %v5139
        %5156 = vst [vmem:[%s285 + $0x68] sm:$0xff] %v5140
        %5157 = vst [vmem:[%s285 + $0x70] sm:$0xff] %v5141
        %5158 = vst [vmem:[%s285 + $0x78] sm:$0xff] %v5142
        %s5159 = sand.u32 %s155, 1
        %s5160 = scalar_lea.sflag [#allocation8], %s5159
        %s5161 = sand.u32 %s155, 1
        %s5162 = smul.addr %s5161, 128
        %s5163 = scalar_lea.vmem [#allocation12], %s5162
        // Predicated region
        $region77: #{tpu_custom_call.1} parent=39 // pred_check
          %p5164 = pneg %p165
        $region78: #{tpu_custom_call.1} parent=39 // pred_check_branch
          %5166 = sbr.rel (%p5164) target = $region80
        $region79: #{tpu_custom_call.1} parent=39 // pred_region
          %s5167 = smul.u32 8, %s28
          %s5169 = ssub.s32 2048, 2048
          %5170 = vsyncadd %s5160, %s5169
          %s5171 = smul.addr %s5167, 2
          %s5172 = smul.addr %s27, 32
          %s5173 = sadd.s32 %s5171, %s5172
          %s5174 = smul.addr %s5173, 128
          %s5175 = scalar_lea.hbm %s5, %s5174
          %s5176 = sshll.u32 %s5163, 4
          %s5177 = int_to_ptr.vmem [resolvable:$true] %s5176
          %5182 = dma.vmem_to_hbm [thread:$0]  %s5177, 2048, %s5175, %s5160, 128, 128, 8
        $region80: #{tpu_custom_call.1} parent=39 // pred_fallthru
          _
      $region40: #{tpu_custom_call.1} parent=5 // pred_fallthru
        _
      %p5183 = scmp.le.s32.totalorder 2, %s18
      // Predicated region
      $region81: #{tpu_custom_call.1} parent=5 // pred_check
        %p5184 = pneg %p5183
      $region82: #{tpu_custom_call.1} parent=5 // pred_check_branch
        %5186 = sbr.rel (%p5184) target = $region84
      $region83: #{tpu_custom_call.1} parent=5 // pred_region
        %s5187 = ssub.s32 %s18, 2
        // Predicated region
        $region85: #{tpu_custom_call.1} parent=83 // pred_check
          %p5188 = pneg %p171
        $region86: #{tpu_custom_call.1} parent=83 // pred_check_branch
          %5190 = sbr.rel (%p5188) target = $region88
        $region87: #{tpu_custom_call.1} parent=83 // pred_region
          %s5191 = sand.u32 %s156, 1
          %s5192 = scalar_lea.sflag [#allocation8], %s5191
          %s5193 = sand.u32 %s156, 1
          %s5194 = smul.addr %s5193, 128
          %s5195 = scalar_lea.vmem [#allocation12], %s5194
          %5196 = dma.done %s5192, 2048
        $region88: #{tpu_custom_call.1} parent=83 // pred_fallthru
          _
      $region84: #{tpu_custom_call.1} parent=5 // pred_fallthru
        _
    $region6: #{tpu_custom_call.1} parent=1 // loop_footer
      %s22 = sadd.s32 1, %s18
    $region7: #{tpu_custom_call.1} parent=1 // loop_footer_branch
      %17 = sbr.rel target = $region3
    $region8: #{tpu_custom_call.1} parent=1 // loop_exit
      _
    %5197 = vsyncpa [#allocation7], 1
    %s5198 = scalar_lea.sflag [#allocation7], 1
    %5199 = vsyncpa %s5198, 1
    %5200 = vsyncpa [#allocation10], 1
    %5201 = vsyncpa [#allocation8], 1
    %s5202 = scalar_lea.sflag [#allocation8], 1
    %5203 = vsyncpa %s5202, 1

</llo_original>
